<compile_context>
chip_gen: v6e
topology: v6e:2x2x1
jax: 0.10.0
libtpu: 0.0.40
codegen_flags: <defaults>
</compile_context>

<pallas_src>
import functools

import numpy as np
import jax
import jax.numpy as jnp
from jax import lax
from jax.experimental import pallas as pl
from jax.experimental.pallas import tpu as pltpu


# ----------------------------------------------------------------------------- #
# Model hyper-parameters (AuxEncoder defaults)
# ----------------------------------------------------------------------------- #
INPUT_HEIGHT = 28
INPUT_CHANNELS = 1
Z0_DIM = 32          # AuxEncoder default z0_dim
FC_HIDDEN = 800
KSIZE, STRIDE, PAD = 5, 2, 2
CONV_CHANNELS = (INPUT_CHANNELS, 16, 32, 32)


def conv_out_size(s, k=KSIZE, stride=STRIDE, pad=PAD):
    return (s + 2 * pad - k) // stride + 1


S_H = INPUT_HEIGHT                 # 28
S_H2 = conv_out_size(S_H)          # 14
S_H4 = conv_out_size(S_H2)         # 7
S_H8 = conv_out_size(S_H4)         # 4


def _softplus(x):
    # numerically stable softplus: max(x,0) + log1p(exp(-|x|))
    return jnp.maximum(x, 0.0) + jnp.log1p(jnp.exp(-jnp.abs(x)))


# ----------------------------------------------------------------------------- #
# Fused Pallas kernel: conv1 -> conv2 -> conv3 -> fc -> reparam, BB images/step.
# ----------------------------------------------------------------------------- #
def _aux_encoder_kernel(x_ref, eps_ref,
                        w1_ref, b1_ref, w2_ref, b2_ref, w3_ref, b3_ref,
                        wfc_ref, bfc_ref, wmv_ref, bmv_ref,
                        h4_ref, zml_ref,
                        *, bb, std, z_dim):
    f32 = jnp.float32
    bf16 = jnp.bfloat16

    def conv_softplus(rows_in, h_in, h_out, w_ref, b_ref):
        # rows_in: list of h_in tiles (bb, W_in*C_in) f32
        # returns: list of h_out tiles (bb, W_out*C_out) f32
        bias = b_ref[...]                                   # (1, W_out*C_out)
        accs = [None] * h_out
        for kh in range(KSIZE):
            taps = [(ho, STRIDE * ho + kh - PAD) for ho in range(h_out)]
            taps = [(ho, hi) for ho, hi in taps if 0 <= hi < h_in]   # drop zero-pad taps
            gathered = jnp.concatenate([rows_in[hi] for _, hi in taps], axis=0)
            out = jnp.dot(gathered.astype(bf16), w_ref[kh],
                          preferred_element_type=f32)       # (len(taps)*bb, W_out*C_out)
            for j, (ho, _) in enumerate(taps):
                part = out[j * bb:(j + 1) * bb]
                accs[ho] = part if accs[ho] is None else accs[ho] + part
        return [_softplus(a + bias) for a in accs]

    # input rows: 2x-1 applied per row (virtual zero-padding is handled by the
    # statically dropped out-of-range taps, matching PyTorch's pad-after-affine)
    a_rows = [2.0 * x_ref[hi] - 1.0 for hi in range(S_H)]            # 28 x (bb, 28*C)

    h1 = conv_softplus(a_rows, S_H, S_H2, w1_ref, b1_ref)            # 14 x (bb, 224)
    h2 = conv_softplus(h1, S_H2, S_H4, w2_ref, b2_ref)               #  7 x (bb, 224)
    h3 = conv_softplus(h2, S_H4, S_H8, w3_ref, b3_ref)               #  4 x (bb, 128)

    # FC 512 -> 800: lane-concat the 4 h3 rows to a single (bb, 512) operand.
    # The PyTorch NCHW-flatten permutation is folded into wfc_ref.
    h3_flat = jnp.concatenate(h3, axis=-1).astype(bf16)              # (bb, 512)
    h4 = _softplus(jnp.dot(h3_flat, wfc_ref[...],
                           preferred_element_type=f32) + bfc_ref[...])   # (bb, 800) f32
    h4_ref[...] = h4

    # Fused mu|logvar head (single (800, 2*z) matmul) + reparameterization.
    muv = jnp.dot(h4.astype(bf16), wmv_ref[...],
                  preferred_element_type=f32) + bmv_ref[...]         # (bb, 2*z)
    mu = muv[:, 0:z_dim]
    lv = muv[:, z_dim:2 * z_dim]
    z = mu + std * jnp.exp(0.5 * lv) * eps_ref[...]

    # single lane-dense packed store: [z | mu | logvar | zero-pad] -> (bb, 4*z)
    zml_ref[...] = jnp.concatenate([z, muv, jnp.zeros_like(z)], axis=-1)


# ----------------------------------------------------------------------------- #
# One-time host-side weight preprocessing (plain JAX/numpy glue).
# ----------------------------------------------------------------------------- #
def _selection_matrix(n_out, n_in):
    """S[k, o, i] = 1 iff i == STRIDE*o + k - PAD (tap k of output position o)."""
    S = np.zeros((KSIZE, n_out, n_in), np.float32)
    for k in range(KSIZE):
        for o in range(n_out):
            i = STRIDE * o + k - PAD
            if 0 <= i < n_in:
                S[k, o, i] = 1.0
    return S


def _banded_weight(w_hwio, w_in, w_out):
    """Wrow[kh, w*Cin+ci, wo*Cout+co] = w_hwio[kh, kw, ci, co] with kw = w - STRIDE*wo + PAD."""
    E = np.transpose(_selection_matrix(w_out, w_in), (0, 2, 1))      # (KSIZE, w_in, w_out)
    kk = w_hwio.shape[0]
    cin, cout = w_hwio.shape[2], w_hwio.shape[3]
    wrow = jnp.einsum("kwv,hkio->hwivo", jnp.asarray(E), w_hwio)     # (kh, w, ci, wo, co)
    return wrow.reshape(kk, w_in * cin, w_out * cout)


def init_params(key):
    """Random params in PyTorch-equivalent layouts (conv HWIO, fc (in,out), heads (in,out))."""
    c0, c1, c2, c3 = CONV_CHANNELS
    fc_in = S_H8 * S_H8 * c3
    keys = jax.random.split(key, 12)
    scale = 0.02
    return {
        "w1": scale * jax.random.normal(keys[0], (KSIZE, KSIZE, c0, c1), jnp.float32),
        "b1": scale * jax.random.normal(keys[1], (c1,), jnp.float32),
        "w2": scale * jax.random.normal(keys[2], (KSIZE, KSIZE, c1, c2), jnp.float32),
        "b2": scale * jax.random.normal(keys[3], (c2,), jnp.float32),
        "w3": scale * jax.random.normal(keys[4], (KSIZE, KSIZE, c2, c3), jnp.float32),
        "b3": scale * jax.random.normal(keys[5], (c3,), jnp.float32),
        # fc input axis uses PyTorch's NCHW flatten order: idx = c*s_h8*s_h8 + h*s_h8 + w
        "w_fc": scale * jax.random.normal(keys[6], (fc_in, FC_HIDDEN), jnp.float32),
        "b_fc": scale * jax.random.normal(keys[7], (FC_HIDDEN,), jnp.float32),
        "w_mu": scale * jax.random.normal(keys[8], (FC_HIDDEN, Z0_DIM), jnp.float32),
        "b_mu": scale * jax.random.normal(keys[9], (Z0_DIM,), jnp.float32),
        "w_lv": scale * jax.random.normal(keys[10], (FC_HIDDEN, Z0_DIM), jnp.float32),
        "b_lv": scale * jax.random.normal(keys[11], (Z0_DIM,), jnp.float32),
    }


def prepare_kernel_params(params):
    """Banded conv weights, tiled biases, permuted FC weight, fused head; bf16 matmul operands."""
    c0, c1, c2, c3 = CONV_CHANNELS
    bf16 = jnp.bfloat16
    kp = {
        "w1": _banded_weight(params["w1"], S_H, S_H2).astype(bf16),    # (5, 28, 224)
        "b1": jnp.tile(params["b1"], S_H2).reshape(1, -1),             # (1, 224) f32
        "w2": _banded_weight(params["w2"], S_H2, S_H4).astype(bf16),   # (5, 224, 224)
        "b2": jnp.tile(params["b2"], S_H4).reshape(1, -1),             # (1, 224)
        "w3": _banded_weight(params["w3"], S_H4, S_H8).astype(bf16),   # (5, 224, 128)
        "b3": jnp.tile(params["b3"], S_H8).reshape(1, -1),             # (1, 128)
    }
    # fold the NCHW-flatten permutation into the FC weight:
    # kernel h3 layout index = h*(s_h8*c3) + w*c3 + c ; torch index = c*(s_h8*s_h8) + h*s_h8 + w
    perm = np.zeros((S_H8 * S_H8 * c3,), np.int32)
    for h in range(S_H8):
        for w in range(S_H8):
            for c in range(c3):
                perm[h * (S_H8 * c3) + w * c3 + c] = c * (S_H8 * S_H8) + h * S_H8 + w
    kp["wfc"] = params["w_fc"][jnp.asarray(perm), :].astype(bf16)      # (512, 800)
    kp["bfc"] = params["b_fc"].reshape(1, -1)                          # (1, 800) f32
    # fused mu|logvar head
    kp["wmv"] = jnp.concatenate([params["w_mu"], params["w_lv"]], axis=1).astype(bf16)  # (800, 64)
    kp["bmv"] = jnp.concatenate([params["b_mu"], params["b_lv"]]).reshape(1, -1)        # (1, 64)
    return kp


# ----------------------------------------------------------------------------- #
# Forward wrapper
# ----------------------------------------------------------------------------- #
@functools.partial(jax.jit, static_argnames=("std", "block_batch"))
def aux_encoder_forward(kp, x, eps, std=1.0, block_batch=64):
    """x: (B, C, H, H) NCHW, eps: (B, Z0_DIM).  Returns (z, mu, logvar, h4)."""
    B = x.shape[0]
    bb = int(block_batch)
    assert bb % 8 == 0, "block_batch must be a multiple of 8 (sublane tile)"
    c0 = INPUT_CHANNELS
    n_blocks = -(-B // bb)
    B_pad = n_blocks * bb

    # NCHW -> (H, B, W*C): image rows on the leading axis, batch on sublanes,
    # width*channels on lanes (so batch is the matmul M axis in the kernel).
    x4 = x.reshape(B, c0, S_H, S_H)
    x3 = jnp.transpose(x4, (2, 0, 3, 1)).reshape(S_H, B, S_H * c0)
    eps2 = eps
    if B_pad != B:
        x3 = jnp.pad(x3, ((0, 0), (0, B_pad - B), (0, 0)))
        eps2 = jnp.pad(eps, ((0, B_pad - B), (0, 0)))

    kernel = functools.partial(_aux_encoder_kernel, bb=bb, std=float(std), z_dim=Z0_DIM)

    def const_spec(a):
        nd = a.ndim
        return pl.BlockSpec(a.shape, lambda i, _nd=nd: (0,) * _nd)

    in_specs = [
        pl.BlockSpec((S_H, bb, S_H * c0), lambda i: (0, i, 0)),   # x block
        pl.BlockSpec((bb, Z0_DIM), lambda i: (i, 0)),             # eps block
        const_spec(kp["w1"]), const_spec(kp["b1"]),
        const_spec(kp["w2"]), const_spec(kp["b2"]),
        const_spec(kp["w3"]), const_spec(kp["b3"]),
        const_spec(kp["wfc"]), const_spec(kp["bfc"]),
        const_spec(kp["wmv"]), const_spec(kp["bmv"]),
    ]
    out_specs = (
        pl.BlockSpec((bb, FC_HIDDEN), lambda i: (i, 0)),          # h4
        pl.BlockSpec((bb, 4 * Z0_DIM), lambda i: (i, 0)),         # packed [z|mu|lv|pad]
    )
    out_shape = (
        jax.ShapeDtypeStruct((B_pad, FC_HIDDEN), jnp.float32),
        jax.ShapeDtypeStruct((B_pad, 4 * Z0_DIM), jnp.float32),
    )

    h4, zml = pl.pallas_call(
        kernel,
        grid=(n_blocks,),
        in_specs=in_specs,
        out_specs=out_specs,
        out_shape=out_shape,
        compiler_params=pltpu.CompilerParams(
            dimension_semantics=("parallel",),
            vmem_limit_bytes=48 * 1024 * 1024),
    )(x3, eps2,
      kp["w1"], kp["b1"], kp["w2"], kp["b2"], kp["w3"], kp["b3"],
      kp["wfc"], kp["bfc"], kp["wmv"], kp["bmv"])

    h4 = h4[:B]
    zml = zml[:B]
    z = zml[:, 0:Z0_DIM]
    mu = zml[:, Z0_DIM:2 * Z0_DIM]
    logvar = zml[:, 2 * Z0_DIM:3 * Z0_DIM]
    return z, mu, logvar, h4


# ----------------------------------------------------------------------------- #
# Plain-JAX reference (for correctness validation only)
# ----------------------------------------------------------------------------- #
def reference_forward(params, x, eps, std=1.0):
    B = x.shape[0]
    xin = 2.0 * x.reshape(B, INPUT_CHANNELS, S_H, S_H) - 1.0
    xin = jnp.transpose(xin, (0, 2, 3, 1))                     # NHWC

    def conv(v, w, b):
        out = lax.conv_general_dilated(
            v, w, (STRIDE, STRIDE), ((PAD, PAD), (PAD, PAD)),
            dimension_numbers=("NHWC", "HWIO", "NHWC"))
        return jax.nn.softplus(out + b)

    h1 = conv(xin, params["w1"], params["b1"])
    h2 = conv(h1, params["w2"], params["b2"])
    h3 = conv(h2, params["w3"], params["b3"])
    h3f = jnp.transpose(h3, (0, 3, 1, 2)).reshape(B, -1)       # PyTorch NCHW flatten
    h4 = jax.nn.softplus(h3f @ params["w_fc"] + params["b_fc"])
    mu = h4 @ params["w_mu"] + params["b_mu"]
    lv = h4 @ params["w_lv"] + params["b_lv"]
    z = mu + std * jnp.exp(0.5 * lv) * eps
    return z, mu, lv, h4


# ----------------------------------------------------------------------------- #
if __name__ == "__main__":
    key = jax.random.PRNGKey(0)
    k_params, k_x, k_eps = jax.random.split(key, 3)

    params = init_params(k_params)
    kparams = prepare_kernel_params(params)

    batch_size = 16          # 2 grid steps of 8 images -> exercises multi-step grid
    block_batch = 8
    x = jax.random.uniform(
        k_x, (batch_size, INPUT_CHANNELS, INPUT_HEIGHT, INPUT_HEIGHT), dtype=jnp.float32)
    # torch.randn_like noise is supplied externally for determinism
    eps = jax.random.normal(k_eps, (batch_size, Z0_DIM), dtype=jnp.float32)

    z, mu, logvar, h4 = aux_encoder_forward(kparams, x, eps, std=1.0, block_batch=block_batch)
    jax.block_until_ready((z, mu, logvar, h4))

    assert z.shape == (batch_size, Z0_DIM)
    assert mu.shape == (batch_size, Z0_DIM)
    assert logvar.shape == (batch_size, Z0_DIM)
    assert h4.shape == (batch_size, FC_HIDDEN)

    # validate against a plain-JAX reference of the same forward.  The kernel uses
    # bf16 MXU operands (f32 accumulate), so compare with a mixed rel/abs metric.
    z_r, mu_r, lv_r, h4_r = reference_forward(params, x, eps, std=1.0)

    def max_err(a, b):
        return float(jnp.max(jnp.abs(a - b) / (1.0 + jnp.abs(b))))

    for name, a, b in (("z", z, z_r), ("mu", mu, mu_r),
                       ("logvar", logvar, lv_r), ("h4", h4, h4_r)):
        err = max_err(a, b)
        if err > 5e-2:
            raise AssertionError(f"{name} mismatch vs reference: max rel/abs err {err}")

    print("KERNEL_OK")
</pallas_src>

<mosaic_0001>
module attributes {stable_mosaic.version = 11 : i64} {
  func.func @_aux_encoder_kernel(%arg0: i32, %arg1: memref<28x8x28xf32, #tpu.memory_space<vmem>>, %arg2: memref<8x32xf32, #tpu.memory_space<vmem>>, %arg3: memref<5x28x224xbf16, #tpu.memory_space<vmem>>, %arg4: memref<1x224xf32, #tpu.memory_space<vmem>>, %arg5: memref<5x224x224xbf16, #tpu.memory_space<vmem>>, %arg6: memref<1x224xf32, #tpu.memory_space<vmem>>, %arg7: memref<5x224x128xbf16, #tpu.memory_space<vmem>>, %arg8: memref<1x128xf32, #tpu.memory_space<vmem>>, %arg9: memref<512x800xbf16, #tpu.memory_space<vmem>>, %arg10: memref<1x800xf32, #tpu.memory_space<vmem>>, %arg11: memref<800x64xbf16, #tpu.memory_space<vmem>>, %arg12: memref<1x64xf32, #tpu.memory_space<vmem>>, %arg13: memref<8x800xf32, #tpu.memory_space<vmem>>, %arg14: memref<8x128xf32, #tpu.memory_space<vmem>>) attributes {dimension_semantics = [#tpu.dimension_semantics<parallel>], iteration_bounds = array<i64: 2>, scalar_prefetch = 0 : i64, scratch_operands = 0 : i64, tpu.core_type = #tpu.core_type<tc>, window_params = [{transform_indices = @transform_0, window_bounds = array<i64: 28, 8, 28>}, {transform_indices = @transform_1, window_bounds = array<i64: 8, 32>}, {pipeline_mode = #tpu.pipeline_mode<synchronous>, transform_indices = @transform_2, window_bounds = array<i64: 5, 28, 224>}, {pipeline_mode = #tpu.pipeline_mode<synchronous>, transform_indices = @transform_3, window_bounds = array<i64: 1, 224>}, {pipeline_mode = #tpu.pipeline_mode<synchronous>, transform_indices = @transform_4, window_bounds = array<i64: 5, 224, 224>}, {pipeline_mode = #tpu.pipeline_mode<synchronous>, transform_indices = @transform_5, window_bounds = array<i64: 1, 224>}, {pipeline_mode = #tpu.pipeline_mode<synchronous>, transform_indices = @transform_6, window_bounds = array<i64: 5, 224, 128>}, {pipeline_mode = #tpu.pipeline_mode<synchronous>, transform_indices = @transform_7, window_bounds = array<i64: 1, 128>}, {pipeline_mode = #tpu.pipeline_mode<synchronous>, transform_indices = @transform_8, window_bounds = array<i64: 512, 800>}, {pipeline_mode = #tpu.pipeline_mode<synchronous>, transform_indices = @transform_9, window_bounds = array<i64: 1, 800>}, {pipeline_mode = #tpu.pipeline_mode<synchronous>, transform_indices = @transform_10, window_bounds = array<i64: 800, 64>}, {pipeline_mode = #tpu.pipeline_mode<synchronous>, transform_indices = @transform_11, window_bounds = array<i64: 1, 64>}, {transform_indices = @transform_12, window_bounds = array<i64: 8, 800>}, {transform_indices = @transform_13, window_bounds = array<i64: 8, 128>}]} {
    %c0 = arith.constant 0 : index
    %c0_0 = arith.constant 0 : index
    %c0_1 = arith.constant 0 : index
    %0 = vector.load %arg1[%c0, %c0_0, %c0_1] : memref<28x8x28xf32, #tpu.memory_space<vmem>>, vector<1x8x28xf32>
    %1 = vector.shape_cast %0 : vector<1x8x28xf32> to vector<8x28xf32>
    %cst = arith.constant 2.000000e+00 : f32
    %2 = vector.broadcast %cst : f32 to vector<8x28xf32>
    %3 = arith.mulf %2, %1 : vector<8x28xf32>
    %cst_2 = arith.constant 1.000000e+00 : f32
    %4 = vector.broadcast %cst_2 : f32 to vector<8x28xf32>
    %5 = arith.subf %3, %4 : vector<8x28xf32>
    %c1 = arith.constant 1 : index
    %c0_3 = arith.constant 0 : index
    %c0_4 = arith.constant 0 : index
    %6 = vector.load %arg1[%c1, %c0_3, %c0_4] : memref<28x8x28xf32, #tpu.memory_space<vmem>>, vector<1x8x28xf32>
    %7 = vector.shape_cast %6 : vector<1x8x28xf32> to vector<8x28xf32>
    %cst_5 = arith.constant 2.000000e+00 : f32
    %8 = vector.broadcast %cst_5 : f32 to vector<8x28xf32>
    %9 = arith.mulf %8, %7 : vector<8x28xf32>
    %cst_6 = arith.constant 1.000000e+00 : f32
    %10 = vector.broadcast %cst_6 : f32 to vector<8x28xf32>
    %11 = arith.subf %9, %10 : vector<8x28xf32>
    %c2 = arith.constant 2 : index
    %c0_7 = arith.constant 0 : index
    %c0_8 = arith.constant 0 : index
    %12 = vector.load %arg1[%c2, %c0_7, %c0_8] : memref<28x8x28xf32, #tpu.memory_space<vmem>>, vector<1x8x28xf32>
    %13 = vector.shape_cast %12 : vector<1x8x28xf32> to vector<8x28xf32>
    %cst_9 = arith.constant 2.000000e+00 : f32
    %14 = vector.broadcast %cst_9 : f32 to vector<8x28xf32>
    %15 = arith.mulf %14, %13 : vector<8x28xf32>
    %cst_10 = arith.constant 1.000000e+00 : f32
    %16 = vector.broadcast %cst_10 : f32 to vector<8x28xf32>
    %17 = arith.subf %15, %16 : vector<8x28xf32>
    %c3 = arith.constant 3 : index
    %c0_11 = arith.constant 0 : index
    %c0_12 = arith.constant 0 : index
    %18 = vector.load %arg1[%c3, %c0_11, %c0_12] : memref<28x8x28xf32, #tpu.memory_space<vmem>>, vector<1x8x28xf32>
    %19 = vector.shape_cast %18 : vector<1x8x28xf32> to vector<8x28xf32>
    %cst_13 = arith.constant 2.000000e+00 : f32
    %20 = vector.broadcast %cst_13 : f32 to vector<8x28xf32>
    %21 = arith.mulf %20, %19 : vector<8x28xf32>
    %cst_14 = arith.constant 1.000000e+00 : f32
    %22 = vector.broadcast %cst_14 : f32 to vector<8x28xf32>
    %23 = arith.subf %21, %22 : vector<8x28xf32>
    %c4 = arith.constant 4 : index
    %c0_15 = arith.constant 0 : index
    %c0_16 = arith.constant 0 : index
    %24 = vector.load %arg1[%c4, %c0_15, %c0_16] : memref<28x8x28xf32, #tpu.memory_space<vmem>>, vector<1x8x28xf32>
    %25 = vector.shape_cast %24 : vector<1x8x28xf32> to vector<8x28xf32>
    %cst_17 = arith.constant 2.000000e+00 : f32
    %26 = vector.broadcast %cst_17 : f32 to vector<8x28xf32>
    %27 = arith.mulf %26, %25 : vector<8x28xf32>
    %cst_18 = arith.constant 1.000000e+00 : f32
    %28 = vector.broadcast %cst_18 : f32 to vector<8x28xf32>
    %29 = arith.subf %27, %28 : vector<8x28xf32>
    %c5 = arith.constant 5 : index
    %c0_19 = arith.constant 0 : index
    %c0_20 = arith.constant 0 : index
    %30 = vector.load %arg1[%c5, %c0_19, %c0_20] : memref<28x8x28xf32, #tpu.memory_space<vmem>>, vector<1x8x28xf32>
    %31 = vector.shape_cast %30 : vector<1x8x28xf32> to vector<8x28xf32>
    %cst_21 = arith.constant 2.000000e+00 : f32
    %32 = vector.broadcast %cst_21 : f32 to vector<8x28xf32>
    %33 = arith.mulf %32, %31 : vector<8x28xf32>
    %cst_22 = arith.constant 1.000000e+00 : f32
    %34 = vector.broadcast %cst_22 : f32 to vector<8x28xf32>
    %35 = arith.subf %33, %34 : vector<8x28xf32>
    %c6 = arith.constant 6 : index
    %c0_23 = arith.constant 0 : index
    %c0_24 = arith.constant 0 : index
    %36 = vector.load %arg1[%c6, %c0_23, %c0_24] : memref<28x8x28xf32, #tpu.memory_space<vmem>>, vector<1x8x28xf32>
    %37 = vector.shape_cast %36 : vector<1x8x28xf32> to vector<8x28xf32>
    %cst_25 = arith.constant 2.000000e+00 : f32
    %38 = vector.broadcast %cst_25 : f32 to vector<8x28xf32>
    %39 = arith.mulf %38, %37 : vector<8x28xf32>
    %cst_26 = arith.constant 1.000000e+00 : f32
    %40 = vector.broadcast %cst_26 : f32 to vector<8x28xf32>
    %41 = arith.subf %39, %40 : vector<8x28xf32>
    %c7 = arith.constant 7 : index
    %c0_27 = arith.constant 0 : index
    %c0_28 = arith.constant 0 : index
    %42 = vector.load %arg1[%c7, %c0_27, %c0_28] : memref<28x8x28xf32, #tpu.memory_space<vmem>>, vector<1x8x28xf32>
    %43 = vector.shape_cast %42 : vector<1x8x28xf32> to vector<8x28xf32>
    %cst_29 = arith.constant 2.000000e+00 : f32
    %44 = vector.broadcast %cst_29 : f32 to vector<8x28xf32>
    %45 = arith.mulf %44, %43 : vector<8x28xf32>
    %cst_30 = arith.constant 1.000000e+00 : f32
    %46 = vector.broadcast %cst_30 : f32 to vector<8x28xf32>
    %47 = arith.subf %45, %46 : vector<8x28xf32>
    %c8 = arith.constant 8 : index
    %c0_31 = arith.constant 0 : index
    %c0_32 = arith.constant 0 : index
    %48 = vector.load %arg1[%c8, %c0_31, %c0_32] : memref<28x8x28xf32, #tpu.memory_space<vmem>>, vector<1x8x28xf32>
    %49 = vector.shape_cast %48 : vector<1x8x28xf32> to vector<8x28xf32>
    %cst_33 = arith.constant 2.000000e+00 : f32
    %50 = vector.broadcast %cst_33 : f32 to vector<8x28xf32>
    %51 = arith.mulf %50, %49 : vector<8x28xf32>
    %cst_34 = arith.constant 1.000000e+00 : f32
    %52 = vector.broadcast %cst_34 : f32 to vector<8x28xf32>
    %53 = arith.subf %51, %52 : vector<8x28xf32>
    %c9 = arith.constant 9 : index
    %c0_35 = arith.constant 0 : index
    %c0_36 = arith.constant 0 : index
    %54 = vector.load %arg1[%c9, %c0_35, %c0_36] : memref<28x8x28xf32, #tpu.memory_space<vmem>>, vector<1x8x28xf32>
    %55 = vector.shape_cast %54 : vector<1x8x28xf32> to vector<8x28xf32>
    %cst_37 = arith.constant 2.000000e+00 : f32
    %56 = vector.broadcast %cst_37 : f32 to vector<8x28xf32>
    %57 = arith.mulf %56, %55 : vector<8x28xf32>
    %cst_38 = arith.constant 1.000000e+00 : f32
    %58 = vector.broadcast %cst_38 : f32 to vector<8x28xf32>
    %59 = arith.subf %57, %58 : vector<8x28xf32>
    %c10 = arith.constant 10 : index
    %c0_39 = arith.constant 0 : index
    %c0_40 = arith.constant 0 : index
    %60 = vector.load %arg1[%c10, %c0_39, %c0_40] : memref<28x8x28xf32, #tpu.memory_space<vmem>>, vector<1x8x28xf32>
    %61 = vector.shape_cast %60 : vector<1x8x28xf32> to vector<8x28xf32>
    %cst_41 = arith.constant 2.000000e+00 : f32
    %62 = vector.broadcast %cst_41 : f32 to vector<8x28xf32>
    %63 = arith.mulf %62, %61 : vector<8x28xf32>
    %cst_42 = arith.constant 1.000000e+00 : f32
    %64 = vector.broadcast %cst_42 : f32 to vector<8x28xf32>
    %65 = arith.subf %63, %64 : vector<8x28xf32>
    %c11 = arith.constant 11 : index
    %c0_43 = arith.constant 0 : index
    %c0_44 = arith.constant 0 : index
    %66 = vector.load %arg1[%c11, %c0_43, %c0_44] : memref<28x8x28xf32, #tpu.memory_space<vmem>>, vector<1x8x28xf32>
    %67 = vector.shape_cast %66 : vector<1x8x28xf32> to vector<8x28xf32>
    %cst_45 = arith.constant 2.000000e+00 : f32
    %68 = vector.broadcast %cst_45 : f32 to vector<8x28xf32>
    %69 = arith.mulf %68, %67 : vector<8x28xf32>
    %cst_46 = arith.constant 1.000000e+00 : f32
    %70 = vector.broadcast %cst_46 : f32 to vector<8x28xf32>
    %71 = arith.subf %69, %70 : vector<8x28xf32>
    %c12 = arith.constant 12 : index
    %c0_47 = arith.constant 0 : index
    %c0_48 = arith.constant 0 : index
    %72 = vector.load %arg1[%c12, %c0_47, %c0_48] : memref<28x8x28xf32, #tpu.memory_space<vmem>>, vector<1x8x28xf32>
    %73 = vector.shape_cast %72 : vector<1x8x28xf32> to vector<8x28xf32>
    %cst_49 = arith.constant 2.000000e+00 : f32
    %74 = vector.broadcast %cst_49 : f32 to vector<8x28xf32>
    %75 = arith.mulf %74, %73 : vector<8x28xf32>
    %cst_50 = arith.constant 1.000000e+00 : f32
    %76 = vector.broadcast %cst_50 : f32 to vector<8x28xf32>
    %77 = arith.subf %75, %76 : vector<8x28xf32>
    %c13 = arith.constant 13 : index
    %c0_51 = arith.constant 0 : index
    %c0_52 = arith.constant 0 : index
    %78 = vector.load %arg1[%c13, %c0_51, %c0_52] : memref<28x8x28xf32, #tpu.memory_space<vmem>>, vector<1x8x28xf32>
    %79 = vector.shape_cast %78 : vector<1x8x28xf32> to vector<8x28xf32>
    %cst_53 = arith.constant 2.000000e+00 : f32
    %80 = vector.broadcast %cst_53 : f32 to vector<8x28xf32>
    %81 = arith.mulf %80, %79 : vector<8x28xf32>
    %cst_54 = arith.constant 1.000000e+00 : f32
    %82 = vector.broadcast %cst_54 : f32 to vector<8x28xf32>
    %83 = arith.subf %81, %82 : vector<8x28xf32>
    %c14 = arith.constant 14 : index
    %c0_55 = arith.constant 0 : index
    %c0_56 = arith.constant 0 : index
    %84 = vector.load %arg1[%c14, %c0_55, %c0_56] : memref<28x8x28xf32, #tpu.memory_space<vmem>>, vector<1x8x28xf32>
    %85 = vector.shape_cast %84 : vector<1x8x28xf32> to vector<8x28xf32>
    %cst_57 = arith.constant 2.000000e+00 : f32
    %86 = vector.broadcast %cst_57 : f32 to vector<8x28xf32>
    %87 = arith.mulf %86, %85 : vector<8x28xf32>
    %cst_58 = arith.constant 1.000000e+00 : f32
    %88 = vector.broadcast %cst_58 : f32 to vector<8x28xf32>
    %89 = arith.subf %87, %88 : vector<8x28xf32>
    %c15 = arith.constant 15 : index
    %c0_59 = arith.constant 0 : index
    %c0_60 = arith.constant 0 : index
    %90 = vector.load %arg1[%c15, %c0_59, %c0_60] : memref<28x8x28xf32, #tpu.memory_space<vmem>>, vector<1x8x28xf32>
    %91 = vector.shape_cast %90 : vector<1x8x28xf32> to vector<8x28xf32>
    %cst_61 = arith.constant 2.000000e+00 : f32
    %92 = vector.broadcast %cst_61 : f32 to vector<8x28xf32>
    %93 = arith.mulf %92, %91 : vector<8x28xf32>
    %cst_62 = arith.constant 1.000000e+00 : f32
    %94 = vector.broadcast %cst_62 : f32 to vector<8x28xf32>
    %95 = arith.subf %93, %94 : vector<8x28xf32>
    %c16 = arith.constant 16 : index
    %c0_63 = arith.constant 0 : index
    %c0_64 = arith.constant 0 : index
    %96 = vector.load %arg1[%c16, %c0_63, %c0_64] : memref<28x8x28xf32, #tpu.memory_space<vmem>>, vector<1x8x28xf32>
    %97 = vector.shape_cast %96 : vector<1x8x28xf32> to vector<8x28xf32>
    %cst_65 = arith.constant 2.000000e+00 : f32
    %98 = vector.broadcast %cst_65 : f32 to vector<8x28xf32>
    %99 = arith.mulf %98, %97 : vector<8x28xf32>
    %cst_66 = arith.constant 1.000000e+00 : f32
    %100 = vector.broadcast %cst_66 : f32 to vector<8x28xf32>
    %101 = arith.subf %99, %100 : vector<8x28xf32>
    %c17 = arith.constant 17 : index
    %c0_67 = arith.constant 0 : index
    %c0_68 = arith.constant 0 : index
    %102 = vector.load %arg1[%c17, %c0_67, %c0_68] : memref<28x8x28xf32, #tpu.memory_space<vmem>>, vector<1x8x28xf32>
    %103 = vector.shape_cast %102 : vector<1x8x28xf32> to vector<8x28xf32>
    %cst_69 = arith.constant 2.000000e+00 : f32
    %104 = vector.broadcast %cst_69 : f32 to vector<8x28xf32>
    %105 = arith.mulf %104, %103 : vector<8x28xf32>
    %cst_70 = arith.constant 1.000000e+00 : f32
    %106 = vector.broadcast %cst_70 : f32 to vector<8x28xf32>
    %107 = arith.subf %105, %106 : vector<8x28xf32>
    %c18 = arith.constant 18 : index
    %c0_71 = arith.constant 0 : index
    %c0_72 = arith.constant 0 : index
    %108 = vector.load %arg1[%c18, %c0_71, %c0_72] : memref<28x8x28xf32, #tpu.memory_space<vmem>>, vector<1x8x28xf32>
    %109 = vector.shape_cast %108 : vector<1x8x28xf32> to vector<8x28xf32>
    %cst_73 = arith.constant 2.000000e+00 : f32
    %110 = vector.broadcast %cst_73 : f32 to vector<8x28xf32>
    %111 = arith.mulf %110, %109 : vector<8x28xf32>
    %cst_74 = arith.constant 1.000000e+00 : f32
    %112 = vector.broadcast %cst_74 : f32 to vector<8x28xf32>
    %113 = arith.subf %111, %112 : vector<8x28xf32>
    %c19 = arith.constant 19 : index
    %c0_75 = arith.constant 0 : index
    %c0_76 = arith.constant 0 : index
    %114 = vector.load %arg1[%c19, %c0_75, %c0_76] : memref<28x8x28xf32, #tpu.memory_space<vmem>>, vector<1x8x28xf32>
    %115 = vector.shape_cast %114 : vector<1x8x28xf32> to vector<8x28xf32>
    %cst_77 = arith.constant 2.000000e+00 : f32
    %116 = vector.broadcast %cst_77 : f32 to vector<8x28xf32>
    %117 = arith.mulf %116, %115 : vector<8x28xf32>
    %cst_78 = arith.constant 1.000000e+00 : f32
    %118 = vector.broadcast %cst_78 : f32 to vector<8x28xf32>
    %119 = arith.subf %117, %118 : vector<8x28xf32>
    %c20 = arith.constant 20 : index
    %c0_79 = arith.constant 0 : index
    %c0_80 = arith.constant 0 : index
    %120 = vector.load %arg1[%c20, %c0_79, %c0_80] : memref<28x8x28xf32, #tpu.memory_space<vmem>>, vector<1x8x28xf32>
    %121 = vector.shape_cast %120 : vector<1x8x28xf32> to vector<8x28xf32>
    %cst_81 = arith.constant 2.000000e+00 : f32
    %122 = vector.broadcast %cst_81 : f32 to vector<8x28xf32>
    %123 = arith.mulf %122, %121 : vector<8x28xf32>
    %cst_82 = arith.constant 1.000000e+00 : f32
    %124 = vector.broadcast %cst_82 : f32 to vector<8x28xf32>
    %125 = arith.subf %123, %124 : vector<8x28xf32>
    %c21 = arith.constant 21 : index
    %c0_83 = arith.constant 0 : index
    %c0_84 = arith.constant 0 : index
    %126 = vector.load %arg1[%c21, %c0_83, %c0_84] : memref<28x8x28xf32, #tpu.memory_space<vmem>>, vector<1x8x28xf32>
    %127 = vector.shape_cast %126 : vector<1x8x28xf32> to vector<8x28xf32>
    %cst_85 = arith.constant 2.000000e+00 : f32
    %128 = vector.broadcast %cst_85 : f32 to vector<8x28xf32>
    %129 = arith.mulf %128, %127 : vector<8x28xf32>
    %cst_86 = arith.constant 1.000000e+00 : f32
    %130 = vector.broadcast %cst_86 : f32 to vector<8x28xf32>
    %131 = arith.subf %129, %130 : vector<8x28xf32>
    %c22 = arith.constant 22 : index
    %c0_87 = arith.constant 0 : index
    %c0_88 = arith.constant 0 : index
    %132 = vector.load %arg1[%c22, %c0_87, %c0_88] : memref<28x8x28xf32, #tpu.memory_space<vmem>>, vector<1x8x28xf32>
    %133 = vector.shape_cast %132 : vector<1x8x28xf32> to vector<8x28xf32>
    %cst_89 = arith.constant 2.000000e+00 : f32
    %134 = vector.broadcast %cst_89 : f32 to vector<8x28xf32>
    %135 = arith.mulf %134, %133 : vector<8x28xf32>
    %cst_90 = arith.constant 1.000000e+00 : f32
    %136 = vector.broadcast %cst_90 : f32 to vector<8x28xf32>
    %137 = arith.subf %135, %136 : vector<8x28xf32>
    %c23 = arith.constant 23 : index
    %c0_91 = arith.constant 0 : index
    %c0_92 = arith.constant 0 : index
    %138 = vector.load %arg1[%c23, %c0_91, %c0_92] : memref<28x8x28xf32, #tpu.memory_space<vmem>>, vector<1x8x28xf32>
    %139 = vector.shape_cast %138 : vector<1x8x28xf32> to vector<8x28xf32>
    %cst_93 = arith.constant 2.000000e+00 : f32
    %140 = vector.broadcast %cst_93 : f32 to vector<8x28xf32>
    %141 = arith.mulf %140, %139 : vector<8x28xf32>
    %cst_94 = arith.constant 1.000000e+00 : f32
    %142 = vector.broadcast %cst_94 : f32 to vector<8x28xf32>
    %143 = arith.subf %141, %142 : vector<8x28xf32>
    %c24 = arith.constant 24 : index
    %c0_95 = arith.constant 0 : index
    %c0_96 = arith.constant 0 : index
    %144 = vector.load %arg1[%c24, %c0_95, %c0_96] : memref<28x8x28xf32, #tpu.memory_space<vmem>>, vector<1x8x28xf32>
    %145 = vector.shape_cast %144 : vector<1x8x28xf32> to vector<8x28xf32>
    %cst_97 = arith.constant 2.000000e+00 : f32
    %146 = vector.broadcast %cst_97 : f32 to vector<8x28xf32>
    %147 = arith.mulf %146, %145 : vector<8x28xf32>
    %cst_98 = arith.constant 1.000000e+00 : f32
    %148 = vector.broadcast %cst_98 : f32 to vector<8x28xf32>
    %149 = arith.subf %147, %148 : vector<8x28xf32>
    %c25 = arith.constant 25 : index
    %c0_99 = arith.constant 0 : index
    %c0_100 = arith.constant 0 : index
    %150 = vector.load %arg1[%c25, %c0_99, %c0_100] : memref<28x8x28xf32, #tpu.memory_space<vmem>>, vector<1x8x28xf32>
    %151 = vector.shape_cast %150 : vector<1x8x28xf32> to vector<8x28xf32>
    %cst_101 = arith.constant 2.000000e+00 : f32
    %152 = vector.broadcast %cst_101 : f32 to vector<8x28xf32>
    %153 = arith.mulf %152, %151 : vector<8x28xf32>
    %cst_102 = arith.constant 1.000000e+00 : f32
    %154 = vector.broadcast %cst_102 : f32 to vector<8x28xf32>
    %155 = arith.subf %153, %154 : vector<8x28xf32>
    %c26 = arith.constant 26 : index
    %c0_103 = arith.constant 0 : index
    %c0_104 = arith.constant 0 : index
    %156 = vector.load %arg1[%c26, %c0_103, %c0_104] : memref<28x8x28xf32, #tpu.memory_space<vmem>>, vector<1x8x28xf32>
    %157 = vector.shape_cast %156 : vector<1x8x28xf32> to vector<8x28xf32>
    %cst_105 = arith.constant 2.000000e+00 : f32
    %158 = vector.broadcast %cst_105 : f32 to vector<8x28xf32>
    %159 = arith.mulf %158, %157 : vector<8x28xf32>
    %cst_106 = arith.constant 1.000000e+00 : f32
    %160 = vector.broadcast %cst_106 : f32 to vector<8x28xf32>
    %161 = arith.subf %159, %160 : vector<8x28xf32>
    %c27 = arith.constant 27 : index
    %c0_107 = arith.constant 0 : index
    %c0_108 = arith.constant 0 : index
    %162 = vector.load %arg1[%c27, %c0_107, %c0_108] : memref<28x8x28xf32, #tpu.memory_space<vmem>>, vector<1x8x28xf32>
    %163 = vector.shape_cast %162 : vector<1x8x28xf32> to vector<8x28xf32>
    %cst_109 = arith.constant 2.000000e+00 : f32
    %164 = vector.broadcast %cst_109 : f32 to vector<8x28xf32>
    %165 = arith.mulf %164, %163 : vector<8x28xf32>
    %cst_110 = arith.constant 1.000000e+00 : f32
    %166 = vector.broadcast %cst_110 : f32 to vector<8x28xf32>
    %167 = arith.subf %165, %166 : vector<8x28xf32>
    %c0_111 = arith.constant 0 : index
    %c0_112 = arith.constant 0 : index
    %168 = vector.load %arg4[%c0_111, %c0_112] : memref<1x224xf32, #tpu.memory_space<vmem>>, vector<1x224xf32>
    %169 = tpu.concatenate %5, %17, %29, %41, %53, %65, %77, %89, %101, %113, %125, %137, %149 in 0 : vector<8x28xf32>, vector<8x28xf32>, vector<8x28xf32>, vector<8x28xf32>, vector<8x28xf32>, vector<8x28xf32>, vector<8x28xf32>, vector<8x28xf32>, vector<8x28xf32>, vector<8x28xf32>, vector<8x28xf32>, vector<8x28xf32>, vector<8x28xf32> -> vector<104x28xf32>
    %170 = arith.truncf %169 : vector<104x28xf32> to vector<104x28xbf16>
    %c0_113 = arith.constant 0 : index
    %c0_114 = arith.constant 0 : index
    %c0_115 = arith.constant 0 : index
    %171 = vector.load %arg3[%c0_113, %c0_114, %c0_115] : memref<5x28x224xbf16, #tpu.memory_space<vmem>>, vector<1x28x224xbf16>
    %172 = vector.shape_cast %171 : vector<1x28x224xbf16> to vector<28x224xbf16>
    %cst_116 = arith.constant dense<0.000000e+00> : vector<104x224xf32>
    %173 = tpu.matmul %170, %172, %cst_116 {dimension_numbers = #tpu.dot_dimension_numbers<[1], [0], [0], [1], [0, 0, 1, 1], [], []>} : vector<104x28xbf16>, vector<28x224xbf16>, vector<104x224xf32> -> vector<104x224xf32>
    %174 = vector.extract_strided_slice %173 {offsets = [0, 0], sizes = [8, 224], strides = [1, 1]} : vector<104x224xf32> to vector<8x224xf32>
    %175 = vector.extract_strided_slice %173 {offsets = [8, 0], sizes = [8, 224], strides = [1, 1]} : vector<104x224xf32> to vector<8x224xf32>
    %176 = vector.extract_strided_slice %173 {offsets = [16, 0], sizes = [8, 224], strides = [1, 1]} : vector<104x224xf32> to vector<8x224xf32>
    %177 = vector.extract_strided_slice %173 {offsets = [24, 0], sizes = [8, 224], strides = [1, 1]} : vector<104x224xf32> to vector<8x224xf32>
    %178 = vector.extract_strided_slice %173 {offsets = [32, 0], sizes = [8, 224], strides = [1, 1]} : vector<104x224xf32> to vector<8x224xf32>
    %179 = vector.extract_strided_slice %173 {offsets = [40, 0], sizes = [8, 224], strides = [1, 1]} : vector<104x224xf32> to vector<8x224xf32>
    %180 = vector.extract_strided_slice %173 {offsets = [48, 0], sizes = [8, 224], strides = [1, 1]} : vector<104x224xf32> to vector<8x224xf32>
    %181 = vector.extract_strided_slice %173 {offsets = [56, 0], sizes = [8, 224], strides = [1, 1]} : vector<104x224xf32> to vector<8x224xf32>
    %182 = vector.extract_strided_slice %173 {offsets = [64, 0], sizes = [8, 224], strides = [1, 1]} : vector<104x224xf32> to vector<8x224xf32>
    %183 = vector.extract_strided_slice %173 {offsets = [72, 0], sizes = [8, 224], strides = [1, 1]} : vector<104x224xf32> to vector<8x224xf32>
    %184 = vector.extract_strided_slice %173 {offsets = [80, 0], sizes = [8, 224], strides = [1, 1]} : vector<104x224xf32> to vector<8x224xf32>
    %185 = vector.extract_strided_slice %173 {offsets = [88, 0], sizes = [8, 224], strides = [1, 1]} : vector<104x224xf32> to vector<8x224xf32>
    %186 = vector.extract_strided_slice %173 {offsets = [96, 0], sizes = [8, 224], strides = [1, 1]} : vector<104x224xf32> to vector<8x224xf32>
    %187 = tpu.concatenate %11, %23, %35, %47, %59, %71, %83, %95, %107, %119, %131, %143, %155 in 0 : vector<8x28xf32>, vector<8x28xf32>, vector<8x28xf32>, vector<8x28xf32>, vector<8x28xf32>, vector<8x28xf32>, vector<8x28xf32>, vector<8x28xf32>, vector<8x28xf32>, vector<8x28xf32>, vector<8x28xf32>, vector<8x28xf32>, vector<8x28xf32> -> vector<104x28xf32>
    %188 = arith.truncf %187 : vector<104x28xf32> to vector<104x28xbf16>
    %c1_117 = arith.constant 1 : index
    %c0_118 = arith.constant 0 : index
    %c0_119 = arith.constant 0 : index
    %189 = vector.load %arg3[%c1_117, %c0_118, %c0_119] : memref<5x28x224xbf16, #tpu.memory_space<vmem>>, vector<1x28x224xbf16>
    %190 = vector.shape_cast %189 : vector<1x28x224xbf16> to vector<28x224xbf16>
    %cst_120 = arith.constant dense<0.000000e+00> : vector<104x224xf32>
    %191 = tpu.matmul %188, %190, %cst_120 {dimension_numbers = #tpu.dot_dimension_numbers<[1], [0], [0], [1], [0, 0, 1, 1], [], []>} : vector<104x28xbf16>, vector<28x224xbf16>, vector<104x224xf32> -> vector<104x224xf32>
    %192 = vector.extract_strided_slice %191 {offsets = [0, 0], sizes = [8, 224], strides = [1, 1]} : vector<104x224xf32> to vector<8x224xf32>
    %193 = arith.addf %174, %192 : vector<8x224xf32>
    %194 = vector.extract_strided_slice %191 {offsets = [8, 0], sizes = [8, 224], strides = [1, 1]} : vector<104x224xf32> to vector<8x224xf32>
    %195 = arith.addf %175, %194 : vector<8x224xf32>
    %196 = vector.extract_strided_slice %191 {offsets = [16, 0], sizes = [8, 224], strides = [1, 1]} : vector<104x224xf32> to vector<8x224xf32>
    %197 = arith.addf %176, %196 : vector<8x224xf32>
    %198 = vector.extract_strided_slice %191 {offsets = [24, 0], sizes = [8, 224], strides = [1, 1]} : vector<104x224xf32> to vector<8x224xf32>
    %199 = arith.addf %177, %198 : vector<8x224xf32>
    %200 = vector.extract_strided_slice %191 {offsets = [32, 0], sizes = [8, 224], strides = [1, 1]} : vector<104x224xf32> to vector<8x224xf32>
    %201 = arith.addf %178, %200 : vector<8x224xf32>
    %202 = vector.extract_strided_slice %191 {offsets = [40, 0], sizes = [8, 224], strides = [1, 1]} : vector<104x224xf32> to vector<8x224xf32>
    %203 = arith.addf %179, %202 : vector<8x224xf32>
    %204 = vector.extract_strided_slice %191 {offsets = [48, 0], sizes = [8, 224], strides = [1, 1]} : vector<104x224xf32> to vector<8x224xf32>
    %205 = arith.addf %180, %204 : vector<8x224xf32>
    %206 = vector.extract_strided_slice %191 {offsets = [56, 0], sizes = [8, 224], strides = [1, 1]} : vector<104x224xf32> to vector<8x224xf32>
    %207 = arith.addf %181, %206 : vector<8x224xf32>
    %208 = vector.extract_strided_slice %191 {offsets = [64, 0], sizes = [8, 224], strides = [1, 1]} : vector<104x224xf32> to vector<8x224xf32>
    %209 = arith.addf %182, %208 : vector<8x224xf32>
    %210 = vector.extract_strided_slice %191 {offsets = [72, 0], sizes = [8, 224], strides = [1, 1]} : vector<104x224xf32> to vector<8x224xf32>
    %211 = arith.addf %183, %210 : vector<8x224xf32>
    %212 = vector.extract_strided_slice %191 {offsets = [80, 0], sizes = [8, 224], strides = [1, 1]} : vector<104x224xf32> to vector<8x224xf32>
    %213 = arith.addf %184, %212 : vector<8x224xf32>
    %214 = vector.extract_strided_slice %191 {offsets = [88, 0], sizes = [8, 224], strides = [1, 1]} : vector<104x224xf32> to vector<8x224xf32>
    %215 = arith.addf %185, %214 : vector<8x224xf32>
    %216 = vector.extract_strided_slice %191 {offsets = [96, 0], sizes = [8, 224], strides = [1, 1]} : vector<104x224xf32> to vector<8x224xf32>
    %217 = arith.addf %186, %216 : vector<8x224xf32>
    %218 = tpu.concatenate %5, %17, %29, %41, %53, %65, %77, %89, %101, %113, %125, %137, %149, %161 in 0 : vector<8x28xf32>, vector<8x28xf32>, vector<8x28xf32>, vector<8x28xf32>, vector<8x28xf32>, vector<8x28xf32>, vector<8x28xf32>, vector<8x28xf32>, vector<8x28xf32>, vector<8x28xf32>, vector<8x28xf32>, vector<8x28xf32>, vector<8x28xf32>, vector<8x28xf32> -> vector<112x28xf32>
    %219 = arith.truncf %218 : vector<112x28xf32> to vector<112x28xbf16>
    %c2_121 = arith.constant 2 : index
    %c0_122 = arith.constant 0 : index
    %c0_123 = arith.constant 0 : index
    %220 = vector.load %arg3[%c2_121, %c0_122, %c0_123] : memref<5x28x224xbf16, #tpu.memory_space<vmem>>, vector<1x28x224xbf16>
    %221 = vector.shape_cast %220 : vector<1x28x224xbf16> to vector<28x224xbf16>
    %cst_124 = arith.constant dense<0.000000e+00> : vector<112x224xf32>
    %222 = tpu.matmul %219, %221, %cst_124 {dimension_numbers = #tpu.dot_dimension_numbers<[1], [0], [0], [1], [0, 0, 1, 1], [], []>} : vector<112x28xbf16>, vector<28x224xbf16>, vector<112x224xf32> -> vector<112x224xf32>
    %223 = vector.extract_strided_slice %222 {offsets = [0, 0], sizes = [8, 224], strides = [1, 1]} : vector<112x224xf32> to vector<8x224xf32>
    %224 = vector.extract_strided_slice %222 {offsets = [8, 0], sizes = [8, 224], strides = [1, 1]} : vector<112x224xf32> to vector<8x224xf32>
    %225 = arith.addf %193, %224 : vector<8x224xf32>
    %226 = vector.extract_strided_slice %222 {offsets = [16, 0], sizes = [8, 224], strides = [1, 1]} : vector<112x224xf32> to vector<8x224xf32>
    %227 = arith.addf %195, %226 : vector<8x224xf32>
    %228 = vector.extract_strided_slice %222 {offsets = [24, 0], sizes = [8, 224], strides = [1, 1]} : vector<112x224xf32> to vector<8x224xf32>
    %229 = arith.addf %197, %228 : vector<8x224xf32>
    %230 = vector.extract_strided_slice %222 {offsets = [32, 0], sizes = [8, 224], strides = [1, 1]} : vector<112x224xf32> to vector<8x224xf32>
    %231 = arith.addf %199, %230 : vector<8x224xf32>
    %232 = vector.extract_strided_slice %222 {offsets = [40, 0], sizes = [8, 224], strides = [1, 1]} : vector<112x224xf32> to vector<8x224xf32>
    %233 = arith.addf %201, %232 : vector<8x224xf32>
    %234 = vector.extract_strided_slice %222 {offsets = [48, 0], sizes = [8, 224], strides = [1, 1]} : vector<112x224xf32> to vector<8x224xf32>
    %235 = arith.addf %203, %234 : vector<8x224xf32>
    %236 = vector.extract_strided_slice %222 {offsets = [56, 0], sizes = [8, 224], strides = [1, 1]} : vector<112x224xf32> to vector<8x224xf32>
    %237 = arith.addf %205, %236 : vector<8x224xf32>
    %238 = vector.extract_strided_slice %222 {offsets = [64, 0], sizes = [8, 224], strides = [1, 1]} : vector<112x224xf32> to vector<8x224xf32>
    %239 = arith.addf %207, %238 : vector<8x224xf32>
    %240 = vector.extract_strided_slice %222 {offsets = [72, 0], sizes = [8, 224], strides = [1, 1]} : vector<112x224xf32> to vector<8x224xf32>
    %241 = arith.addf %209, %240 : vector<8x224xf32>
    %242 = vector.extract_strided_slice %222 {offsets = [80, 0], sizes = [8, 224], strides = [1, 1]} : vector<112x224xf32> to vector<8x224xf32>
    %243 = arith.addf %211, %242 : vector<8x224xf32>
    %244 = vector.extract_strided_slice %222 {offsets = [88, 0], sizes = [8, 224], strides = [1, 1]} : vector<112x224xf32> to vector<8x224xf32>
    %245 = arith.addf %213, %244 : vector<8x224xf32>
    %246 = vector.extract_strided_slice %222 {offsets = [96, 0], sizes = [8, 224], strides = [1, 1]} : vector<112x224xf32> to vector<8x224xf32>
    %247 = arith.addf %215, %246 : vector<8x224xf32>
    %248 = vector.extract_strided_slice %222 {offsets = [104, 0], sizes = [8, 224], strides = [1, 1]} : vector<112x224xf32> to vector<8x224xf32>
    %249 = arith.addf %217, %248 : vector<8x224xf32>
    %250 = tpu.concatenate %11, %23, %35, %47, %59, %71, %83, %95, %107, %119, %131, %143, %155, %167 in 0 : vector<8x28xf32>, vector<8x28xf32>, vector<8x28xf32>, vector<8x28xf32>, vector<8x28xf32>, vector<8x28xf32>, vector<8x28xf32>, vector<8x28xf32>, vector<8x28xf32>, vector<8x28xf32>, vector<8x28xf32>, vector<8x28xf32>, vector<8x28xf32>, vector<8x28xf32> -> vector<112x28xf32>
    %251 = arith.truncf %250 : vector<112x28xf32> to vector<112x28xbf16>
    %c3_125 = arith.constant 3 : index
    %c0_126 = arith.constant 0 : index
    %c0_127 = arith.constant 0 : index
    %252 = vector.load %arg3[%c3_125, %c0_126, %c0_127] : memref<5x28x224xbf16, #tpu.memory_space<vmem>>, vector<1x28x224xbf16>
    %253 = vector.shape_cast %252 : vector<1x28x224xbf16> to vector<28x224xbf16>
    %cst_128 = arith.constant dense<0.000000e+00> : vector<112x224xf32>
    %254 = tpu.matmul %251, %253, %cst_128 {dimension_numbers = #tpu.dot_dimension_numbers<[1], [0], [0], [1], [0, 0, 1, 1], [], []>} : vector<112x28xbf16>, vector<28x224xbf16>, vector<112x224xf32> -> vector<112x224xf32>
    %255 = vector.extract_strided_slice %254 {offsets = [0, 0], sizes = [8, 224], strides = [1, 1]} : vector<112x224xf32> to vector<8x224xf32>
    %256 = arith.addf %223, %255 : vector<8x224xf32>
    %257 = vector.extract_strided_slice %254 {offsets = [8, 0], sizes = [8, 224], strides = [1, 1]} : vector<112x224xf32> to vector<8x224xf32>
    %258 = arith.addf %225, %257 : vector<8x224xf32>
    %259 = vector.extract_strided_slice %254 {offsets = [16, 0], sizes = [8, 224], strides = [1, 1]} : vector<112x224xf32> to vector<8x224xf32>
    %260 = arith.addf %227, %259 : vector<8x224xf32>
    %261 = vector.extract_strided_slice %254 {offsets = [24, 0], sizes = [8, 224], strides = [1, 1]} : vector<112x224xf32> to vector<8x224xf32>
    %262 = arith.addf %229, %261 : vector<8x224xf32>
    %263 = vector.extract_strided_slice %254 {offsets = [32, 0], sizes = [8, 224], strides = [1, 1]} : vector<112x224xf32> to vector<8x224xf32>
    %264 = arith.addf %231, %263 : vector<8x224xf32>
    %265 = vector.extract_strided_slice %254 {offsets = [40, 0], sizes = [8, 224], strides = [1, 1]} : vector<112x224xf32> to vector<8x224xf32>
    %266 = arith.addf %233, %265 : vector<8x224xf32>
    %267 = vector.extract_strided_slice %254 {offsets = [48, 0], sizes = [8, 224], strides = [1, 1]} : vector<112x224xf32> to vector<8x224xf32>
    %268 = arith.addf %235, %267 : vector<8x224xf32>
    %269 = vector.extract_strided_slice %254 {offsets = [56, 0], sizes = [8, 224], strides = [1, 1]} : vector<112x224xf32> to vector<8x224xf32>
    %270 = arith.addf %237, %269 : vector<8x224xf32>
    %271 = vector.extract_strided_slice %254 {offsets = [64, 0], sizes = [8, 224], strides = [1, 1]} : vector<112x224xf32> to vector<8x224xf32>
    %272 = arith.addf %239, %271 : vector<8x224xf32>
    %273 = vector.extract_strided_slice %254 {offsets = [72, 0], sizes = [8, 224], strides = [1, 1]} : vector<112x224xf32> to vector<8x224xf32>
    %274 = arith.addf %241, %273 : vector<8x224xf32>
    %275 = vector.extract_strided_slice %254 {offsets = [80, 0], sizes = [8, 224], strides = [1, 1]} : vector<112x224xf32> to vector<8x224xf32>
    %276 = arith.addf %243, %275 : vector<8x224xf32>
    %277 = vector.extract_strided_slice %254 {offsets = [88, 0], sizes = [8, 224], strides = [1, 1]} : vector<112x224xf32> to vector<8x224xf32>
    %278 = arith.addf %245, %277 : vector<8x224xf32>
    %279 = vector.extract_strided_slice %254 {offsets = [96, 0], sizes = [8, 224], strides = [1, 1]} : vector<112x224xf32> to vector<8x224xf32>
    %280 = arith.addf %247, %279 : vector<8x224xf32>
    %281 = vector.extract_strided_slice %254 {offsets = [104, 0], sizes = [8, 224], strides = [1, 1]} : vector<112x224xf32> to vector<8x224xf32>
    %282 = arith.addf %249, %281 : vector<8x224xf32>
    %283 = tpu.concatenate %17, %29, %41, %53, %65, %77, %89, %101, %113, %125, %137, %149, %161 in 0 : vector<8x28xf32>, vector<8x28xf32>, vector<8x28xf32>, vector<8x28xf32>, vector<8x28xf32>, vector<8x28xf32>, vector<8x28xf32>, vector<8x28xf32>, vector<8x28xf32>, vector<8x28xf32>, vector<8x28xf32>, vector<8x28xf32>, vector<8x28xf32> -> vector<104x28xf32>
    %284 = arith.truncf %283 : vector<104x28xf32> to vector<104x28xbf16>
    %c4_129 = arith.constant 4 : index
    %c0_130 = arith.constant 0 : index
    %c0_131 = arith.constant 0 : index
    %285 = vector.load %arg3[%c4_129, %c0_130, %c0_131] : memref<5x28x224xbf16, #tpu.memory_space<vmem>>, vector<1x28x224xbf16>
    %286 = vector.shape_cast %285 : vector<1x28x224xbf16> to vector<28x224xbf16>
    %cst_132 = arith.constant dense<0.000000e+00> : vector<104x224xf32>
    %287 = tpu.matmul %284, %286, %cst_132 {dimension_numbers = #tpu.dot_dimension_numbers<[1], [0], [0], [1], [0, 0, 1, 1], [], []>} : vector<104x28xbf16>, vector<28x224xbf16>, vector<104x224xf32> -> vector<104x224xf32>
    %288 = vector.extract_strided_slice %287 {offsets = [0, 0], sizes = [8, 224], strides = [1, 1]} : vector<104x224xf32> to vector<8x224xf32>
    %289 = arith.addf %256, %288 : vector<8x224xf32>
    %290 = vector.extract_strided_slice %287 {offsets = [8, 0], sizes = [8, 224], strides = [1, 1]} : vector<104x224xf32> to vector<8x224xf32>
    %291 = arith.addf %258, %290 : vector<8x224xf32>
    %292 = vector.extract_strided_slice %287 {offsets = [16, 0], sizes = [8, 224], strides = [1, 1]} : vector<104x224xf32> to vector<8x224xf32>
    %293 = arith.addf %260, %292 : vector<8x224xf32>
    %294 = vector.extract_strided_slice %287 {offsets = [24, 0], sizes = [8, 224], strides = [1, 1]} : vector<104x224xf32> to vector<8x224xf32>
    %295 = arith.addf %262, %294 : vector<8x224xf32>
    %296 = vector.extract_strided_slice %287 {offsets = [32, 0], sizes = [8, 224], strides = [1, 1]} : vector<104x224xf32> to vector<8x224xf32>
    %297 = arith.addf %264, %296 : vector<8x224xf32>
    %298 = vector.extract_strided_slice %287 {offsets = [40, 0], sizes = [8, 224], strides = [1, 1]} : vector<104x224xf32> to vector<8x224xf32>
    %299 = arith.addf %266, %298 : vector<8x224xf32>
    %300 = vector.extract_strided_slice %287 {offsets = [48, 0], sizes = [8, 224], strides = [1, 1]} : vector<104x224xf32> to vector<8x224xf32>
    %301 = arith.addf %268, %300 : vector<8x224xf32>
    %302 = vector.extract_strided_slice %287 {offsets = [56, 0], sizes = [8, 224], strides = [1, 1]} : vector<104x224xf32> to vector<8x224xf32>
    %303 = arith.addf %270, %302 : vector<8x224xf32>
    %304 = vector.extract_strided_slice %287 {offsets = [64, 0], sizes = [8, 224], strides = [1, 1]} : vector<104x224xf32> to vector<8x224xf32>
    %305 = arith.addf %272, %304 : vector<8x224xf32>
    %306 = vector.extract_strided_slice %287 {offsets = [72, 0], sizes = [8, 224], strides = [1, 1]} : vector<104x224xf32> to vector<8x224xf32>
    %307 = arith.addf %274, %306 : vector<8x224xf32>
    %308 = vector.extract_strided_slice %287 {offsets = [80, 0], sizes = [8, 224], strides = [1, 1]} : vector<104x224xf32> to vector<8x224xf32>
    %309 = arith.addf %276, %308 : vector<8x224xf32>
    %310 = vector.extract_strided_slice %287 {offsets = [88, 0], sizes = [8, 224], strides = [1, 1]} : vector<104x224xf32> to vector<8x224xf32>
    %311 = arith.addf %278, %310 : vector<8x224xf32>
    %312 = vector.extract_strided_slice %287 {offsets = [96, 0], sizes = [8, 224], strides = [1, 1]} : vector<104x224xf32> to vector<8x224xf32>
    %313 = arith.addf %280, %312 : vector<8x224xf32>
    %314 = vector.broadcast %168 : vector<1x224xf32> to vector<8x224xf32>
    %315 = arith.addf %289, %314 : vector<8x224xf32>
    %cst_133 = arith.constant 0.000000e+00 : f32
    %316 = vector.broadcast %cst_133 : f32 to vector<8x224xf32>
    %317 = arith.maximumf %315, %316 : vector<8x224xf32>
    %318 = math.absf %315 : vector<8x224xf32>
    %cst_134 = arith.constant 0.000000e+00 : f32
    %319 = vector.broadcast %cst_134 : f32 to vector<8x224xf32>
    %320 = arith.subf %319, %318 : vector<8x224xf32>
    %321 = math.exp %320 : vector<8x224xf32>
    %322 = math.log1p %321 : vector<8x224xf32>
    %323 = arith.addf %317, %322 : vector<8x224xf32>
    %324 = vector.broadcast %168 : vector<1x224xf32> to vector<8x224xf32>
    %325 = arith.addf %291, %324 : vector<8x224xf32>
    %cst_135 = arith.constant 0.000000e+00 : f32
    %326 = vector.broadcast %cst_135 : f32 to vector<8x224xf32>
    %327 = arith.maximumf %325, %326 : vector<8x224xf32>
    %328 = math.absf %325 : vector<8x224xf32>
    %cst_136 = arith.constant 0.000000e+00 : f32
    %329 = vector.broadcast %cst_136 : f32 to vector<8x224xf32>
    %330 = arith.subf %329, %328 : vector<8x224xf32>
    %331 = math.exp %330 : vector<8x224xf32>
    %332 = math.log1p %331 : vector<8x224xf32>
    %333 = arith.addf %327, %332 : vector<8x224xf32>
    %334 = vector.broadcast %168 : vector<1x224xf32> to vector<8x224xf32>
    %335 = arith.addf %293, %334 : vector<8x224xf32>
    %cst_137 = arith.constant 0.000000e+00 : f32
    %336 = vector.broadcast %cst_137 : f32 to vector<8x224xf32>
    %337 = arith.maximumf %335, %336 : vector<8x224xf32>
    %338 = math.absf %335 : vector<8x224xf32>
    %cst_138 = arith.constant 0.000000e+00 : f32
    %339 = vector.broadcast %cst_138 : f32 to vector<8x224xf32>
    %340 = arith.subf %339, %338 : vector<8x224xf32>
    %341 = math.exp %340 : vector<8x224xf32>
    %342 = math.log1p %341 : vector<8x224xf32>
    %343 = arith.addf %337, %342 : vector<8x224xf32>
    %344 = vector.broadcast %168 : vector<1x224xf32> to vector<8x224xf32>
    %345 = arith.addf %295, %344 : vector<8x224xf32>
    %cst_139 = arith.constant 0.000000e+00 : f32
    %346 = vector.broadcast %cst_139 : f32 to vector<8x224xf32>
    %347 = arith.maximumf %345, %346 : vector<8x224xf32>
    %348 = math.absf %345 : vector<8x224xf32>
    %cst_140 = arith.constant 0.000000e+00 : f32
    %349 = vector.broadcast %cst_140 : f32 to vector<8x224xf32>
    %350 = arith.subf %349, %348 : vector<8x224xf32>
    %351 = math.exp %350 : vector<8x224xf32>
    %352 = math.log1p %351 : vector<8x224xf32>
    %353 = arith.addf %347, %352 : vector<8x224xf32>
    %354 = vector.broadcast %168 : vector<1x224xf32> to vector<8x224xf32>
    %355 = arith.addf %297, %354 : vector<8x224xf32>
    %cst_141 = arith.constant 0.000000e+00 : f32
    %356 = vector.broadcast %cst_141 : f32 to vector<8x224xf32>
    %357 = arith.maximumf %355, %356 : vector<8x224xf32>
    %358 = math.absf %355 : vector<8x224xf32>
    %cst_142 = arith.constant 0.000000e+00 : f32
    %359 = vector.broadcast %cst_142 : f32 to vector<8x224xf32>
    %360 = arith.subf %359, %358 : vector<8x224xf32>
    %361 = math.exp %360 : vector<8x224xf32>
    %362 = math.log1p %361 : vector<8x224xf32>
    %363 = arith.addf %357, %362 : vector<8x224xf32>
    %364 = vector.broadcast %168 : vector<1x224xf32> to vector<8x224xf32>
    %365 = arith.addf %299, %364 : vector<8x224xf32>
    %cst_143 = arith.constant 0.000000e+00 : f32
    %366 = vector.broadcast %cst_143 : f32 to vector<8x224xf32>
    %367 = arith.maximumf %365, %366 : vector<8x224xf32>
    %368 = math.absf %365 : vector<8x224xf32>
    %cst_144 = arith.constant 0.000000e+00 : f32
    %369 = vector.broadcast %cst_144 : f32 to vector<8x224xf32>
    %370 = arith.subf %369, %368 : vector<8x224xf32>
    %371 = math.exp %370 : vector<8x224xf32>
    %372 = math.log1p %371 : vector<8x224xf32>
    %373 = arith.addf %367, %372 : vector<8x224xf32>
    %374 = vector.broadcast %168 : vector<1x224xf32> to vector<8x224xf32>
    %375 = arith.addf %301, %374 : vector<8x224xf32>
    %cst_145 = arith.constant 0.000000e+00 : f32
    %376 = vector.broadcast %cst_145 : f32 to vector<8x224xf32>
    %377 = arith.maximumf %375, %376 : vector<8x224xf32>
    %378 = math.absf %375 : vector<8x224xf32>
    %cst_146 = arith.constant 0.000000e+00 : f32
    %379 = vector.broadcast %cst_146 : f32 to vector<8x224xf32>
    %380 = arith.subf %379, %378 : vector<8x224xf32>
    %381 = math.exp %380 : vector<8x224xf32>
    %382 = math.log1p %381 : vector<8x224xf32>
    %383 = arith.addf %377, %382 : vector<8x224xf32>
    %384 = vector.broadcast %168 : vector<1x224xf32> to vector<8x224xf32>
    %385 = arith.addf %303, %384 : vector<8x224xf32>
    %cst_147 = arith.constant 0.000000e+00 : f32
    %386 = vector.broadcast %cst_147 : f32 to vector<8x224xf32>
    %387 = arith.maximumf %385, %386 : vector<8x224xf32>
    %388 = math.absf %385 : vector<8x224xf32>
    %cst_148 = arith.constant 0.000000e+00 : f32
    %389 = vector.broadcast %cst_148 : f32 to vector<8x224xf32>
    %390 = arith.subf %389, %388 : vector<8x224xf32>
    %391 = math.exp %390 : vector<8x224xf32>
    %392 = math.log1p %391 : vector<8x224xf32>
    %393 = arith.addf %387, %392 : vector<8x224xf32>
    %394 = vector.broadcast %168 : vector<1x224xf32> to vector<8x224xf32>
    %395 = arith.addf %305, %394 : vector<8x224xf32>
    %cst_149 = arith.constant 0.000000e+00 : f32
    %396 = vector.broadcast %cst_149 : f32 to vector<8x224xf32>
    %397 = arith.maximumf %395, %396 : vector<8x224xf32>
    %398 = math.absf %395 : vector<8x224xf32>
    %cst_150 = arith.constant 0.000000e+00 : f32
    %399 = vector.broadcast %cst_150 : f32 to vector<8x224xf32>
    %400 = arith.subf %399, %398 : vector<8x224xf32>
    %401 = math.exp %400 : vector<8x224xf32>
    %402 = math.log1p %401 : vector<8x224xf32>
    %403 = arith.addf %397, %402 : vector<8x224xf32>
    %404 = vector.broadcast %168 : vector<1x224xf32> to vector<8x224xf32>
    %405 = arith.addf %307, %404 : vector<8x224xf32>
    %cst_151 = arith.constant 0.000000e+00 : f32
    %406 = vector.broadcast %cst_151 : f32 to vector<8x224xf32>
    %407 = arith.maximumf %405, %406 : vector<8x224xf32>
    %408 = math.absf %405 : vector<8x224xf32>
    %cst_152 = arith.constant 0.000000e+00 : f32
    %409 = vector.broadcast %cst_152 : f32 to vector<8x224xf32>
    %410 = arith.subf %409, %408 : vector<8x224xf32>
    %411 = math.exp %410 : vector<8x224xf32>
    %412 = math.log1p %411 : vector<8x224xf32>
    %413 = arith.addf %407, %412 : vector<8x224xf32>
    %414 = vector.broadcast %168 : vector<1x224xf32> to vector<8x224xf32>
    %415 = arith.addf %309, %414 : vector<8x224xf32>
    %cst_153 = arith.constant 0.000000e+00 : f32
    %416 = vector.broadcast %cst_153 : f32 to vector<8x224xf32>
    %417 = arith.maximumf %415, %416 : vector<8x224xf32>
    %418 = math.absf %415 : vector<8x224xf32>
    %cst_154 = arith.constant 0.000000e+00 : f32
    %419 = vector.broadcast %cst_154 : f32 to vector<8x224xf32>
    %420 = arith.subf %419, %418 : vector<8x224xf32>
    %421 = math.exp %420 : vector<8x224xf32>
    %422 = math.log1p %421 : vector<8x224xf32>
    %423 = arith.addf %417, %422 : vector<8x224xf32>
    %424 = vector.broadcast %168 : vector<1x224xf32> to vector<8x224xf32>
    %425 = arith.addf %311, %424 : vector<8x224xf32>
    %cst_155 = arith.constant 0.000000e+00 : f32
    %426 = vector.broadcast %cst_155 : f32 to vector<8x224xf32>
    %427 = arith.maximumf %425, %426 : vector<8x224xf32>
    %428 = math.absf %425 : vector<8x224xf32>
    %cst_156 = arith.constant 0.000000e+00 : f32
    %429 = vector.broadcast %cst_156 : f32 to vector<8x224xf32>
    %430 = arith.subf %429, %428 : vector<8x224xf32>
    %431 = math.exp %430 : vector<8x224xf32>
    %432 = math.log1p %431 : vector<8x224xf32>
    %433 = arith.addf %427, %432 : vector<8x224xf32>
    %434 = vector.broadcast %168 : vector<1x224xf32> to vector<8x224xf32>
    %435 = arith.addf %313, %434 : vector<8x224xf32>
    %cst_157 = arith.constant 0.000000e+00 : f32
    %436 = vector.broadcast %cst_157 : f32 to vector<8x224xf32>
    %437 = arith.maximumf %435, %436 : vector<8x224xf32>
    %438 = math.absf %435 : vector<8x224xf32>
    %cst_158 = arith.constant 0.000000e+00 : f32
    %439 = vector.broadcast %cst_158 : f32 to vector<8x224xf32>
    %440 = arith.subf %439, %438 : vector<8x224xf32>
    %441 = math.exp %440 : vector<8x224xf32>
    %442 = math.log1p %441 : vector<8x224xf32>
    %443 = arith.addf %437, %442 : vector<8x224xf32>
    %444 = vector.broadcast %168 : vector<1x224xf32> to vector<8x224xf32>
    %445 = arith.addf %282, %444 : vector<8x224xf32>
    %cst_159 = arith.constant 0.000000e+00 : f32
    %446 = vector.broadcast %cst_159 : f32 to vector<8x224xf32>
    %447 = arith.maximumf %445, %446 : vector<8x224xf32>
    %448 = math.absf %445 : vector<8x224xf32>
    %cst_160 = arith.constant 0.000000e+00 : f32
    %449 = vector.broadcast %cst_160 : f32 to vector<8x224xf32>
    %450 = arith.subf %449, %448 : vector<8x224xf32>
    %451 = math.exp %450 : vector<8x224xf32>
    %452 = math.log1p %451 : vector<8x224xf32>
    %453 = arith.addf %447, %452 : vector<8x224xf32>
    %c0_161 = arith.constant 0 : index
    %c0_162 = arith.constant 0 : index
    %454 = vector.load %arg6[%c0_161, %c0_162] : memref<1x224xf32, #tpu.memory_space<vmem>>, vector<1x224xf32>
    %455 = tpu.concatenate %323, %343, %363, %383, %403, %423 in 0 : vector<8x224xf32>, vector<8x224xf32>, vector<8x224xf32>, vector<8x224xf32>, vector<8x224xf32>, vector<8x224xf32> -> vector<48x224xf32>
    %456 = arith.truncf %455 : vector<48x224xf32> to vector<48x224xbf16>
    %c0_163 = arith.constant 0 : index
    %c0_164 = arith.constant 0 : index
    %c0_165 = arith.constant 0 : index
    %457 = vector.load %arg5[%c0_163, %c0_164, %c0_165] : memref<5x224x224xbf16, #tpu.memory_space<vmem>>, vector<1x224x224xbf16>
    %458 = vector.shape_cast %457 : vector<1x224x224xbf16> to vector<224x224xbf16>
    %cst_166 = arith.constant dense<0.000000e+00> : vector<48x224xf32>
    %459 = tpu.matmul %456, %458, %cst_166 {dimension_numbers = #tpu.dot_dimension_numbers<[1], [0], [0], [1], [0, 0, 1, 1], [], []>} : vector<48x224xbf16>, vector<224x224xbf16>, vector<48x224xf32> -> vector<48x224xf32>
    %460 = vector.extract_strided_slice %459 {offsets = [0, 0], sizes = [8, 224], strides = [1, 1]} : vector<48x224xf32> to vector<8x224xf32>
    %461 = vector.extract_strided_slice %459 {offsets = [8, 0], sizes = [8, 224], strides = [1, 1]} : vector<48x224xf32> to vector<8x224xf32>
    %462 = vector.extract_strided_slice %459 {offsets = [16, 0], sizes = [8, 224], strides = [1, 1]} : vector<48x224xf32> to vector<8x224xf32>
    %463 = vector.extract_strided_slice %459 {offsets = [24, 0], sizes = [8, 224], strides = [1, 1]} : vector<48x224xf32> to vector<8x224xf32>
    %464 = vector.extract_strided_slice %459 {offsets = [32, 0], sizes = [8, 224], strides = [1, 1]} : vector<48x224xf32> to vector<8x224xf32>
    %465 = vector.extract_strided_slice %459 {offsets = [40, 0], sizes = [8, 224], strides = [1, 1]} : vector<48x224xf32> to vector<8x224xf32>
    %466 = tpu.concatenate %333, %353, %373, %393, %413, %433 in 0 : vector<8x224xf32>, vector<8x224xf32>, vector<8x224xf32>, vector<8x224xf32>, vector<8x224xf32>, vector<8x224xf32> -> vector<48x224xf32>
    %467 = arith.truncf %466 : vector<48x224xf32> to vector<48x224xbf16>
    %c1_167 = arith.constant 1 : index
    %c0_168 = arith.constant 0 : index
    %c0_169 = arith.constant 0 : index
    %468 = vector.load %arg5[%c1_167, %c0_168, %c0_169] : memref<5x224x224xbf16, #tpu.memory_space<vmem>>, vector<1x224x224xbf16>
    %469 = vector.shape_cast %468 : vector<1x224x224xbf16> to vector<224x224xbf16>
    %cst_170 = arith.constant dense<0.000000e+00> : vector<48x224xf32>
    %470 = tpu.matmul %467, %469, %cst_170 {dimension_numbers = #tpu.dot_dimension_numbers<[1], [0], [0], [1], [0, 0, 1, 1], [], []>} : vector<48x224xbf16>, vector<224x224xbf16>, vector<48x224xf32> -> vector<48x224xf32>
    %471 = vector.extract_strided_slice %470 {offsets = [0, 0], sizes = [8, 224], strides = [1, 1]} : vector<48x224xf32> to vector<8x224xf32>
    %472 = arith.addf %460, %471 : vector<8x224xf32>
    %473 = vector.extract_strided_slice %470 {offsets = [8, 0], sizes = [8, 224], strides = [1, 1]} : vector<48x224xf32> to vector<8x224xf32>
    %474 = arith.addf %461, %473 : vector<8x224xf32>
    %475 = vector.extract_strided_slice %470 {offsets = [16, 0], sizes = [8, 224], strides = [1, 1]} : vector<48x224xf32> to vector<8x224xf32>
    %476 = arith.addf %462, %475 : vector<8x224xf32>
    %477 = vector.extract_strided_slice %470 {offsets = [24, 0], sizes = [8, 224], strides = [1, 1]} : vector<48x224xf32> to vector<8x224xf32>
    %478 = arith.addf %463, %477 : vector<8x224xf32>
    %479 = vector.extract_strided_slice %470 {offsets = [32, 0], sizes = [8, 224], strides = [1, 1]} : vector<48x224xf32> to vector<8x224xf32>
    %480 = arith.addf %464, %479 : vector<8x224xf32>
    %481 = vector.extract_strided_slice %470 {offsets = [40, 0], sizes = [8, 224], strides = [1, 1]} : vector<48x224xf32> to vector<8x224xf32>
    %482 = arith.addf %465, %481 : vector<8x224xf32>
    %483 = tpu.concatenate %323, %343, %363, %383, %403, %423, %443 in 0 : vector<8x224xf32>, vector<8x224xf32>, vector<8x224xf32>, vector<8x224xf32>, vector<8x224xf32>, vector<8x224xf32>, vector<8x224xf32> -> vector<56x224xf32>
    %484 = arith.truncf %483 : vector<56x224xf32> to vector<56x224xbf16>
    %c2_171 = arith.constant 2 : index
    %c0_172 = arith.constant 0 : index
    %c0_173 = arith.constant 0 : index
    %485 = vector.load %arg5[%c2_171, %c0_172, %c0_173] : memref<5x224x224xbf16, #tpu.memory_space<vmem>>, vector<1x224x224xbf16>
    %486 = vector.shape_cast %485 : vector<1x224x224xbf16> to vector<224x224xbf16>
    %cst_174 = arith.constant dense<0.000000e+00> : vector<56x224xf32>
    %487 = tpu.matmul %484, %486, %cst_174 {dimension_numbers = #tpu.dot_dimension_numbers<[1], [0], [0], [1], [0, 0, 1, 1], [], []>} : vector<56x224xbf16>, vector<224x224xbf16>, vector<56x224xf32> -> vector<56x224xf32>
    %488 = vector.extract_strided_slice %487 {offsets = [0, 0], sizes = [8, 224], strides = [1, 1]} : vector<56x224xf32> to vector<8x224xf32>
    %489 = vector.extract_strided_slice %487 {offsets = [8, 0], sizes = [8, 224], strides = [1, 1]} : vector<56x224xf32> to vector<8x224xf32>
    %490 = arith.addf %472, %489 : vector<8x224xf32>
    %491 = vector.extract_strided_slice %487 {offsets = [16, 0], sizes = [8, 224], strides = [1, 1]} : vector<56x224xf32> to vector<8x224xf32>
    %492 = arith.addf %474, %491 : vector<8x224xf32>
    %493 = vector.extract_strided_slice %487 {offsets = [24, 0], sizes = [8, 224], strides = [1, 1]} : vector<56x224xf32> to vector<8x224xf32>
    %494 = arith.addf %476, %493 : vector<8x224xf32>
    %495 = vector.extract_strided_slice %487 {offsets = [32, 0], sizes = [8, 224], strides = [1, 1]} : vector<56x224xf32> to vector<8x224xf32>
    %496 = arith.addf %478, %495 : vector<8x224xf32>
    %497 = vector.extract_strided_slice %487 {offsets = [40, 0], sizes = [8, 224], strides = [1, 1]} : vector<56x224xf32> to vector<8x224xf32>
    %498 = arith.addf %480, %497 : vector<8x224xf32>
    %499 = vector.extract_strided_slice %487 {offsets = [48, 0], sizes = [8, 224], strides = [1, 1]} : vector<56x224xf32> to vector<8x224xf32>
    %500 = arith.addf %482, %499 : vector<8x224xf32>
    %501 = tpu.concatenate %333, %353, %373, %393, %413, %433, %453 in 0 : vector<8x224xf32>, vector<8x224xf32>, vector<8x224xf32>, vector<8x224xf32>, vector<8x224xf32>, vector<8x224xf32>, vector<8x224xf32> -> vector<56x224xf32>
    %502 = arith.truncf %501 : vector<56x224xf32> to vector<56x224xbf16>
    %c3_175 = arith.constant 3 : index
    %c0_176 = arith.constant 0 : index
    %c0_177 = arith.constant 0 : index
    %503 = vector.load %arg5[%c3_175, %c0_176, %c0_177] : memref<5x224x224xbf16, #tpu.memory_space<vmem>>, vector<1x224x224xbf16>
    %504 = vector.shape_cast %503 : vector<1x224x224xbf16> to vector<224x224xbf16>
    %cst_178 = arith.constant dense<0.000000e+00> : vector<56x224xf32>
    %505 = tpu.matmul %502, %504, %cst_178 {dimension_numbers = #tpu.dot_dimension_numbers<[1], [0], [0], [1], [0, 0, 1, 1], [], []>} : vector<56x224xbf16>, vector<224x224xbf16>, vector<56x224xf32> -> vector<56x224xf32>
    %506 = vector.extract_strided_slice %505 {offsets = [0, 0], sizes = [8, 224], strides = [1, 1]} : vector<56x224xf32> to vector<8x224xf32>
    %507 = arith.addf %488, %506 : vector<8x224xf32>
    %508 = vector.extract_strided_slice %505 {offsets = [8, 0], sizes = [8, 224], strides = [1, 1]} : vector<56x224xf32> to vector<8x224xf32>
    %509 = arith.addf %490, %508 : vector<8x224xf32>
    %510 = vector.extract_strided_slice %505 {offsets = [16, 0], sizes = [8, 224], strides = [1, 1]} : vector<56x224xf32> to vector<8x224xf32>
    %511 = arith.addf %492, %510 : vector<8x224xf32>
    %512 = vector.extract_strided_slice %505 {offsets = [24, 0], sizes = [8, 224], strides = [1, 1]} : vector<56x224xf32> to vector<8x224xf32>
    %513 = arith.addf %494, %512 : vector<8x224xf32>
    %514 = vector.extract_strided_slice %505 {offsets = [32, 0], sizes = [8, 224], strides = [1, 1]} : vector<56x224xf32> to vector<8x224xf32>
    %515 = arith.addf %496, %514 : vector<8x224xf32>
    %516 = vector.extract_strided_slice %505 {offsets = [40, 0], sizes = [8, 224], strides = [1, 1]} : vector<56x224xf32> to vector<8x224xf32>
    %517 = arith.addf %498, %516 : vector<8x224xf32>
    %518 = vector.extract_strided_slice %505 {offsets = [48, 0], sizes = [8, 224], strides = [1, 1]} : vector<56x224xf32> to vector<8x224xf32>
    %519 = arith.addf %500, %518 : vector<8x224xf32>
    %520 = tpu.concatenate %343, %363, %383, %403, %423, %443 in 0 : vector<8x224xf32>, vector<8x224xf32>, vector<8x224xf32>, vector<8x224xf32>, vector<8x224xf32>, vector<8x224xf32> -> vector<48x224xf32>
    %521 = arith.truncf %520 : vector<48x224xf32> to vector<48x224xbf16>
    %c4_179 = arith.constant 4 : index
    %c0_180 = arith.constant 0 : index
    %c0_181 = arith.constant 0 : index
    %522 = vector.load %arg5[%c4_179, %c0_180, %c0_181] : memref<5x224x224xbf16, #tpu.memory_space<vmem>>, vector<1x224x224xbf16>
    %523 = vector.shape_cast %522 : vector<1x224x224xbf16> to vector<224x224xbf16>
    %cst_182 = arith.constant dense<0.000000e+00> : vector<48x224xf32>
    %524 = tpu.matmul %521, %523, %cst_182 {dimension_numbers = #tpu.dot_dimension_numbers<[1], [0], [0], [1], [0, 0, 1, 1], [], []>} : vector<48x224xbf16>, vector<224x224xbf16>, vector<48x224xf32> -> vector<48x224xf32>
    %525 = vector.extract_strided_slice %524 {offsets = [0, 0], sizes = [8, 224], strides = [1, 1]} : vector<48x224xf32> to vector<8x224xf32>
    %526 = arith.addf %507, %525 : vector<8x224xf32>
    %527 = vector.extract_strided_slice %524 {offsets = [8, 0], sizes = [8, 224], strides = [1, 1]} : vector<48x224xf32> to vector<8x224xf32>
    %528 = arith.addf %509, %527 : vector<8x224xf32>
    %529 = vector.extract_strided_slice %524 {offsets = [16, 0], sizes = [8, 224], strides = [1, 1]} : vector<48x224xf32> to vector<8x224xf32>
    %530 = arith.addf %511, %529 : vector<8x224xf32>
    %531 = vector.extract_strided_slice %524 {offsets = [24, 0], sizes = [8, 224], strides = [1, 1]} : vector<48x224xf32> to vector<8x224xf32>
    %532 = arith.addf %513, %531 : vector<8x224xf32>
    %533 = vector.extract_strided_slice %524 {offsets = [32, 0], sizes = [8, 224], strides = [1, 1]} : vector<48x224xf32> to vector<8x224xf32>
    %534 = arith.addf %515, %533 : vector<8x224xf32>
    %535 = vector.extract_strided_slice %524 {offsets = [40, 0], sizes = [8, 224], strides = [1, 1]} : vector<48x224xf32> to vector<8x224xf32>
    %536 = arith.addf %517, %535 : vector<8x224xf32>
    %537 = vector.broadcast %454 : vector<1x224xf32> to vector<8x224xf32>
    %538 = arith.addf %526, %537 : vector<8x224xf32>
    %cst_183 = arith.constant 0.000000e+00 : f32
    %539 = vector.broadcast %cst_183 : f32 to vector<8x224xf32>
    %540 = arith.maximumf %538, %539 : vector<8x224xf32>
    %541 = math.absf %538 : vector<8x224xf32>
    %cst_184 = arith.constant 0.000000e+00 : f32
    %542 = vector.broadcast %cst_184 : f32 to vector<8x224xf32>
    %543 = arith.subf %542, %541 : vector<8x224xf32>
    %544 = math.exp %543 : vector<8x224xf32>
    %545 = math.log1p %544 : vector<8x224xf32>
    %546 = arith.addf %540, %545 : vector<8x224xf32>
    %547 = vector.broadcast %454 : vector<1x224xf32> to vector<8x224xf32>
    %548 = arith.addf %528, %547 : vector<8x224xf32>
    %cst_185 = arith.constant 0.000000e+00 : f32
    %549 = vector.broadcast %cst_185 : f32 to vector<8x224xf32>
    %550 = arith.maximumf %548, %549 : vector<8x224xf32>
    %551 = math.absf %548 : vector<8x224xf32>
    %cst_186 = arith.constant 0.000000e+00 : f32
    %552 = vector.broadcast %cst_186 : f32 to vector<8x224xf32>
    %553 = arith.subf %552, %551 : vector<8x224xf32>
    %554 = math.exp %553 : vector<8x224xf32>
    %555 = math.log1p %554 : vector<8x224xf32>
    %556 = arith.addf %550, %555 : vector<8x224xf32>
    %557 = vector.broadcast %454 : vector<1x224xf32> to vector<8x224xf32>
    %558 = arith.addf %530, %557 : vector<8x224xf32>
    %cst_187 = arith.constant 0.000000e+00 : f32
    %559 = vector.broadcast %cst_187 : f32 to vector<8x224xf32>
    %560 = arith.maximumf %558, %559 : vector<8x224xf32>
    %561 = math.absf %558 : vector<8x224xf32>
    %cst_188 = arith.constant 0.000000e+00 : f32
    %562 = vector.broadcast %cst_188 : f32 to vector<8x224xf32>
    %563 = arith.subf %562, %561 : vector<8x224xf32>
    %564 = math.exp %563 : vector<8x224xf32>
    %565 = math.log1p %564 : vector<8x224xf32>
    %566 = arith.addf %560, %565 : vector<8x224xf32>
    %567 = vector.broadcast %454 : vector<1x224xf32> to vector<8x224xf32>
    %568 = arith.addf %532, %567 : vector<8x224xf32>
    %cst_189 = arith.constant 0.000000e+00 : f32
    %569 = vector.broadcast %cst_189 : f32 to vector<8x224xf32>
    %570 = arith.maximumf %568, %569 : vector<8x224xf32>
    %571 = math.absf %568 : vector<8x224xf32>
    %cst_190 = arith.constant 0.000000e+00 : f32
    %572 = vector.broadcast %cst_190 : f32 to vector<8x224xf32>
    %573 = arith.subf %572, %571 : vector<8x224xf32>
    %574 = math.exp %573 : vector<8x224xf32>
    %575 = math.log1p %574 : vector<8x224xf32>
    %576 = arith.addf %570, %575 : vector<8x224xf32>
    %577 = vector.broadcast %454 : vector<1x224xf32> to vector<8x224xf32>
    %578 = arith.addf %534, %577 : vector<8x224xf32>
    %cst_191 = arith.constant 0.000000e+00 : f32
    %579 = vector.broadcast %cst_191 : f32 to vector<8x224xf32>
    %580 = arith.maximumf %578, %579 : vector<8x224xf32>
    %581 = math.absf %578 : vector<8x224xf32>
    %cst_192 = arith.constant 0.000000e+00 : f32
    %582 = vector.broadcast %cst_192 : f32 to vector<8x224xf32>
    %583 = arith.subf %582, %581 : vector<8x224xf32>
    %584 = math.exp %583 : vector<8x224xf32>
    %585 = math.log1p %584 : vector<8x224xf32>
    %586 = arith.addf %580, %585 : vector<8x224xf32>
    %587 = vector.broadcast %454 : vector<1x224xf32> to vector<8x224xf32>
    %588 = arith.addf %536, %587 : vector<8x224xf32>
    %cst_193 = arith.constant 0.000000e+00 : f32
    %589 = vector.broadcast %cst_193 : f32 to vector<8x224xf32>
    %590 = arith.maximumf %588, %589 : vector<8x224xf32>
    %591 = math.absf %588 : vector<8x224xf32>
    %cst_194 = arith.constant 0.000000e+00 : f32
    %592 = vector.broadcast %cst_194 : f32 to vector<8x224xf32>
    %593 = arith.subf %592, %591 : vector<8x224xf32>
    %594 = math.exp %593 : vector<8x224xf32>
    %595 = math.log1p %594 : vector<8x224xf32>
    %596 = arith.addf %590, %595 : vector<8x224xf32>
    %597 = vector.broadcast %454 : vector<1x224xf32> to vector<8x224xf32>
    %598 = arith.addf %519, %597 : vector<8x224xf32>
    %cst_195 = arith.constant 0.000000e+00 : f32
    %599 = vector.broadcast %cst_195 : f32 to vector<8x224xf32>
    %600 = arith.maximumf %598, %599 : vector<8x224xf32>
    %601 = math.absf %598 : vector<8x224xf32>
    %cst_196 = arith.constant 0.000000e+00 : f32
    %602 = vector.broadcast %cst_196 : f32 to vector<8x224xf32>
    %603 = arith.subf %602, %601 : vector<8x224xf32>
    %604 = math.exp %603 : vector<8x224xf32>
    %605 = math.log1p %604 : vector<8x224xf32>
    %606 = arith.addf %600, %605 : vector<8x224xf32>
    %c0_197 = arith.constant 0 : index
    %c0_198 = arith.constant 0 : index
    %607 = vector.load %arg8[%c0_197, %c0_198] : memref<1x128xf32, #tpu.memory_space<vmem>>, vector<1x128xf32>
    %608 = tpu.concatenate %546, %566, %586 in 0 : vector<8x224xf32>, vector<8x224xf32>, vector<8x224xf32> -> vector<24x224xf32>
    %609 = arith.truncf %608 : vector<24x224xf32> to vector<24x224xbf16>
    %c0_199 = arith.constant 0 : index
    %c0_200 = arith.constant 0 : index
    %c0_201 = arith.constant 0 : index
    %610 = vector.load %arg7[%c0_199, %c0_200, %c0_201] : memref<5x224x128xbf16, #tpu.memory_space<vmem>>, vector<1x224x128xbf16>
    %611 = vector.shape_cast %610 : vector<1x224x128xbf16> to vector<224x128xbf16>
    %cst_202 = arith.constant dense<0.000000e+00> : vector<24x128xf32>
    %612 = tpu.matmul %609, %611, %cst_202 {dimension_numbers = #tpu.dot_dimension_numbers<[1], [0], [0], [1], [0, 0, 1, 1], [], []>} : vector<24x224xbf16>, vector<224x128xbf16>, vector<24x128xf32> -> vector<24x128xf32>
    %613 = vector.extract_strided_slice %612 {offsets = [0, 0], sizes = [8, 128], strides = [1, 1]} : vector<24x128xf32> to vector<8x128xf32>
    %614 = vector.extract_strided_slice %612 {offsets = [8, 0], sizes = [8, 128], strides = [1, 1]} : vector<24x128xf32> to vector<8x128xf32>
    %615 = vector.extract_strided_slice %612 {offsets = [16, 0], sizes = [8, 128], strides = [1, 1]} : vector<24x128xf32> to vector<8x128xf32>
    %616 = tpu.concatenate %556, %576, %596 in 0 : vector<8x224xf32>, vector<8x224xf32>, vector<8x224xf32> -> vector<24x224xf32>
    %617 = arith.truncf %616 : vector<24x224xf32> to vector<24x224xbf16>
    %c1_203 = arith.constant 1 : index
    %c0_204 = arith.constant 0 : index
    %c0_205 = arith.constant 0 : index
    %618 = vector.load %arg7[%c1_203, %c0_204, %c0_205] : memref<5x224x128xbf16, #tpu.memory_space<vmem>>, vector<1x224x128xbf16>
    %619 = vector.shape_cast %618 : vector<1x224x128xbf16> to vector<224x128xbf16>
    %cst_206 = arith.constant dense<0.000000e+00> : vector<24x128xf32>
    %620 = tpu.matmul %617, %619, %cst_206 {dimension_numbers = #tpu.dot_dimension_numbers<[1], [0], [0], [1], [0, 0, 1, 1], [], []>} : vector<24x224xbf16>, vector<224x128xbf16>, vector<24x128xf32> -> vector<24x128xf32>
    %621 = vector.extract_strided_slice %620 {offsets = [0, 0], sizes = [8, 128], strides = [1, 1]} : vector<24x128xf32> to vector<8x128xf32>
    %622 = arith.addf %613, %621 : vector<8x128xf32>
    %623 = vector.extract_strided_slice %620 {offsets = [8, 0], sizes = [8, 128], strides = [1, 1]} : vector<24x128xf32> to vector<8x128xf32>
    %624 = arith.addf %614, %623 : vector<8x128xf32>
    %625 = vector.extract_strided_slice %620 {offsets = [16, 0], sizes = [8, 128], strides = [1, 1]} : vector<24x128xf32> to vector<8x128xf32>
    %626 = arith.addf %615, %625 : vector<8x128xf32>
    %627 = tpu.concatenate %546, %566, %586, %606 in 0 : vector<8x224xf32>, vector<8x224xf32>, vector<8x224xf32>, vector<8x224xf32> -> vector<32x224xf32>
    %628 = arith.truncf %627 : vector<32x224xf32> to vector<32x224xbf16>
    %c2_207 = arith.constant 2 : index
    %c0_208 = arith.constant 0 : index
    %c0_209 = arith.constant 0 : index
    %629 = vector.load %arg7[%c2_207, %c0_208, %c0_209] : memref<5x224x128xbf16, #tpu.memory_space<vmem>>, vector<1x224x128xbf16>
    %630 = vector.shape_cast %629 : vector<1x224x128xbf16> to vector<224x128xbf16>
    %cst_210 = arith.constant dense<0.000000e+00> : vector<32x128xf32>
    %631 = tpu.matmul %628, %630, %cst_210 {dimension_numbers = #tpu.dot_dimension_numbers<[1], [0], [0], [1], [0, 0, 1, 1], [], []>} : vector<32x224xbf16>, vector<224x128xbf16>, vector<32x128xf32> -> vector<32x128xf32>
    %632 = vector.extract_strided_slice %631 {offsets = [0, 0], sizes = [8, 128], strides = [1, 1]} : vector<32x128xf32> to vector<8x128xf32>
    %633 = vector.extract_strided_slice %631 {offsets = [8, 0], sizes = [8, 128], strides = [1, 1]} : vector<32x128xf32> to vector<8x128xf32>
    %634 = arith.addf %622, %633 : vector<8x128xf32>
    %635 = vector.extract_strided_slice %631 {offsets = [16, 0], sizes = [8, 128], strides = [1, 1]} : vector<32x128xf32> to vector<8x128xf32>
    %636 = arith.addf %624, %635 : vector<8x128xf32>
    %637 = vector.extract_strided_slice %631 {offsets = [24, 0], sizes = [8, 128], strides = [1, 1]} : vector<32x128xf32> to vector<8x128xf32>
    %638 = arith.addf %626, %637 : vector<8x128xf32>
    %639 = tpu.concatenate %556, %576, %596 in 0 : vector<8x224xf32>, vector<8x224xf32>, vector<8x224xf32> -> vector<24x224xf32>
    %640 = arith.truncf %639 : vector<24x224xf32> to vector<24x224xbf16>
    %c3_211 = arith.constant 3 : index
    %c0_212 = arith.constant 0 : index
    %c0_213 = arith.constant 0 : index
    %641 = vector.load %arg7[%c3_211, %c0_212, %c0_213] : memref<5x224x128xbf16, #tpu.memory_space<vmem>>, vector<1x224x128xbf16>
    %642 = vector.shape_cast %641 : vector<1x224x128xbf16> to vector<224x128xbf16>
    %cst_214 = arith.constant dense<0.000000e+00> : vector<24x128xf32>
    %643 = tpu.matmul %640, %642, %cst_214 {dimension_numbers = #tpu.dot_dimension_numbers<[1], [0], [0], [1], [0, 0, 1, 1], [], []>} : vector<24x224xbf16>, vector<224x128xbf16>, vector<24x128xf32> -> vector<24x128xf32>
    %644 = vector.extract_strided_slice %643 {offsets = [0, 0], sizes = [8, 128], strides = [1, 1]} : vector<24x128xf32> to vector<8x128xf32>
    %645 = arith.addf %632, %644 : vector<8x128xf32>
    %646 = vector.extract_strided_slice %643 {offsets = [8, 0], sizes = [8, 128], strides = [1, 1]} : vector<24x128xf32> to vector<8x128xf32>
    %647 = arith.addf %634, %646 : vector<8x128xf32>
    %648 = vector.extract_strided_slice %643 {offsets = [16, 0], sizes = [8, 128], strides = [1, 1]} : vector<24x128xf32> to vector<8x128xf32>
    %649 = arith.addf %636, %648 : vector<8x128xf32>
    %650 = tpu.concatenate %566, %586, %606 in 0 : vector<8x224xf32>, vector<8x224xf32>, vector<8x224xf32> -> vector<24x224xf32>
    %651 = arith.truncf %650 : vector<24x224xf32> to vector<24x224xbf16>
    %c4_215 = arith.constant 4 : index
    %c0_216 = arith.constant 0 : index
    %c0_217 = arith.constant 0 : index
    %652 = vector.load %arg7[%c4_215, %c0_216, %c0_217] : memref<5x224x128xbf16, #tpu.memory_space<vmem>>, vector<1x224x128xbf16>
    %653 = vector.shape_cast %652 : vector<1x224x128xbf16> to vector<224x128xbf16>
    %cst_218 = arith.constant dense<0.000000e+00> : vector<24x128xf32>
    %654 = tpu.matmul %651, %653, %cst_218 {dimension_numbers = #tpu.dot_dimension_numbers<[1], [0], [0], [1], [0, 0, 1, 1], [], []>} : vector<24x224xbf16>, vector<224x128xbf16>, vector<24x128xf32> -> vector<24x128xf32>
    %655 = vector.extract_strided_slice %654 {offsets = [0, 0], sizes = [8, 128], strides = [1, 1]} : vector<24x128xf32> to vector<8x128xf32>
    %656 = arith.addf %645, %655 : vector<8x128xf32>
    %657 = vector.extract_strided_slice %654 {offsets = [8, 0], sizes = [8, 128], strides = [1, 1]} : vector<24x128xf32> to vector<8x128xf32>
    %658 = arith.addf %647, %657 : vector<8x128xf32>
    %659 = vector.extract_strided_slice %654 {offsets = [16, 0], sizes = [8, 128], strides = [1, 1]} : vector<24x128xf32> to vector<8x128xf32>
    %660 = arith.addf %649, %659 : vector<8x128xf32>
    %661 = vector.broadcast %607 : vector<1x128xf32> to vector<8x128xf32>
    %662 = arith.addf %656, %661 : vector<8x128xf32>
    %cst_219 = arith.constant 0.000000e+00 : f32
    %663 = vector.broadcast %cst_219 : f32 to vector<8x128xf32>
    %664 = arith.maximumf %662, %663 : vector<8x128xf32>
    %665 = math.absf %662 : vector<8x128xf32>
    %cst_220 = arith.constant 0.000000e+00 : f32
    %666 = vector.broadcast %cst_220 : f32 to vector<8x128xf32>
    %667 = arith.subf %666, %665 : vector<8x128xf32>
    %668 = math.exp %667 : vector<8x128xf32>
    %669 = math.log1p %668 : vector<8x128xf32>
    %670 = arith.addf %664, %669 : vector<8x128xf32>
    %671 = vector.broadcast %607 : vector<1x128xf32> to vector<8x128xf32>
    %672 = arith.addf %658, %671 : vector<8x128xf32>
    %cst_221 = arith.constant 0.000000e+00 : f32
    %673 = vector.broadcast %cst_221 : f32 to vector<8x128xf32>
    %674 = arith.maximumf %672, %673 : vector<8x128xf32>
    %675 = math.absf %672 : vector<8x128xf32>
    %cst_222 = arith.constant 0.000000e+00 : f32
    %676 = vector.broadcast %cst_222 : f32 to vector<8x128xf32>
    %677 = arith.subf %676, %675 : vector<8x128xf32>
    %678 = math.exp %677 : vector<8x128xf32>
    %679 = math.log1p %678 : vector<8x128xf32>
    %680 = arith.addf %674, %679 : vector<8x128xf32>
    %681 = vector.broadcast %607 : vector<1x128xf32> to vector<8x128xf32>
    %682 = arith.addf %660, %681 : vector<8x128xf32>
    %cst_223 = arith.constant 0.000000e+00 : f32
    %683 = vector.broadcast %cst_223 : f32 to vector<8x128xf32>
    %684 = arith.maximumf %682, %683 : vector<8x128xf32>
    %685 = math.absf %682 : vector<8x128xf32>
    %cst_224 = arith.constant 0.000000e+00 : f32
    %686 = vector.broadcast %cst_224 : f32 to vector<8x128xf32>
    %687 = arith.subf %686, %685 : vector<8x128xf32>
    %688 = math.exp %687 : vector<8x128xf32>
    %689 = math.log1p %688 : vector<8x128xf32>
    %690 = arith.addf %684, %689 : vector<8x128xf32>
    %691 = vector.broadcast %607 : vector<1x128xf32> to vector<8x128xf32>
    %692 = arith.addf %638, %691 : vector<8x128xf32>
    %cst_225 = arith.constant 0.000000e+00 : f32
    %693 = vector.broadcast %cst_225 : f32 to vector<8x128xf32>
    %694 = arith.maximumf %692, %693 : vector<8x128xf32>
    %695 = math.absf %692 : vector<8x128xf32>
    %cst_226 = arith.constant 0.000000e+00 : f32
    %696 = vector.broadcast %cst_226 : f32 to vector<8x128xf32>
    %697 = arith.subf %696, %695 : vector<8x128xf32>
    %698 = math.exp %697 : vector<8x128xf32>
    %699 = math.log1p %698 : vector<8x128xf32>
    %700 = arith.addf %694, %699 : vector<8x128xf32>
    %701 = tpu.concatenate %670, %680, %690, %700 in 1 : vector<8x128xf32>, vector<8x128xf32>, vector<8x128xf32>, vector<8x128xf32> -> vector<8x512xf32>
    %702 = arith.truncf %701 : vector<8x512xf32> to vector<8x512xbf16>
    %c0_227 = arith.constant 0 : index
    %c0_228 = arith.constant 0 : index
    %703 = vector.load %arg9[%c0_227, %c0_228] : memref<512x800xbf16, #tpu.memory_space<vmem>>, vector<512x800xbf16>
    %cst_229 = arith.constant dense<0.000000e+00> : vector<8x800xf32>
    %704 = tpu.matmul %702, %703, %cst_229 {dimension_numbers = #tpu.dot_dimension_numbers<[1], [0], [0], [1], [0, 0, 1, 1], [], []>} : vector<8x512xbf16>, vector<512x800xbf16>, vector<8x800xf32> -> vector<8x800xf32>
    %c0_230 = arith.constant 0 : index
    %c0_231 = arith.constant 0 : index
    %705 = vector.load %arg10[%c0_230, %c0_231] : memref<1x800xf32, #tpu.memory_space<vmem>>, vector<1x800xf32>
    %706 = vector.broadcast %705 : vector<1x800xf32> to vector<8x800xf32>
    %707 = arith.addf %704, %706 : vector<8x800xf32>
    %cst_232 = arith.constant 0.000000e+00 : f32
    %708 = vector.broadcast %cst_232 : f32 to vector<8x800xf32>
    %709 = arith.maximumf %707, %708 : vector<8x800xf32>
    %710 = math.absf %707 : vector<8x800xf32>
    %cst_233 = arith.constant 0.000000e+00 : f32
    %711 = vector.broadcast %cst_233 : f32 to vector<8x800xf32>
    %712 = arith.subf %711, %710 : vector<8x800xf32>
    %713 = math.exp %712 : vector<8x800xf32>
    %714 = math.log1p %713 : vector<8x800xf32>
    %715 = arith.addf %709, %714 : vector<8x800xf32>
    %c0_234 = arith.constant 0 : index
    %c0_235 = arith.constant 0 : index
    %716 = vector.load %arg13[%c0_234, %c0_235] : memref<8x800xf32, #tpu.memory_space<vmem>>, vector<8x800xf32>
    tpu.vector_store %arg13[%c0_234, %c0_235], %715 {strides = array<i32>} : memref<8x800xf32, #tpu.memory_space<vmem>>, vector<8x800xf32>,
    %717 = arith.truncf %715 : vector<8x800xf32> to vector<8x800xbf16>
    %c0_236 = arith.constant 0 : index
    %c0_237 = arith.constant 0 : index
    %718 = vector.load %arg11[%c0_236, %c0_237] : memref<800x64xbf16, #tpu.memory_space<vmem>>, vector<800x64xbf16>
    %cst_238 = arith.constant dense<0.000000e+00> : vector<8x64xf32>
    %719 = tpu.matmul %717, %718, %cst_238 {dimension_numbers = #tpu.dot_dimension_numbers<[1], [0], [0], [1], [0, 0, 1, 1], [], []>} : vector<8x800xbf16>, vector<800x64xbf16>, vector<8x64xf32> -> vector<8x64xf32>
    %c0_239 = arith.constant 0 : index
    %c0_240 = arith.constant 0 : index
    %720 = vector.load %arg12[%c0_239, %c0_240] : memref<1x64xf32, #tpu.memory_space<vmem>>, vector<1x64xf32>
    %721 = vector.broadcast %720 : vector<1x64xf32> to vector<8x64xf32>
    %722 = arith.addf %719, %721 : vector<8x64xf32>
    %723 = vector.extract_strided_slice %722 {offsets = [0, 0], sizes = [8, 32], strides = [1, 1]} : vector<8x64xf32> to vector<8x32xf32>
    %724 = vector.extract_strided_slice %722 {offsets = [0, 32], sizes = [8, 32], strides = [1, 1]} : vector<8x64xf32> to vector<8x32xf32>
    %cst_241 = arith.constant 5.000000e-01 : f32
    %725 = vector.broadcast %cst_241 : f32 to vector<8x32xf32>
    %726 = arith.mulf %725, %724 : vector<8x32xf32>
    %727 = math.exp %726 : vector<8x32xf32>
    %cst_242 = arith.constant 1.000000e+00 : f32
    %728 = vector.broadcast %cst_242 : f32 to vector<8x32xf32>
    %729 = arith.mulf %728, %727 : vector<8x32xf32>
    %c0_243 = arith.constant 0 : index
    %c0_244 = arith.constant 0 : index
    %730 = vector.load %arg2[%c0_243, %c0_244] : memref<8x32xf32, #tpu.memory_space<vmem>>, vector<8x32xf32>
    %731 = arith.mulf %729, %730 : vector<8x32xf32>
    %732 = arith.addf %723, %731 : vector<8x32xf32>
    %cst_245 = arith.constant 0.000000e+00 : f32
    %733 = vector.broadcast %cst_245 : f32 to vector<8x32xf32>
    %734 = tpu.concatenate %732, %722, %733 in 1 : vector<8x32xf32>, vector<8x64xf32>, vector<8x32xf32> -> vector<8x128xf32>
    %c0_246 = arith.constant 0 : index
    %c0_247 = arith.constant 0 : index
    %735 = vector.load %arg14[%c0_246, %c0_247] : memref<8x128xf32, #tpu.memory_space<vmem>>, vector<8x128xf32>
    tpu.vector_store %arg14[%c0_246, %c0_247], %734 {strides = array<i32>} : memref<8x128xf32, #tpu.memory_space<vmem>>, vector<8x128xf32>,
    return
  }
  func.func @transform_0(%arg0: i32) -> (i32, i32, i32) {
    %c0_i32 = arith.constant 0 : i32
    %c0_i32_0 = arith.constant 0 : i32
    %c0_i32_1 = arith.constant 0 : i32
    return %c0_i32, %arg0, %c0_i32_0 : i32, i32, i32
  }
  func.func @transform_1(%arg0: i32) -> (i32, i32) {
    %c0_i32 = arith.constant 0 : i32
    %c0_i32_0 = arith.constant 0 : i32
    return %arg0, %c0_i32 : i32, i32
  }
  func.func @transform_2(%arg0: i32) -> (i32, i32, i32) {
    %c0_i32 = arith.constant 0 : i32
    %c0_i32_0 = arith.constant 0 : i32
    %c0_i32_1 = arith.constant 0 : i32
    %c0_i32_2 = arith.constant 0 : i32
    return %c0_i32, %c0_i32_0, %c0_i32_1 : i32, i32, i32
  }
  func.func @transform_3(%arg0: i32) -> (i32, i32) {
    %c0_i32 = arith.constant 0 : i32
    %c0_i32_0 = arith.constant 0 : i32
    %c0_i32_1 = arith.constant 0 : i32
    return %c0_i32, %c0_i32_0 : i32, i32
  }
  func.func @transform_4(%arg0: i32) -> (i32, i32, i32) {
    %c0_i32 = arith.constant 0 : i32
    %c0_i32_0 = arith.constant 0 : i32
    %c0_i32_1 = arith.constant 0 : i32
    %c0_i32_2 = arith.constant 0 : i32
    return %c0_i32, %c0_i32_0, %c0_i32_1 : i32, i32, i32
  }
  func.func @transform_5(%arg0: i32) -> (i32, i32) {
    %c0_i32 = arith.constant 0 : i32
    %c0_i32_0 = arith.constant 0 : i32
    %c0_i32_1 = arith.constant 0 : i32
    return %c0_i32, %c0_i32_0 : i32, i32
  }
  func.func @transform_6(%arg0: i32) -> (i32, i32, i32) {
    %c0_i32 = arith.constant 0 : i32
    %c0_i32_0 = arith.constant 0 : i32
    %c0_i32_1 = arith.constant 0 : i32
    %c0_i32_2 = arith.constant 0 : i32
    return %c0_i32, %c0_i32_0, %c0_i32_1 : i32, i32, i32
  }
  func.func @transform_7(%arg0: i32) -> (i32, i32) {
    %c0_i32 = arith.constant 0 : i32
    %c0_i32_0 = arith.constant 0 : i32
    %c0_i32_1 = arith.constant 0 : i32
    return %c0_i32, %c0_i32_0 : i32, i32
  }
  func.func @transform_8(%arg0: i32) -> (i32, i32) {
    %c0_i32 = arith.constant 0 : i32
    %c0_i32_0 = arith.constant 0 : i32
    %c0_i32_1 = arith.constant 0 : i32
    return %c0_i32, %c0_i32_0 : i32, i32
  }
  func.func @transform_9(%arg0: i32) -> (i32, i32) {
    %c0_i32 = arith.constant 0 : i32
    %c0_i32_0 = arith.constant 0 : i32
    %c0_i32_1 = arith.constant 0 : i32
    return %c0_i32, %c0_i32_0 : i32, i32
  }
  func.func @transform_10(%arg0: i32) -> (i32, i32) {
    %c0_i32 = arith.constant 0 : i32
    %c0_i32_0 = arith.constant 0 : i32
    %c0_i32_1 = arith.constant 0 : i32
    return %c0_i32, %c0_i32_0 : i32, i32
  }
  func.func @transform_11(%arg0: i32) -> (i32, i32) {
    %c0_i32 = arith.constant 0 : i32
    %c0_i32_0 = arith.constant 0 : i32
    %c0_i32_1 = arith.constant 0 : i32
    return %c0_i32, %c0_i32_0 : i32, i32
  }
  func.func @transform_12(%arg0: i32) -> (i32, i32) {
    %c0_i32 = arith.constant 0 : i32
    %c0_i32_0 = arith.constant 0 : i32
    return %arg0, %c0_i32 : i32, i32
  }
  func.func @transform_13(%arg0: i32) -> (i32, i32) {
    %c0_i32 = arith.constant 0 : i32
    %c0_i32_0 = arith.constant 0 : i32
    return %arg0, %c0_i32 : i32, i32
  }
}

</mosaic_0001>

<llo_original>
// kernel: aux_encoder_forward.1
$region0: #{aux_encoder_forward.1}
  #allocation0 [shape = 'u32[]', space=smem, size = 0x4, offset = 0x4, fixed_abs, tag = 'smem constant byte address 0x4 - core index']
  #allocation1 [shape = 'u32[144,128]{1,0:T(1,128)}', space=vmem, size = 0x12000, scoped, tag = 'internal scratch']
  %s0 = inlined_call_operand.vmem [shape: f32[28,16,28], index: 0, kind: input, shape index: {}]
  %s1 = inlined_call_operand.vmem [shape: f32[16,32], index: 1, kind: input, shape index: {}]
  %s2 = inlined_call_operand.vmem [shape: bf16[5,28,224], index: 2, kind: input, shape index: {}]
  %s3 = inlined_call_operand.vmem [shape: f32[1,224], index: 3, kind: input, shape index: {}]
  %s4 = inlined_call_operand.vmem [shape: bf16[5,224,224], index: 4, kind: input, shape index: {}]
  %s5 = inlined_call_operand.vmem [shape: f32[1,224], index: 5, kind: input, shape index: {}]
  %s6 = inlined_call_operand.vmem [shape: bf16[5,224,128], index: 6, kind: input, shape index: {}]
  %s7 = inlined_call_operand.vmem [shape: f32[1,128], index: 7, kind: input, shape index: {}]
  %s8 = inlined_call_operand.vmem [shape: bf16[512,800], index: 8, kind: input, shape index: {}]
  %s9 = inlined_call_operand.vmem [shape: f32[1,800], index: 9, kind: input, shape index: {}]
  %s10 = inlined_call_operand.vmem [shape: bf16[800,64], index: 10, kind: input, shape index: {}]
  %s11 = inlined_call_operand.vmem [shape: f32[1,64], index: 11, kind: input, shape index: {}]
  %s12 = inlined_call_operand.hbm [shape: f32[16,800], index: 12, kind: output, shape index: {0}]
  %s13 = inlined_call_operand.vmem [shape: f32[16,128], index: 13, kind: output, shape index: {1}]
  %14 = xla_tuple %s12, %s13
  %s15 = sld [smem:[#allocation0]]
  $region127: #{aux_encoder_forward.1} parent=0
    _
  %s17 = ssub.s32 1, %s15
  %s18 = scalar_select 0, %s17, %s15
  $region1: #{aux_encoder_forward.1} parent=0
    #allocation2 [shape = 'u8[229376]{0}', space=vmem, size = 0x38000, scoped, tag = 'input window, operand 0']
    #allocation3 [shape = 'u8[57344]{0}', space=vmem, size = 0xe000, scoped, tag = 'output window, operand 0']
    #allocation4 [shape = 's32[2]{0}', space=sflag, size = 0x8, scoped, tag = 'scoped memory for aux_encoder_forward.1']
    %19 = vsyncpa [#allocation4], 0
    %s20 = scalar_lea.sflag [#allocation4], 1
    %21 = vsyncpa %s20, 0
    loop: start=0, step=1, limit=4
    $region2: #{aux_encoder_forward.1} parent=1 // loop_pre_header
      _
    $region3: #{aux_encoder_forward.1} parent=1 // loop_header
      %s23 = sphi 0, %s27
      %p24 = scmp.ge.s32.totalorder %s23, 4
      %s33 = sphi 0, %s35
      %s36 = sphi 0, %s33
      %s37 = sphi 0, %s36
      %s53 = sphi 0, %s37
      %s59 = sphi 0, %s61
      %s62 = sphi 0, %s59
      %s63 = sphi 0, %s62
      %s79 = sphi 0, %s63
      %s83 = sphi 0, %s83
      %s85 = sphi 0, %s83
      %s86 = sphi 0, %s85
      %s100 = sphi 0, %s86
      %s104 = sphi 0, %s104
      %s106 = sphi 0, %s104
      %s107 = sphi 0, %s106
      %s121 = sphi 0, %s107
      %s125 = sphi 0, %s125
      %s127 = sphi 0, %s125
      %s128 = sphi 0, %s127
      %s142 = sphi 0, %s128
      %s146 = sphi 0, %s146
      %s148 = sphi 0, %s146
      %s149 = sphi 0, %s148
      %s163 = sphi 0, %s149
      %s167 = sphi 0, %s167
      %s169 = sphi 0, %s167
      %s170 = sphi 0, %s169
      %s184 = sphi 0, %s170
      %s188 = sphi 0, %s188
      %s190 = sphi 0, %s188
      %s191 = sphi 0, %s190
      %s205 = sphi 0, %s191
      %s209 = sphi 0, %s209
      %s211 = sphi 0, %s209
      %s212 = sphi 0, %s211
      %s226 = sphi 0, %s212
      %s230 = sphi 0, %s230
      %s232 = sphi 0, %s230
      %s233 = sphi 0, %s232
      %s247 = sphi 0, %s233
      %s251 = sphi 0, %s251
      %s253 = sphi 0, %s251
      %s254 = sphi 0, %s253
      %s268 = sphi 0, %s254
      %s272 = sphi 0, %s272
      %s274 = sphi 0, %s272
      %s275 = sphi 0, %s274
      %s289 = sphi 0, %s275
      %s295 = sphi 0, %s297
      %s298 = sphi 0, %s295
      %s299 = sphi 0, %s298
      %s315 = sphi 0, %s299
      %s321 = sphi 0, %s323
      %s324 = sphi 0, %s321
      %s325 = sphi 0, %s324
      %s341 = sphi 0, %s325
    $region4: #{aux_encoder_forward.1} parent=1 // loop_header_branch
      %26 = sbr.rel (%p24) target = $region8
    $region5: #{aux_encoder_forward.1} parent=1 // loop_body
      %s28 = ssub.s32 %s23, 1
      %s29 = ssub.s32 %s23, 2
      %s30 = sadd.s32 %s23, 1
      %s31 = ssub.s32 %s23, %s30
      %p32 = scmp.eq.s32.totalorder %s31, 0
      %s34 = sadd.s32 %s33, 1
      %s35 = scalar_select %p32, %s33, %s34
      %p38 = pneg %p32
      %p39 = scmp.eq.s32.totalorder %s23, 1
      %p40 = por %p38, %p39
      %p41 = scmp.ne.s32.totalorder %s33, %s36
      %p42 = scmp.eq.s32.totalorder %s23, 0
      %p43 = por %p41, %p42
      %p44 = scmp.ne.s32.totalorder %s33, %s36
      %p45 = scmp.eq.s32.totalorder %s28, 1
      %p46 = por %p44, %p45
      %p47 = scmp.ne.s32.totalorder %s36, %s37
      %p48 = scmp.eq.s32.totalorder %s28, 0
      %p49 = por %p47, %p48
      %p50 = scmp.ne.s32.totalorder %s36, %s37
      %p51 = scmp.eq.s32.totalorder %s29, 1
      %p52 = por %p50, %p51
      %p54 = scmp.ne.s32.totalorder %s37, %s53
      %p55 = scmp.eq.s32.totalorder %s29, 0
      %p56 = por %p54, %p55
      %s57 = ssub.s32 %s23, %s30
      %p58 = scmp.eq.s32.totalorder %s57, 0
      %s60 = sadd.s32 %s59, 1
      %s61 = scalar_select %p58, %s59, %s60
      %p64 = pneg %p58
      %p65 = scmp.eq.s32.totalorder %s23, 1
      %p66 = por %p64, %p65
      %p67 = scmp.ne.s32.totalorder %s59, %s62
      %p68 = scmp.eq.s32.totalorder %s23, 0
      %p69 = por %p67, %p68
      %p70 = scmp.ne.s32.totalorder %s59, %s62
      %p71 = scmp.eq.s32.totalorder %s28, 1
      %p72 = por %p70, %p71
      %p73 = scmp.ne.s32.totalorder %s62, %s63
      %p74 = scmp.eq.s32.totalorder %s28, 0
      %p75 = por %p73, %p74
      %p76 = scmp.ne.s32.totalorder %s62, %s63
      %p77 = scmp.eq.s32.totalorder %s29, 1
      %p78 = por %p76, %p77
      %p80 = scmp.ne.s32.totalorder %s63, %s79
      %p81 = scmp.eq.s32.totalorder %s29, 0
      %p82 = por %p80, %p81
      %s84 = sadd.s32 %s83, 1
      %p87 = scmp.eq.s32.totalorder %s23, 1
      %p88 = scmp.ne.s32.totalorder %s83, %s85
      %p89 = scmp.eq.s32.totalorder %s23, 0
      %p90 = por %p88, %p89
      %p91 = scmp.ne.s32.totalorder %s83, %s85
      %p92 = scmp.eq.s32.totalorder %s28, 1
      %p93 = por %p91, %p92
      %p94 = scmp.ne.s32.totalorder %s85, %s86
      %p95 = scmp.eq.s32.totalorder %s28, 0
      %p96 = por %p94, %p95
      %p97 = scmp.ne.s32.totalorder %s85, %s86
      %p98 = scmp.eq.s32.totalorder %s29, 1
      %p99 = por %p97, %p98
      %p101 = scmp.ne.s32.totalorder %s86, %s100
      %p102 = scmp.eq.s32.totalorder %s29, 0
      %p103 = por %p101, %p102
      %s105 = sadd.s32 %s104, 1
      %p108 = scmp.eq.s32.totalorder %s23, 1
      %p109 = scmp.ne.s32.totalorder %s104, %s106
      %p110 = scmp.eq.s32.totalorder %s23, 0
      %p111 = por %p109, %p110
      %p112 = scmp.ne.s32.totalorder %s104, %s106
      %p113 = scmp.eq.s32.totalorder %s28, 1
      %p114 = por %p112, %p113
      %p115 = scmp.ne.s32.totalorder %s106, %s107
      %p116 = scmp.eq.s32.totalorder %s28, 0
      %p117 = por %p115, %p116
      %p118 = scmp.ne.s32.totalorder %s106, %s107
      %p119 = scmp.eq.s32.totalorder %s29, 1
      %p120 = por %p118, %p119
      %p122 = scmp.ne.s32.totalorder %s107, %s121
      %p123 = scmp.eq.s32.totalorder %s29, 0
      %p124 = por %p122, %p123
      %s126 = sadd.s32 %s125, 1
      %p129 = scmp.eq.s32.totalorder %s23, 1
      %p130 = scmp.ne.s32.totalorder %s125, %s127
      %p131 = scmp.eq.s32.totalorder %s23, 0
      %p132 = por %p130, %p131
      %p133 = scmp.ne.s32.totalorder %s125, %s127
      %p134 = scmp.eq.s32.totalorder %s28, 1
      %p135 = por %p133, %p134
      %p136 = scmp.ne.s32.totalorder %s127, %s128
      %p137 = scmp.eq.s32.totalorder %s28, 0
      %p138 = por %p136, %p137
      %p139 = scmp.ne.s32.totalorder %s127, %s128
      %p140 = scmp.eq.s32.totalorder %s29, 1
      %p141 = por %p139, %p140
      %p143 = scmp.ne.s32.totalorder %s128, %s142
      %p144 = scmp.eq.s32.totalorder %s29, 0
      %p145 = por %p143, %p144
      %s147 = sadd.s32 %s146, 1
      %p150 = scmp.eq.s32.totalorder %s23, 1
      %p151 = scmp.ne.s32.totalorder %s146, %s148
      %p152 = scmp.eq.s32.totalorder %s23, 0
      %p153 = por %p151, %p152
      %p154 = scmp.ne.s32.totalorder %s146, %s148
      %p155 = scmp.eq.s32.totalorder %s28, 1
      %p156 = por %p154, %p155
      %p157 = scmp.ne.s32.totalorder %s148, %s149
      %p158 = scmp.eq.s32.totalorder %s28, 0
      %p159 = por %p157, %p158
      %p160 = scmp.ne.s32.totalorder %s148, %s149
      %p161 = scmp.eq.s32.totalorder %s29, 1
      %p162 = por %p160, %p161
      %p164 = scmp.ne.s32.totalorder %s149, %s163
      %p165 = scmp.eq.s32.totalorder %s29, 0
      %p166 = por %p164, %p165
      %s168 = sadd.s32 %s167, 1
      %p171 = scmp.eq.s32.totalorder %s23, 1
      %p172 = scmp.ne.s32.totalorder %s167, %s169
      %p173 = scmp.eq.s32.totalorder %s23, 0
      %p174 = por %p172, %p173
      %p175 = scmp.ne.s32.totalorder %s167, %s169
      %p176 = scmp.eq.s32.totalorder %s28, 1
      %p177 = por %p175, %p176
      %p178 = scmp.ne.s32.totalorder %s169, %s170
      %p179 = scmp.eq.s32.totalorder %s28, 0
      %p180 = por %p178, %p179
      %p181 = scmp.ne.s32.totalorder %s169, %s170
      %p182 = scmp.eq.s32.totalorder %s29, 1
      %p183 = por %p181, %p182
      %p185 = scmp.ne.s32.totalorder %s170, %s184
      %p186 = scmp.eq.s32.totalorder %s29, 0
      %p187 = por %p185, %p186
      %s189 = sadd.s32 %s188, 1
      %p192 = scmp.eq.s32.totalorder %s23, 1
      %p193 = scmp.ne.s32.totalorder %s188, %s190
      %p194 = scmp.eq.s32.totalorder %s23, 0
      %p195 = por %p193, %p194
      %p196 = scmp.ne.s32.totalorder %s188, %s190
      %p197 = scmp.eq.s32.totalorder %s28, 1
      %p198 = por %p196, %p197
      %p199 = scmp.ne.s32.totalorder %s190, %s191
      %p200 = scmp.eq.s32.totalorder %s28, 0
      %p201 = por %p199, %p200
      %p202 = scmp.ne.s32.totalorder %s190, %s191
      %p203 = scmp.eq.s32.totalorder %s29, 1
      %p204 = por %p202, %p203
      %p206 = scmp.ne.s32.totalorder %s191, %s205
      %p207 = scmp.eq.s32.totalorder %s29, 0
      %p208 = por %p206, %p207
      %s210 = sadd.s32 %s209, 1
      %p213 = scmp.eq.s32.totalorder %s23, 1
      %p214 = scmp.ne.s32.totalorder %s209, %s211
      %p215 = scmp.eq.s32.totalorder %s23, 0
      %p216 = por %p214, %p215
      %p217 = scmp.ne.s32.totalorder %s209, %s211
      %p218 = scmp.eq.s32.totalorder %s28, 1
      %p219 = por %p217, %p218
      %p220 = scmp.ne.s32.totalorder %s211, %s212
      %p221 = scmp.eq.s32.totalorder %s28, 0
      %p222 = por %p220, %p221
      %p223 = scmp.ne.s32.totalorder %s211, %s212
      %p224 = scmp.eq.s32.totalorder %s29, 1
      %p225 = por %p223, %p224
      %p227 = scmp.ne.s32.totalorder %s212, %s226
      %p228 = scmp.eq.s32.totalorder %s29, 0
      %p229 = por %p227, %p228
      %s231 = sadd.s32 %s230, 1
      %p234 = scmp.eq.s32.totalorder %s23, 1
      %p235 = scmp.ne.s32.totalorder %s230, %s232
      %p236 = scmp.eq.s32.totalorder %s23, 0
      %p237 = por %p235, %p236
      %p238 = scmp.ne.s32.totalorder %s230, %s232
      %p239 = scmp.eq.s32.totalorder %s28, 1
      %p240 = por %p238, %p239
      %p241 = scmp.ne.s32.totalorder %s232, %s233
      %p242 = scmp.eq.s32.totalorder %s28, 0
      %p243 = por %p241, %p242
      %p244 = scmp.ne.s32.totalorder %s232, %s233
      %p245 = scmp.eq.s32.totalorder %s29, 1
      %p246 = por %p244, %p245
      %p248 = scmp.ne.s32.totalorder %s233, %s247
      %p249 = scmp.eq.s32.totalorder %s29, 0
      %p250 = por %p248, %p249
      %s252 = sadd.s32 %s251, 1
      %p255 = scmp.eq.s32.totalorder %s23, 1
      %p256 = scmp.ne.s32.totalorder %s251, %s253
      %p257 = scmp.eq.s32.totalorder %s23, 0
      %p258 = por %p256, %p257
      %p259 = scmp.ne.s32.totalorder %s251, %s253
      %p260 = scmp.eq.s32.totalorder %s28, 1
      %p261 = por %p259, %p260
      %p262 = scmp.ne.s32.totalorder %s253, %s254
      %p263 = scmp.eq.s32.totalorder %s28, 0
      %p264 = por %p262, %p263
      %p265 = scmp.ne.s32.totalorder %s253, %s254
      %p266 = scmp.eq.s32.totalorder %s29, 1
      %p267 = por %p265, %p266
      %p269 = scmp.ne.s32.totalorder %s254, %s268
      %p270 = scmp.eq.s32.totalorder %s29, 0
      %p271 = por %p269, %p270
      %s273 = sadd.s32 %s272, 1
      %p276 = scmp.eq.s32.totalorder %s23, 1
      %p277 = scmp.ne.s32.totalorder %s272, %s274
      %p278 = scmp.eq.s32.totalorder %s23, 0
      %p279 = por %p277, %p278
      %p280 = scmp.ne.s32.totalorder %s272, %s274
      %p281 = scmp.eq.s32.totalorder %s28, 1
      %p282 = por %p280, %p281
      %p283 = scmp.ne.s32.totalorder %s274, %s275
      %p284 = scmp.eq.s32.totalorder %s28, 0
      %p285 = por %p283, %p284
      %p286 = scmp.ne.s32.totalorder %s274, %s275
      %p287 = scmp.eq.s32.totalorder %s29, 1
      %p288 = por %p286, %p287
      %p290 = scmp.ne.s32.totalorder %s275, %s289
      %p291 = scmp.eq.s32.totalorder %s29, 0
      %p292 = por %p290, %p291
      %s293 = ssub.s32 %s23, %s30
      %p294 = scmp.eq.s32.totalorder %s293, 0
      %s296 = sadd.s32 %s295, 1
      %s297 = scalar_select %p294, %s295, %s296
      %p300 = pneg %p294
      %p301 = scmp.eq.s32.totalorder %s23, 1
      %p302 = por %p300, %p301
      %p303 = scmp.ne.s32.totalorder %s295, %s298
      %p304 = scmp.eq.s32.totalorder %s23, 0
      %p305 = por %p303, %p304
      %p306 = scmp.ne.s32.totalorder %s295, %s298
      %p307 = scmp.eq.s32.totalorder %s28, 1
      %p308 = por %p306, %p307
      %p309 = scmp.ne.s32.totalorder %s298, %s299
      %p310 = scmp.eq.s32.totalorder %s28, 0
      %p311 = por %p309, %p310
      %p312 = scmp.ne.s32.totalorder %s298, %s299
      %p313 = scmp.eq.s32.totalorder %s29, 1
      %p314 = por %p312, %p313
      %p316 = scmp.ne.s32.totalorder %s299, %s315
      %p317 = scmp.eq.s32.totalorder %s29, 0
      %p318 = por %p316, %p317
      %s319 = ssub.s32 %s23, %s30
      %p320 = scmp.eq.s32.totalorder %s319, 0
      %s322 = sadd.s32 %s321, 1
      %s323 = scalar_select %p320, %s321, %s322
      %p326 = pneg %p320
      %p327 = scmp.eq.s32.totalorder %s23, 1
      %p328 = por %p326, %p327
      %p329 = scmp.ne.s32.totalorder %s321, %s324
      %p330 = scmp.eq.s32.totalorder %s23, 0
      %p331 = por %p329, %p330
      %p332 = scmp.ne.s32.totalorder %s321, %s324
      %p333 = scmp.eq.s32.totalorder %s28, 1
      %p334 = por %p332, %p333
      %p335 = scmp.ne.s32.totalorder %s324, %s325
      %p336 = scmp.eq.s32.totalorder %s28, 0
      %p337 = por %p335, %p336
      %p338 = scmp.ne.s32.totalorder %s324, %s325
      %p339 = scmp.eq.s32.totalorder %s29, 1
      %p340 = por %p338, %p339
      %p342 = scmp.ne.s32.totalorder %s325, %s341
      %p343 = scmp.eq.s32.totalorder %s29, 0
      %p344 = por %p342, %p343
      %p345 = scmp.le.s32.totalorder 1, %s23
      %p346 = scmp.lt.s32.totalorder %s23, 3
      %p347 = pnand %p345, %p346
      %p348 = pneg %p347
      // Predicated region
      $region9: #{aux_encoder_forward.1} parent=5 // pred_check
        _
      $region10: #{aux_encoder_forward.1} parent=5 // pred_check_branch
        %350 = sbr.rel (%p347) target = $region12
      $region11: #{aux_encoder_forward.1} parent=5 // pred_region
        %s351 = ssub.s32 %s23, 1
        // Predicated region
        $region13: #{aux_encoder_forward.1} parent=11 // pred_check
          %p352 = pneg %p96
        $region14: #{aux_encoder_forward.1} parent=11 // pred_check_branch
          %354 = sbr.rel (%p352) target = $region16
        $region15: #{aux_encoder_forward.1} parent=11 // pred_region
          _
        $region16: #{aux_encoder_forward.1} parent=11 // pred_fallthru
          _
        // Predicated region
        $region17: #{aux_encoder_forward.1} parent=11 // pred_check
          %p355 = pneg %p117
        $region18: #{aux_encoder_forward.1} parent=11 // pred_check_branch
          %357 = sbr.rel (%p355) target = $region20
        $region19: #{aux_encoder_forward.1} parent=11 // pred_region
          _
        $region20: #{aux_encoder_forward.1} parent=11 // pred_fallthru
          _
        // Predicated region
        $region21: #{aux_encoder_forward.1} parent=11 // pred_check
          %p358 = pneg %p138
        $region22: #{aux_encoder_forward.1} parent=11 // pred_check_branch
          %360 = sbr.rel (%p358) target = $region24
        $region23: #{aux_encoder_forward.1} parent=11 // pred_region
          _
        $region24: #{aux_encoder_forward.1} parent=11 // pred_fallthru
          _
        // Predicated region
        $region25: #{aux_encoder_forward.1} parent=11 // pred_check
          %p361 = pneg %p159
        $region26: #{aux_encoder_forward.1} parent=11 // pred_check_branch
          %363 = sbr.rel (%p361) target = $region28
        $region27: #{aux_encoder_forward.1} parent=11 // pred_region
          _
        $region28: #{aux_encoder_forward.1} parent=11 // pred_fallthru
          _
        // Predicated region
        $region29: #{aux_encoder_forward.1} parent=11 // pred_check
          %p364 = pneg %p180
        $region30: #{aux_encoder_forward.1} parent=11 // pred_check_branch
          %366 = sbr.rel (%p364) target = $region32
        $region31: #{aux_encoder_forward.1} parent=11 // pred_region
          _
        $region32: #{aux_encoder_forward.1} parent=11 // pred_fallthru
          _
        // Predicated region
        $region33: #{aux_encoder_forward.1} parent=11 // pred_check
          %p367 = pneg %p201
        $region34: #{aux_encoder_forward.1} parent=11 // pred_check_branch
          %369 = sbr.rel (%p367) target = $region36
        $region35: #{aux_encoder_forward.1} parent=11 // pred_region
          _
        $region36: #{aux_encoder_forward.1} parent=11 // pred_fallthru
          _
        // Predicated region
        $region37: #{aux_encoder_forward.1} parent=11 // pred_check
          %p370 = pneg %p222
        $region38: #{aux_encoder_forward.1} parent=11 // pred_check_branch
          %372 = sbr.rel (%p370) target = $region40
        $region39: #{aux_encoder_forward.1} parent=11 // pred_region
          _
        $region40: #{aux_encoder_forward.1} parent=11 // pred_fallthru
          _
        // Predicated region
        $region41: #{aux_encoder_forward.1} parent=11 // pred_check
          %p373 = pneg %p243
        $region42: #{aux_encoder_forward.1} parent=11 // pred_check_branch
          %375 = sbr.rel (%p373) target = $region44
        $region43: #{aux_encoder_forward.1} parent=11 // pred_region
          _
        $region44: #{aux_encoder_forward.1} parent=11 // pred_fallthru
          _
        // Predicated region
        $region45: #{aux_encoder_forward.1} parent=11 // pred_check
          %p376 = pneg %p264
        $region46: #{aux_encoder_forward.1} parent=11 // pred_check_branch
          %378 = sbr.rel (%p376) target = $region48
        $region47: #{aux_encoder_forward.1} parent=11 // pred_region
          _
        $region48: #{aux_encoder_forward.1} parent=11 // pred_fallthru
          _
        // Predicated region
        $region49: #{aux_encoder_forward.1} parent=11 // pred_check
          %p379 = pneg %p285
        $region50: #{aux_encoder_forward.1} parent=11 // pred_check_branch
          %381 = sbr.rel (%p379) target = $region52
        $region51: #{aux_encoder_forward.1} parent=11 // pred_region
          _
        $region52: #{aux_encoder_forward.1} parent=11 // pred_fallthru
          _
      $region12: #{aux_encoder_forward.1} parent=5 // pred_fallthru
        _
      %p382 = scmp.lt.s32.totalorder %s23, 2
      // Predicated region
      $region53: #{aux_encoder_forward.1} parent=5 // pred_check
        %p383 = pneg %p382
      $region54: #{aux_encoder_forward.1} parent=5 // pred_check_branch
        %385 = sbr.rel (%p383) target = $region56
      $region55: #{aux_encoder_forward.1} parent=5 // pred_region
        // Predicated region
        $region57: #{aux_encoder_forward.1} parent=55 // pred_check
          %p386 = pneg %p43
        $region58: #{aux_encoder_forward.1} parent=55 // pred_check_branch
          %388 = sbr.rel (%p386) target = $region60
        $region59: #{aux_encoder_forward.1} parent=55 // pred_region
          %s389 = sand.u32 %s33, 1
          %s390 = sand.u32 %s33, 1
          %s391 = smul.addr %s390, 224
          %s392 = scalar_lea.vmem [#allocation2], %s391
          %s393 = smul.addr %s23, 8
          %s394 = scalar_lea.vmem %s0, %s393
          // Predicated region
          $region61: #{aux_encoder_forward.1} parent=59 // pred_check
            _
          $region62: #{aux_encoder_forward.1} parent=59 // pred_check_branch
            %396 = sbr.rel (0) target = $region64
          $region63: #{aux_encoder_forward.1} parent=59 // pred_region
            // Predicated region
            $region65: #{aux_encoder_forward.1} parent=63 // pred_check
              _
            $region66: #{aux_encoder_forward.1} parent=63 // pred_check_branch
              %398 = sbr.rel (0) target = $region68
            $region67: #{aux_encoder_forward.1} parent=63 // pred_region
              // Predicated region
              $region80: #{aux_encoder_forward.1} parent=67 // pred_check
                _
              $region81: #{aux_encoder_forward.1} parent=67 // pred_check_branch
                %468 = sbr.rel (0) target = $region83
              $region82: #{aux_encoder_forward.1} parent=67 // pred_region
                loop: start=0, step=1, limit=1
                $region84: #{aux_encoder_forward.1} parent=82 // loop_pre_header
                  _
                $region85: #{aux_encoder_forward.1} parent=82 // loop_header
                  %s470 = sphi 0, %s474
                  %p471 = scmp.ge.s32.totalorder %s470, 1
                  %s475 = sphi %s394, %s394
                  %s476 = sphi %s392, %s392
                $region86: #{aux_encoder_forward.1} parent=82 // loop_header_branch
                  %473 = sbr.rel (%p471) target = $region90
                $region87: #{aux_encoder_forward.1} parent=82 // loop_body
                  %v477 = vld [vmem:[%s475] sm:$0xff]
                  %478 = vst [vmem:[%s476] sm:$0xff] %v477
                  %v479 = vld [vmem:[%s475 + $0x10] sm:$0xff]
                  %480 = vst [vmem:[%s476 + $0x8] sm:$0xff] %v479
                  %v481 = vld [vmem:[%s475 + $0x20] sm:$0xff]
                  %482 = vst [vmem:[%s476 + $0x10] sm:$0xff] %v481
                  %v483 = vld [vmem:[%s475 + $0x30] sm:$0xff]
                  %484 = vst [vmem:[%s476 + $0x18] sm:$0xff] %v483
                  %v485 = vld [vmem:[%s475 + $0x40] sm:$0xff]
                  %486 = vst [vmem:[%s476 + $0x20] sm:$0xff] %v485
                  %v487 = vld [vmem:[%s475 + $0x50] sm:$0xff]
                  %488 = vst [vmem:[%s476 + $0x28] sm:$0xff] %v487
                  %v489 = vld [vmem:[%s475 + $0x60] sm:$0xff]
                  %490 = vst [vmem:[%s476 + $0x30] sm:$0xff] %v489
                  %v491 = vld [vmem:[%s475 + $0x70] sm:$0xff]
                  %492 = vst [vmem:[%s476 + $0x38] sm:$0xff] %v491
                  %v493 = vld [vmem:[%s475 + $0x80] sm:$0xff]
                  %494 = vst [vmem:[%s476 + $0x40] sm:$0xff] %v493
                  %v495 = vld [vmem:[%s475 + $0x90] sm:$0xff]
                  %496 = vst [vmem:[%s476 + $0x48] sm:$0xff] %v495
                  %v497 = vld [vmem:[%s475 + $0xa0] sm:$0xff]
                  %498 = vst [vmem:[%s476 + $0x50] sm:$0xff] %v497
                  %v499 = vld [vmem:[%s475 + $0xb0] sm:$0xff]
                  %500 = vst [vmem:[%s476 + $0x58] sm:$0xff] %v499
                  %v501 = vld [vmem:[%s475 + $0xc0] sm:$0xff]
                  %502 = vst [vmem:[%s476 + $0x60] sm:$0xff] %v501
                  %v503 = vld [vmem:[%s475 + $0xd0] sm:$0xff]
                  %504 = vst [vmem:[%s476 + $0x68] sm:$0xff] %v503
                  %v505 = vld [vmem:[%s475 + $0xe0] sm:$0xff]
                  %506 = vst [vmem:[%s476 + $0x70] sm:$0xff] %v505
                  %v507 = vld [vmem:[%s475 + $0xf0] sm:$0xff]
                  %508 = vst [vmem:[%s476 + $0x78] sm:$0xff] %v507
                  %v509 = vld [vmem:[%s475 + $0x100] sm:$0xff]
                  %510 = vst [vmem:[%s476 + $0x80] sm:$0xff] %v509
                  %v511 = vld [vmem:[%s475 + $0x110] sm:$0xff]
                  %512 = vst [vmem:[%s476 + $0x88] sm:$0xff] %v511
                  %v513 = vld [vmem:[%s475 + $0x120] sm:$0xff]
                  %514 = vst [vmem:[%s476 + $0x90] sm:$0xff] %v513
                  %v515 = vld [vmem:[%s475 + $0x130] sm:$0xff]
                  %516 = vst [vmem:[%s476 + $0x98] sm:$0xff] %v515
                  %v517 = vld [vmem:[%s475 + $0x140] sm:$0xff]
                  %518 = vst [vmem:[%s476 + $0xa0] sm:$0xff] %v517
                  %v519 = vld [vmem:[%s475 + $0x150] sm:$0xff]
                  %520 = vst [vmem:[%s476 + $0xa8] sm:$0xff] %v519
                  %v521 = vld [vmem:[%s475 + $0x160] sm:$0xff]
                  %522 = vst [vmem:[%s476 + $0xb0] sm:$0xff] %v521
                  %v523 = vld [vmem:[%s475 + $0x170] sm:$0xff]
                  %524 = vst [vmem:[%s476 + $0xb8] sm:$0xff] %v523
                  %v525 = vld [vmem:[%s475 + $0x180] sm:$0xff]
                  %526 = vst [vmem:[%s476 + $0xc0] sm:$0xff] %v525
                  %v527 = vld [vmem:[%s475 + $0x190] sm:$0xff]
                  %528 = vst [vmem:[%s476 + $0xc8] sm:$0xff] %v527
                  %v529 = vld [vmem:[%s475 + $0x1a0] sm:$0xff]
                  %530 = vst [vmem:[%s476 + $0xd0] sm:$0xff] %v529
                  %v531 = vld [vmem:[%s475 + $0x1b0] sm:$0xff]
                  %532 = vst [vmem:[%s476 + $0xd8] sm:$0xff] %v531
                $region88: #{aux_encoder_forward.1} parent=82 // loop_footer
                  %s474 = sadd.s32 1, %s470
                $region89: #{aux_encoder_forward.1} parent=82 // loop_footer_branch
                  %469 = sbr.rel target = $region85
                $region90: #{aux_encoder_forward.1} parent=82 // loop_exit
                  _
              $region83: #{aux_encoder_forward.1} parent=67 // pred_fallthru
                _
              // Predicated region
              $region91: #{aux_encoder_forward.1} parent=67 // pred_check
                _
              $region92: #{aux_encoder_forward.1} parent=67 // pred_check_branch
                %534 = sbr.rel target = $region94
              $region93: #{aux_encoder_forward.1} parent=67 // pred_region
                _
              $region94: #{aux_encoder_forward.1} parent=67 // pred_fallthru
                _
            $region68: #{aux_encoder_forward.1} parent=63 // pred_fallthru
              _
            // Predicated region
            $region69: #{aux_encoder_forward.1} parent=63 // pred_check
              _
            $region70: #{aux_encoder_forward.1} parent=63 // pred_check_branch
              %400 = sbr.rel target = $region72
            $region71: #{aux_encoder_forward.1} parent=63 // pred_region
              %s402 = ssub.s32 256, 1
              loop: start=0, step=1, limit=1
              $region73: #{aux_encoder_forward.1} parent=71 // loop_pre_header
                _
              $region74: #{aux_encoder_forward.1} parent=71 // loop_header
                %s404 = sphi 0, %s408
                %p405 = scmp.ge.s32.totalorder %s404, 1
                %s409 = sphi %s394, %s394
                %s410 = sphi %s392, %s392
              $region75: #{aux_encoder_forward.1} parent=71 // loop_header_branch
                %407 = sbr.rel (%p405) target = $region79
              $region76: #{aux_encoder_forward.1} parent=71 // loop_body
                %v411 = vld [vmem:[%s409] sm:%s402]
                %412 = vst [vmem:[%s410] sm:%s402] %v411
                %v413 = vld [vmem:[%s409 + $0x10] sm:%s402]
                %414 = vst [vmem:[%s410 + $0x8] sm:%s402] %v413
                %v415 = vld [vmem:[%s409 + $0x20] sm:%s402]
                %416 = vst [vmem:[%s410 + $0x10] sm:%s402] %v415
                %v417 = vld [vmem:[%s409 + $0x30] sm:%s402]
                %418 = vst [vmem:[%s410 + $0x18] sm:%s402] %v417
                %v419 = vld [vmem:[%s409 + $0x40] sm:%s402]
                %420 = vst [vmem:[%s410 + $0x20] sm:%s402] %v419
                %v421 = vld [vmem:[%s409 + $0x50] sm:%s402]
                %422 = vst [vmem:[%s410 + $0x28] sm:%s402] %v421
                %v423 = vld [vmem:[%s409 + $0x60] sm:%s402]
                %424 = vst [vmem:[%s410 + $0x30] sm:%s402] %v423
                %v425 = vld [vmem:[%s409 + $0x70] sm:%s402]
                %426 = vst [vmem:[%s410 + $0x38] sm:%s402] %v425
                %v427 = vld [vmem:[%s409 + $0x80] sm:%s402]
                %428 = vst [vmem:[%s410 + $0x40] sm:%s402] %v427
                %v429 = vld [vmem:[%s409 + $0x90] sm:%s402]
                %430 = vst [vmem:[%s410 + $0x48] sm:%s402] %v429
                %v431 = vld [vmem:[%s409 + $0xa0] sm:%s402]
                %432 = vst [vmem:[%s410 + $0x50] sm:%s402] %v431
                %v433 = vld [vmem:[%s409 + $0xb0] sm:%s402]
                %434 = vst [vmem:[%s410 + $0x58] sm:%s402] %v433
                %v435 = vld [vmem:[%s409 + $0xc0] sm:%s402]
                %436 = vst [vmem:[%s410 + $0x60] sm:%s402] %v435
                %v437 = vld [vmem:[%s409 + $0xd0] sm:%s402]
                %438 = vst [vmem:[%s410 + $0x68] sm:%s402] %v437
                %v439 = vld [vmem:[%s409 + $0xe0] sm:%s402]
                %440 = vst [vmem:[%s410 + $0x70] sm:%s402] %v439
                %v441 = vld [vmem:[%s409 + $0xf0] sm:%s402]
                %442 = vst [vmem:[%s410 + $0x78] sm:%s402] %v441
                %v443 = vld [vmem:[%s409 + $0x100] sm:%s402]
                %444 = vst [vmem:[%s410 + $0x80] sm:%s402] %v443
                %v445 = vld [vmem:[%s409 + $0x110] sm:%s402]
                %446 = vst [vmem:[%s410 + $0x88] sm:%s402] %v445
                %v447 = vld [vmem:[%s409 + $0x120] sm:%s402]
                %448 = vst [vmem:[%s410 + $0x90] sm:%s402] %v447
                %v449 = vld [vmem:[%s409 + $0x130] sm:%s402]
                %450 = vst [vmem:[%s410 + $0x98] sm:%s402] %v449
                %v451 = vld [vmem:[%s409 + $0x140] sm:%s402]
                %452 = vst [vmem:[%s410 + $0xa0] sm:%s402] %v451
                %v453 = vld [vmem:[%s409 + $0x150] sm:%s402]
                %454 = vst [vmem:[%s410 + $0xa8] sm:%s402] %v453
                %v455 = vld [vmem:[%s409 + $0x160] sm:%s402]
                %456 = vst [vmem:[%s410 + $0xb0] sm:%s402] %v455
                %v457 = vld [vmem:[%s409 + $0x170] sm:%s402]
                %458 = vst [vmem:[%s410 + $0xb8] sm:%s402] %v457
                %v459 = vld [vmem:[%s409 + $0x180] sm:%s402]
                %460 = vst [vmem:[%s410 + $0xc0] sm:%s402] %v459
                %v461 = vld [vmem:[%s409 + $0x190] sm:%s402]
                %462 = vst [vmem:[%s410 + $0xc8] sm:%s402] %v461
                %v463 = vld [vmem:[%s409 + $0x1a0] sm:%s402]
                %464 = vst [vmem:[%s410 + $0xd0] sm:%s402] %v463
                %v465 = vld [vmem:[%s409 + $0x1b0] sm:%s402]
                %466 = vst [vmem:[%s410 + $0xd8] sm:%s402] %v465
              $region77: #{aux_encoder_forward.1} parent=71 // loop_footer
                %s408 = sadd.s32 1, %s404
              $region78: #{aux_encoder_forward.1} parent=71 // loop_footer_branch
                %403 = sbr.rel target = $region74
              $region79: #{aux_encoder_forward.1} parent=71 // loop_exit
                _
            $region72: #{aux_encoder_forward.1} parent=63 // pred_fallthru
              _
          $region64: #{aux_encoder_forward.1} parent=59 // pred_fallthru
            _
          %535 = vnop
        $region60: #{aux_encoder_forward.1} parent=55 // pred_fallthru
          _
        // Predicated region
        $region95: #{aux_encoder_forward.1} parent=55 // pred_check
          %p536 = pneg %p69
        $region96: #{aux_encoder_forward.1} parent=55 // pred_check_branch
          %538 = sbr.rel (%p536) target = $region98
        $region97: #{aux_encoder_forward.1} parent=55 // pred_region
          %p539 = scmp.lt.s32.totalorder %s23, 1
          %s540 = scalar_select %p539, %s23, 1
          %s541 = smul.addr %s540, 8
          %s542 = scalar_lea.vmem %s1, %s541
        $region98: #{aux_encoder_forward.1} parent=55 // pred_fallthru
          _
      $region56: #{aux_encoder_forward.1} parent=5 // pred_fallthru
        _
      %p543 = scmp.le.s32.totalorder 1, %s23
      %p544 = scmp.lt.s32.totalorder %s23, 3
      %p545 = pnand %p543, %p544
      %p546 = pneg %p545
      // Predicated region
      $region99: #{aux_encoder_forward.1} parent=5 // pred_check
        _
      $region100: #{aux_encoder_forward.1} parent=5 // pred_check_branch
        %548 = sbr.rel (%p545) target = $region102
      $region101: #{aux_encoder_forward.1} parent=5 // pred_region
        %s549 = ssub.s32 %s23, 1
        %s550 = sand.u32 %s36, 1
        %s551 = sand.u32 %s36, 1
        %s552 = smul.addr %s551, 224
        %s553 = scalar_lea.vmem [#allocation2], %s552
        // Predicated region
        $region103: #{aux_encoder_forward.1} parent=101 // pred_check
          %p554 = pneg %p49
        $region104: #{aux_encoder_forward.1} parent=101 // pred_check_branch
          %556 = sbr.rel (%p554) target = $region106
        $region105: #{aux_encoder_forward.1} parent=101 // pred_region
          _
        $region106: #{aux_encoder_forward.1} parent=101 // pred_fallthru
          _
        %s557 = sand.u32 %s36, 1
        %s558 = sand.u32 %s36, 1
        %s559 = smul.addr %s558, 224
        %s560 = scalar_lea.vmem [#allocation2], %s559
        %p561 = pneg %p49
        %p562 = pneg %p46
        %p563 = scmp.lt.s32.totalorder %s28, 1
        %s564 = scalar_select %p563, %s28, 1
        %s565 = smul.addr %s564, 8
        %s566 = scalar_lea.vmem %s1, %s565
        %p567 = pneg %p75
        %p568 = pneg %p72
        %p569 = pneg %p96
        %p570 = pneg %p93
        %p571 = pneg %p117
        %p572 = pneg %p114
        %p573 = pneg %p138
        %p574 = pneg %p135
        %p575 = pneg %p159
        %p576 = pneg %p156
        %p577 = pneg %p180
        %p578 = pneg %p177
        %p579 = pneg %p201
        %p580 = pneg %p198
        %p581 = pneg %p222
        %p582 = pneg %p219
        %p583 = pneg %p243
        %p584 = pneg %p240
        %p585 = pneg %p264
        %p586 = pneg %p261
        %p587 = pneg %p285
        %p588 = pneg %p282
        %p589 = pneg %p311
        %p590 = pneg %p308
        %s591 = sand.u32 %s298, 1
        %s592 = scalar_lea.sflag [#allocation4], %s591
        %s593 = sand.u32 %s298, 1
        %s594 = smul.addr %s593, 56
        %s595 = scalar_lea.vmem [#allocation3], %s594
        %p596 = pneg %p337
        %p597 = pneg %p334
        %p598 = scmp.lt.s32.totalorder %s28, 1
        %s599 = scalar_select %p598, %s28, 1
        %s600 = smul.addr %s599, 8
        %s601 = scalar_lea.vmem %s13, %s600
        %p602 = scmp.lt.s32.totalorder %s28, 1
        %s603 = scalar_select %p602, %s28, 1
        %s604 = smul.addr %s603, 8
        %s605 = scalar_lea.vmem %s1, %s604
        %p606 = scmp.lt.s32.totalorder %s28, 1
        %s607 = scalar_select %p606, %s28, 1
        %s608 = smul.addr %s607, 8
        %s609 = scalar_lea.vmem %s13, %s608
        %v611 = vld [vmem:[%s553] sm:$0xff]
        %v612 = vmul.f32 %v611, 2.0
        %v613 = vsub.f32 %v612, 1.0
        %s614 = scalar_lea.vmem %s553, 8 [#allocation2]
        %v615 = vld [vmem:[%s614] sm:$0xff]
        %v616 = vmul.f32 %v615, 2.0
        %v617 = vsub.f32 %v616, 1.0
        %s618 = scalar_lea.vmem %s553, 16 [#allocation2]
        %v619 = vld [vmem:[%s618] sm:$0xff]
        %v620 = vmul.f32 %v619, 2.0
        %v621 = vsub.f32 %v620, 1.0
        %s622 = scalar_lea.vmem %s553, 24 [#allocation2]
        %v623 = vld [vmem:[%s622] sm:$0xff]
        %v624 = vmul.f32 %v623, 2.0
        %v625 = vsub.f32 %v624, 1.0
        %s626 = scalar_lea.vmem %s553, 32 [#allocation2]
        %v627 = vld [vmem:[%s626] sm:$0xff]
        %v628 = vmul.f32 %v627, 2.0
        %v629 = vsub.f32 %v628, 1.0
        %s630 = scalar_lea.vmem %s553, 40 [#allocation2]
        %v631 = vld [vmem:[%s630] sm:$0xff]
        %v632 = vmul.f32 %v631, 2.0
        %v633 = vsub.f32 %v632, 1.0
        %s634 = scalar_lea.vmem %s553, 48 [#allocation2]
        %v635 = vld [vmem:[%s634] sm:$0xff]
        %v636 = vmul.f32 %v635, 2.0
        %v637 = vsub.f32 %v636, 1.0
        %s638 = scalar_lea.vmem %s553, 56 [#allocation2]
        %v639 = vld [vmem:[%s638] sm:$0xff]
        %v640 = vmul.f32 %v639, 2.0
        %v641 = vsub.f32 %v640, 1.0
        %s642 = scalar_lea.vmem %s553, 64 [#allocation2]
        %v643 = vld [vmem:[%s642] sm:$0xff]
        %v644 = vmul.f32 %v643, 2.0
        %v645 = vsub.f32 %v644, 1.0
        %s646 = scalar_lea.vmem %s553, 72 [#allocation2]
        %v647 = vld [vmem:[%s646] sm:$0xff]
        %v648 = vmul.f32 %v647, 2.0
        %v649 = vsub.f32 %v648, 1.0
        %s650 = scalar_lea.vmem %s553, 80 [#allocation2]
        %v651 = vld [vmem:[%s650] sm:$0xff]
        %v652 = vmul.f32 %v651, 2.0
        %v653 = vsub.f32 %v652, 1.0
        %s654 = scalar_lea.vmem %s553, 88 [#allocation2]
        %v655 = vld [vmem:[%s654] sm:$0xff]
        %v656 = vmul.f32 %v655, 2.0
        %v657 = vsub.f32 %v656, 1.0
        %s658 = scalar_lea.vmem %s553, 96 [#allocation2]
        %v659 = vld [vmem:[%s658] sm:$0xff]
        %v660 = vmul.f32 %v659, 2.0
        %v661 = vsub.f32 %v660, 1.0
        %s662 = scalar_lea.vmem %s553, 104 [#allocation2]
        %v663 = vld [vmem:[%s662] sm:$0xff]
        %v664 = vmul.f32 %v663, 2.0
        %v665 = vsub.f32 %v664, 1.0
        %s666 = scalar_lea.vmem %s553, 112 [#allocation2]
        %v667 = vld [vmem:[%s666] sm:$0xff]
        %v668 = vmul.f32 %v667, 2.0
        %v669 = vsub.f32 %v668, 1.0
        %s670 = scalar_lea.vmem %s553, 120 [#allocation2]
        %v671 = vld [vmem:[%s670] sm:$0xff]
        %v672 = vmul.f32 %v671, 2.0
        %v673 = vsub.f32 %v672, 1.0
        %s674 = scalar_lea.vmem %s553, 128 [#allocation2]
        %v675 = vld [vmem:[%s674] sm:$0xff]
        %v676 = vmul.f32 %v675, 2.0
        %v677 = vsub.f32 %v676, 1.0
        %s678 = scalar_lea.vmem %s553, 136 [#allocation2]
        %v679 = vld [vmem:[%s678] sm:$0xff]
        %v680 = vmul.f32 %v679, 2.0
        %v681 = vsub.f32 %v680, 1.0
        %s682 = scalar_lea.vmem %s553, 144 [#allocation2]
        %v683 = vld [vmem:[%s682] sm:$0xff]
        %v684 = vmul.f32 %v683, 2.0
        %v685 = vsub.f32 %v684, 1.0
        %s686 = scalar_lea.vmem %s553, 152 [#allocation2]
        %v687 = vld [vmem:[%s686] sm:$0xff]
        %v688 = vmul.f32 %v687, 2.0
        %v689 = vsub.f32 %v688, 1.0
        %s690 = scalar_lea.vmem %s553, 160 [#allocation2]
        %v691 = vld [vmem:[%s690] sm:$0xff]
        %v692 = vmul.f32 %v691, 2.0
        %v693 = vsub.f32 %v692, 1.0
        %s694 = scalar_lea.vmem %s553, 168 [#allocation2]
        %v695 = vld [vmem:[%s694] sm:$0xff]
        %v696 = vmul.f32 %v695, 2.0
        %v697 = vsub.f32 %v696, 1.0
        %s698 = scalar_lea.vmem %s553, 176 [#allocation2]
        %v699 = vld [vmem:[%s698] sm:$0xff]
        %v700 = vmul.f32 %v699, 2.0
        %v701 = vsub.f32 %v700, 1.0
        %s702 = scalar_lea.vmem %s553, 184 [#allocation2]
        %v703 = vld [vmem:[%s702] sm:$0xff]
        %v704 = vmul.f32 %v703, 2.0
        %v705 = vsub.f32 %v704, 1.0
        %s706 = scalar_lea.vmem %s553, 192 [#allocation2]
        %v707 = vld [vmem:[%s706] sm:$0xff]
        %v708 = vmul.f32 %v707, 2.0
        %v709 = vsub.f32 %v708, 1.0
        %s710 = scalar_lea.vmem %s553, 200 [#allocation2]
        %v711 = vld [vmem:[%s710] sm:$0xff]
        %v712 = vmul.f32 %v711, 2.0
        %v713 = vsub.f32 %v712, 1.0
        %s714 = scalar_lea.vmem %s553, 208 [#allocation2]
        %v715 = vld [vmem:[%s714] sm:$0xff]
        %v716 = vmul.f32 %v715, 2.0
        %v717 = vsub.f32 %v716, 1.0
        %s718 = scalar_lea.vmem %s553, 216 [#allocation2]
        %v719 = vld [vmem:[%s718] sm:$0xff]
        %v720 = vmul.f32 %v719, 2.0
        %v721 = vsub.f32 %v720, 1.0
        %v722 = vld [vmem:[%s3] sm:$0x3]
        %v723 = vpack.c.bf16 %v621, %v613
        %v724 = vpack.c.bf16 %v637, %v629
        %v725 = vpack.c.bf16 %v653, %v645
        %v726 = vpack.c.bf16 %v669, %v661
        %v727 = vpack.c.bf16 %v685, %v677
        %v728 = vpack.c.bf16 %v701, %v693
        %v729 = vpack.c.bf16 %v709, %v709
        %v730 = vld [vmem:[%s2] sm:$0xff]
        %v731 = vld [vmem:[%s2 + $0x8] sm:$0xff]
        %v732 = vld [vmem:[%s2 + $0x10] sm:$0xff]
        %v733 = vld [vmem:[%s2 + $0x18] sm:$0x33]
        %v738 = vunpack.c.l.b16 %v730
        %v739 = vunpack.c.h.b16 %v730
        %v740 = vunpack.c.l.b16 %v731
        %v741 = vunpack.c.h.b16 %v731
        %v742 = vunpack.c.l.b16 %v732
        %v743 = vunpack.c.h.b16 %v732
        %v744 = vunpack.c.l.b16 %v733
        %v745 = vunpack.c.h.b16 %v733
        %v746 = vpack.c.b16 %v740, %v738
        %v747 = vpack.c.b16 %v741, %v739
        %v748 = vpack.c.b16 %v744, %v742
        %v749 = vpack.c.b16 %v745, %v743
        %vm752 = vcmask 228352
        %v754 = vsel %vm752, %v723, 0
        %v757 = vsel %vm752, %v724, 0
        %v760 = vsel %vm752, %v725, 0
        %v763 = vsel %vm752, %v726, 0
        %v766 = vsel %vm752, %v727, 0
        %v769 = vsel %vm752, %v728, 0
        %v772 = vsel %vm752, %v729, 0
        %vm774 = vcmask 1045504
        %v776 = vsel %vm774, %v748, 0
        %v779 = vsel %vm774, %v749, 0
        %781 = vmatprep.subr.bf16.mxu0 0
        %782 = vmatpush1.bf16.msra.mxu0 0
        %783 = vmatprep.subr.bf16.mxu0 0
        %784 = vmatpush1.bf16.msra.mxu0 0
        %785 = vmatprep.subr.bf16.mxu0 0
        %786 = vmatpush1.bf16.msra.mxu0 0
        %787 = vmatprep.subr.bf16.mxu0 0
        %788 = vmatpush1.bf16.msra.mxu0 0
        %789 = vmatprep.subr.bf16.mxu0 0
        %790 = vmatpush1.bf16.msra.mxu0 0
        %791 = vmatprep.subr.bf16.mxu0 0
        %792 = vmatpush1.bf16.msra.mxu0 0
        %793 = vmatprep.subr.bf16.mxu0 %v779
        %794 = vmatpush1.bf16.msra.mxu0 %v776
        %795 = vmatprep.subr.bf16.mxu0 %v747
        %796 = vmatpush1.bf16.msra.mxu0 %v746
        %797 = vmatprep.subr.bf16.mxu0 0
        %798 = vmatpush2.bf16.msra.mxu0 0
        %799 = vmatprep.subr.bf16.mxu0 0
        %800 = vmatpush2.bf16.msra.mxu0 0
        %801 = vmatprep.subr.bf16.mxu0 0
        %802 = vmatpush2.bf16.msra.mxu0 0
        %803 = vmatprep.subr.bf16.mxu0 0
        %804 = vmatpush2.bf16.msra.mxu0 0
        %805 = vmatprep.subr.bf16.mxu0 0
        %806 = vmatpush2.bf16.msra.mxu0 0
        %807 = vmatprep.subr.bf16.mxu0 0
        %808 = vmatpush2.bf16.msra.mxu0 0
        %809 = vmatprep.subr.bf16.mxu0 0
        %810 = vmatpush2.bf16.msra.mxu0 0
        %811 = vmatprep.subr.bf16.mxu0 0
        %812 = vmatpush2.bf16.msra.mxu0 0
        %813 = vmatprep.mubr.bf16.mxu0 0
        %814 = vmatmul.mubr.bf16.gmra.mxu0 %v754
        %v815 = vpop.f32.mrf.mxu0
        %v816 = vadd.f32 0.0, %v815
        %v817 = vpop.f32.mrf.mxu0
        %v818 = vadd.f32 0.0, %v817
        %v819 = vpop.f32.mrf.mxu0
        %v820 = vadd.f32 0.0, %v819
        %v821 = vpop.f32.mrf.mxu0
        %v822 = vadd.f32 0.0, %v821
        %823 = vmatprep.mubr.bf16.mxu0 0
        %824 = vmatmul.mubr.bf16.gmra.mxu0 %v757
        %v825 = vpop.f32.mrf.mxu0
        %v826 = vadd.f32 0.0, %v825
        %v827 = vpop.f32.mrf.mxu0
        %v828 = vadd.f32 0.0, %v827
        %v829 = vpop.f32.mrf.mxu0
        %v830 = vadd.f32 0.0, %v829
        %v831 = vpop.f32.mrf.mxu0
        %v832 = vadd.f32 0.0, %v831
        %833 = vmatprep.mubr.bf16.mxu0 0
        %834 = vmatmul.mubr.bf16.gmra.mxu0 %v760
        %v835 = vpop.f32.mrf.mxu0
        %v836 = vadd.f32 0.0, %v835
        %v837 = vpop.f32.mrf.mxu0
        %v838 = vadd.f32 0.0, %v837
        %v839 = vpop.f32.mrf.mxu0
        %v840 = vadd.f32 0.0, %v839
        %v841 = vpop.f32.mrf.mxu0
        %v842 = vadd.f32 0.0, %v841
        %843 = vmatprep.mubr.bf16.mxu0 0
        %844 = vmatmul.mubr.bf16.gmra.mxu0 %v763
        %v845 = vpop.f32.mrf.mxu0
        %v846 = vadd.f32 0.0, %v845
        %v847 = vpop.f32.mrf.mxu0
        %v848 = vadd.f32 0.0, %v847
        %v849 = vpop.f32.mrf.mxu0
        %v850 = vadd.f32 0.0, %v849
        %v851 = vpop.f32.mrf.mxu0
        %v852 = vadd.f32 0.0, %v851
        %853 = vmatprep.mubr.bf16.mxu0 0
        %854 = vmatmul.mubr.bf16.gmra.mxu0 %v766
        %v855 = vpop.f32.mrf.mxu0
        %v856 = vadd.f32 0.0, %v855
        %v857 = vpop.f32.mrf.mxu0
        %v858 = vadd.f32 0.0, %v857
        %v859 = vpop.f32.mrf.mxu0
        %v860 = vadd.f32 0.0, %v859
        %v861 = vpop.f32.mrf.mxu0
        %v862 = vadd.f32 0.0, %v861
        %863 = vmatprep.mubr.bf16.mxu0 0
        %864 = vmatmul.mubr.bf16.gmra.mxu0 %v769
        %v865 = vpop.f32.mrf.mxu0
        %v866 = vadd.f32 0.0, %v865
        %v867 = vpop.f32.mrf.mxu0
        %v868 = vadd.f32 0.0, %v867
        %v869 = vpop.f32.mrf.mxu0
        %v870 = vadd.f32 0.0, %v869
        %v871 = vpop.f32.mrf.mxu0
        %v872 = vadd.f32 0.0, %v871
        %873 = vmatprep.mubr.bf16.mxu0 0
        %874 = vmatmul.mubr.bf16.gmra.mxu0 %v772
        %v875 = vpop.f32.mrf.mxu0
        %v876 = vadd.f32 0.0, %v875
        %v877 = vpop.f32.mrf.mxu0
        %v878 = vadd.f32 0.0, %v877
        %v879 = vpop.f32.mrf.mxu0
        %v880 = vpop.f32.mrf.mxu0
        %881 = vdwg.mxu0
        %v882 = vpack.c.bf16 %v625, %v617
        %v883 = vpack.c.bf16 %v641, %v633
        %v884 = vpack.c.bf16 %v657, %v649
        %v885 = vpack.c.bf16 %v673, %v665
        %v886 = vpack.c.bf16 %v689, %v681
        %v887 = vpack.c.bf16 %v705, %v697
        %v888 = vpack.c.bf16 %v713, %v713
        %s889 = scalar_lea.vmem %s2, 32
        %v890 = vld [vmem:[%s889] sm:$0xff]
        %v891 = vld [vmem:[%s889 + $0x8] sm:$0xff]
        %v892 = vld [vmem:[%s889 + $0x10] sm:$0xff]
        %v893 = vld [vmem:[%s889 + $0x18] sm:$0x33]
        %v898 = vunpack.c.l.b16 %v890
        %v899 = vunpack.c.h.b16 %v890
        %v900 = vunpack.c.l.b16 %v891
        %v901 = vunpack.c.h.b16 %v891
        %v902 = vunpack.c.l.b16 %v892
        %v903 = vunpack.c.h.b16 %v892
        %v904 = vunpack.c.l.b16 %v893
        %v905 = vunpack.c.h.b16 %v893
        %v906 = vpack.c.b16 %v900, %v898
        %v907 = vpack.c.b16 %v901, %v899
        %v908 = vpack.c.b16 %v904, %v902
        %v909 = vpack.c.b16 %v905, %v903
        %v913 = vsel %vm752, %v882, 0
        %v916 = vsel %vm752, %v883, 0
        %v919 = vsel %vm752, %v884, 0
        %v922 = vsel %vm752, %v885, 0
        %v925 = vsel %vm752, %v886, 0
        %v928 = vsel %vm752, %v887, 0
        %v931 = vsel %vm752, %v888, 0
        %v934 = vsel %vm774, %v908, 0
        %v937 = vsel %vm774, %v909, 0
        %939 = vmatprep.subr.bf16.mxu0 0
        %940 = vmatpush1.bf16.msra.mxu0 0
        %941 = vmatprep.subr.bf16.mxu0 0
        %942 = vmatpush1.bf16.msra.mxu0 0
        %943 = vmatprep.subr.bf16.mxu0 0
        %944 = vmatpush1.bf16.msra.mxu0 0
        %945 = vmatprep.subr.bf16.mxu0 0
        %946 = vmatpush1.bf16.msra.mxu0 0
        %947 = vmatprep.subr.bf16.mxu0 0
        %948 = vmatpush1.bf16.msra.mxu0 0
        %949 = vmatprep.subr.bf16.mxu0 0
        %950 = vmatpush1.bf16.msra.mxu0 0
        %951 = vmatprep.subr.bf16.mxu0 %v937
        %952 = vmatpush1.bf16.msra.mxu0 %v934
        %953 = vmatprep.subr.bf16.mxu0 %v907
        %954 = vmatpush1.bf16.msra.mxu0 %v906
        %955 = vmatprep.subr.bf16.mxu0 0
        %956 = vmatpush2.bf16.msra.mxu0 0
        %957 = vmatprep.subr.bf16.mxu0 0
        %958 = vmatpush2.bf16.msra.mxu0 0
        %959 = vmatprep.subr.bf16.mxu0 0
        %960 = vmatpush2.bf16.msra.mxu0 0
        %961 = vmatprep.subr.bf16.mxu0 0
        %962 = vmatpush2.bf16.msra.mxu0 0
        %963 = vmatprep.subr.bf16.mxu0 0
        %964 = vmatpush2.bf16.msra.mxu0 0
        %965 = vmatprep.subr.bf16.mxu0 0
        %966 = vmatpush2.bf16.msra.mxu0 0
        %967 = vmatprep.subr.bf16.mxu0 0
        %968 = vmatpush2.bf16.msra.mxu0 0
        %969 = vmatprep.subr.bf16.mxu0 0
        %970 = vmatpush2.bf16.msra.mxu0 0
        %971 = vmatprep.mubr.bf16.mxu0 0
        %972 = vmatmul.mubr.bf16.gmra.mxu0 %v913
        %v973 = vpop.f32.mrf.mxu0
        %v974 = vadd.f32 0.0, %v973
        %v975 = vpop.f32.mrf.mxu0
        %v976 = vadd.f32 0.0, %v975
        %v977 = vpop.f32.mrf.mxu0
        %v978 = vadd.f32 0.0, %v977
        %v979 = vpop.f32.mrf.mxu0
        %v980 = vadd.f32 0.0, %v979
        %981 = vmatprep.mubr.bf16.mxu0 0
        %982 = vmatmul.mubr.bf16.gmra.mxu0 %v916
        %v983 = vpop.f32.mrf.mxu0
        %v984 = vadd.f32 0.0, %v983
        %v985 = vpop.f32.mrf.mxu0
        %v986 = vadd.f32 0.0, %v985
        %v987 = vpop.f32.mrf.mxu0
        %v988 = vadd.f32 0.0, %v987
        %v989 = vpop.f32.mrf.mxu0
        %v990 = vadd.f32 0.0, %v989
        %991 = vmatprep.mubr.bf16.mxu0 0
        %992 = vmatmul.mubr.bf16.gmra.mxu0 %v919
        %v993 = vpop.f32.mrf.mxu0
        %v994 = vadd.f32 0.0, %v993
        %v995 = vpop.f32.mrf.mxu0
        %v996 = vadd.f32 0.0, %v995
        %v997 = vpop.f32.mrf.mxu0
        %v998 = vadd.f32 0.0, %v997
        %v999 = vpop.f32.mrf.mxu0
        %v1000 = vadd.f32 0.0, %v999
        %1001 = vmatprep.mubr.bf16.mxu0 0
        %1002 = vmatmul.mubr.bf16.gmra.mxu0 %v922
        %v1003 = vpop.f32.mrf.mxu0
        %v1004 = vadd.f32 0.0, %v1003
        %v1005 = vpop.f32.mrf.mxu0
        %v1006 = vadd.f32 0.0, %v1005
        %v1007 = vpop.f32.mrf.mxu0
        %v1008 = vadd.f32 0.0, %v1007
        %v1009 = vpop.f32.mrf.mxu0
        %v1010 = vadd.f32 0.0, %v1009
        %1011 = vmatprep.mubr.bf16.mxu0 0
        %1012 = vmatmul.mubr.bf16.gmra.mxu0 %v925
        %v1013 = vpop.f32.mrf.mxu0
        %v1014 = vadd.f32 0.0, %v1013
        %v1015 = vpop.f32.mrf.mxu0
        %v1016 = vadd.f32 0.0, %v1015
        %v1017 = vpop.f32.mrf.mxu0
        %v1018 = vadd.f32 0.0, %v1017
        %v1019 = vpop.f32.mrf.mxu0
        %v1020 = vadd.f32 0.0, %v1019
        %1021 = vmatprep.mubr.bf16.mxu0 0
        %1022 = vmatmul.mubr.bf16.gmra.mxu0 %v928
        %v1023 = vpop.f32.mrf.mxu0
        %v1024 = vadd.f32 0.0, %v1023
        %v1025 = vpop.f32.mrf.mxu0
        %v1026 = vadd.f32 0.0, %v1025
        %v1027 = vpop.f32.mrf.mxu0
        %v1028 = vadd.f32 0.0, %v1027
        %v1029 = vpop.f32.mrf.mxu0
        %v1030 = vadd.f32 0.0, %v1029
        %1031 = vmatprep.mubr.bf16.mxu0 0
        %1032 = vmatmul.mubr.bf16.gmra.mxu0 %v931
        %v1033 = vpop.f32.mrf.mxu0
        %v1034 = vadd.f32 0.0, %v1033
        %v1035 = vpop.f32.mrf.mxu0
        %v1036 = vadd.f32 0.0, %v1035
        %v1037 = vpop.f32.mrf.mxu0
        %v1038 = vpop.f32.mrf.mxu0
        %1039 = vdwg.mxu0
        %v1040 = vadd.f32 %v816, %v974
        %v1041 = vadd.f32 %v818, %v976
        %v1042 = vadd.f32 %v820, %v978
        %v1043 = vadd.f32 %v822, %v980
        %v1044 = vadd.f32 %v826, %v984
        %v1045 = vadd.f32 %v828, %v986
        %v1046 = vadd.f32 %v830, %v988
        %v1047 = vadd.f32 %v832, %v990
        %v1048 = vadd.f32 %v836, %v994
        %v1049 = vadd.f32 %v838, %v996
        %v1050 = vadd.f32 %v840, %v998
        %v1051 = vadd.f32 %v842, %v1000
        %v1052 = vadd.f32 %v846, %v1004
        %v1053 = vadd.f32 %v848, %v1006
        %v1054 = vadd.f32 %v850, %v1008
        %v1055 = vadd.f32 %v852, %v1010
        %v1056 = vadd.f32 %v856, %v1014
        %v1057 = vadd.f32 %v858, %v1016
        %v1058 = vadd.f32 %v860, %v1018
        %v1059 = vadd.f32 %v862, %v1020
        %v1060 = vadd.f32 %v866, %v1024
        %v1061 = vadd.f32 %v868, %v1026
        %v1062 = vadd.f32 %v870, %v1028
        %v1063 = vadd.f32 %v872, %v1030
        %v1064 = vadd.f32 %v876, %v1034
        %v1065 = vadd.f32 %v878, %v1036
        %v1066 = vpack.c.bf16 %v717, %v709
        %s1067 = scalar_lea.vmem %s2, 64
        %v1068 = vld [vmem:[%s1067] sm:$0xff]
        %v1069 = vld [vmem:[%s1067 + $0x8] sm:$0xff]
        %v1070 = vld [vmem:[%s1067 + $0x10] sm:$0xff]
        %v1071 = vld [vmem:[%s1067 + $0x18] sm:$0x33]
        %v1076 = vunpack.c.l.b16 %v1068
        %v1077 = vunpack.c.h.b16 %v1068
        %v1078 = vunpack.c.l.b16 %v1069
        %v1079 = vunpack.c.h.b16 %v1069
        %v1080 = vunpack.c.l.b16 %v1070
        %v1081 = vunpack.c.h.b16 %v1070
        %v1082 = vunpack.c.l.b16 %v1071
        %v1083 = vunpack.c.h.b16 %v1071
        %v1084 = vpack.c.b16 %v1078, %v1076
        %v1085 = vpack.c.b16 %v1079, %v1077
        %v1086 = vpack.c.b16 %v1082, %v1080
        %v1087 = vpack.c.b16 %v1083, %v1081
        %v1091 = vsel %vm752, %v1066, 0
        %v1094 = vsel %vm774, %v1086, 0
        %v1097 = vsel %vm774, %v1087, 0
        %1099 = vmatprep.subr.bf16.mxu0 0
        %1100 = vmatpush1.bf16.msra.mxu0 0
        %1101 = vmatprep.subr.bf16.mxu0 0
        %1102 = vmatpush1.bf16.msra.mxu0 0
        %1103 = vmatprep.subr.bf16.mxu0 0
        %1104 = vmatpush1.bf16.msra.mxu0 0
        %1105 = vmatprep.subr.bf16.mxu0 0
        %1106 = vmatpush1.bf16.msra.mxu0 0
        %1107 = vmatprep.subr.bf16.mxu0 0
        %1108 = vmatpush1.bf16.msra.mxu0 0
        %1109 = vmatprep.subr.bf16.mxu0 0
        %1110 = vmatpush1.bf16.msra.mxu0 0
        %1111 = vmatprep.subr.bf16.mxu0 %v1097
        %1112 = vmatpush1.bf16.msra.mxu0 %v1094
        %1113 = vmatprep.subr.bf16.mxu0 %v1085
        %1114 = vmatpush1.bf16.msra.mxu0 %v1084
        %1115 = vmatprep.subr.bf16.mxu0 0
        %1116 = vmatpush2.bf16.msra.mxu0 0
        %1117 = vmatprep.subr.bf16.mxu0 0
        %1118 = vmatpush2.bf16.msra.mxu0 0
        %1119 = vmatprep.subr.bf16.mxu0 0
        %1120 = vmatpush2.bf16.msra.mxu0 0
        %1121 = vmatprep.subr.bf16.mxu0 0
        %1122 = vmatpush2.bf16.msra.mxu0 0
        %1123 = vmatprep.subr.bf16.mxu0 0
        %1124 = vmatpush2.bf16.msra.mxu0 0
        %1125 = vmatprep.subr.bf16.mxu0 0
        %1126 = vmatpush2.bf16.msra.mxu0 0
        %1127 = vmatprep.subr.bf16.mxu0 0
        %1128 = vmatpush2.bf16.msra.mxu0 0
        %1129 = vmatprep.subr.bf16.mxu0 0
        %1130 = vmatpush2.bf16.msra.mxu0 0
        %1131 = vmatprep.mubr.bf16.mxu0 0
        %1132 = vmatmul.mubr.bf16.gmra.mxu0 %v754
        %v1133 = vpop.f32.mrf.mxu0
        %v1134 = vadd.f32 0.0, %v1133
        %v1135 = vpop.f32.mrf.mxu0
        %v1136 = vadd.f32 0.0, %v1135
        %v1137 = vpop.f32.mrf.mxu0
        %v1138 = vadd.f32 0.0, %v1137
        %v1139 = vpop.f32.mrf.mxu0
        %v1140 = vadd.f32 0.0, %v1139
        %1141 = vmatprep.mubr.bf16.mxu0 0
        %1142 = vmatmul.mubr.bf16.gmra.mxu0 %v757
        %v1143 = vpop.f32.mrf.mxu0
        %v1144 = vadd.f32 0.0, %v1143
        %v1145 = vpop.f32.mrf.mxu0
        %v1146 = vadd.f32 0.0, %v1145
        %v1147 = vpop.f32.mrf.mxu0
        %v1148 = vadd.f32 0.0, %v1147
        %v1149 = vpop.f32.mrf.mxu0
        %v1150 = vadd.f32 0.0, %v1149
        %1151 = vmatprep.mubr.bf16.mxu0 0
        %1152 = vmatmul.mubr.bf16.gmra.mxu0 %v760
        %v1153 = vpop.f32.mrf.mxu0
        %v1154 = vadd.f32 0.0, %v1153
        %v1155 = vpop.f32.mrf.mxu0
        %v1156 = vadd.f32 0.0, %v1155
        %v1157 = vpop.f32.mrf.mxu0
        %v1158 = vadd.f32 0.0, %v1157
        %v1159 = vpop.f32.mrf.mxu0
        %v1160 = vadd.f32 0.0, %v1159
        %1161 = vmatprep.mubr.bf16.mxu0 0
        %1162 = vmatmul.mubr.bf16.gmra.mxu0 %v763
        %v1163 = vpop.f32.mrf.mxu0
        %v1164 = vadd.f32 0.0, %v1163
        %v1165 = vpop.f32.mrf.mxu0
        %v1166 = vadd.f32 0.0, %v1165
        %v1167 = vpop.f32.mrf.mxu0
        %v1168 = vadd.f32 0.0, %v1167
        %v1169 = vpop.f32.mrf.mxu0
        %v1170 = vadd.f32 0.0, %v1169
        %1171 = vmatprep.mubr.bf16.mxu0 0
        %1172 = vmatmul.mubr.bf16.gmra.mxu0 %v766
        %v1173 = vpop.f32.mrf.mxu0
        %v1174 = vadd.f32 0.0, %v1173
        %v1175 = vpop.f32.mrf.mxu0
        %v1176 = vadd.f32 0.0, %v1175
        %v1177 = vpop.f32.mrf.mxu0
        %v1178 = vadd.f32 0.0, %v1177
        %v1179 = vpop.f32.mrf.mxu0
        %v1180 = vadd.f32 0.0, %v1179
        %1181 = vmatprep.mubr.bf16.mxu0 0
        %1182 = vmatmul.mubr.bf16.gmra.mxu0 %v769
        %v1183 = vpop.f32.mrf.mxu0
        %v1184 = vadd.f32 0.0, %v1183
        %v1185 = vpop.f32.mrf.mxu0
        %v1186 = vadd.f32 0.0, %v1185
        %v1187 = vpop.f32.mrf.mxu0
        %v1188 = vadd.f32 0.0, %v1187
        %v1189 = vpop.f32.mrf.mxu0
        %v1190 = vadd.f32 0.0, %v1189
        %1191 = vmatprep.mubr.bf16.mxu0 0
        %1192 = vmatmul.mubr.bf16.gmra.mxu0 %v1091
        %v1193 = vpop.f32.mrf.mxu0
        %v1194 = vadd.f32 0.0, %v1193
        %v1195 = vpop.f32.mrf.mxu0
        %v1196 = vadd.f32 0.0, %v1195
        %v1197 = vpop.f32.mrf.mxu0
        %v1198 = vadd.f32 0.0, %v1197
        %v1199 = vpop.f32.mrf.mxu0
        %v1200 = vadd.f32 0.0, %v1199
        %1201 = vdwg.mxu0
        %v1202 = vadd.f32 %v1040, %v1138
        %v1203 = vadd.f32 %v1041, %v1140
        %v1204 = vadd.f32 %v1042, %v1144
        %v1205 = vadd.f32 %v1043, %v1146
        %v1206 = vadd.f32 %v1044, %v1148
        %v1207 = vadd.f32 %v1045, %v1150
        %v1208 = vadd.f32 %v1046, %v1154
        %v1209 = vadd.f32 %v1047, %v1156
        %v1210 = vadd.f32 %v1048, %v1158
        %v1211 = vadd.f32 %v1049, %v1160
        %v1212 = vadd.f32 %v1050, %v1164
        %v1213 = vadd.f32 %v1051, %v1166
        %v1214 = vadd.f32 %v1052, %v1168
        %v1215 = vadd.f32 %v1053, %v1170
        %v1216 = vadd.f32 %v1054, %v1174
        %v1217 = vadd.f32 %v1055, %v1176
        %v1218 = vadd.f32 %v1056, %v1178
        %v1219 = vadd.f32 %v1057, %v1180
        %v1220 = vadd.f32 %v1058, %v1184
        %v1221 = vadd.f32 %v1059, %v1186
        %v1222 = vadd.f32 %v1060, %v1188
        %v1223 = vadd.f32 %v1061, %v1190
        %v1224 = vadd.f32 %v1062, %v1194
        %v1225 = vadd.f32 %v1063, %v1196
        %v1226 = vadd.f32 %v1064, %v1198
        %v1227 = vadd.f32 %v1065, %v1200
        %v1228 = vpack.c.bf16 %v721, %v713
        %s1229 = scalar_lea.vmem %s2, 96
        %v1230 = vld [vmem:[%s1229] sm:$0xff]
        %v1231 = vld [vmem:[%s1229 + $0x8] sm:$0xff]
        %v1232 = vld [vmem:[%s1229 + $0x10] sm:$0xff]
        %v1233 = vld [vmem:[%s1229 + $0x18] sm:$0x33]
        %v1238 = vunpack.c.l.b16 %v1230
        %v1239 = vunpack.c.h.b16 %v1230
        %v1240 = vunpack.c.l.b16 %v1231
        %v1241 = vunpack.c.h.b16 %v1231
        %v1242 = vunpack.c.l.b16 %v1232
        %v1243 = vunpack.c.h.b16 %v1232
        %v1244 = vunpack.c.l.b16 %v1233
        %v1245 = vunpack.c.h.b16 %v1233
        %v1246 = vpack.c.b16 %v1240, %v1238
        %v1247 = vpack.c.b16 %v1241, %v1239
        %v1248 = vpack.c.b16 %v1244, %v1242
        %v1249 = vpack.c.b16 %v1245, %v1243
        %v1253 = vsel %vm752, %v1228, 0
        %v1256 = vsel %vm774, %v1248, 0
        %v1259 = vsel %vm774, %v1249, 0
        %1261 = vmatprep.subr.bf16.mxu0 0
        %1262 = vmatpush1.bf16.msra.mxu0 0
        %1263 = vmatprep.subr.bf16.mxu0 0
        %1264 = vmatpush1.bf16.msra.mxu0 0
        %1265 = vmatprep.subr.bf16.mxu0 0
        %1266 = vmatpush1.bf16.msra.mxu0 0
        %1267 = vmatprep.subr.bf16.mxu0 0
        %1268 = vmatpush1.bf16.msra.mxu0 0
        %1269 = vmatprep.subr.bf16.mxu0 0
        %1270 = vmatpush1.bf16.msra.mxu0 0
        %1271 = vmatprep.subr.bf16.mxu0 0
        %1272 = vmatpush1.bf16.msra.mxu0 0
        %1273 = vmatprep.subr.bf16.mxu0 %v1259
        %1274 = vmatpush1.bf16.msra.mxu0 %v1256
        %1275 = vmatprep.subr.bf16.mxu0 %v1247
        %1276 = vmatpush1.bf16.msra.mxu0 %v1246
        %1277 = vmatprep.subr.bf16.mxu0 0
        %1278 = vmatpush2.bf16.msra.mxu0 0
        %1279 = vmatprep.subr.bf16.mxu0 0
        %1280 = vmatpush2.bf16.msra.mxu0 0
        %1281 = vmatprep.subr.bf16.mxu0 0
        %1282 = vmatpush2.bf16.msra.mxu0 0
        %1283 = vmatprep.subr.bf16.mxu0 0
        %1284 = vmatpush2.bf16.msra.mxu0 0
        %1285 = vmatprep.subr.bf16.mxu0 0
        %1286 = vmatpush2.bf16.msra.mxu0 0
        %1287 = vmatprep.subr.bf16.mxu0 0
        %1288 = vmatpush2.bf16.msra.mxu0 0
        %1289 = vmatprep.subr.bf16.mxu0 0
        %1290 = vmatpush2.bf16.msra.mxu0 0
        %1291 = vmatprep.subr.bf16.mxu0 0
        %1292 = vmatpush2.bf16.msra.mxu0 0
        %1293 = vmatprep.mubr.bf16.mxu0 0
        %1294 = vmatmul.mubr.bf16.gmra.mxu0 %v913
        %v1295 = vpop.f32.mrf.mxu0
        %v1296 = vadd.f32 0.0, %v1295
        %v1297 = vpop.f32.mrf.mxu0
        %v1298 = vadd.f32 0.0, %v1297
        %v1299 = vpop.f32.mrf.mxu0
        %v1300 = vadd.f32 0.0, %v1299
        %v1301 = vpop.f32.mrf.mxu0
        %v1302 = vadd.f32 0.0, %v1301
        %1303 = vmatprep.mubr.bf16.mxu0 0
        %1304 = vmatmul.mubr.bf16.gmra.mxu0 %v916
        %v1305 = vpop.f32.mrf.mxu0
        %v1306 = vadd.f32 0.0, %v1305
        %v1307 = vpop.f32.mrf.mxu0
        %v1308 = vadd.f32 0.0, %v1307
        %v1309 = vpop.f32.mrf.mxu0
        %v1310 = vadd.f32 0.0, %v1309
        %v1311 = vpop.f32.mrf.mxu0
        %v1312 = vadd.f32 0.0, %v1311
        %1313 = vmatprep.mubr.bf16.mxu0 0
        %1314 = vmatmul.mubr.bf16.gmra.mxu0 %v919
        %v1315 = vpop.f32.mrf.mxu0
        %v1316 = vadd.f32 0.0, %v1315
        %v1317 = vpop.f32.mrf.mxu0
        %v1318 = vadd.f32 0.0, %v1317
        %v1319 = vpop.f32.mrf.mxu0
        %v1320 = vadd.f32 0.0, %v1319
        %v1321 = vpop.f32.mrf.mxu0
        %v1322 = vadd.f32 0.0, %v1321
        %1323 = vmatprep.mubr.bf16.mxu0 0
        %1324 = vmatmul.mubr.bf16.gmra.mxu0 %v922
        %v1325 = vpop.f32.mrf.mxu0
        %v1326 = vadd.f32 0.0, %v1325
        %v1327 = vpop.f32.mrf.mxu0
        %v1328 = vadd.f32 0.0, %v1327
        %v1329 = vpop.f32.mrf.mxu0
        %v1330 = vadd.f32 0.0, %v1329
        %v1331 = vpop.f32.mrf.mxu0
        %v1332 = vadd.f32 0.0, %v1331
        %1333 = vmatprep.mubr.bf16.mxu0 0
        %1334 = vmatmul.mubr.bf16.gmra.mxu0 %v925
        %v1335 = vpop.f32.mrf.mxu0
        %v1336 = vadd.f32 0.0, %v1335
        %v1337 = vpop.f32.mrf.mxu0
        %v1338 = vadd.f32 0.0, %v1337
        %v1339 = vpop.f32.mrf.mxu0
        %v1340 = vadd.f32 0.0, %v1339
        %v1341 = vpop.f32.mrf.mxu0
        %v1342 = vadd.f32 0.0, %v1341
        %1343 = vmatprep.mubr.bf16.mxu0 0
        %1344 = vmatmul.mubr.bf16.gmra.mxu0 %v928
        %v1345 = vpop.f32.mrf.mxu0
        %v1346 = vadd.f32 0.0, %v1345
        %v1347 = vpop.f32.mrf.mxu0
        %v1348 = vadd.f32 0.0, %v1347
        %v1349 = vpop.f32.mrf.mxu0
        %v1350 = vadd.f32 0.0, %v1349
        %v1351 = vpop.f32.mrf.mxu0
        %v1352 = vadd.f32 0.0, %v1351
        %1353 = vmatprep.mubr.bf16.mxu0 0
        %1354 = vmatmul.mubr.bf16.gmra.mxu0 %v1253
        %v1355 = vpop.f32.mrf.mxu0
        %v1356 = vadd.f32 0.0, %v1355
        %v1357 = vpop.f32.mrf.mxu0
        %v1358 = vadd.f32 0.0, %v1357
        %v1359 = vpop.f32.mrf.mxu0
        %v1360 = vadd.f32 0.0, %v1359
        %v1361 = vpop.f32.mrf.mxu0
        %v1362 = vadd.f32 0.0, %v1361
        %1363 = vdwg.mxu0
        %v1364 = vadd.f32 %v1134, %v1296
        %v1365 = vadd.f32 %v1136, %v1298
        %v1366 = vadd.f32 %v1202, %v1300
        %v1367 = vadd.f32 %v1203, %v1302
        %v1368 = vadd.f32 %v1204, %v1306
        %v1369 = vadd.f32 %v1205, %v1308
        %v1370 = vadd.f32 %v1206, %v1310
        %v1371 = vadd.f32 %v1207, %v1312
        %v1372 = vadd.f32 %v1208, %v1316
        %v1373 = vadd.f32 %v1209, %v1318
        %v1374 = vadd.f32 %v1210, %v1320
        %v1375 = vadd.f32 %v1211, %v1322
        %v1376 = vadd.f32 %v1212, %v1326
        %v1377 = vadd.f32 %v1213, %v1328
        %v1378 = vadd.f32 %v1214, %v1330
        %v1379 = vadd.f32 %v1215, %v1332
        %v1380 = vadd.f32 %v1216, %v1336
        %v1381 = vadd.f32 %v1217, %v1338
        %v1382 = vadd.f32 %v1218, %v1340
        %v1383 = vadd.f32 %v1219, %v1342
        %v1384 = vadd.f32 %v1220, %v1346
        %v1385 = vadd.f32 %v1221, %v1348
        %v1386 = vadd.f32 %v1222, %v1350
        %v1387 = vadd.f32 %v1223, %v1352
        %v1388 = vadd.f32 %v1224, %v1356
        %v1389 = vadd.f32 %v1225, %v1358
        %v1390 = vadd.f32 %v1226, %v1360
        %v1391 = vadd.f32 %v1227, %v1362
        %v1392 = vpack.c.bf16 %v629, %v621
        %v1393 = vpack.c.bf16 %v645, %v637
        %v1394 = vpack.c.bf16 %v661, %v653
        %v1395 = vpack.c.bf16 %v677, %v669
        %v1396 = vpack.c.bf16 %v693, %v685
        %v1397 = vpack.c.bf16 %v709, %v701
        %v1398 = vpack.c.bf16 %v717, %v717
        %s1399 = scalar_lea.vmem %s2, 128
        %v1400 = vld [vmem:[%s1399] sm:$0xff]
        %v1401 = vld [vmem:[%s1399 + $0x8] sm:$0xff]
        %v1402 = vld [vmem:[%s1399 + $0x10] sm:$0xff]
        %v1403 = vld [vmem:[%s1399 + $0x18] sm:$0x33]
        %v1408 = vunpack.c.l.b16 %v1400
        %v1409 = vunpack.c.h.b16 %v1400
        %v1410 = vunpack.c.l.b16 %v1401
        %v1411 = vunpack.c.h.b16 %v1401
        %v1412 = vunpack.c.l.b16 %v1402
        %v1413 = vunpack.c.h.b16 %v1402
        %v1414 = vunpack.c.l.b16 %v1403
        %v1415 = vunpack.c.h.b16 %v1403
        %v1416 = vpack.c.b16 %v1410, %v1408
        %v1417 = vpack.c.b16 %v1411, %v1409
        %v1418 = vpack.c.b16 %v1414, %v1412
        %v1419 = vpack.c.b16 %v1415, %v1413
        %v1423 = vsel %vm752, %v1392, 0
        %v1426 = vsel %vm752, %v1393, 0
        %v1429 = vsel %vm752, %v1394, 0
        %v1432 = vsel %vm752, %v1395, 0
        %v1435 = vsel %vm752, %v1396, 0
        %v1438 = vsel %vm752, %v1397, 0
        %v1441 = vsel %vm752, %v1398, 0
        %v1444 = vsel %vm774, %v1418, 0
        %v1447 = vsel %vm774, %v1419, 0
        %1449 = vmatprep.subr.bf16.mxu0 0
        %1450 = vmatpush1.bf16.msra.mxu0 0
        %1451 = vmatprep.subr.bf16.mxu0 0
        %1452 = vmatpush1.bf16.msra.mxu0 0
        %1453 = vmatprep.subr.bf16.mxu0 0
        %1454 = vmatpush1.bf16.msra.mxu0 0
        %1455 = vmatprep.subr.bf16.mxu0 0
        %1456 = vmatpush1.bf16.msra.mxu0 0
        %1457 = vmatprep.subr.bf16.mxu0 0
        %1458 = vmatpush1.bf16.msra.mxu0 0
        %1459 = vmatprep.subr.bf16.mxu0 0
        %1460 = vmatpush1.bf16.msra.mxu0 0
        %1461 = vmatprep.subr.bf16.mxu0 %v1447
        %1462 = vmatpush1.bf16.msra.mxu0 %v1444
        %1463 = vmatprep.subr.bf16.mxu0 %v1417
        %1464 = vmatpush1.bf16.msra.mxu0 %v1416
        %1465 = vmatprep.subr.bf16.mxu0 0
        %1466 = vmatpush2.bf16.msra.mxu0 0
        %1467 = vmatprep.subr.bf16.mxu0 0
        %1468 = vmatpush2.bf16.msra.mxu0 0
        %1469 = vmatprep.subr.bf16.mxu0 0
        %1470 = vmatpush2.bf16.msra.mxu0 0
        %1471 = vmatprep.subr.bf16.mxu0 0
        %1472 = vmatpush2.bf16.msra.mxu0 0
        %1473 = vmatprep.subr.bf16.mxu0 0
        %1474 = vmatpush2.bf16.msra.mxu0 0
        %1475 = vmatprep.subr.bf16.mxu0 0
        %1476 = vmatpush2.bf16.msra.mxu0 0
        %1477 = vmatprep.subr.bf16.mxu0 0
        %1478 = vmatpush2.bf16.msra.mxu0 0
        %1479 = vmatprep.subr.bf16.mxu0 0
        %1480 = vmatpush2.bf16.msra.mxu0 0
        %1481 = vmatprep.mubr.bf16.mxu0 0
        %1482 = vmatmul.mubr.bf16.gmra.mxu0 %v1423
        %v1483 = vpop.f32.mrf.mxu0
        %v1484 = vadd.f32 0.0, %v1483
        %v1485 = vpop.f32.mrf.mxu0
        %v1486 = vadd.f32 0.0, %v1485
        %v1487 = vpop.f32.mrf.mxu0
        %v1488 = vadd.f32 0.0, %v1487
        %v1489 = vpop.f32.mrf.mxu0
        %v1490 = vadd.f32 0.0, %v1489
        %1491 = vmatprep.mubr.bf16.mxu0 0
        %1492 = vmatmul.mubr.bf16.gmra.mxu0 %v1426
        %v1493 = vpop.f32.mrf.mxu0
        %v1494 = vadd.f32 0.0, %v1493
        %v1495 = vpop.f32.mrf.mxu0
        %v1496 = vadd.f32 0.0, %v1495
        %v1497 = vpop.f32.mrf.mxu0
        %v1498 = vadd.f32 0.0, %v1497
        %v1499 = vpop.f32.mrf.mxu0
        %v1500 = vadd.f32 0.0, %v1499
        %1501 = vmatprep.mubr.bf16.mxu0 0
        %1502 = vmatmul.mubr.bf16.gmra.mxu0 %v1429
        %v1503 = vpop.f32.mrf.mxu0
        %v1504 = vadd.f32 0.0, %v1503
        %v1505 = vpop.f32.mrf.mxu0
        %v1506 = vadd.f32 0.0, %v1505
        %v1507 = vpop.f32.mrf.mxu0
        %v1508 = vadd.f32 0.0, %v1507
        %v1509 = vpop.f32.mrf.mxu0
        %v1510 = vadd.f32 0.0, %v1509
        %1511 = vmatprep.mubr.bf16.mxu0 0
        %1512 = vmatmul.mubr.bf16.gmra.mxu0 %v1432
        %v1513 = vpop.f32.mrf.mxu0
        %v1514 = vadd.f32 0.0, %v1513
        %v1515 = vpop.f32.mrf.mxu0
        %v1516 = vadd.f32 0.0, %v1515
        %v1517 = vpop.f32.mrf.mxu0
        %v1518 = vadd.f32 0.0, %v1517
        %v1519 = vpop.f32.mrf.mxu0
        %v1520 = vadd.f32 0.0, %v1519
        %1521 = vmatprep.mubr.bf16.mxu0 0
        %1522 = vmatmul.mubr.bf16.gmra.mxu0 %v1435
        %v1523 = vpop.f32.mrf.mxu0
        %v1524 = vadd.f32 0.0, %v1523
        %v1525 = vpop.f32.mrf.mxu0
        %v1526 = vadd.f32 0.0, %v1525
        %v1527 = vpop.f32.mrf.mxu0
        %v1528 = vadd.f32 0.0, %v1527
        %v1529 = vpop.f32.mrf.mxu0
        %v1530 = vadd.f32 0.0, %v1529
        %1531 = vmatprep.mubr.bf16.mxu0 0
        %1532 = vmatmul.mubr.bf16.gmra.mxu0 %v1438
        %v1533 = vpop.f32.mrf.mxu0
        %v1534 = vadd.f32 0.0, %v1533
        %v1535 = vpop.f32.mrf.mxu0
        %v1536 = vadd.f32 0.0, %v1535
        %v1537 = vpop.f32.mrf.mxu0
        %v1538 = vadd.f32 0.0, %v1537
        %v1539 = vpop.f32.mrf.mxu0
        %v1540 = vadd.f32 0.0, %v1539
        %1541 = vmatprep.mubr.bf16.mxu0 0
        %1542 = vmatmul.mubr.bf16.gmra.mxu0 %v1441
        %v1543 = vpop.f32.mrf.mxu0
        %v1544 = vadd.f32 0.0, %v1543
        %v1545 = vpop.f32.mrf.mxu0
        %v1546 = vadd.f32 0.0, %v1545
        %v1547 = vpop.f32.mrf.mxu0
        %v1548 = vpop.f32.mrf.mxu0
        %1549 = vdwg.mxu0
        %v1550 = vadd.f32 %v1364, %v1484
        %v1551 = vadd.f32 %v1365, %v1486
        %v1552 = vadd.f32 %v1366, %v1488
        %v1553 = vadd.f32 %v1367, %v1490
        %v1554 = vadd.f32 %v1368, %v1494
        %v1555 = vadd.f32 %v1369, %v1496
        %v1556 = vadd.f32 %v1370, %v1498
        %v1557 = vadd.f32 %v1371, %v1500
        %v1558 = vadd.f32 %v1372, %v1504
        %v1559 = vadd.f32 %v1373, %v1506
        %v1560 = vadd.f32 %v1374, %v1508
        %v1561 = vadd.f32 %v1375, %v1510
        %v1562 = vadd.f32 %v1376, %v1514
        %v1563 = vadd.f32 %v1377, %v1516
        %v1564 = vadd.f32 %v1378, %v1518
        %v1565 = vadd.f32 %v1379, %v1520
        %v1566 = vadd.f32 %v1380, %v1524
        %v1567 = vadd.f32 %v1381, %v1526
        %v1568 = vadd.f32 %v1382, %v1528
        %v1569 = vadd.f32 %v1383, %v1530
        %v1570 = vadd.f32 %v1384, %v1534
        %v1571 = vadd.f32 %v1385, %v1536
        %v1572 = vadd.f32 %v1386, %v1538
        %v1573 = vadd.f32 %v1387, %v1540
        %v1574 = vadd.f32 %v1388, %v1544
        %v1575 = vadd.f32 %v1389, %v1546
        %v1577 = vlaneseq
        %v1578 = vshrl.u32 %v1577, 7
        %v1579 = vsub.s32 0, %v1578
        %v1580 = vrot.slane %v722, %v1579
        %v1581 = vlaneseq
        %v1582 = vshrl.u32 %v1581, 7
        %v1583 = vsub.s32 1, %v1582
        %v1584 = vrot.slane %v722, %v1583
        %v1587 = vadd.f32 %v1550, %v1580
        %v1588 = vadd.f32 %v1551, %v1584
        %v1589 = vmax.f32 %v1587, 0.0
        %v1590 = vmax.f32 %v1588, 0.0
        %v1591 = vand.u32 2147483647, %v1587
        %v1592 = vand.u32 2147483647, %v1588
        %v1593 = vsub.f32 0.0, %v1591
        %v1594 = vsub.f32 0.0, %v1592
        %v1595 = vmul.f32 %v1593, 1.442695
        %v1596 = vpow.pop %v1595
        %v1597 = vmul.f32 %v1594, 1.442695
        %v1598 = vpow.pop %v1597
        %v1599 = vadd.f32 %v1596, 1.0
        %v1600 = vlog2.pop %v1599
        %v1601 = vmul.f32 %v1600, 0.6931472
        %v1602 = vmul.f32 -0.5, %v1596
        %v1603 = vadd.f32 %v1602, 1.0
        %v1604 = vmul.f32 %v1603, %v1596
        %v1605 = vand.u32 2147483647, %v1596
        %vm1606 = vcmp.lt.f32.partialorder %v1605, 0.0004427343
        %v1607 = vsel %vm1606, %v1604, %v1601
        %v1608 = vadd.f32 %v1598, 1.0
        %v1609 = vlog2.pop %v1608
        %v1610 = vmul.f32 %v1609, 0.6931472
        %v1611 = vmul.f32 -0.5, %v1598
        %v1612 = vadd.f32 %v1611, 1.0
        %v1613 = vmul.f32 %v1612, %v1598
        %v1614 = vand.u32 2147483647, %v1598
        %vm1615 = vcmp.lt.f32.partialorder %v1614, 0.0004427343
        %v1616 = vsel %vm1615, %v1613, %v1610
        %v1617 = vadd.f32 %v1589, %v1607
        %v1618 = vadd.f32 %v1590, %v1616
        %v1619 = vadd.f32 %v1552, %v1580
        %v1620 = vadd.f32 %v1553, %v1584
        %v1621 = vmax.f32 %v1619, 0.0
        %v1622 = vmax.f32 %v1620, 0.0
        %v1623 = vand.u32 2147483647, %v1619
        %v1624 = vand.u32 2147483647, %v1620
        %v1625 = vsub.f32 0.0, %v1623
        %v1626 = vsub.f32 0.0, %v1624
        %v1627 = vmul.f32 %v1625, 1.442695
        %v1628 = vpow.pop %v1627
        %v1629 = vmul.f32 %v1626, 1.442695
        %v1630 = vpow.pop %v1629
        %v1631 = vadd.f32 %v1628, 1.0
        %v1632 = vlog2.pop %v1631
        %v1633 = vmul.f32 %v1632, 0.6931472
        %v1634 = vmul.f32 -0.5, %v1628
        %v1635 = vadd.f32 %v1634, 1.0
        %v1636 = vmul.f32 %v1635, %v1628
        %v1637 = vand.u32 2147483647, %v1628
        %vm1638 = vcmp.lt.f32.partialorder %v1637, 0.0004427343
        %v1639 = vsel %vm1638, %v1636, %v1633
        %v1640 = vadd.f32 %v1630, 1.0
        %v1641 = vlog2.pop %v1640
        %v1642 = vmul.f32 %v1641, 0.6931472
        %v1643 = vmul.f32 -0.5, %v1630
        %v1644 = vadd.f32 %v1643, 1.0
        %v1645 = vmul.f32 %v1644, %v1630
        %v1646 = vand.u32 2147483647, %v1630
        %vm1647 = vcmp.lt.f32.partialorder %v1646, 0.0004427343
        %v1648 = vsel %vm1647, %v1645, %v1642
        %v1649 = vadd.f32 %v1621, %v1639
        %v1650 = vadd.f32 %v1622, %v1648
        %v1651 = vadd.f32 %v1554, %v1580
        %v1652 = vadd.f32 %v1555, %v1584
        %v1653 = vmax.f32 %v1651, 0.0
        %v1654 = vmax.f32 %v1652, 0.0
        %v1655 = vand.u32 2147483647, %v1651
        %v1656 = vand.u32 2147483647, %v1652
        %v1657 = vsub.f32 0.0, %v1655
        %v1658 = vsub.f32 0.0, %v1656
        %v1659 = vmul.f32 %v1657, 1.442695
        %v1660 = vpow.pop %v1659
        %v1661 = vmul.f32 %v1658, 1.442695
        %v1662 = vpow.pop %v1661
        %v1663 = vadd.f32 %v1660, 1.0
        %v1664 = vlog2.pop %v1663
        %v1665 = vmul.f32 %v1664, 0.6931472
        %v1666 = vmul.f32 -0.5, %v1660
        %v1667 = vadd.f32 %v1666, 1.0
        %v1668 = vmul.f32 %v1667, %v1660
        %v1669 = vand.u32 2147483647, %v1660
        %vm1670 = vcmp.lt.f32.partialorder %v1669, 0.0004427343
        %v1671 = vsel %vm1670, %v1668, %v1665
        %v1672 = vadd.f32 %v1662, 1.0
        %v1673 = vlog2.pop %v1672
        %v1674 = vmul.f32 %v1673, 0.6931472
        %v1675 = vmul.f32 -0.5, %v1662
        %v1676 = vadd.f32 %v1675, 1.0
        %v1677 = vmul.f32 %v1676, %v1662
        %v1678 = vand.u32 2147483647, %v1662
        %vm1679 = vcmp.lt.f32.partialorder %v1678, 0.0004427343
        %v1680 = vsel %vm1679, %v1677, %v1674
        %v1681 = vadd.f32 %v1653, %v1671
        %v1682 = vadd.f32 %v1654, %v1680
        %v1683 = vadd.f32 %v1556, %v1580
        %v1684 = vadd.f32 %v1557, %v1584
        %v1685 = vmax.f32 %v1683, 0.0
        %v1686 = vmax.f32 %v1684, 0.0
        %v1687 = vand.u32 2147483647, %v1683
        %v1688 = vand.u32 2147483647, %v1684
        %v1689 = vsub.f32 0.0, %v1687
        %v1690 = vsub.f32 0.0, %v1688
        %v1691 = vmul.f32 %v1689, 1.442695
        %v1692 = vpow.pop %v1691
        %v1693 = vmul.f32 %v1690, 1.442695
        %v1694 = vpow.pop %v1693
        %v1695 = vadd.f32 %v1692, 1.0
        %v1696 = vlog2.pop %v1695
        %v1697 = vmul.f32 %v1696, 0.6931472
        %v1698 = vmul.f32 -0.5, %v1692
        %v1699 = vadd.f32 %v1698, 1.0
        %v1700 = vmul.f32 %v1699, %v1692
        %v1701 = vand.u32 2147483647, %v1692
        %vm1702 = vcmp.lt.f32.partialorder %v1701, 0.0004427343
        %v1703 = vsel %vm1702, %v1700, %v1697
        %v1704 = vadd.f32 %v1694, 1.0
        %v1705 = vlog2.pop %v1704
        %v1706 = vmul.f32 %v1705, 0.6931472
        %v1707 = vmul.f32 -0.5, %v1694
        %v1708 = vadd.f32 %v1707, 1.0
        %v1709 = vmul.f32 %v1708, %v1694
        %v1710 = vand.u32 2147483647, %v1694
        %vm1711 = vcmp.lt.f32.partialorder %v1710, 0.0004427343
        %v1712 = vsel %vm1711, %v1709, %v1706
        %v1713 = vadd.f32 %v1685, %v1703
        %v1714 = vadd.f32 %v1686, %v1712
        %v1715 = vadd.f32 %v1558, %v1580
        %v1716 = vadd.f32 %v1559, %v1584
        %v1717 = vmax.f32 %v1715, 0.0
        %v1718 = vmax.f32 %v1716, 0.0
        %v1719 = vand.u32 2147483647, %v1715
        %v1720 = vand.u32 2147483647, %v1716
        %v1721 = vsub.f32 0.0, %v1719
        %v1722 = vsub.f32 0.0, %v1720
        %v1723 = vmul.f32 %v1721, 1.442695
        %v1724 = vpow.pop %v1723
        %v1725 = vmul.f32 %v1722, 1.442695
        %v1726 = vpow.pop %v1725
        %v1727 = vadd.f32 %v1724, 1.0
        %v1728 = vlog2.pop %v1727
        %v1729 = vmul.f32 %v1728, 0.6931472
        %v1730 = vmul.f32 -0.5, %v1724
        %v1731 = vadd.f32 %v1730, 1.0
        %v1732 = vmul.f32 %v1731, %v1724
        %v1733 = vand.u32 2147483647, %v1724
        %vm1734 = vcmp.lt.f32.partialorder %v1733, 0.0004427343
        %v1735 = vsel %vm1734, %v1732, %v1729
        %v1736 = vadd.f32 %v1726, 1.0
        %v1737 = vlog2.pop %v1736
        %v1738 = vmul.f32 %v1737, 0.6931472
        %v1739 = vmul.f32 -0.5, %v1726
        %v1740 = vadd.f32 %v1739, 1.0
        %v1741 = vmul.f32 %v1740, %v1726
        %v1742 = vand.u32 2147483647, %v1726
        %vm1743 = vcmp.lt.f32.partialorder %v1742, 0.0004427343
        %v1744 = vsel %vm1743, %v1741, %v1738
        %v1745 = vadd.f32 %v1717, %v1735
        %v1746 = vadd.f32 %v1718, %v1744
        %v1747 = vadd.f32 %v1560, %v1580
        %v1748 = vadd.f32 %v1561, %v1584
        %v1749 = vmax.f32 %v1747, 0.0
        %v1750 = vmax.f32 %v1748, 0.0
        %v1751 = vand.u32 2147483647, %v1747
        %v1752 = vand.u32 2147483647, %v1748
        %v1753 = vsub.f32 0.0, %v1751
        %v1754 = vsub.f32 0.0, %v1752
        %v1755 = vmul.f32 %v1753, 1.442695
        %v1756 = vpow.pop %v1755
        %v1757 = vmul.f32 %v1754, 1.442695
        %v1758 = vpow.pop %v1757
        %v1759 = vadd.f32 %v1756, 1.0
        %v1760 = vlog2.pop %v1759
        %v1761 = vmul.f32 %v1760, 0.6931472
        %v1762 = vmul.f32 -0.5, %v1756
        %v1763 = vadd.f32 %v1762, 1.0
        %v1764 = vmul.f32 %v1763, %v1756
        %v1765 = vand.u32 2147483647, %v1756
        %vm1766 = vcmp.lt.f32.partialorder %v1765, 0.0004427343
        %v1767 = vsel %vm1766, %v1764, %v1761
        %v1768 = vadd.f32 %v1758, 1.0
        %v1769 = vlog2.pop %v1768
        %v1770 = vmul.f32 %v1769, 0.6931472
        %v1771 = vmul.f32 -0.5, %v1758
        %v1772 = vadd.f32 %v1771, 1.0
        %v1773 = vmul.f32 %v1772, %v1758
        %v1774 = vand.u32 2147483647, %v1758
        %vm1775 = vcmp.lt.f32.partialorder %v1774, 0.0004427343
        %v1776 = vsel %vm1775, %v1773, %v1770
        %v1777 = vadd.f32 %v1749, %v1767
        %v1778 = vadd.f32 %v1750, %v1776
        %v1779 = vadd.f32 %v1562, %v1580
        %v1780 = vadd.f32 %v1563, %v1584
        %v1781 = vmax.f32 %v1779, 0.0
        %v1782 = vmax.f32 %v1780, 0.0
        %v1783 = vand.u32 2147483647, %v1779
        %v1784 = vand.u32 2147483647, %v1780
        %v1785 = vsub.f32 0.0, %v1783
        %v1786 = vsub.f32 0.0, %v1784
        %v1787 = vmul.f32 %v1785, 1.442695
        %v1788 = vpow.pop %v1787
        %v1789 = vmul.f32 %v1786, 1.442695
        %v1790 = vpow.pop %v1789
        %v1791 = vadd.f32 %v1788, 1.0
        %v1792 = vlog2.pop %v1791
        %v1793 = vmul.f32 %v1792, 0.6931472
        %v1794 = vmul.f32 -0.5, %v1788
        %v1795 = vadd.f32 %v1794, 1.0
        %v1796 = vmul.f32 %v1795, %v1788
        %v1797 = vand.u32 2147483647, %v1788
        %vm1798 = vcmp.lt.f32.partialorder %v1797, 0.0004427343
        %v1799 = vsel %vm1798, %v1796, %v1793
        %v1800 = vadd.f32 %v1790, 1.0
        %v1801 = vlog2.pop %v1800
        %v1802 = vmul.f32 %v1801, 0.6931472
        %v1803 = vmul.f32 -0.5, %v1790
        %v1804 = vadd.f32 %v1803, 1.0
        %v1805 = vmul.f32 %v1804, %v1790
        %v1806 = vand.u32 2147483647, %v1790
        %vm1807 = vcmp.lt.f32.partialorder %v1806, 0.0004427343
        %v1808 = vsel %vm1807, %v1805, %v1802
        %v1809 = vadd.f32 %v1781, %v1799
        %v1810 = vadd.f32 %v1782, %v1808
        %v1811 = vadd.f32 %v1564, %v1580
        %v1812 = vadd.f32 %v1565, %v1584
        %v1813 = vmax.f32 %v1811, 0.0
        %v1814 = vmax.f32 %v1812, 0.0
        %v1815 = vand.u32 2147483647, %v1811
        %v1816 = vand.u32 2147483647, %v1812
        %v1817 = vsub.f32 0.0, %v1815
        %v1818 = vsub.f32 0.0, %v1816
        %v1819 = vmul.f32 %v1817, 1.442695
        %v1820 = vpow.pop %v1819
        %v1821 = vmul.f32 %v1818, 1.442695
        %v1822 = vpow.pop %v1821
        %v1823 = vadd.f32 %v1820, 1.0
        %v1824 = vlog2.pop %v1823
        %v1825 = vmul.f32 %v1824, 0.6931472
        %v1826 = vmul.f32 -0.5, %v1820
        %v1827 = vadd.f32 %v1826, 1.0
        %v1828 = vmul.f32 %v1827, %v1820
        %v1829 = vand.u32 2147483647, %v1820
        %vm1830 = vcmp.lt.f32.partialorder %v1829, 0.0004427343
        %v1831 = vsel %vm1830, %v1828, %v1825
        %v1832 = vadd.f32 %v1822, 1.0
        %v1833 = vlog2.pop %v1832
        %v1834 = vmul.f32 %v1833, 0.6931472
        %v1835 = vmul.f32 -0.5, %v1822
        %v1836 = vadd.f32 %v1835, 1.0
        %v1837 = vmul.f32 %v1836, %v1822
        %v1838 = vand.u32 2147483647, %v1822
        %vm1839 = vcmp.lt.f32.partialorder %v1838, 0.0004427343
        %v1840 = vsel %vm1839, %v1837, %v1834
        %v1841 = vadd.f32 %v1813, %v1831
        %v1842 = vadd.f32 %v1814, %v1840
        %v1843 = vadd.f32 %v1566, %v1580
        %v1844 = vadd.f32 %v1567, %v1584
        %v1845 = vmax.f32 %v1843, 0.0
        %v1846 = vmax.f32 %v1844, 0.0
        %v1847 = vand.u32 2147483647, %v1843
        %v1848 = vand.u32 2147483647, %v1844
        %v1849 = vsub.f32 0.0, %v1847
        %v1850 = vsub.f32 0.0, %v1848
        %v1851 = vmul.f32 %v1849, 1.442695
        %v1852 = vpow.pop %v1851
        %v1853 = vmul.f32 %v1850, 1.442695
        %v1854 = vpow.pop %v1853
        %v1855 = vadd.f32 %v1852, 1.0
        %v1856 = vlog2.pop %v1855
        %v1857 = vmul.f32 %v1856, 0.6931472
        %v1858 = vmul.f32 -0.5, %v1852
        %v1859 = vadd.f32 %v1858, 1.0
        %v1860 = vmul.f32 %v1859, %v1852
        %v1861 = vand.u32 2147483647, %v1852
        %vm1862 = vcmp.lt.f32.partialorder %v1861, 0.0004427343
        %v1863 = vsel %vm1862, %v1860, %v1857
        %v1864 = vadd.f32 %v1854, 1.0
        %v1865 = vlog2.pop %v1864
        %v1866 = vmul.f32 %v1865, 0.6931472
        %v1867 = vmul.f32 -0.5, %v1854
        %v1868 = vadd.f32 %v1867, 1.0
        %v1869 = vmul.f32 %v1868, %v1854
        %v1870 = vand.u32 2147483647, %v1854
        %vm1871 = vcmp.lt.f32.partialorder %v1870, 0.0004427343
        %v1872 = vsel %vm1871, %v1869, %v1866
        %v1873 = vadd.f32 %v1845, %v1863
        %v1874 = vadd.f32 %v1846, %v1872
        %v1875 = vadd.f32 %v1568, %v1580
        %v1876 = vadd.f32 %v1569, %v1584
        %v1877 = vmax.f32 %v1875, 0.0
        %v1878 = vmax.f32 %v1876, 0.0
        %v1879 = vand.u32 2147483647, %v1875
        %v1880 = vand.u32 2147483647, %v1876
        %v1881 = vsub.f32 0.0, %v1879
        %v1882 = vsub.f32 0.0, %v1880
        %v1883 = vmul.f32 %v1881, 1.442695
        %v1884 = vpow.pop %v1883
        %v1885 = vmul.f32 %v1882, 1.442695
        %v1886 = vpow.pop %v1885
        %v1887 = vadd.f32 %v1884, 1.0
        %v1888 = vlog2.pop %v1887
        %v1889 = vmul.f32 %v1888, 0.6931472
        %v1890 = vmul.f32 -0.5, %v1884
        %v1891 = vadd.f32 %v1890, 1.0
        %v1892 = vmul.f32 %v1891, %v1884
        %v1893 = vand.u32 2147483647, %v1884
        %vm1894 = vcmp.lt.f32.partialorder %v1893, 0.0004427343
        %v1895 = vsel %vm1894, %v1892, %v1889
        %v1896 = vadd.f32 %v1886, 1.0
        %v1897 = vlog2.pop %v1896
        %v1898 = vmul.f32 %v1897, 0.6931472
        %v1899 = vmul.f32 -0.5, %v1886
        %v1900 = vadd.f32 %v1899, 1.0
        %v1901 = vmul.f32 %v1900, %v1886
        %v1902 = vand.u32 2147483647, %v1886
        %vm1903 = vcmp.lt.f32.partialorder %v1902, 0.0004427343
        %v1904 = vsel %vm1903, %v1901, %v1898
        %v1905 = vadd.f32 %v1877, %v1895
        %v1906 = vadd.f32 %v1878, %v1904
        %v1907 = vadd.f32 %v1570, %v1580
        %v1908 = vadd.f32 %v1571, %v1584
        %v1909 = vmax.f32 %v1907, 0.0
        %v1910 = vmax.f32 %v1908, 0.0
        %v1911 = vand.u32 2147483647, %v1907
        %v1912 = vand.u32 2147483647, %v1908
        %v1913 = vsub.f32 0.0, %v1911
        %v1914 = vsub.f32 0.0, %v1912
        %v1915 = vmul.f32 %v1913, 1.442695
        %v1916 = vpow.pop %v1915
        %v1917 = vmul.f32 %v1914, 1.442695
        %v1918 = vpow.pop %v1917
        %v1919 = vadd.f32 %v1916, 1.0
        %v1920 = vlog2.pop %v1919
        %v1921 = vmul.f32 %v1920, 0.6931472
        %v1922 = vmul.f32 -0.5, %v1916
        %v1923 = vadd.f32 %v1922, 1.0
        %v1924 = vmul.f32 %v1923, %v1916
        %v1925 = vand.u32 2147483647, %v1916
        %vm1926 = vcmp.lt.f32.partialorder %v1925, 0.0004427343
        %v1927 = vsel %vm1926, %v1924, %v1921
        %v1928 = vadd.f32 %v1918, 1.0
        %v1929 = vlog2.pop %v1928
        %v1930 = vmul.f32 %v1929, 0.6931472
        %v1931 = vmul.f32 -0.5, %v1918
        %v1932 = vadd.f32 %v1931, 1.0
        %v1933 = vmul.f32 %v1932, %v1918
        %v1934 = vand.u32 2147483647, %v1918
        %vm1935 = vcmp.lt.f32.partialorder %v1934, 0.0004427343
        %v1936 = vsel %vm1935, %v1933, %v1930
        %v1937 = vadd.f32 %v1909, %v1927
        %v1938 = vadd.f32 %v1910, %v1936
        %v1939 = vadd.f32 %v1572, %v1580
        %v1940 = vadd.f32 %v1573, %v1584
        %v1941 = vmax.f32 %v1939, 0.0
        %v1942 = vmax.f32 %v1940, 0.0
        %v1943 = vand.u32 2147483647, %v1939
        %v1944 = vand.u32 2147483647, %v1940
        %v1945 = vsub.f32 0.0, %v1943
        %v1946 = vsub.f32 0.0, %v1944
        %v1947 = vmul.f32 %v1945, 1.442695
        %v1948 = vpow.pop %v1947
        %v1949 = vmul.f32 %v1946, 1.442695
        %v1950 = vpow.pop %v1949
        %v1951 = vadd.f32 %v1948, 1.0
        %v1952 = vlog2.pop %v1951
        %v1953 = vmul.f32 %v1952, 0.6931472
        %v1954 = vmul.f32 -0.5, %v1948
        %v1955 = vadd.f32 %v1954, 1.0
        %v1956 = vmul.f32 %v1955, %v1948
        %v1957 = vand.u32 2147483647, %v1948
        %vm1958 = vcmp.lt.f32.partialorder %v1957, 0.0004427343
        %v1959 = vsel %vm1958, %v1956, %v1953
        %v1960 = vadd.f32 %v1950, 1.0
        %v1961 = vlog2.pop %v1960
        %v1962 = vmul.f32 %v1961, 0.6931472
        %v1963 = vmul.f32 -0.5, %v1950
        %v1964 = vadd.f32 %v1963, 1.0
        %v1965 = vmul.f32 %v1964, %v1950
        %v1966 = vand.u32 2147483647, %v1950
        %vm1967 = vcmp.lt.f32.partialorder %v1966, 0.0004427343
        %v1968 = vsel %vm1967, %v1965, %v1962
        %v1969 = vadd.f32 %v1941, %v1959
        %v1970 = vadd.f32 %v1942, %v1968
        %v1971 = vadd.f32 %v1574, %v1580
        %v1972 = vadd.f32 %v1575, %v1584
        %v1973 = vmax.f32 %v1971, 0.0
        %v1974 = vmax.f32 %v1972, 0.0
        %v1975 = vand.u32 2147483647, %v1971
        %v1976 = vand.u32 2147483647, %v1972
        %v1977 = vsub.f32 0.0, %v1975
        %v1978 = vsub.f32 0.0, %v1976
        %v1979 = vmul.f32 %v1977, 1.442695
        %v1980 = vpow.pop %v1979
        %v1981 = vmul.f32 %v1978, 1.442695
        %v1982 = vpow.pop %v1981
        %v1983 = vadd.f32 %v1980, 1.0
        %v1984 = vlog2.pop %v1983
        %v1985 = vmul.f32 %v1984, 0.6931472
        %v1986 = vmul.f32 -0.5, %v1980
        %v1987 = vadd.f32 %v1986, 1.0
        %v1988 = vmul.f32 %v1987, %v1980
        %v1989 = vand.u32 2147483647, %v1980
        %vm1990 = vcmp.lt.f32.partialorder %v1989, 0.0004427343
        %v1991 = vsel %vm1990, %v1988, %v1985
        %v1992 = vadd.f32 %v1982, 1.0
        %v1993 = vlog2.pop %v1992
        %v1994 = vmul.f32 %v1993, 0.6931472
        %v1995 = vmul.f32 -0.5, %v1982
        %v1996 = vadd.f32 %v1995, 1.0
        %v1997 = vmul.f32 %v1996, %v1982
        %v1998 = vand.u32 2147483647, %v1982
        %vm1999 = vcmp.lt.f32.partialorder %v1998, 0.0004427343
        %v2000 = vsel %vm1999, %v1997, %v1994
        %v2001 = vadd.f32 %v1973, %v1991
        %v2002 = vadd.f32 %v1974, %v2000
        %v2003 = vadd.f32 %v1390, %v1580
        %v2004 = vadd.f32 %v1391, %v1584
        %v2005 = vmax.f32 %v2003, 0.0
        %v2006 = vmax.f32 %v2004, 0.0
        %v2007 = vand.u32 2147483647, %v2003
        %v2008 = vand.u32 2147483647, %v2004
        %v2009 = vsub.f32 0.0, %v2007
        %v2010 = vsub.f32 0.0, %v2008
        %v2011 = vmul.f32 %v2009, 1.442695
        %v2012 = vpow.pop %v2011
        %v2013 = vmul.f32 %v2010, 1.442695
        %v2014 = vpow.pop %v2013
        %v2015 = vadd.f32 %v2012, 1.0
        %v2016 = vlog2.pop %v2015
        %v2017 = vmul.f32 %v2016, 0.6931472
        %v2018 = vmul.f32 -0.5, %v2012
        %v2019 = vadd.f32 %v2018, 1.0
        %v2020 = vmul.f32 %v2019, %v2012
        %v2021 = vand.u32 2147483647, %v2012
        %vm2022 = vcmp.lt.f32.partialorder %v2021, 0.0004427343
        %v2023 = vsel %vm2022, %v2020, %v2017
        %v2024 = vadd.f32 %v2014, 1.0
        %v2025 = vlog2.pop %v2024
        %v2026 = vmul.f32 %v2025, 0.6931472
        %v2027 = vmul.f32 -0.5, %v2014
        %v2028 = vadd.f32 %v2027, 1.0
        %v2029 = vmul.f32 %v2028, %v2014
        %v2030 = vand.u32 2147483647, %v2014
        %vm2031 = vcmp.lt.f32.partialorder %v2030, 0.0004427343
        %v2032 = vsel %vm2031, %v2029, %v2026
        %v2033 = vadd.f32 %v2005, %v2023
        %v2034 = vadd.f32 %v2006, %v2032
        %v2035 = vld [vmem:[%s5] sm:$0x3]
        %v2036 = vpack.c.bf16 %v1681, %v1617
        %v2037 = vpack.c.bf16 %v1682, %v1618
        %v2038 = vpack.c.bf16 %v1809, %v1745
        %v2039 = vpack.c.bf16 %v1810, %v1746
        %v2040 = vpack.c.bf16 %v1937, %v1873
        %v2041 = vpack.c.bf16 %v1938, %v1874
        %v2042 = vld [vmem:[%s4] sm:$0xff]
        %v2043 = vld [vmem:[%s4 + $0x8] sm:$0xff]
        %v2044 = vld [vmem:[%s4 + $0x10] sm:$0xff]
        %v2045 = vld [vmem:[%s4 + $0x18] sm:$0xff]
        %v2046 = vld [vmem:[%s4 + $0x20] sm:$0xff]
        %v2047 = vld [vmem:[%s4 + $0x28] sm:$0xff]
        %v2048 = vld [vmem:[%s4 + $0x30] sm:$0xff]
        %v2049 = vld [vmem:[%s4 + $0x38] sm:$0xff]
        %v2050 = vld [vmem:[%s4 + $0x40] sm:$0xff]
        %v2051 = vld [vmem:[%s4 + $0x48] sm:$0xff]
        %v2052 = vld [vmem:[%s4 + $0x50] sm:$0xff]
        %v2053 = vld [vmem:[%s4 + $0x58] sm:$0xff]
        %v2054 = vld [vmem:[%s4 + $0x60] sm:$0xff]
        %v2055 = vld [vmem:[%s4 + $0x68] sm:$0xff]
        %v2056 = vld [vmem:[%s4 + $0x70] sm:$0xff]
        %v2057 = vld [vmem:[%s4 + $0x78] sm:$0xff]
        %v2058 = vld [vmem:[%s4 + $0x80] sm:$0xff]
        %v2059 = vld [vmem:[%s4 + $0x88] sm:$0xff]
        %v2060 = vld [vmem:[%s4 + $0x90] sm:$0xff]
        %v2061 = vld [vmem:[%s4 + $0x98] sm:$0xff]
        %v2062 = vld [vmem:[%s4 + $0xa0] sm:$0xff]
        %v2063 = vld [vmem:[%s4 + $0xa8] sm:$0xff]
        %v2064 = vld [vmem:[%s4 + $0xb0] sm:$0xff]
        %v2065 = vld [vmem:[%s4 + $0xb8] sm:$0xff]
        %v2066 = vld [vmem:[%s4 + $0xc0] sm:$0xff]
        %v2067 = vld [vmem:[%s4 + $0xc8] sm:$0xff]
        %v2068 = vld [vmem:[%s4 + $0xd0] sm:$0xff]
        %v2069 = vld [vmem:[%s4 + $0xd8] sm:$0xff]
        %v2098 = vunpack.c.l.b16 %v2042
        %v2099 = vunpack.c.h.b16 %v2042
        %v2100 = vunpack.c.l.b16 %v2043
        %v2101 = vunpack.c.h.b16 %v2043
        %v2102 = vunpack.c.l.b16 %v2044
        %v2103 = vunpack.c.h.b16 %v2044
        %v2104 = vunpack.c.l.b16 %v2045
        %v2105 = vunpack.c.h.b16 %v2045
        %v2106 = vunpack.c.l.b16 %v2046
        %v2107 = vunpack.c.h.b16 %v2046
        %v2108 = vunpack.c.l.b16 %v2047
        %v2109 = vunpack.c.h.b16 %v2047
        %v2110 = vunpack.c.l.b16 %v2048
        %v2111 = vunpack.c.h.b16 %v2048
        %v2112 = vunpack.c.l.b16 %v2049
        %v2113 = vunpack.c.h.b16 %v2049
        %v2114 = vunpack.c.l.b16 %v2050
        %v2115 = vunpack.c.h.b16 %v2050
        %v2116 = vunpack.c.l.b16 %v2051
        %v2117 = vunpack.c.h.b16 %v2051
        %v2118 = vunpack.c.l.b16 %v2052
        %v2119 = vunpack.c.h.b16 %v2052
        %v2120 = vunpack.c.l.b16 %v2053
        %v2121 = vunpack.c.h.b16 %v2053
        %v2122 = vunpack.c.l.b16 %v2054
        %v2123 = vunpack.c.h.b16 %v2054
        %v2124 = vunpack.c.l.b16 %v2055
        %v2125 = vunpack.c.h.b16 %v2055
        %v2126 = vunpack.c.l.b16 %v2056
        %v2127 = vunpack.c.h.b16 %v2056
        %v2128 = vunpack.c.l.b16 %v2057
        %v2129 = vunpack.c.h.b16 %v2057
        %v2130 = vunpack.c.l.b16 %v2058
        %v2131 = vunpack.c.h.b16 %v2058
        %v2132 = vunpack.c.l.b16 %v2059
        %v2133 = vunpack.c.h.b16 %v2059
        %v2134 = vunpack.c.l.b16 %v2060
        %v2135 = vunpack.c.h.b16 %v2060
        %v2136 = vunpack.c.l.b16 %v2061
        %v2137 = vunpack.c.h.b16 %v2061
        %v2138 = vunpack.c.l.b16 %v2062
        %v2139 = vunpack.c.h.b16 %v2062
        %v2140 = vunpack.c.l.b16 %v2063
        %v2141 = vunpack.c.h.b16 %v2063
        %v2142 = vunpack.c.l.b16 %v2064
        %v2143 = vunpack.c.h.b16 %v2064
        %v2144 = vunpack.c.l.b16 %v2065
        %v2145 = vunpack.c.h.b16 %v2065
        %v2146 = vunpack.c.l.b16 %v2066
        %v2147 = vunpack.c.h.b16 %v2066
        %v2148 = vunpack.c.l.b16 %v2067
        %v2149 = vunpack.c.h.b16 %v2067
        %v2150 = vunpack.c.l.b16 %v2068
        %v2151 = vunpack.c.h.b16 %v2068
        %v2152 = vunpack.c.l.b16 %v2069
        %v2153 = vunpack.c.h.b16 %v2069
        %v2154 = vpack.c.b16 %v2100, %v2098
        %v2155 = vpack.c.b16 %v2101, %v2099
        %v2156 = vpack.c.b16 %v2104, %v2102
        %v2157 = vpack.c.b16 %v2105, %v2103
        %v2158 = vpack.c.b16 %v2108, %v2106
        %v2159 = vpack.c.b16 %v2109, %v2107
        %v2160 = vpack.c.b16 %v2112, %v2110
        %v2161 = vpack.c.b16 %v2113, %v2111
        %v2162 = vpack.c.b16 %v2116, %v2114
        %v2163 = vpack.c.b16 %v2117, %v2115
        %v2164 = vpack.c.b16 %v2120, %v2118
        %v2165 = vpack.c.b16 %v2121, %v2119
        %v2166 = vpack.c.b16 %v2124, %v2122
        %v2167 = vpack.c.b16 %v2125, %v2123
        %v2168 = vpack.c.b16 %v2128, %v2126
        %v2169 = vpack.c.b16 %v2129, %v2127
        %v2170 = vpack.c.b16 %v2132, %v2130
        %v2171 = vpack.c.b16 %v2133, %v2131
        %v2172 = vpack.c.b16 %v2136, %v2134
        %v2173 = vpack.c.b16 %v2137, %v2135
        %v2174 = vpack.c.b16 %v2140, %v2138
        %v2175 = vpack.c.b16 %v2141, %v2139
        %v2176 = vpack.c.b16 %v2144, %v2142
        %v2177 = vpack.c.b16 %v2145, %v2143
        %v2178 = vpack.c.b16 %v2148, %v2146
        %v2179 = vpack.c.b16 %v2149, %v2147
        %v2180 = vpack.c.b16 %v2152, %v2150
        %v2181 = vpack.c.b16 %v2153, %v2151
        %vm2210 = vcmask 785408
        %v2212 = vsel %vm2210, %v2037, 0
        %v2215 = vsel %vm2210, %v2039, 0
        %v2218 = vsel %vm2210, %v2041, 0
        %2220 = vmatprep.subr.bf16.mxu0 %v2169
        %2221 = vmatpush1.bf16.msra.mxu0 %v2168
        %2222 = vmatprep.subr.bf16.mxu0 %v2167
        %2223 = vmatpush1.bf16.msra.mxu0 %v2166
        %2224 = vmatprep.subr.bf16.mxu0 %v2165
        %2225 = vmatpush1.bf16.msra.mxu0 %v2164
        %2226 = vmatprep.subr.bf16.mxu0 %v2163
        %2227 = vmatpush1.bf16.msra.mxu0 %v2162
        %2228 = vmatprep.subr.bf16.mxu0 %v2161
        %2229 = vmatpush1.bf16.msra.mxu0 %v2160
        %2230 = vmatprep.subr.bf16.mxu0 %v2159
        %2231 = vmatpush1.bf16.msra.mxu0 %v2158
        %2232 = vmatprep.subr.bf16.mxu0 %v2157
        %2233 = vmatpush1.bf16.msra.mxu0 %v2156
        %2234 = vmatprep.subr.bf16.mxu0 %v2155
        %2235 = vmatpush1.bf16.msra.mxu0 %v2154
        %2236 = vmatprep.subr.bf16.mxu0 0
        %2237 = vmatpush2.bf16.msra.mxu0 0
        %2238 = vmatprep.subr.bf16.mxu0 0
        %2239 = vmatpush2.bf16.msra.mxu0 0
        %2240 = vmatprep.subr.bf16.mxu0 %v2181
        %2241 = vmatpush2.bf16.msra.mxu0 %v2180
        %2242 = vmatprep.subr.bf16.mxu0 %v2179
        %2243 = vmatpush2.bf16.msra.mxu0 %v2178
        %2244 = vmatprep.subr.bf16.mxu0 %v2177
        %2245 = vmatpush2.bf16.msra.mxu0 %v2176
        %2246 = vmatprep.subr.bf16.mxu0 %v2175
        %2247 = vmatpush2.bf16.msra.mxu0 %v2174
        %2248 = vmatprep.subr.bf16.mxu0 %v2173
        %2249 = vmatpush2.bf16.msra.mxu0 %v2172
        %2250 = vmatprep.subr.bf16.mxu0 %v2171
        %2251 = vmatpush2.bf16.msra.mxu0 %v2170
        %2252 = vmatprep.mubr.bf16.mxu0 %v2212
        %2253 = vmatmul.mubr.bf16.gmra.mxu0 %v2036
        %v2254 = vpop.f32.mrf.mxu0
        %v2255 = vadd.f32 0.0, %v2254
        %v2256 = vpop.f32.mrf.mxu0
        %v2257 = vadd.f32 0.0, %v2256
        %v2258 = vpop.f32.mrf.mxu0
        %v2259 = vadd.f32 0.0, %v2258
        %v2260 = vpop.f32.mrf.mxu0
        %v2261 = vadd.f32 0.0, %v2260
        %2262 = vmatprep.mubr.bf16.mxu0 %v2215
        %2263 = vmatmul.mubr.bf16.gmra.mxu0 %v2038
        %v2264 = vpop.f32.mrf.mxu0
        %v2265 = vadd.f32 0.0, %v2264
        %v2266 = vpop.f32.mrf.mxu0
        %v2267 = vadd.f32 0.0, %v2266
        %v2268 = vpop.f32.mrf.mxu0
        %v2269 = vadd.f32 0.0, %v2268
        %v2270 = vpop.f32.mrf.mxu0
        %v2271 = vadd.f32 0.0, %v2270
        %2272 = vmatprep.mubr.bf16.mxu0 %v2218
        %2273 = vmatmul.mubr.bf16.gmra.mxu0 %v2040
        %v2274 = vpop.f32.mrf.mxu0
        %v2275 = vadd.f32 0.0, %v2274
        %v2276 = vpop.f32.mrf.mxu0
        %v2277 = vadd.f32 0.0, %v2276
        %v2278 = vpop.f32.mrf.mxu0
        %v2279 = vadd.f32 0.0, %v2278
        %v2280 = vpop.f32.mrf.mxu0
        %v2281 = vadd.f32 0.0, %v2280
        %2282 = vdwg.mxu0
        %v2283 = vpack.c.bf16 %v1713, %v1649
        %v2284 = vpack.c.bf16 %v1714, %v1650
        %v2285 = vpack.c.bf16 %v1841, %v1777
        %v2286 = vpack.c.bf16 %v1842, %v1778
        %v2287 = vpack.c.bf16 %v1969, %v1905
        %v2288 = vpack.c.bf16 %v1970, %v1906
        %s2289 = scalar_lea.vmem %s4, 224
        %v2290 = vld [vmem:[%s2289] sm:$0xff]
        %v2291 = vld [vmem:[%s2289 + $0x8] sm:$0xff]
        %v2292 = vld [vmem:[%s2289 + $0x10] sm:$0xff]
        %v2293 = vld [vmem:[%s2289 + $0x18] sm:$0xff]
        %v2294 = vld [vmem:[%s2289 + $0x20] sm:$0xff]
        %v2295 = vld [vmem:[%s2289 + $0x28] sm:$0xff]
        %v2296 = vld [vmem:[%s2289 + $0x30] sm:$0xff]
        %v2297 = vld [vmem:[%s2289 + $0x38] sm:$0xff]
        %v2298 = vld [vmem:[%s2289 + $0x40] sm:$0xff]
        %v2299 = vld [vmem:[%s2289 + $0x48] sm:$0xff]
        %v2300 = vld [vmem:[%s2289 + $0x50] sm:$0xff]
        %v2301 = vld [vmem:[%s2289 + $0x58] sm:$0xff]
        %v2302 = vld [vmem:[%s2289 + $0x60] sm:$0xff]
        %v2303 = vld [vmem:[%s2289 + $0x68] sm:$0xff]
        %v2304 = vld [vmem:[%s2289 + $0x70] sm:$0xff]
        %v2305 = vld [vmem:[%s2289 + $0x78] sm:$0xff]
        %v2306 = vld [vmem:[%s2289 + $0x80] sm:$0xff]
        %v2307 = vld [vmem:[%s2289 + $0x88] sm:$0xff]
        %v2308 = vld [vmem:[%s2289 + $0x90] sm:$0xff]
        %v2309 = vld [vmem:[%s2289 + $0x98] sm:$0xff]
        %v2310 = vld [vmem:[%s2289 + $0xa0] sm:$0xff]
        %v2311 = vld [vmem:[%s2289 + $0xa8] sm:$0xff]
        %v2312 = vld [vmem:[%s2289 + $0xb0] sm:$0xff]
        %v2313 = vld [vmem:[%s2289 + $0xb8] sm:$0xff]
        %v2314 = vld [vmem:[%s2289 + $0xc0] sm:$0xff]
        %v2315 = vld [vmem:[%s2289 + $0xc8] sm:$0xff]
        %v2316 = vld [vmem:[%s2289 + $0xd0] sm:$0xff]
        %v2317 = vld [vmem:[%s2289 + $0xd8] sm:$0xff]
        %v2346 = vunpack.c.l.b16 %v2290
        %v2347 = vunpack.c.h.b16 %v2290
        %v2348 = vunpack.c.l.b16 %v2291
        %v2349 = vunpack.c.h.b16 %v2291
        %v2350 = vunpack.c.l.b16 %v2292
        %v2351 = vunpack.c.h.b16 %v2292
        %v2352 = vunpack.c.l.b16 %v2293
        %v2353 = vunpack.c.h.b16 %v2293
        %v2354 = vunpack.c.l.b16 %v2294
        %v2355 = vunpack.c.h.b16 %v2294
        %v2356 = vunpack.c.l.b16 %v2295
        %v2357 = vunpack.c.h.b16 %v2295
        %v2358 = vunpack.c.l.b16 %v2296
        %v2359 = vunpack.c.h.b16 %v2296
        %v2360 = vunpack.c.l.b16 %v2297
        %v2361 = vunpack.c.h.b16 %v2297
        %v2362 = vunpack.c.l.b16 %v2298
        %v2363 = vunpack.c.h.b16 %v2298
        %v2364 = vunpack.c.l.b16 %v2299
        %v2365 = vunpack.c.h.b16 %v2299
        %v2366 = vunpack.c.l.b16 %v2300
        %v2367 = vunpack.c.h.b16 %v2300
        %v2368 = vunpack.c.l.b16 %v2301
        %v2369 = vunpack.c.h.b16 %v2301
        %v2370 = vunpack.c.l.b16 %v2302
        %v2371 = vunpack.c.h.b16 %v2302
        %v2372 = vunpack.c.l.b16 %v2303
        %v2373 = vunpack.c.h.b16 %v2303
        %v2374 = vunpack.c.l.b16 %v2304
        %v2375 = vunpack.c.h.b16 %v2304
        %v2376 = vunpack.c.l.b16 %v2305
        %v2377 = vunpack.c.h.b16 %v2305
        %v2378 = vunpack.c.l.b16 %v2306
        %v2379 = vunpack.c.h.b16 %v2306
        %v2380 = vunpack.c.l.b16 %v2307
        %v2381 = vunpack.c.h.b16 %v2307
        %v2382 = vunpack.c.l.b16 %v2308
        %v2383 = vunpack.c.h.b16 %v2308
        %v2384 = vunpack.c.l.b16 %v2309
        %v2385 = vunpack.c.h.b16 %v2309
        %v2386 = vunpack.c.l.b16 %v2310
        %v2387 = vunpack.c.h.b16 %v2310
        %v2388 = vunpack.c.l.b16 %v2311
        %v2389 = vunpack.c.h.b16 %v2311
        %v2390 = vunpack.c.l.b16 %v2312
        %v2391 = vunpack.c.h.b16 %v2312
        %v2392 = vunpack.c.l.b16 %v2313
        %v2393 = vunpack.c.h.b16 %v2313
        %v2394 = vunpack.c.l.b16 %v2314
        %v2395 = vunpack.c.h.b16 %v2314
        %v2396 = vunpack.c.l.b16 %v2315
        %v2397 = vunpack.c.h.b16 %v2315
        %v2398 = vunpack.c.l.b16 %v2316
        %v2399 = vunpack.c.h.b16 %v2316
        %v2400 = vunpack.c.l.b16 %v2317
        %v2401 = vunpack.c.h.b16 %v2317
        %v2402 = vpack.c.b16 %v2348, %v2346
        %v2403 = vpack.c.b16 %v2349, %v2347
        %v2404 = vpack.c.b16 %v2352, %v2350
        %v2405 = vpack.c.b16 %v2353, %v2351
        %v2406 = vpack.c.b16 %v2356, %v2354
        %v2407 = vpack.c.b16 %v2357, %v2355
        %v2408 = vpack.c.b16 %v2360, %v2358
        %v2409 = vpack.c.b16 %v2361, %v2359
        %v2410 = vpack.c.b16 %v2364, %v2362
        %v2411 = vpack.c.b16 %v2365, %v2363
        %v2412 = vpack.c.b16 %v2368, %v2366
        %v2413 = vpack.c.b16 %v2369, %v2367
        %v2414 = vpack.c.b16 %v2372, %v2370
        %v2415 = vpack.c.b16 %v2373, %v2371
        %v2416 = vpack.c.b16 %v2376, %v2374
        %v2417 = vpack.c.b16 %v2377, %v2375
        %v2418 = vpack.c.b16 %v2380, %v2378
        %v2419 = vpack.c.b16 %v2381, %v2379
        %v2420 = vpack.c.b16 %v2384, %v2382
        %v2421 = vpack.c.b16 %v2385, %v2383
        %v2422 = vpack.c.b16 %v2388, %v2386
        %v2423 = vpack.c.b16 %v2389, %v2387
        %v2424 = vpack.c.b16 %v2392, %v2390
        %v2425 = vpack.c.b16 %v2393, %v2391
        %v2426 = vpack.c.b16 %v2396, %v2394
        %v2427 = vpack.c.b16 %v2397, %v2395
        %v2428 = vpack.c.b16 %v2400, %v2398
        %v2429 = vpack.c.b16 %v2401, %v2399
        %v2459 = vsel %vm2210, %v2284, 0
        %v2462 = vsel %vm2210, %v2286, 0
        %v2465 = vsel %vm2210, %v2288, 0
        %2467 = vmatprep.subr.bf16.mxu0 %v2417
        %2468 = vmatpush1.bf16.msra.mxu0 %v2416
        %2469 = vmatprep.subr.bf16.mxu0 %v2415
        %2470 = vmatpush1.bf16.msra.mxu0 %v2414
        %2471 = vmatprep.subr.bf16.mxu0 %v2413
        %2472 = vmatpush1.bf16.msra.mxu0 %v2412
        %2473 = vmatprep.subr.bf16.mxu0 %v2411
        %2474 = vmatpush1.bf16.msra.mxu0 %v2410
        %2475 = vmatprep.subr.bf16.mxu0 %v2409
        %2476 = vmatpush1.bf16.msra.mxu0 %v2408
        %2477 = vmatprep.subr.bf16.mxu0 %v2407
        %2478 = vmatpush1.bf16.msra.mxu0 %v2406
        %2479 = vmatprep.subr.bf16.mxu0 %v2405
        %2480 = vmatpush1.bf16.msra.mxu0 %v2404
        %2481 = vmatprep.subr.bf16.mxu0 %v2403
        %2482 = vmatpush1.bf16.msra.mxu0 %v2402
        %2483 = vmatprep.subr.bf16.mxu0 0
        %2484 = vmatpush2.bf16.msra.mxu0 0
        %2485 = vmatprep.subr.bf16.mxu0 0
        %2486 = vmatpush2.bf16.msra.mxu0 0
        %2487 = vmatprep.subr.bf16.mxu0 %v2429
        %2488 = vmatpush2.bf16.msra.mxu0 %v2428
        %2489 = vmatprep.subr.bf16.mxu0 %v2427
        %2490 = vmatpush2.bf16.msra.mxu0 %v2426
        %2491 = vmatprep.subr.bf16.mxu0 %v2425
        %2492 = vmatpush2.bf16.msra.mxu0 %v2424
        %2493 = vmatprep.subr.bf16.mxu0 %v2423
        %2494 = vmatpush2.bf16.msra.mxu0 %v2422
        %2495 = vmatprep.subr.bf16.mxu0 %v2421
        %2496 = vmatpush2.bf16.msra.mxu0 %v2420
        %2497 = vmatprep.subr.bf16.mxu0 %v2419
        %2498 = vmatpush2.bf16.msra.mxu0 %v2418
        %2499 = vmatprep.mubr.bf16.mxu0 %v2459
        %2500 = vmatmul.mubr.bf16.gmra.mxu0 %v2283
        %v2501 = vpop.f32.mrf.mxu0
        %v2502 = vadd.f32 0.0, %v2501
        %v2503 = vpop.f32.mrf.mxu0
        %v2504 = vadd.f32 0.0, %v2503
        %v2505 = vpop.f32.mrf.mxu0
        %v2506 = vadd.f32 0.0, %v2505
        %v2507 = vpop.f32.mrf.mxu0
        %v2508 = vadd.f32 0.0, %v2507
        %2509 = vmatprep.mubr.bf16.mxu0 %v2462
        %2510 = vmatmul.mubr.bf16.gmra.mxu0 %v2285
        %v2511 = vpop.f32.mrf.mxu0
        %v2512 = vadd.f32 0.0, %v2511
        %v2513 = vpop.f32.mrf.mxu0
        %v2514 = vadd.f32 0.0, %v2513
        %v2515 = vpop.f32.mrf.mxu0
        %v2516 = vadd.f32 0.0, %v2515
        %v2517 = vpop.f32.mrf.mxu0
        %v2518 = vadd.f32 0.0, %v2517
        %2519 = vmatprep.mubr.bf16.mxu0 %v2465
        %2520 = vmatmul.mubr.bf16.gmra.mxu0 %v2287
        %v2521 = vpop.f32.mrf.mxu0
        %v2522 = vadd.f32 0.0, %v2521
        %v2523 = vpop.f32.mrf.mxu0
        %v2524 = vadd.f32 0.0, %v2523
        %v2525 = vpop.f32.mrf.mxu0
        %v2526 = vadd.f32 0.0, %v2525
        %v2527 = vpop.f32.mrf.mxu0
        %v2528 = vadd.f32 0.0, %v2527
        %2529 = vdwg.mxu0
        %v2530 = vadd.f32 %v2255, %v2502
        %v2531 = vadd.f32 %v2257, %v2504
        %v2532 = vadd.f32 %v2259, %v2506
        %v2533 = vadd.f32 %v2261, %v2508
        %v2534 = vadd.f32 %v2265, %v2512
        %v2535 = vadd.f32 %v2267, %v2514
        %v2536 = vadd.f32 %v2269, %v2516
        %v2537 = vadd.f32 %v2271, %v2518
        %v2538 = vadd.f32 %v2275, %v2522
        %v2539 = vadd.f32 %v2277, %v2524
        %v2540 = vadd.f32 %v2279, %v2526
        %v2541 = vadd.f32 %v2281, %v2528
        %v2542 = vpack.c.bf16 %v2001, %v2001
        %v2543 = vpack.c.bf16 %v2002, %v2002
        %s2544 = scalar_lea.vmem %s4, 448
        %v2545 = vld [vmem:[%s2544] sm:$0xff]
        %v2546 = vld [vmem:[%s2544 + $0x8] sm:$0xff]
        %v2547 = vld [vmem:[%s2544 + $0x10] sm:$0xff]
        %v2548 = vld [vmem:[%s2544 + $0x18] sm:$0xff]
        %v2549 = vld [vmem:[%s2544 + $0x20] sm:$0xff]
        %v2550 = vld [vmem:[%s2544 + $0x28] sm:$0xff]
        %v2551 = vld [vmem:[%s2544 + $0x30] sm:$0xff]
        %v2552 = vld [vmem:[%s2544 + $0x38] sm:$0xff]
        %v2553 = vld [vmem:[%s2544 + $0x40] sm:$0xff]
        %v2554 = vld [vmem:[%s2544 + $0x48] sm:$0xff]
        %v2555 = vld [vmem:[%s2544 + $0x50] sm:$0xff]
        %v2556 = vld [vmem:[%s2544 + $0x58] sm:$0xff]
        %v2557 = vld [vmem:[%s2544 + $0x60] sm:$0xff]
        %v2558 = vld [vmem:[%s2544 + $0x68] sm:$0xff]
        %v2559 = vld [vmem:[%s2544 + $0x70] sm:$0xff]
        %v2560 = vld [vmem:[%s2544 + $0x78] sm:$0xff]
        %v2561 = vld [vmem:[%s2544 + $0x80] sm:$0xff]
        %v2562 = vld [vmem:[%s2544 + $0x88] sm:$0xff]
        %v2563 = vld [vmem:[%s2544 + $0x90] sm:$0xff]
        %v2564 = vld [vmem:[%s2544 + $0x98] sm:$0xff]
        %v2565 = vld [vmem:[%s2544 + $0xa0] sm:$0xff]
        %v2566 = vld [vmem:[%s2544 + $0xa8] sm:$0xff]
        %v2567 = vld [vmem:[%s2544 + $0xb0] sm:$0xff]
        %v2568 = vld [vmem:[%s2544 + $0xb8] sm:$0xff]
        %v2569 = vld [vmem:[%s2544 + $0xc0] sm:$0xff]
        %v2570 = vld [vmem:[%s2544 + $0xc8] sm:$0xff]
        %v2571 = vld [vmem:[%s2544 + $0xd0] sm:$0xff]
        %v2572 = vld [vmem:[%s2544 + $0xd8] sm:$0xff]
        %v2601 = vunpack.c.l.b16 %v2545
        %v2602 = vunpack.c.h.b16 %v2545
        %v2603 = vunpack.c.l.b16 %v2546
        %v2604 = vunpack.c.h.b16 %v2546
        %v2605 = vunpack.c.l.b16 %v2547
        %v2606 = vunpack.c.h.b16 %v2547
        %v2607 = vunpack.c.l.b16 %v2548
        %v2608 = vunpack.c.h.b16 %v2548
        %v2609 = vunpack.c.l.b16 %v2549
        %v2610 = vunpack.c.h.b16 %v2549
        %v2611 = vunpack.c.l.b16 %v2550
        %v2612 = vunpack.c.h.b16 %v2550
        %v2613 = vunpack.c.l.b16 %v2551
        %v2614 = vunpack.c.h.b16 %v2551
        %v2615 = vunpack.c.l.b16 %v2552
        %v2616 = vunpack.c.h.b16 %v2552
        %v2617 = vunpack.c.l.b16 %v2553
        %v2618 = vunpack.c.h.b16 %v2553
        %v2619 = vunpack.c.l.b16 %v2554
        %v2620 = vunpack.c.h.b16 %v2554
        %v2621 = vunpack.c.l.b16 %v2555
        %v2622 = vunpack.c.h.b16 %v2555
        %v2623 = vunpack.c.l.b16 %v2556
        %v2624 = vunpack.c.h.b16 %v2556
        %v2625 = vunpack.c.l.b16 %v2557
        %v2626 = vunpack.c.h.b16 %v2557
        %v2627 = vunpack.c.l.b16 %v2558
        %v2628 = vunpack.c.h.b16 %v2558
        %v2629 = vunpack.c.l.b16 %v2559
        %v2630 = vunpack.c.h.b16 %v2559
        %v2631 = vunpack.c.l.b16 %v2560
        %v2632 = vunpack.c.h.b16 %v2560
        %v2633 = vunpack.c.l.b16 %v2561
        %v2634 = vunpack.c.h.b16 %v2561
        %v2635 = vunpack.c.l.b16 %v2562
        %v2636 = vunpack.c.h.b16 %v2562
        %v2637 = vunpack.c.l.b16 %v2563
        %v2638 = vunpack.c.h.b16 %v2563
        %v2639 = vunpack.c.l.b16 %v2564
        %v2640 = vunpack.c.h.b16 %v2564
        %v2641 = vunpack.c.l.b16 %v2565
        %v2642 = vunpack.c.h.b16 %v2565
        %v2643 = vunpack.c.l.b16 %v2566
        %v2644 = vunpack.c.h.b16 %v2566
        %v2645 = vunpack.c.l.b16 %v2567
        %v2646 = vunpack.c.h.b16 %v2567
        %v2647 = vunpack.c.l.b16 %v2568
        %v2648 = vunpack.c.h.b16 %v2568
        %v2649 = vunpack.c.l.b16 %v2569
        %v2650 = vunpack.c.h.b16 %v2569
        %v2651 = vunpack.c.l.b16 %v2570
        %v2652 = vunpack.c.h.b16 %v2570
        %v2653 = vunpack.c.l.b16 %v2571
        %v2654 = vunpack.c.h.b16 %v2571
        %v2655 = vunpack.c.l.b16 %v2572
        %v2656 = vunpack.c.h.b16 %v2572
        %v2657 = vpack.c.b16 %v2603, %v2601
        %v2658 = vpack.c.b16 %v2604, %v2602
        %v2659 = vpack.c.b16 %v2607, %v2605
        %v2660 = vpack.c.b16 %v2608, %v2606
        %v2661 = vpack.c.b16 %v2611, %v2609
        %v2662 = vpack.c.b16 %v2612, %v2610
        %v2663 = vpack.c.b16 %v2615, %v2613
        %v2664 = vpack.c.b16 %v2616, %v2614
        %v2665 = vpack.c.b16 %v2619, %v2617
        %v2666 = vpack.c.b16 %v2620, %v2618
        %v2667 = vpack.c.b16 %v2623, %v2621
        %v2668 = vpack.c.b16 %v2624, %v2622
        %v2669 = vpack.c.b16 %v2627, %v2625
        %v2670 = vpack.c.b16 %v2628, %v2626
        %v2671 = vpack.c.b16 %v2631, %v2629
        %v2672 = vpack.c.b16 %v2632, %v2630
        %v2673 = vpack.c.b16 %v2635, %v2633
        %v2674 = vpack.c.b16 %v2636, %v2634
        %v2675 = vpack.c.b16 %v2639, %v2637
        %v2676 = vpack.c.b16 %v2640, %v2638
        %v2677 = vpack.c.b16 %v2643, %v2641
        %v2678 = vpack.c.b16 %v2644, %v2642
        %v2679 = vpack.c.b16 %v2647, %v2645
        %v2680 = vpack.c.b16 %v2648, %v2646
        %v2681 = vpack.c.b16 %v2651, %v2649
        %v2682 = vpack.c.b16 %v2652, %v2650
        %v2683 = vpack.c.b16 %v2655, %v2653
        %v2684 = vpack.c.b16 %v2656, %v2654
        %v2714 = vsel %vm2210, %v2543, 0
        %2716 = vmatprep.subr.bf16.mxu0 %v2672
        %2717 = vmatpush1.bf16.msra.mxu0 %v2671
        %2718 = vmatprep.subr.bf16.mxu0 %v2670
        %2719 = vmatpush1.bf16.msra.mxu0 %v2669
        %2720 = vmatprep.subr.bf16.mxu0 %v2668
        %2721 = vmatpush1.bf16.msra.mxu0 %v2667
        %2722 = vmatprep.subr.bf16.mxu0 %v2666
        %2723 = vmatpush1.bf16.msra.mxu0 %v2665
        %2724 = vmatprep.subr.bf16.mxu0 %v2664
        %2725 = vmatpush1.bf16.msra.mxu0 %v2663
        %2726 = vmatprep.subr.bf16.mxu0 %v2662
        %2727 = vmatpush1.bf16.msra.mxu0 %v2661
        %2728 = vmatprep.subr.bf16.mxu0 %v2660
        %2729 = vmatpush1.bf16.msra.mxu0 %v2659
        %2730 = vmatprep.subr.bf16.mxu0 %v2658
        %2731 = vmatpush1.bf16.msra.mxu0 %v2657
        %2732 = vmatprep.subr.bf16.mxu0 0
        %2733 = vmatpush2.bf16.msra.mxu0 0
        %2734 = vmatprep.subr.bf16.mxu0 0
        %2735 = vmatpush2.bf16.msra.mxu0 0
        %2736 = vmatprep.subr.bf16.mxu0 %v2684
        %2737 = vmatpush2.bf16.msra.mxu0 %v2683
        %2738 = vmatprep.subr.bf16.mxu0 %v2682
        %2739 = vmatpush2.bf16.msra.mxu0 %v2681
        %2740 = vmatprep.subr.bf16.mxu0 %v2680
        %2741 = vmatpush2.bf16.msra.mxu0 %v2679
        %2742 = vmatprep.subr.bf16.mxu0 %v2678
        %2743 = vmatpush2.bf16.msra.mxu0 %v2677
        %2744 = vmatprep.subr.bf16.mxu0 %v2676
        %2745 = vmatpush2.bf16.msra.mxu0 %v2675
        %2746 = vmatprep.subr.bf16.mxu0 %v2674
        %2747 = vmatpush2.bf16.msra.mxu0 %v2673
        %2748 = vmatprep.mubr.bf16.mxu0 %v2212
        %2749 = vmatmul.mubr.bf16.gmra.mxu0 %v2036
        %v2750 = vpop.f32.mrf.mxu0
        %v2751 = vadd.f32 0.0, %v2750
        %v2752 = vpop.f32.mrf.mxu0
        %v2753 = vadd.f32 0.0, %v2752
        %v2754 = vpop.f32.mrf.mxu0
        %v2755 = vadd.f32 0.0, %v2754
        %v2756 = vpop.f32.mrf.mxu0
        %v2757 = vadd.f32 0.0, %v2756
        %2758 = vmatprep.mubr.bf16.mxu0 %v2215
        %2759 = vmatmul.mubr.bf16.gmra.mxu0 %v2038
        %v2760 = vpop.f32.mrf.mxu0
        %v2761 = vadd.f32 0.0, %v2760
        %v2762 = vpop.f32.mrf.mxu0
        %v2763 = vadd.f32 0.0, %v2762
        %v2764 = vpop.f32.mrf.mxu0
        %v2765 = vadd.f32 0.0, %v2764
        %v2766 = vpop.f32.mrf.mxu0
        %v2767 = vadd.f32 0.0, %v2766
        %2768 = vmatprep.mubr.bf16.mxu0 %v2218
        %2769 = vmatmul.mubr.bf16.gmra.mxu0 %v2040
        %v2770 = vpop.f32.mrf.mxu0
        %v2771 = vadd.f32 0.0, %v2770
        %v2772 = vpop.f32.mrf.mxu0
        %v2773 = vadd.f32 0.0, %v2772
        %v2774 = vpop.f32.mrf.mxu0
        %v2775 = vadd.f32 0.0, %v2774
        %v2776 = vpop.f32.mrf.mxu0
        %v2777 = vadd.f32 0.0, %v2776
        %2778 = vmatprep.mubr.bf16.mxu0 %v2714
        %2779 = vmatmul.mubr.bf16.gmra.mxu0 %v2542
        %v2780 = vpop.f32.mrf.mxu0
        %v2781 = vadd.f32 0.0, %v2780
        %v2782 = vpop.f32.mrf.mxu0
        %v2783 = vadd.f32 0.0, %v2782
        %v2784 = vpop.f32.mrf.mxu0
        %v2785 = vpop.f32.mrf.mxu0
        %2786 = vdwg.mxu0
        %v2787 = vadd.f32 %v2530, %v2755
        %v2788 = vadd.f32 %v2531, %v2757
        %v2789 = vadd.f32 %v2532, %v2761
        %v2790 = vadd.f32 %v2533, %v2763
        %v2791 = vadd.f32 %v2534, %v2765
        %v2792 = vadd.f32 %v2535, %v2767
        %v2793 = vadd.f32 %v2536, %v2771
        %v2794 = vadd.f32 %v2537, %v2773
        %v2795 = vadd.f32 %v2538, %v2775
        %v2796 = vadd.f32 %v2539, %v2777
        %v2797 = vadd.f32 %v2540, %v2781
        %v2798 = vadd.f32 %v2541, %v2783
        %v2799 = vpack.c.bf16 %v2033, %v2033
        %v2800 = vpack.c.bf16 %v2034, %v2034
        %s2801 = scalar_lea.vmem %s4, 672
        %v2802 = vld [vmem:[%s2801] sm:$0xff]
        %v2803 = vld [vmem:[%s2801 + $0x8] sm:$0xff]
        %v2804 = vld [vmem:[%s2801 + $0x10] sm:$0xff]
        %v2805 = vld [vmem:[%s2801 + $0x18] sm:$0xff]
        %v2806 = vld [vmem:[%s2801 + $0x20] sm:$0xff]
        %v2807 = vld [vmem:[%s2801 + $0x28] sm:$0xff]
        %v2808 = vld [vmem:[%s2801 + $0x30] sm:$0xff]
        %v2809 = vld [vmem:[%s2801 + $0x38] sm:$0xff]
        %v2810 = vld [vmem:[%s2801 + $0x40] sm:$0xff]
        %v2811 = vld [vmem:[%s2801 + $0x48] sm:$0xff]
        %v2812 = vld [vmem:[%s2801 + $0x50] sm:$0xff]
        %v2813 = vld [vmem:[%s2801 + $0x58] sm:$0xff]
        %v2814 = vld [vmem:[%s2801 + $0x60] sm:$0xff]
        %v2815 = vld [vmem:[%s2801 + $0x68] sm:$0xff]
        %v2816 = vld [vmem:[%s2801 + $0x70] sm:$0xff]
        %v2817 = vld [vmem:[%s2801 + $0x78] sm:$0xff]
        %v2818 = vld [vmem:[%s2801 + $0x80] sm:$0xff]
        %v2819 = vld [vmem:[%s2801 + $0x88] sm:$0xff]
        %v2820 = vld [vmem:[%s2801 + $0x90] sm:$0xff]
        %v2821 = vld [vmem:[%s2801 + $0x98] sm:$0xff]
        %v2822 = vld [vmem:[%s2801 + $0xa0] sm:$0xff]
        %v2823 = vld [vmem:[%s2801 + $0xa8] sm:$0xff]
        %v2824 = vld [vmem:[%s2801 + $0xb0] sm:$0xff]
        %v2825 = vld [vmem:[%s2801 + $0xb8] sm:$0xff]
        %v2826 = vld [vmem:[%s2801 + $0xc0] sm:$0xff]
        %v2827 = vld [vmem:[%s2801 + $0xc8] sm:$0xff]
        %v2828 = vld [vmem:[%s2801 + $0xd0] sm:$0xff]
        %v2829 = vld [vmem:[%s2801 + $0xd8] sm:$0xff]
        %v2858 = vunpack.c.l.b16 %v2802
        %v2859 = vunpack.c.h.b16 %v2802
        %v2860 = vunpack.c.l.b16 %v2803
        %v2861 = vunpack.c.h.b16 %v2803
        %v2862 = vunpack.c.l.b16 %v2804
        %v2863 = vunpack.c.h.b16 %v2804
        %v2864 = vunpack.c.l.b16 %v2805
        %v2865 = vunpack.c.h.b16 %v2805
        %v2866 = vunpack.c.l.b16 %v2806
        %v2867 = vunpack.c.h.b16 %v2806
        %v2868 = vunpack.c.l.b16 %v2807
        %v2869 = vunpack.c.h.b16 %v2807
        %v2870 = vunpack.c.l.b16 %v2808
        %v2871 = vunpack.c.h.b16 %v2808
        %v2872 = vunpack.c.l.b16 %v2809
        %v2873 = vunpack.c.h.b16 %v2809
        %v2874 = vunpack.c.l.b16 %v2810
        %v2875 = vunpack.c.h.b16 %v2810
        %v2876 = vunpack.c.l.b16 %v2811
        %v2877 = vunpack.c.h.b16 %v2811
        %v2878 = vunpack.c.l.b16 %v2812
        %v2879 = vunpack.c.h.b16 %v2812
        %v2880 = vunpack.c.l.b16 %v2813
        %v2881 = vunpack.c.h.b16 %v2813
        %v2882 = vunpack.c.l.b16 %v2814
        %v2883 = vunpack.c.h.b16 %v2814
        %v2884 = vunpack.c.l.b16 %v2815
        %v2885 = vunpack.c.h.b16 %v2815
        %v2886 = vunpack.c.l.b16 %v2816
        %v2887 = vunpack.c.h.b16 %v2816
        %v2888 = vunpack.c.l.b16 %v2817
        %v2889 = vunpack.c.h.b16 %v2817
        %v2890 = vunpack.c.l.b16 %v2818
        %v2891 = vunpack.c.h.b16 %v2818
        %v2892 = vunpack.c.l.b16 %v2819
        %v2893 = vunpack.c.h.b16 %v2819
        %v2894 = vunpack.c.l.b16 %v2820
        %v2895 = vunpack.c.h.b16 %v2820
        %v2896 = vunpack.c.l.b16 %v2821
        %v2897 = vunpack.c.h.b16 %v2821
        %v2898 = vunpack.c.l.b16 %v2822
        %v2899 = vunpack.c.h.b16 %v2822
        %v2900 = vunpack.c.l.b16 %v2823
        %v2901 = vunpack.c.h.b16 %v2823
        %v2902 = vunpack.c.l.b16 %v2824
        %v2903 = vunpack.c.h.b16 %v2824
        %v2904 = vunpack.c.l.b16 %v2825
        %v2905 = vunpack.c.h.b16 %v2825
        %v2906 = vunpack.c.l.b16 %v2826
        %v2907 = vunpack.c.h.b16 %v2826
        %v2908 = vunpack.c.l.b16 %v2827
        %v2909 = vunpack.c.h.b16 %v2827
        %v2910 = vunpack.c.l.b16 %v2828
        %v2911 = vunpack.c.h.b16 %v2828
        %v2912 = vunpack.c.l.b16 %v2829
        %v2913 = vunpack.c.h.b16 %v2829
        %v2914 = vpack.c.b16 %v2860, %v2858
        %v2915 = vpack.c.b16 %v2861, %v2859
        %v2916 = vpack.c.b16 %v2864, %v2862
        %v2917 = vpack.c.b16 %v2865, %v2863
        %v2918 = vpack.c.b16 %v2868, %v2866
        %v2919 = vpack.c.b16 %v2869, %v2867
        %v2920 = vpack.c.b16 %v2872, %v2870
        %v2921 = vpack.c.b16 %v2873, %v2871
        %v2922 = vpack.c.b16 %v2876, %v2874
        %v2923 = vpack.c.b16 %v2877, %v2875
        %v2924 = vpack.c.b16 %v2880, %v2878
        %v2925 = vpack.c.b16 %v2881, %v2879
        %v2926 = vpack.c.b16 %v2884, %v2882
        %v2927 = vpack.c.b16 %v2885, %v2883
        %v2928 = vpack.c.b16 %v2888, %v2886
        %v2929 = vpack.c.b16 %v2889, %v2887
        %v2930 = vpack.c.b16 %v2892, %v2890
        %v2931 = vpack.c.b16 %v2893, %v2891
        %v2932 = vpack.c.b16 %v2896, %v2894
        %v2933 = vpack.c.b16 %v2897, %v2895
        %v2934 = vpack.c.b16 %v2900, %v2898
        %v2935 = vpack.c.b16 %v2901, %v2899
        %v2936 = vpack.c.b16 %v2904, %v2902
        %v2937 = vpack.c.b16 %v2905, %v2903
        %v2938 = vpack.c.b16 %v2908, %v2906
        %v2939 = vpack.c.b16 %v2909, %v2907
        %v2940 = vpack.c.b16 %v2912, %v2910
        %v2941 = vpack.c.b16 %v2913, %v2911
        %v2971 = vsel %vm2210, %v2800, 0
        %2973 = vmatprep.subr.bf16.mxu0 %v2929
        %2974 = vmatpush1.bf16.msra.mxu0 %v2928
        %2975 = vmatprep.subr.bf16.mxu0 %v2927
        %2976 = vmatpush1.bf16.msra.mxu0 %v2926
        %2977 = vmatprep.subr.bf16.mxu0 %v2925
        %2978 = vmatpush1.bf16.msra.mxu0 %v2924
        %2979 = vmatprep.subr.bf16.mxu0 %v2923
        %2980 = vmatpush1.bf16.msra.mxu0 %v2922
        %2981 = vmatprep.subr.bf16.mxu0 %v2921
        %2982 = vmatpush1.bf16.msra.mxu0 %v2920
        %2983 = vmatprep.subr.bf16.mxu0 %v2919
        %2984 = vmatpush1.bf16.msra.mxu0 %v2918
        %2985 = vmatprep.subr.bf16.mxu0 %v2917
        %2986 = vmatpush1.bf16.msra.mxu0 %v2916
        %2987 = vmatprep.subr.bf16.mxu0 %v2915
        %2988 = vmatpush1.bf16.msra.mxu0 %v2914
        %2989 = vmatprep.subr.bf16.mxu0 0
        %2990 = vmatpush2.bf16.msra.mxu0 0
        %2991 = vmatprep.subr.bf16.mxu0 0
        %2992 = vmatpush2.bf16.msra.mxu0 0
        %2993 = vmatprep.subr.bf16.mxu0 %v2941
        %2994 = vmatpush2.bf16.msra.mxu0 %v2940
        %2995 = vmatprep.subr.bf16.mxu0 %v2939
        %2996 = vmatpush2.bf16.msra.mxu0 %v2938
        %2997 = vmatprep.subr.bf16.mxu0 %v2937
        %2998 = vmatpush2.bf16.msra.mxu0 %v2936
        %2999 = vmatprep.subr.bf16.mxu0 %v2935
        %3000 = vmatpush2.bf16.msra.mxu0 %v2934
        %3001 = vmatprep.subr.bf16.mxu0 %v2933
        %3002 = vmatpush2.bf16.msra.mxu0 %v2932
        %3003 = vmatprep.subr.bf16.mxu0 %v2931
        %3004 = vmatpush2.bf16.msra.mxu0 %v2930
        %3005 = vmatprep.mubr.bf16.mxu0 %v2459
        %3006 = vmatmul.mubr.bf16.gmra.mxu0 %v2283
        %v3007 = vpop.f32.mrf.mxu0
        %v3008 = vadd.f32 0.0, %v3007
        %v3009 = vpop.f32.mrf.mxu0
        %v3010 = vadd.f32 0.0, %v3009
        %v3011 = vpop.f32.mrf.mxu0
        %v3012 = vadd.f32 0.0, %v3011
        %v3013 = vpop.f32.mrf.mxu0
        %v3014 = vadd.f32 0.0, %v3013
        %3015 = vmatprep.mubr.bf16.mxu0 %v2462
        %3016 = vmatmul.mubr.bf16.gmra.mxu0 %v2285
        %v3017 = vpop.f32.mrf.mxu0
        %v3018 = vadd.f32 0.0, %v3017
        %v3019 = vpop.f32.mrf.mxu0
        %v3020 = vadd.f32 0.0, %v3019
        %v3021 = vpop.f32.mrf.mxu0
        %v3022 = vadd.f32 0.0, %v3021
        %v3023 = vpop.f32.mrf.mxu0
        %v3024 = vadd.f32 0.0, %v3023
        %3025 = vmatprep.mubr.bf16.mxu0 %v2465
        %3026 = vmatmul.mubr.bf16.gmra.mxu0 %v2287
        %v3027 = vpop.f32.mrf.mxu0
        %v3028 = vadd.f32 0.0, %v3027
        %v3029 = vpop.f32.mrf.mxu0
        %v3030 = vadd.f32 0.0, %v3029
        %v3031 = vpop.f32.mrf.mxu0
        %v3032 = vadd.f32 0.0, %v3031
        %v3033 = vpop.f32.mrf.mxu0
        %v3034 = vadd.f32 0.0, %v3033
        %3035 = vmatprep.mubr.bf16.mxu0 %v2971
        %3036 = vmatmul.mubr.bf16.gmra.mxu0 %v2799
        %v3037 = vpop.f32.mrf.mxu0
        %v3038 = vadd.f32 0.0, %v3037
        %v3039 = vpop.f32.mrf.mxu0
        %v3040 = vadd.f32 0.0, %v3039
        %v3041 = vpop.f32.mrf.mxu0
        %v3042 = vpop.f32.mrf.mxu0
        %3043 = vdwg.mxu0
        %v3044 = vadd.f32 %v2751, %v3008
        %v3045 = vadd.f32 %v2753, %v3010
        %v3046 = vadd.f32 %v2787, %v3012
        %v3047 = vadd.f32 %v2788, %v3014
        %v3048 = vadd.f32 %v2789, %v3018
        %v3049 = vadd.f32 %v2790, %v3020
        %v3050 = vadd.f32 %v2791, %v3022
        %v3051 = vadd.f32 %v2792, %v3024
        %v3052 = vadd.f32 %v2793, %v3028
        %v3053 = vadd.f32 %v2794, %v3030
        %v3054 = vadd.f32 %v2795, %v3032
        %v3055 = vadd.f32 %v2796, %v3034
        %v3056 = vadd.f32 %v2797, %v3038
        %v3057 = vadd.f32 %v2798, %v3040
        %v3058 = vpack.c.bf16 %v1745, %v1681
        %v3059 = vpack.c.bf16 %v1746, %v1682
        %v3060 = vpack.c.bf16 %v1873, %v1809
        %v3061 = vpack.c.bf16 %v1874, %v1810
        %v3062 = vpack.c.bf16 %v2001, %v1937
        %v3063 = vpack.c.bf16 %v2002, %v1938
        %s3064 = scalar_lea.vmem %s4, 896
        %v3065 = vld [vmem:[%s3064] sm:$0xff]
        %v3066 = vld [vmem:[%s3064 + $0x8] sm:$0xff]
        %v3067 = vld [vmem:[%s3064 + $0x10] sm:$0xff]
        %v3068 = vld [vmem:[%s3064 + $0x18] sm:$0xff]
        %v3069 = vld [vmem:[%s3064 + $0x20] sm:$0xff]
        %v3070 = vld [vmem:[%s3064 + $0x28] sm:$0xff]
        %v3071 = vld [vmem:[%s3064 + $0x30] sm:$0xff]
        %v3072 = vld [vmem:[%s3064 + $0x38] sm:$0xff]
        %v3073 = vld [vmem:[%s3064 + $0x40] sm:$0xff]
        %v3074 = vld [vmem:[%s3064 + $0x48] sm:$0xff]
        %v3075 = vld [vmem:[%s3064 + $0x50] sm:$0xff]
        %v3076 = vld [vmem:[%s3064 + $0x58] sm:$0xff]
        %v3077 = vld [vmem:[%s3064 + $0x60] sm:$0xff]
        %v3078 = vld [vmem:[%s3064 + $0x68] sm:$0xff]
        %v3079 = vld [vmem:[%s3064 + $0x70] sm:$0xff]
        %v3080 = vld [vmem:[%s3064 + $0x78] sm:$0xff]
        %v3081 = vld [vmem:[%s3064 + $0x80] sm:$0xff]
        %v3082 = vld [vmem:[%s3064 + $0x88] sm:$0xff]
        %v3083 = vld [vmem:[%s3064 + $0x90] sm:$0xff]
        %v3084 = vld [vmem:[%s3064 + $0x98] sm:$0xff]
        %v3085 = vld [vmem:[%s3064 + $0xa0] sm:$0xff]
        %v3086 = vld [vmem:[%s3064 + $0xa8] sm:$0xff]
        %v3087 = vld [vmem:[%s3064 + $0xb0] sm:$0xff]
        %v3088 = vld [vmem:[%s3064 + $0xb8] sm:$0xff]
        %v3089 = vld [vmem:[%s3064 + $0xc0] sm:$0xff]
        %v3090 = vld [vmem:[%s3064 + $0xc8] sm:$0xff]
        %v3091 = vld [vmem:[%s3064 + $0xd0] sm:$0xff]
        %v3092 = vld [vmem:[%s3064 + $0xd8] sm:$0xff]
        %v3121 = vunpack.c.l.b16 %v3065
        %v3122 = vunpack.c.h.b16 %v3065
        %v3123 = vunpack.c.l.b16 %v3066
        %v3124 = vunpack.c.h.b16 %v3066
        %v3125 = vunpack.c.l.b16 %v3067
        %v3126 = vunpack.c.h.b16 %v3067
        %v3127 = vunpack.c.l.b16 %v3068
        %v3128 = vunpack.c.h.b16 %v3068
        %v3129 = vunpack.c.l.b16 %v3069
        %v3130 = vunpack.c.h.b16 %v3069
        %v3131 = vunpack.c.l.b16 %v3070
        %v3132 = vunpack.c.h.b16 %v3070
        %v3133 = vunpack.c.l.b16 %v3071
        %v3134 = vunpack.c.h.b16 %v3071
        %v3135 = vunpack.c.l.b16 %v3072
        %v3136 = vunpack.c.h.b16 %v3072
        %v3137 = vunpack.c.l.b16 %v3073
        %v3138 = vunpack.c.h.b16 %v3073
        %v3139 = vunpack.c.l.b16 %v3074
        %v3140 = vunpack.c.h.b16 %v3074
        %v3141 = vunpack.c.l.b16 %v3075
        %v3142 = vunpack.c.h.b16 %v3075
        %v3143 = vunpack.c.l.b16 %v3076
        %v3144 = vunpack.c.h.b16 %v3076
        %v3145 = vunpack.c.l.b16 %v3077
        %v3146 = vunpack.c.h.b16 %v3077
        %v3147 = vunpack.c.l.b16 %v3078
        %v3148 = vunpack.c.h.b16 %v3078
        %v3149 = vunpack.c.l.b16 %v3079
        %v3150 = vunpack.c.h.b16 %v3079
        %v3151 = vunpack.c.l.b16 %v3080
        %v3152 = vunpack.c.h.b16 %v3080
        %v3153 = vunpack.c.l.b16 %v3081
        %v3154 = vunpack.c.h.b16 %v3081
        %v3155 = vunpack.c.l.b16 %v3082
        %v3156 = vunpack.c.h.b16 %v3082
        %v3157 = vunpack.c.l.b16 %v3083
        %v3158 = vunpack.c.h.b16 %v3083
        %v3159 = vunpack.c.l.b16 %v3084
        %v3160 = vunpack.c.h.b16 %v3084
        %v3161 = vunpack.c.l.b16 %v3085
        %v3162 = vunpack.c.h.b16 %v3085
        %v3163 = vunpack.c.l.b16 %v3086
        %v3164 = vunpack.c.h.b16 %v3086
        %v3165 = vunpack.c.l.b16 %v3087
        %v3166 = vunpack.c.h.b16 %v3087
        %v3167 = vunpack.c.l.b16 %v3088
        %v3168 = vunpack.c.h.b16 %v3088
        %v3169 = vunpack.c.l.b16 %v3089
        %v3170 = vunpack.c.h.b16 %v3089
        %v3171 = vunpack.c.l.b16 %v3090
        %v3172 = vunpack.c.h.b16 %v3090
        %v3173 = vunpack.c.l.b16 %v3091
        %v3174 = vunpack.c.h.b16 %v3091
        %v3175 = vunpack.c.l.b16 %v3092
        %v3176 = vunpack.c.h.b16 %v3092
        %v3177 = vpack.c.b16 %v3123, %v3121
        %v3178 = vpack.c.b16 %v3124, %v3122
        %v3179 = vpack.c.b16 %v3127, %v3125
        %v3180 = vpack.c.b16 %v3128, %v3126
        %v3181 = vpack.c.b16 %v3131, %v3129
        %v3182 = vpack.c.b16 %v3132, %v3130
        %v3183 = vpack.c.b16 %v3135, %v3133
        %v3184 = vpack.c.b16 %v3136, %v3134
        %v3185 = vpack.c.b16 %v3139, %v3137
        %v3186 = vpack.c.b16 %v3140, %v3138
        %v3187 = vpack.c.b16 %v3143, %v3141
        %v3188 = vpack.c.b16 %v3144, %v3142
        %v3189 = vpack.c.b16 %v3147, %v3145
        %v3190 = vpack.c.b16 %v3148, %v3146
        %v3191 = vpack.c.b16 %v3151, %v3149
        %v3192 = vpack.c.b16 %v3152, %v3150
        %v3193 = vpack.c.b16 %v3155, %v3153
        %v3194 = vpack.c.b16 %v3156, %v3154
        %v3195 = vpack.c.b16 %v3159, %v3157
        %v3196 = vpack.c.b16 %v3160, %v3158
        %v3197 = vpack.c.b16 %v3163, %v3161
        %v3198 = vpack.c.b16 %v3164, %v3162
        %v3199 = vpack.c.b16 %v3167, %v3165
        %v3200 = vpack.c.b16 %v3168, %v3166
        %v3201 = vpack.c.b16 %v3171, %v3169
        %v3202 = vpack.c.b16 %v3172, %v3170
        %v3203 = vpack.c.b16 %v3175, %v3173
        %v3204 = vpack.c.b16 %v3176, %v3174
        %v3234 = vsel %vm2210, %v3059, 0
        %v3237 = vsel %vm2210, %v3061, 0
        %v3240 = vsel %vm2210, %v3063, 0
        %3242 = vmatprep.subr.bf16.mxu0 %v3192
        %3243 = vmatpush1.bf16.msra.mxu0 %v3191
        %3244 = vmatprep.subr.bf16.mxu0 %v3190
        %3245 = vmatpush1.bf16.msra.mxu0 %v3189
        %3246 = vmatprep.subr.bf16.mxu0 %v3188
        %3247 = vmatpush1.bf16.msra.mxu0 %v3187
        %3248 = vmatprep.subr.bf16.mxu0 %v3186
        %3249 = vmatpush1.bf16.msra.mxu0 %v3185
        %3250 = vmatprep.subr.bf16.mxu0 %v3184
        %3251 = vmatpush1.bf16.msra.mxu0 %v3183
        %3252 = vmatprep.subr.bf16.mxu0 %v3182
        %3253 = vmatpush1.bf16.msra.mxu0 %v3181
        %3254 = vmatprep.subr.bf16.mxu0 %v3180
        %3255 = vmatpush1.bf16.msra.mxu0 %v3179
        %3256 = vmatprep.subr.bf16.mxu0 %v3178
        %3257 = vmatpush1.bf16.msra.mxu0 %v3177
        %3258 = vmatprep.subr.bf16.mxu0 0
        %3259 = vmatpush2.bf16.msra.mxu0 0
        %3260 = vmatprep.subr.bf16.mxu0 0
        %3261 = vmatpush2.bf16.msra.mxu0 0
        %3262 = vmatprep.subr.bf16.mxu0 %v3204
        %3263 = vmatpush2.bf16.msra.mxu0 %v3203
        %3264 = vmatprep.subr.bf16.mxu0 %v3202
        %3265 = vmatpush2.bf16.msra.mxu0 %v3201
        %3266 = vmatprep.subr.bf16.mxu0 %v3200
        %3267 = vmatpush2.bf16.msra.mxu0 %v3199
        %3268 = vmatprep.subr.bf16.mxu0 %v3198
        %3269 = vmatpush2.bf16.msra.mxu0 %v3197
        %3270 = vmatprep.subr.bf16.mxu0 %v3196
        %3271 = vmatpush2.bf16.msra.mxu0 %v3195
        %3272 = vmatprep.subr.bf16.mxu0 %v3194
        %3273 = vmatpush2.bf16.msra.mxu0 %v3193
        %3274 = vmatprep.mubr.bf16.mxu0 %v3234
        %3275 = vmatmul.mubr.bf16.gmra.mxu0 %v3058
        %v3276 = vpop.f32.mrf.mxu0
        %v3277 = vadd.f32 0.0, %v3276
        %v3278 = vpop.f32.mrf.mxu0
        %v3279 = vadd.f32 0.0, %v3278
        %v3280 = vpop.f32.mrf.mxu0
        %v3281 = vadd.f32 0.0, %v3280
        %v3282 = vpop.f32.mrf.mxu0
        %v3283 = vadd.f32 0.0, %v3282
        %3284 = vmatprep.mubr.bf16.mxu0 %v3237
        %3285 = vmatmul.mubr.bf16.gmra.mxu0 %v3060
        %v3286 = vpop.f32.mrf.mxu0
        %v3287 = vadd.f32 0.0, %v3286
        %v3288 = vpop.f32.mrf.mxu0
        %v3289 = vadd.f32 0.0, %v3288
        %v3290 = vpop.f32.mrf.mxu0
        %v3291 = vadd.f32 0.0, %v3290
        %v3292 = vpop.f32.mrf.mxu0
        %v3293 = vadd.f32 0.0, %v3292
        %3294 = vmatprep.mubr.bf16.mxu0 %v3240
        %3295 = vmatmul.mubr.bf16.gmra.mxu0 %v3062
        %v3296 = vpop.f32.mrf.mxu0
        %v3297 = vadd.f32 0.0, %v3296
        %v3298 = vpop.f32.mrf.mxu0
        %v3299 = vadd.f32 0.0, %v3298
        %v3300 = vpop.f32.mrf.mxu0
        %v3301 = vadd.f32 0.0, %v3300
        %v3302 = vpop.f32.mrf.mxu0
        %v3303 = vadd.f32 0.0, %v3302
        %3304 = vdwg.mxu0
        %v3305 = vadd.f32 %v3044, %v3277
        %v3306 = vadd.f32 %v3045, %v3279
        %v3307 = vadd.f32 %v3046, %v3281
        %v3308 = vadd.f32 %v3047, %v3283
        %v3309 = vadd.f32 %v3048, %v3287
        %v3310 = vadd.f32 %v3049, %v3289
        %v3311 = vadd.f32 %v3050, %v3291
        %v3312 = vadd.f32 %v3051, %v3293
        %v3313 = vadd.f32 %v3052, %v3297
        %v3314 = vadd.f32 %v3053, %v3299
        %v3315 = vadd.f32 %v3054, %v3301
        %v3316 = vadd.f32 %v3055, %v3303
        %v3318 = vlaneseq
        %v3319 = vshrl.u32 %v3318, 7
        %v3320 = vsub.s32 0, %v3319
        %v3321 = vrot.slane %v2035, %v3320
        %v3322 = vlaneseq
        %v3323 = vshrl.u32 %v3322, 7
        %v3324 = vsub.s32 1, %v3323
        %v3325 = vrot.slane %v2035, %v3324
        %v3328 = vadd.f32 %v3305, %v3321
        %v3329 = vadd.f32 %v3306, %v3325
        %v3330 = vmax.f32 %v3328, 0.0
        %v3331 = vmax.f32 %v3329, 0.0
        %v3332 = vand.u32 2147483647, %v3328
        %v3333 = vand.u32 2147483647, %v3329
        %v3334 = vsub.f32 0.0, %v3332
        %v3335 = vsub.f32 0.0, %v3333
        %v3336 = vmul.f32 %v3334, 1.442695
        %v3337 = vpow.pop %v3336
        %v3338 = vmul.f32 %v3335, 1.442695
        %v3339 = vpow.pop %v3338
        %v3340 = vadd.f32 %v3337, 1.0
        %v3341 = vlog2.pop %v3340
        %v3342 = vmul.f32 %v3341, 0.6931472
        %v3343 = vmul.f32 -0.5, %v3337
        %v3344 = vadd.f32 %v3343, 1.0
        %v3345 = vmul.f32 %v3344, %v3337
        %v3346 = vand.u32 2147483647, %v3337
        %vm3347 = vcmp.lt.f32.partialorder %v3346, 0.0004427343
        %v3348 = vsel %vm3347, %v3345, %v3342
        %v3349 = vadd.f32 %v3339, 1.0
        %v3350 = vlog2.pop %v3349
        %v3351 = vmul.f32 %v3350, 0.6931472
        %v3352 = vmul.f32 -0.5, %v3339
        %v3353 = vadd.f32 %v3352, 1.0
        %v3354 = vmul.f32 %v3353, %v3339
        %v3355 = vand.u32 2147483647, %v3339
        %vm3356 = vcmp.lt.f32.partialorder %v3355, 0.0004427343
        %v3357 = vsel %vm3356, %v3354, %v3351
        %v3358 = vadd.f32 %v3330, %v3348
        %v3359 = vadd.f32 %v3331, %v3357
        %v3360 = vadd.f32 %v3307, %v3321
        %v3361 = vadd.f32 %v3308, %v3325
        %v3362 = vmax.f32 %v3360, 0.0
        %v3363 = vmax.f32 %v3361, 0.0
        %v3364 = vand.u32 2147483647, %v3360
        %v3365 = vand.u32 2147483647, %v3361
        %v3366 = vsub.f32 0.0, %v3364
        %v3367 = vsub.f32 0.0, %v3365
        %v3368 = vmul.f32 %v3366, 1.442695
        %v3369 = vpow.pop %v3368
        %v3370 = vmul.f32 %v3367, 1.442695
        %v3371 = vpow.pop %v3370
        %v3372 = vadd.f32 %v3369, 1.0
        %v3373 = vlog2.pop %v3372
        %v3374 = vmul.f32 %v3373, 0.6931472
        %v3375 = vmul.f32 -0.5, %v3369
        %v3376 = vadd.f32 %v3375, 1.0
        %v3377 = vmul.f32 %v3376, %v3369
        %v3378 = vand.u32 2147483647, %v3369
        %vm3379 = vcmp.lt.f32.partialorder %v3378, 0.0004427343
        %v3380 = vsel %vm3379, %v3377, %v3374
        %v3381 = vadd.f32 %v3371, 1.0
        %v3382 = vlog2.pop %v3381
        %v3383 = vmul.f32 %v3382, 0.6931472
        %v3384 = vmul.f32 -0.5, %v3371
        %v3385 = vadd.f32 %v3384, 1.0
        %v3386 = vmul.f32 %v3385, %v3371
        %v3387 = vand.u32 2147483647, %v3371
        %vm3388 = vcmp.lt.f32.partialorder %v3387, 0.0004427343
        %v3389 = vsel %vm3388, %v3386, %v3383
        %v3390 = vadd.f32 %v3362, %v3380
        %v3391 = vadd.f32 %v3363, %v3389
        %v3392 = vadd.f32 %v3309, %v3321
        %v3393 = vadd.f32 %v3310, %v3325
        %v3394 = vmax.f32 %v3392, 0.0
        %v3395 = vmax.f32 %v3393, 0.0
        %v3396 = vand.u32 2147483647, %v3392
        %v3397 = vand.u32 2147483647, %v3393
        %v3398 = vsub.f32 0.0, %v3396
        %v3399 = vsub.f32 0.0, %v3397
        %v3400 = vmul.f32 %v3398, 1.442695
        %v3401 = vpow.pop %v3400
        %v3402 = vmul.f32 %v3399, 1.442695
        %v3403 = vpow.pop %v3402
        %v3404 = vadd.f32 %v3401, 1.0
        %v3405 = vlog2.pop %v3404
        %v3406 = vmul.f32 %v3405, 0.6931472
        %v3407 = vmul.f32 -0.5, %v3401
        %v3408 = vadd.f32 %v3407, 1.0
        %v3409 = vmul.f32 %v3408, %v3401
        %v3410 = vand.u32 2147483647, %v3401
        %vm3411 = vcmp.lt.f32.partialorder %v3410, 0.0004427343
        %v3412 = vsel %vm3411, %v3409, %v3406
        %v3413 = vadd.f32 %v3403, 1.0
        %v3414 = vlog2.pop %v3413
        %v3415 = vmul.f32 %v3414, 0.6931472
        %v3416 = vmul.f32 -0.5, %v3403
        %v3417 = vadd.f32 %v3416, 1.0
        %v3418 = vmul.f32 %v3417, %v3403
        %v3419 = vand.u32 2147483647, %v3403
        %vm3420 = vcmp.lt.f32.partialorder %v3419, 0.0004427343
        %v3421 = vsel %vm3420, %v3418, %v3415
        %v3422 = vadd.f32 %v3394, %v3412
        %v3423 = vadd.f32 %v3395, %v3421
        %v3424 = vadd.f32 %v3311, %v3321
        %v3425 = vadd.f32 %v3312, %v3325
        %v3426 = vmax.f32 %v3424, 0.0
        %v3427 = vmax.f32 %v3425, 0.0
        %v3428 = vand.u32 2147483647, %v3424
        %v3429 = vand.u32 2147483647, %v3425
        %v3430 = vsub.f32 0.0, %v3428
        %v3431 = vsub.f32 0.0, %v3429
        %v3432 = vmul.f32 %v3430, 1.442695
        %v3433 = vpow.pop %v3432
        %v3434 = vmul.f32 %v3431, 1.442695
        %v3435 = vpow.pop %v3434
        %v3436 = vadd.f32 %v3433, 1.0
        %v3437 = vlog2.pop %v3436
        %v3438 = vmul.f32 %v3437, 0.6931472
        %v3439 = vmul.f32 -0.5, %v3433
        %v3440 = vadd.f32 %v3439, 1.0
        %v3441 = vmul.f32 %v3440, %v3433
        %v3442 = vand.u32 2147483647, %v3433
        %vm3443 = vcmp.lt.f32.partialorder %v3442, 0.0004427343
        %v3444 = vsel %vm3443, %v3441, %v3438
        %v3445 = vadd.f32 %v3435, 1.0
        %v3446 = vlog2.pop %v3445
        %v3447 = vmul.f32 %v3446, 0.6931472
        %v3448 = vmul.f32 -0.5, %v3435
        %v3449 = vadd.f32 %v3448, 1.0
        %v3450 = vmul.f32 %v3449, %v3435
        %v3451 = vand.u32 2147483647, %v3435
        %vm3452 = vcmp.lt.f32.partialorder %v3451, 0.0004427343
        %v3453 = vsel %vm3452, %v3450, %v3447
        %v3454 = vadd.f32 %v3426, %v3444
        %v3455 = vadd.f32 %v3427, %v3453
        %v3456 = vadd.f32 %v3313, %v3321
        %v3457 = vadd.f32 %v3314, %v3325
        %v3458 = vmax.f32 %v3456, 0.0
        %v3459 = vmax.f32 %v3457, 0.0
        %v3460 = vand.u32 2147483647, %v3456
        %v3461 = vand.u32 2147483647, %v3457
        %v3462 = vsub.f32 0.0, %v3460
        %v3463 = vsub.f32 0.0, %v3461
        %v3464 = vmul.f32 %v3462, 1.442695
        %v3465 = vpow.pop %v3464
        %v3466 = vmul.f32 %v3463, 1.442695
        %v3467 = vpow.pop %v3466
        %v3468 = vadd.f32 %v3465, 1.0
        %v3469 = vlog2.pop %v3468
        %v3470 = vmul.f32 %v3469, 0.6931472
        %v3471 = vmul.f32 -0.5, %v3465
        %v3472 = vadd.f32 %v3471, 1.0
        %v3473 = vmul.f32 %v3472, %v3465
        %v3474 = vand.u32 2147483647, %v3465
        %vm3475 = vcmp.lt.f32.partialorder %v3474, 0.0004427343
        %v3476 = vsel %vm3475, %v3473, %v3470
        %v3477 = vadd.f32 %v3467, 1.0
        %v3478 = vlog2.pop %v3477
        %v3479 = vmul.f32 %v3478, 0.6931472
        %v3480 = vmul.f32 -0.5, %v3467
        %v3481 = vadd.f32 %v3480, 1.0
        %v3482 = vmul.f32 %v3481, %v3467
        %v3483 = vand.u32 2147483647, %v3467
        %vm3484 = vcmp.lt.f32.partialorder %v3483, 0.0004427343
        %v3485 = vsel %vm3484, %v3482, %v3479
        %v3486 = vadd.f32 %v3458, %v3476
        %v3487 = vadd.f32 %v3459, %v3485
        %v3488 = vadd.f32 %v3315, %v3321
        %v3489 = vadd.f32 %v3316, %v3325
        %v3490 = vmax.f32 %v3488, 0.0
        %v3491 = vmax.f32 %v3489, 0.0
        %v3492 = vand.u32 2147483647, %v3488
        %v3493 = vand.u32 2147483647, %v3489
        %v3494 = vsub.f32 0.0, %v3492
        %v3495 = vsub.f32 0.0, %v3493
        %v3496 = vmul.f32 %v3494, 1.442695
        %v3497 = vpow.pop %v3496
        %v3498 = vmul.f32 %v3495, 1.442695
        %v3499 = vpow.pop %v3498
        %v3500 = vadd.f32 %v3497, 1.0
        %v3501 = vlog2.pop %v3500
        %v3502 = vmul.f32 %v3501, 0.6931472
        %v3503 = vmul.f32 -0.5, %v3497
        %v3504 = vadd.f32 %v3503, 1.0
        %v3505 = vmul.f32 %v3504, %v3497
        %v3506 = vand.u32 2147483647, %v3497
        %vm3507 = vcmp.lt.f32.partialorder %v3506, 0.0004427343
        %v3508 = vsel %vm3507, %v3505, %v3502
        %v3509 = vadd.f32 %v3499, 1.0
        %v3510 = vlog2.pop %v3509
        %v3511 = vmul.f32 %v3510, 0.6931472
        %v3512 = vmul.f32 -0.5, %v3499
        %v3513 = vadd.f32 %v3512, 1.0
        %v3514 = vmul.f32 %v3513, %v3499
        %v3515 = vand.u32 2147483647, %v3499
        %vm3516 = vcmp.lt.f32.partialorder %v3515, 0.0004427343
        %v3517 = vsel %vm3516, %v3514, %v3511
        %v3518 = vadd.f32 %v3490, %v3508
        %v3519 = vadd.f32 %v3491, %v3517
        %v3520 = vadd.f32 %v3056, %v3321
        %v3521 = vadd.f32 %v3057, %v3325
        %v3522 = vmax.f32 %v3520, 0.0
        %v3523 = vmax.f32 %v3521, 0.0
        %v3524 = vand.u32 2147483647, %v3520
        %v3525 = vand.u32 2147483647, %v3521
        %v3526 = vsub.f32 0.0, %v3524
        %v3527 = vsub.f32 0.0, %v3525
        %v3528 = vmul.f32 %v3526, 1.442695
        %v3529 = vpow.pop %v3528
        %v3530 = vmul.f32 %v3527, 1.442695
        %v3531 = vpow.pop %v3530
        %v3532 = vadd.f32 %v3529, 1.0
        %v3533 = vlog2.pop %v3532
        %v3534 = vmul.f32 %v3533, 0.6931472
        %v3535 = vmul.f32 -0.5, %v3529
        %v3536 = vadd.f32 %v3535, 1.0
        %v3537 = vmul.f32 %v3536, %v3529
        %v3538 = vand.u32 2147483647, %v3529
        %vm3539 = vcmp.lt.f32.partialorder %v3538, 0.0004427343
        %v3540 = vsel %vm3539, %v3537, %v3534
        %v3541 = vadd.f32 %v3531, 1.0
        %v3542 = vlog2.pop %v3541
        %v3543 = vmul.f32 %v3542, 0.6931472
        %v3544 = vmul.f32 -0.5, %v3531
        %v3545 = vadd.f32 %v3544, 1.0
        %v3546 = vmul.f32 %v3545, %v3531
        %v3547 = vand.u32 2147483647, %v3531
        %vm3548 = vcmp.lt.f32.partialorder %v3547, 0.0004427343
        %v3549 = vsel %vm3548, %v3546, %v3543
        %v3550 = vadd.f32 %v3522, %v3540
        %v3551 = vadd.f32 %v3523, %v3549
        %v3552 = vld [vmem:[%s7] sm:$0x1]
        %v3553 = vpack.c.bf16 %v3422, %v3358
        %v3554 = vpack.c.bf16 %v3423, %v3359
        %v3555 = vpack.c.bf16 %v3486, %v3486
        %v3556 = vpack.c.bf16 %v3487, %v3487
        %v3557 = vld [vmem:[%s6] sm:$0xf]
        %v3558 = vld [vmem:[%s6 + $0x4] sm:$0xf]
        %v3559 = vld [vmem:[%s6 + $0x8] sm:$0xf]
        %v3560 = vld [vmem:[%s6 + $0xc] sm:$0xf]
        %v3561 = vld [vmem:[%s6 + $0x10] sm:$0xf]
        %v3562 = vld [vmem:[%s6 + $0x14] sm:$0xf]
        %v3563 = vld [vmem:[%s6 + $0x18] sm:$0xf]
        %v3564 = vld [vmem:[%s6 + $0x1c] sm:$0xf]
        %v3565 = vld [vmem:[%s6 + $0x20] sm:$0xf]
        %v3566 = vld [vmem:[%s6 + $0x24] sm:$0xf]
        %v3567 = vld [vmem:[%s6 + $0x28] sm:$0xf]
        %v3568 = vld [vmem:[%s6 + $0x2c] sm:$0xf]
        %v3569 = vld [vmem:[%s6 + $0x30] sm:$0xf]
        %v3570 = vld [vmem:[%s6 + $0x34] sm:$0xf]
        %v3571 = vld [vmem:[%s6 + $0x38] sm:$0xf]
        %v3572 = vld [vmem:[%s6 + $0x3c] sm:$0xf]
        %v3573 = vld [vmem:[%s6 + $0x40] sm:$0xf]
        %v3574 = vld [vmem:[%s6 + $0x44] sm:$0xf]
        %v3575 = vld [vmem:[%s6 + $0x48] sm:$0xf]
        %v3576 = vld [vmem:[%s6 + $0x4c] sm:$0xf]
        %v3577 = vld [vmem:[%s6 + $0x50] sm:$0xf]
        %v3578 = vld [vmem:[%s6 + $0x54] sm:$0xf]
        %v3579 = vld [vmem:[%s6 + $0x58] sm:$0xf]
        %v3580 = vld [vmem:[%s6 + $0x5c] sm:$0xf]
        %v3581 = vld [vmem:[%s6 + $0x60] sm:$0xf]
        %v3582 = vld [vmem:[%s6 + $0x64] sm:$0xf]
        %v3583 = vld [vmem:[%s6 + $0x68] sm:$0xf]
        %v3584 = vld [vmem:[%s6 + $0x6c] sm:$0xf]
        %v3613 = vunpack.c.l.b16 %v3557
        %v3614 = vunpack.c.l.b16 %v3558
        %v3615 = vunpack.c.l.b16 %v3559
        %v3616 = vunpack.c.l.b16 %v3560
        %v3617 = vunpack.c.l.b16 %v3561
        %v3618 = vunpack.c.l.b16 %v3562
        %v3619 = vunpack.c.l.b16 %v3563
        %v3620 = vunpack.c.l.b16 %v3564
        %v3621 = vunpack.c.l.b16 %v3565
        %v3622 = vunpack.c.l.b16 %v3566
        %v3623 = vunpack.c.l.b16 %v3567
        %v3624 = vunpack.c.l.b16 %v3568
        %v3625 = vunpack.c.l.b16 %v3569
        %v3626 = vunpack.c.l.b16 %v3570
        %v3627 = vunpack.c.l.b16 %v3571
        %v3628 = vunpack.c.l.b16 %v3572
        %v3629 = vunpack.c.l.b16 %v3573
        %v3630 = vunpack.c.l.b16 %v3574
        %v3631 = vunpack.c.l.b16 %v3575
        %v3632 = vunpack.c.l.b16 %v3576
        %v3633 = vunpack.c.l.b16 %v3577
        %v3634 = vunpack.c.l.b16 %v3578
        %v3635 = vunpack.c.l.b16 %v3579
        %v3636 = vunpack.c.l.b16 %v3580
        %v3637 = vunpack.c.l.b16 %v3581
        %v3638 = vunpack.c.l.b16 %v3582
        %v3639 = vunpack.c.l.b16 %v3583
        %v3640 = vunpack.c.l.b16 %v3584
        %v3641 = vpack.c.b16 %v3614, %v3613
        %v3642 = vpack.c.b16 %v3616, %v3615
        %v3643 = vpack.c.b16 %v3618, %v3617
        %v3644 = vpack.c.b16 %v3620, %v3619
        %v3645 = vpack.c.b16 %v3622, %v3621
        %v3646 = vpack.c.b16 %v3624, %v3623
        %v3647 = vpack.c.b16 %v3626, %v3625
        %v3648 = vpack.c.b16 %v3628, %v3627
        %v3649 = vpack.c.b16 %v3630, %v3629
        %v3650 = vpack.c.b16 %v3632, %v3631
        %v3651 = vpack.c.b16 %v3634, %v3633
        %v3652 = vpack.c.b16 %v3636, %v3635
        %v3653 = vpack.c.b16 %v3638, %v3637
        %v3654 = vpack.c.b16 %v3640, %v3639
        %v3670 = vsel %vm2210, %v3554, 0
        %v3673 = vsel %vm2210, %v3556, 0
        %3675 = vmatprep.subr.bf16.mxu0 0
        %3676 = vmatpush1.bf16.msra.mxu0 %v3648
        %3677 = vmatprep.subr.bf16.mxu0 0
        %3678 = vmatpush1.bf16.msra.mxu0 %v3647
        %3679 = vmatprep.subr.bf16.mxu0 0
        %3680 = vmatpush1.bf16.msra.mxu0 %v3646
        %3681 = vmatprep.subr.bf16.mxu0 0
        %3682 = vmatpush1.bf16.msra.mxu0 %v3645
        %3683 = vmatprep.subr.bf16.mxu0 0
        %3684 = vmatpush1.bf16.msra.mxu0 %v3644
        %3685 = vmatprep.subr.bf16.mxu0 0
        %3686 = vmatpush1.bf16.msra.mxu0 %v3643
        %3687 = vmatprep.subr.bf16.mxu0 0
        %3688 = vmatpush1.bf16.msra.mxu0 %v3642
        %3689 = vmatprep.subr.bf16.mxu0 0
        %3690 = vmatpush1.bf16.msra.mxu0 %v3641
        %3691 = vmatprep.subr.bf16.mxu0 0
        %3692 = vmatpush2.bf16.msra.mxu0 0
        %3693 = vmatprep.subr.bf16.mxu0 0
        %3694 = vmatpush2.bf16.msra.mxu0 0
        %3695 = vmatprep.subr.bf16.mxu0 0
        %3696 = vmatpush2.bf16.msra.mxu0 %v3654
        %3697 = vmatprep.subr.bf16.mxu0 0
        %3698 = vmatpush2.bf16.msra.mxu0 %v3653
        %3699 = vmatprep.subr.bf16.mxu0 0
        %3700 = vmatpush2.bf16.msra.mxu0 %v3652
        %3701 = vmatprep.subr.bf16.mxu0 0
        %3702 = vmatpush2.bf16.msra.mxu0 %v3651
        %3703 = vmatprep.subr.bf16.mxu0 0
        %3704 = vmatpush2.bf16.msra.mxu0 %v3650
        %3705 = vmatprep.subr.bf16.mxu0 0
        %3706 = vmatpush2.bf16.msra.mxu0 %v3649
        %3707 = vmatprep.mubr.bf16.mxu0 %v3670
        %3708 = vmatmul.mubr.bf16.gmra.mxu0 %v3553
        %v3709 = vpop.f32.mrf.mxu0
        %v3710 = vadd.f32 0.0, %v3709
        %v3711 = vpop.f32.mrf.mxu0
        %v3712 = vpop.f32.mrf.mxu0
        %v3713 = vadd.f32 0.0, %v3712
        %v3714 = vpop.f32.mrf.mxu0
        %3715 = vmatprep.mubr.bf16.mxu0 %v3673
        %3716 = vmatmul.mubr.bf16.gmra.mxu0 %v3555
        %v3717 = vpop.f32.mrf.mxu0
        %v3718 = vadd.f32 0.0, %v3717
        %v3719 = vpop.f32.mrf.mxu0
        %v3720 = vpop.f32.mrf.mxu0
        %v3721 = vpop.f32.mrf.mxu0
        %3722 = vdwg.mxu0
        %v3723 = vpack.c.bf16 %v3454, %v3390
        %v3724 = vpack.c.bf16 %v3455, %v3391
        %v3725 = vpack.c.bf16 %v3518, %v3518
        %v3726 = vpack.c.bf16 %v3519, %v3519
        %s3727 = scalar_lea.vmem %s6, 112
        %v3728 = vld [vmem:[%s3727] sm:$0xf]
        %v3729 = vld [vmem:[%s3727 + $0x4] sm:$0xf]
        %v3730 = vld [vmem:[%s3727 + $0x8] sm:$0xf]
        %v3731 = vld [vmem:[%s3727 + $0xc] sm:$0xf]
        %v3732 = vld [vmem:[%s3727 + $0x10] sm:$0xf]
        %v3733 = vld [vmem:[%s3727 + $0x14] sm:$0xf]
        %v3734 = vld [vmem:[%s3727 + $0x18] sm:$0xf]
        %v3735 = vld [vmem:[%s3727 + $0x1c] sm:$0xf]
        %v3736 = vld [vmem:[%s3727 + $0x20] sm:$0xf]
        %v3737 = vld [vmem:[%s3727 + $0x24] sm:$0xf]
        %v3738 = vld [vmem:[%s3727 + $0x28] sm:$0xf]
        %v3739 = vld [vmem:[%s3727 + $0x2c] sm:$0xf]
        %v3740 = vld [vmem:[%s3727 + $0x30] sm:$0xf]
        %v3741 = vld [vmem:[%s3727 + $0x34] sm:$0xf]
        %v3742 = vld [vmem:[%s3727 + $0x38] sm:$0xf]
        %v3743 = vld [vmem:[%s3727 + $0x3c] sm:$0xf]
        %v3744 = vld [vmem:[%s3727 + $0x40] sm:$0xf]
        %v3745 = vld [vmem:[%s3727 + $0x44] sm:$0xf]
        %v3746 = vld [vmem:[%s3727 + $0x48] sm:$0xf]
        %v3747 = vld [vmem:[%s3727 + $0x4c] sm:$0xf]
        %v3748 = vld [vmem:[%s3727 + $0x50] sm:$0xf]
        %v3749 = vld [vmem:[%s3727 + $0x54] sm:$0xf]
        %v3750 = vld [vmem:[%s3727 + $0x58] sm:$0xf]
        %v3751 = vld [vmem:[%s3727 + $0x5c] sm:$0xf]
        %v3752 = vld [vmem:[%s3727 + $0x60] sm:$0xf]
        %v3753 = vld [vmem:[%s3727 + $0x64] sm:$0xf]
        %v3754 = vld [vmem:[%s3727 + $0x68] sm:$0xf]
        %v3755 = vld [vmem:[%s3727 + $0x6c] sm:$0xf]
        %v3784 = vunpack.c.l.b16 %v3728
        %v3785 = vunpack.c.l.b16 %v3729
        %v3786 = vunpack.c.l.b16 %v3730
        %v3787 = vunpack.c.l.b16 %v3731
        %v3788 = vunpack.c.l.b16 %v3732
        %v3789 = vunpack.c.l.b16 %v3733
        %v3790 = vunpack.c.l.b16 %v3734
        %v3791 = vunpack.c.l.b16 %v3735
        %v3792 = vunpack.c.l.b16 %v3736
        %v3793 = vunpack.c.l.b16 %v3737
        %v3794 = vunpack.c.l.b16 %v3738
        %v3795 = vunpack.c.l.b16 %v3739
        %v3796 = vunpack.c.l.b16 %v3740
        %v3797 = vunpack.c.l.b16 %v3741
        %v3798 = vunpack.c.l.b16 %v3742
        %v3799 = vunpack.c.l.b16 %v3743
        %v3800 = vunpack.c.l.b16 %v3744
        %v3801 = vunpack.c.l.b16 %v3745
        %v3802 = vunpack.c.l.b16 %v3746
        %v3803 = vunpack.c.l.b16 %v3747
        %v3804 = vunpack.c.l.b16 %v3748
        %v3805 = vunpack.c.l.b16 %v3749
        %v3806 = vunpack.c.l.b16 %v3750
        %v3807 = vunpack.c.l.b16 %v3751
        %v3808 = vunpack.c.l.b16 %v3752
        %v3809 = vunpack.c.l.b16 %v3753
        %v3810 = vunpack.c.l.b16 %v3754
        %v3811 = vunpack.c.l.b16 %v3755
        %v3812 = vpack.c.b16 %v3785, %v3784
        %v3813 = vpack.c.b16 %v3787, %v3786
        %v3814 = vpack.c.b16 %v3789, %v3788
        %v3815 = vpack.c.b16 %v3791, %v3790
        %v3816 = vpack.c.b16 %v3793, %v3792
        %v3817 = vpack.c.b16 %v3795, %v3794
        %v3818 = vpack.c.b16 %v3797, %v3796
        %v3819 = vpack.c.b16 %v3799, %v3798
        %v3820 = vpack.c.b16 %v3801, %v3800
        %v3821 = vpack.c.b16 %v3803, %v3802
        %v3822 = vpack.c.b16 %v3805, %v3804
        %v3823 = vpack.c.b16 %v3807, %v3806
        %v3824 = vpack.c.b16 %v3809, %v3808
        %v3825 = vpack.c.b16 %v3811, %v3810
        %v3841 = vsel %vm2210, %v3724, 0
        %v3844 = vsel %vm2210, %v3726, 0
        %3846 = vmatprep.subr.bf16.mxu0 0
        %3847 = vmatpush1.bf16.msra.mxu0 %v3819
        %3848 = vmatprep.subr.bf16.mxu0 0
        %3849 = vmatpush1.bf16.msra.mxu0 %v3818
        %3850 = vmatprep.subr.bf16.mxu0 0
        %3851 = vmatpush1.bf16.msra.mxu0 %v3817
        %3852 = vmatprep.subr.bf16.mxu0 0
        %3853 = vmatpush1.bf16.msra.mxu0 %v3816
        %3854 = vmatprep.subr.bf16.mxu0 0
        %3855 = vmatpush1.bf16.msra.mxu0 %v3815
        %3856 = vmatprep.subr.bf16.mxu0 0
        %3857 = vmatpush1.bf16.msra.mxu0 %v3814
        %3858 = vmatprep.subr.bf16.mxu0 0
        %3859 = vmatpush1.bf16.msra.mxu0 %v3813
        %3860 = vmatprep.subr.bf16.mxu0 0
        %3861 = vmatpush1.bf16.msra.mxu0 %v3812
        %3862 = vmatprep.subr.bf16.mxu0 0
        %3863 = vmatpush2.bf16.msra.mxu0 0
        %3864 = vmatprep.subr.bf16.mxu0 0
        %3865 = vmatpush2.bf16.msra.mxu0 0
        %3866 = vmatprep.subr.bf16.mxu0 0
        %3867 = vmatpush2.bf16.msra.mxu0 %v3825
        %3868 = vmatprep.subr.bf16.mxu0 0
        %3869 = vmatpush2.bf16.msra.mxu0 %v3824
        %3870 = vmatprep.subr.bf16.mxu0 0
        %3871 = vmatpush2.bf16.msra.mxu0 %v3823
        %3872 = vmatprep.subr.bf16.mxu0 0
        %3873 = vmatpush2.bf16.msra.mxu0 %v3822
        %3874 = vmatprep.subr.bf16.mxu0 0
        %3875 = vmatpush2.bf16.msra.mxu0 %v3821
        %3876 = vmatprep.subr.bf16.mxu0 0
        %3877 = vmatpush2.bf16.msra.mxu0 %v3820
        %3878 = vmatprep.mubr.bf16.mxu0 %v3841
        %3879 = vmatmul.mubr.bf16.gmra.mxu0 %v3723
        %v3880 = vpop.f32.mrf.mxu0
        %v3881 = vadd.f32 0.0, %v3880
        %v3882 = vpop.f32.mrf.mxu0
        %v3883 = vpop.f32.mrf.mxu0
        %v3884 = vadd.f32 0.0, %v3883
        %v3885 = vpop.f32.mrf.mxu0
        %3886 = vmatprep.mubr.bf16.mxu0 %v3844
        %3887 = vmatmul.mubr.bf16.gmra.mxu0 %v3725
        %v3888 = vpop.f32.mrf.mxu0
        %v3889 = vadd.f32 0.0, %v3888
        %v3890 = vpop.f32.mrf.mxu0
        %v3891 = vpop.f32.mrf.mxu0
        %v3892 = vpop.f32.mrf.mxu0
        %3893 = vdwg.mxu0
        %v3894 = vadd.f32 %v3710, %v3881
        %v3895 = vadd.f32 %v3713, %v3884
        %v3896 = vadd.f32 %v3718, %v3889
        %v3897 = vpack.c.bf16 %v3550, %v3486
        %v3898 = vpack.c.bf16 %v3551, %v3487
        %s3899 = scalar_lea.vmem %s6, 224
        %v3900 = vld [vmem:[%s3899] sm:$0xf]
        %v3901 = vld [vmem:[%s3899 + $0x4] sm:$0xf]
        %v3902 = vld [vmem:[%s3899 + $0x8] sm:$0xf]
        %v3903 = vld [vmem:[%s3899 + $0xc] sm:$0xf]
        %v3904 = vld [vmem:[%s3899 + $0x10] sm:$0xf]
        %v3905 = vld [vmem:[%s3899 + $0x14] sm:$0xf]
        %v3906 = vld [vmem:[%s3899 + $0x18] sm:$0xf]
        %v3907 = vld [vmem:[%s3899 + $0x1c] sm:$0xf]
        %v3908 = vld [vmem:[%s3899 + $0x20] sm:$0xf]
        %v3909 = vld [vmem:[%s3899 + $0x24] sm:$0xf]
        %v3910 = vld [vmem:[%s3899 + $0x28] sm:$0xf]
        %v3911 = vld [vmem:[%s3899 + $0x2c] sm:$0xf]
        %v3912 = vld [vmem:[%s3899 + $0x30] sm:$0xf]
        %v3913 = vld [vmem:[%s3899 + $0x34] sm:$0xf]
        %v3914 = vld [vmem:[%s3899 + $0x38] sm:$0xf]
        %v3915 = vld [vmem:[%s3899 + $0x3c] sm:$0xf]
        %v3916 = vld [vmem:[%s3899 + $0x40] sm:$0xf]
        %v3917 = vld [vmem:[%s3899 + $0x44] sm:$0xf]
        %v3918 = vld [vmem:[%s3899 + $0x48] sm:$0xf]
        %v3919 = vld [vmem:[%s3899 + $0x4c] sm:$0xf]
        %v3920 = vld [vmem:[%s3899 + $0x50] sm:$0xf]
        %v3921 = vld [vmem:[%s3899 + $0x54] sm:$0xf]
        %v3922 = vld [vmem:[%s3899 + $0x58] sm:$0xf]
        %v3923 = vld [vmem:[%s3899 + $0x5c] sm:$0xf]
        %v3924 = vld [vmem:[%s3899 + $0x60] sm:$0xf]
        %v3925 = vld [vmem:[%s3899 + $0x64] sm:$0xf]
        %v3926 = vld [vmem:[%s3899 + $0x68] sm:$0xf]
        %v3927 = vld [vmem:[%s3899 + $0x6c] sm:$0xf]
        %v3956 = vunpack.c.l.b16 %v3900
        %v3957 = vunpack.c.l.b16 %v3901
        %v3958 = vunpack.c.l.b16 %v3902
        %v3959 = vunpack.c.l.b16 %v3903
        %v3960 = vunpack.c.l.b16 %v3904
        %v3961 = vunpack.c.l.b16 %v3905
        %v3962 = vunpack.c.l.b16 %v3906
        %v3963 = vunpack.c.l.b16 %v3907
        %v3964 = vunpack.c.l.b16 %v3908
        %v3965 = vunpack.c.l.b16 %v3909
        %v3966 = vunpack.c.l.b16 %v3910
        %v3967 = vunpack.c.l.b16 %v3911
        %v3968 = vunpack.c.l.b16 %v3912
        %v3969 = vunpack.c.l.b16 %v3913
        %v3970 = vunpack.c.l.b16 %v3914
        %v3971 = vunpack.c.l.b16 %v3915
        %v3972 = vunpack.c.l.b16 %v3916
        %v3973 = vunpack.c.l.b16 %v3917
        %v3974 = vunpack.c.l.b16 %v3918
        %v3975 = vunpack.c.l.b16 %v3919
        %v3976 = vunpack.c.l.b16 %v3920
        %v3977 = vunpack.c.l.b16 %v3921
        %v3978 = vunpack.c.l.b16 %v3922
        %v3979 = vunpack.c.l.b16 %v3923
        %v3980 = vunpack.c.l.b16 %v3924
        %v3981 = vunpack.c.l.b16 %v3925
        %v3982 = vunpack.c.l.b16 %v3926
        %v3983 = vunpack.c.l.b16 %v3927
        %v3984 = vpack.c.b16 %v3957, %v3956
        %v3985 = vpack.c.b16 %v3959, %v3958
        %v3986 = vpack.c.b16 %v3961, %v3960
        %v3987 = vpack.c.b16 %v3963, %v3962
        %v3988 = vpack.c.b16 %v3965, %v3964
        %v3989 = vpack.c.b16 %v3967, %v3966
        %v3990 = vpack.c.b16 %v3969, %v3968
        %v3991 = vpack.c.b16 %v3971, %v3970
        %v3992 = vpack.c.b16 %v3973, %v3972
        %v3993 = vpack.c.b16 %v3975, %v3974
        %v3994 = vpack.c.b16 %v3977, %v3976
        %v3995 = vpack.c.b16 %v3979, %v3978
        %v3996 = vpack.c.b16 %v3981, %v3980
        %v3997 = vpack.c.b16 %v3983, %v3982
        %v4013 = vsel %vm2210, %v3898, 0
        %4015 = vmatprep.subr.bf16.mxu0 0
        %4016 = vmatpush1.bf16.msra.mxu0 %v3991
        %4017 = vmatprep.subr.bf16.mxu0 0
        %4018 = vmatpush1.bf16.msra.mxu0 %v3990
        %4019 = vmatprep.subr.bf16.mxu0 0
        %4020 = vmatpush1.bf16.msra.mxu0 %v3989
        %4021 = vmatprep.subr.bf16.mxu0 0
        %4022 = vmatpush1.bf16.msra.mxu0 %v3988
        %4023 = vmatprep.subr.bf16.mxu0 0
        %4024 = vmatpush1.bf16.msra.mxu0 %v3987
        %4025 = vmatprep.subr.bf16.mxu0 0
        %4026 = vmatpush1.bf16.msra.mxu0 %v3986
        %4027 = vmatprep.subr.bf16.mxu0 0
        %4028 = vmatpush1.bf16.msra.mxu0 %v3985
        %4029 = vmatprep.subr.bf16.mxu0 0
        %4030 = vmatpush1.bf16.msra.mxu0 %v3984
        %4031 = vmatprep.subr.bf16.mxu0 0
        %4032 = vmatpush2.bf16.msra.mxu0 0
        %4033 = vmatprep.subr.bf16.mxu0 0
        %4034 = vmatpush2.bf16.msra.mxu0 0
        %4035 = vmatprep.subr.bf16.mxu0 0
        %4036 = vmatpush2.bf16.msra.mxu0 %v3997
        %4037 = vmatprep.subr.bf16.mxu0 0
        %4038 = vmatpush2.bf16.msra.mxu0 %v3996
        %4039 = vmatprep.subr.bf16.mxu0 0
        %4040 = vmatpush2.bf16.msra.mxu0 %v3995
        %4041 = vmatprep.subr.bf16.mxu0 0
        %4042 = vmatpush2.bf16.msra.mxu0 %v3994
        %4043 = vmatprep.subr.bf16.mxu0 0
        %4044 = vmatpush2.bf16.msra.mxu0 %v3993
        %4045 = vmatprep.subr.bf16.mxu0 0
        %4046 = vmatpush2.bf16.msra.mxu0 %v3992
        %4047 = vmatprep.mubr.bf16.mxu0 %v3670
        %4048 = vmatmul.mubr.bf16.gmra.mxu0 %v3553
        %v4049 = vpop.f32.mrf.mxu0
        %v4050 = vadd.f32 0.0, %v4049
        %v4051 = vpop.f32.mrf.mxu0
        %v4052 = vpop.f32.mrf.mxu0
        %v4053 = vadd.f32 0.0, %v4052
        %v4054 = vpop.f32.mrf.mxu0
        %4055 = vmatprep.mubr.bf16.mxu0 %v4013
        %4056 = vmatmul.mubr.bf16.gmra.mxu0 %v3897
        %v4057 = vpop.f32.mrf.mxu0
        %v4058 = vadd.f32 0.0, %v4057
        %v4059 = vpop.f32.mrf.mxu0
        %v4060 = vpop.f32.mrf.mxu0
        %v4061 = vadd.f32 0.0, %v4060
        %v4062 = vpop.f32.mrf.mxu0
        %4063 = vdwg.mxu0
        %v4064 = vadd.f32 %v3894, %v4053
        %v4065 = vadd.f32 %v3895, %v4058
        %v4066 = vadd.f32 %v3896, %v4061
        %s4067 = scalar_lea.vmem %s6, 336
        %v4068 = vld [vmem:[%s4067] sm:$0xf]
        %v4069 = vld [vmem:[%s4067 + $0x4] sm:$0xf]
        %v4070 = vld [vmem:[%s4067 + $0x8] sm:$0xf]
        %v4071 = vld [vmem:[%s4067 + $0xc] sm:$0xf]
        %v4072 = vld [vmem:[%s4067 + $0x10] sm:$0xf]
        %v4073 = vld [vmem:[%s4067 + $0x14] sm:$0xf]
        %v4074 = vld [vmem:[%s4067 + $0x18] sm:$0xf]
        %v4075 = vld [vmem:[%s4067 + $0x1c] sm:$0xf]
        %v4076 = vld [vmem:[%s4067 + $0x20] sm:$0xf]
        %v4077 = vld [vmem:[%s4067 + $0x24] sm:$0xf]
        %v4078 = vld [vmem:[%s4067 + $0x28] sm:$0xf]
        %v4079 = vld [vmem:[%s4067 + $0x2c] sm:$0xf]
        %v4080 = vld [vmem:[%s4067 + $0x30] sm:$0xf]
        %v4081 = vld [vmem:[%s4067 + $0x34] sm:$0xf]
        %v4082 = vld [vmem:[%s4067 + $0x38] sm:$0xf]
        %v4083 = vld [vmem:[%s4067 + $0x3c] sm:$0xf]
        %v4084 = vld [vmem:[%s4067 + $0x40] sm:$0xf]
        %v4085 = vld [vmem:[%s4067 + $0x44] sm:$0xf]
        %v4086 = vld [vmem:[%s4067 + $0x48] sm:$0xf]
        %v4087 = vld [vmem:[%s4067 + $0x4c] sm:$0xf]
        %v4088 = vld [vmem:[%s4067 + $0x50] sm:$0xf]
        %v4089 = vld [vmem:[%s4067 + $0x54] sm:$0xf]
        %v4090 = vld [vmem:[%s4067 + $0x58] sm:$0xf]
        %v4091 = vld [vmem:[%s4067 + $0x5c] sm:$0xf]
        %v4092 = vld [vmem:[%s4067 + $0x60] sm:$0xf]
        %v4093 = vld [vmem:[%s4067 + $0x64] sm:$0xf]
        %v4094 = vld [vmem:[%s4067 + $0x68] sm:$0xf]
        %v4095 = vld [vmem:[%s4067 + $0x6c] sm:$0xf]
        %v4124 = vunpack.c.l.b16 %v4068
        %v4125 = vunpack.c.l.b16 %v4069
        %v4126 = vunpack.c.l.b16 %v4070
        %v4127 = vunpack.c.l.b16 %v4071
        %v4128 = vunpack.c.l.b16 %v4072
        %v4129 = vunpack.c.l.b16 %v4073
        %v4130 = vunpack.c.l.b16 %v4074
        %v4131 = vunpack.c.l.b16 %v4075
        %v4132 = vunpack.c.l.b16 %v4076
        %v4133 = vunpack.c.l.b16 %v4077
        %v4134 = vunpack.c.l.b16 %v4078
        %v4135 = vunpack.c.l.b16 %v4079
        %v4136 = vunpack.c.l.b16 %v4080
        %v4137 = vunpack.c.l.b16 %v4081
        %v4138 = vunpack.c.l.b16 %v4082
        %v4139 = vunpack.c.l.b16 %v4083
        %v4140 = vunpack.c.l.b16 %v4084
        %v4141 = vunpack.c.l.b16 %v4085
        %v4142 = vunpack.c.l.b16 %v4086
        %v4143 = vunpack.c.l.b16 %v4087
        %v4144 = vunpack.c.l.b16 %v4088
        %v4145 = vunpack.c.l.b16 %v4089
        %v4146 = vunpack.c.l.b16 %v4090
        %v4147 = vunpack.c.l.b16 %v4091
        %v4148 = vunpack.c.l.b16 %v4092
        %v4149 = vunpack.c.l.b16 %v4093
        %v4150 = vunpack.c.l.b16 %v4094
        %v4151 = vunpack.c.l.b16 %v4095
        %v4152 = vpack.c.b16 %v4125, %v4124
        %v4153 = vpack.c.b16 %v4127, %v4126
        %v4154 = vpack.c.b16 %v4129, %v4128
        %v4155 = vpack.c.b16 %v4131, %v4130
        %v4156 = vpack.c.b16 %v4133, %v4132
        %v4157 = vpack.c.b16 %v4135, %v4134
        %v4158 = vpack.c.b16 %v4137, %v4136
        %v4159 = vpack.c.b16 %v4139, %v4138
        %v4160 = vpack.c.b16 %v4141, %v4140
        %v4161 = vpack.c.b16 %v4143, %v4142
        %v4162 = vpack.c.b16 %v4145, %v4144
        %v4163 = vpack.c.b16 %v4147, %v4146
        %v4164 = vpack.c.b16 %v4149, %v4148
        %v4165 = vpack.c.b16 %v4151, %v4150
        %4180 = vmatprep.subr.bf16.mxu0 0
        %4181 = vmatpush1.bf16.msra.mxu0 %v4159
        %4182 = vmatprep.subr.bf16.mxu0 0
        %4183 = vmatpush1.bf16.msra.mxu0 %v4158
        %4184 = vmatprep.subr.bf16.mxu0 0
        %4185 = vmatpush1.bf16.msra.mxu0 %v4157
        %4186 = vmatprep.subr.bf16.mxu0 0
        %4187 = vmatpush1.bf16.msra.mxu0 %v4156
        %4188 = vmatprep.subr.bf16.mxu0 0
        %4189 = vmatpush1.bf16.msra.mxu0 %v4155
        %4190 = vmatprep.subr.bf16.mxu0 0
        %4191 = vmatpush1.bf16.msra.mxu0 %v4154
        %4192 = vmatprep.subr.bf16.mxu0 0
        %4193 = vmatpush1.bf16.msra.mxu0 %v4153
        %4194 = vmatprep.subr.bf16.mxu0 0
        %4195 = vmatpush1.bf16.msra.mxu0 %v4152
        %4196 = vmatprep.subr.bf16.mxu0 0
        %4197 = vmatpush2.bf16.msra.mxu0 0
        %4198 = vmatprep.subr.bf16.mxu0 0
        %4199 = vmatpush2.bf16.msra.mxu0 0
        %4200 = vmatprep.subr.bf16.mxu0 0
        %4201 = vmatpush2.bf16.msra.mxu0 %v4165
        %4202 = vmatprep.subr.bf16.mxu0 0
        %4203 = vmatpush2.bf16.msra.mxu0 %v4164
        %4204 = vmatprep.subr.bf16.mxu0 0
        %4205 = vmatpush2.bf16.msra.mxu0 %v4163
        %4206 = vmatprep.subr.bf16.mxu0 0
        %4207 = vmatpush2.bf16.msra.mxu0 %v4162
        %4208 = vmatprep.subr.bf16.mxu0 0
        %4209 = vmatpush2.bf16.msra.mxu0 %v4161
        %4210 = vmatprep.subr.bf16.mxu0 0
        %4211 = vmatpush2.bf16.msra.mxu0 %v4160
        %4212 = vmatprep.mubr.bf16.mxu0 %v3841
        %4213 = vmatmul.mubr.bf16.gmra.mxu0 %v3723
        %v4214 = vpop.f32.mrf.mxu0
        %v4215 = vadd.f32 0.0, %v4214
        %v4216 = vpop.f32.mrf.mxu0
        %v4217 = vpop.f32.mrf.mxu0
        %v4218 = vadd.f32 0.0, %v4217
        %v4219 = vpop.f32.mrf.mxu0
        %4220 = vmatprep.mubr.bf16.mxu0 %v3844
        %4221 = vmatmul.mubr.bf16.gmra.mxu0 %v3725
        %v4222 = vpop.f32.mrf.mxu0
        %v4223 = vadd.f32 0.0, %v4222
        %v4224 = vpop.f32.mrf.mxu0
        %v4225 = vpop.f32.mrf.mxu0
        %v4226 = vpop.f32.mrf.mxu0
        %4227 = vdwg.mxu0
        %v4228 = vadd.f32 %v4050, %v4215
        %v4229 = vadd.f32 %v4064, %v4218
        %v4230 = vadd.f32 %v4065, %v4223
        %v4231 = vpack.c.bf16 %v3486, %v3422
        %v4232 = vpack.c.bf16 %v3487, %v3423
        %v4233 = vpack.c.bf16 %v3550, %v3550
        %v4234 = vpack.c.bf16 %v3551, %v3551
        %s4235 = scalar_lea.vmem %s6, 448
        %v4236 = vld [vmem:[%s4235] sm:$0xf]
        %v4237 = vld [vmem:[%s4235 + $0x4] sm:$0xf]
        %v4238 = vld [vmem:[%s4235 + $0x8] sm:$0xf]
        %v4239 = vld [vmem:[%s4235 + $0xc] sm:$0xf]
        %v4240 = vld [vmem:[%s4235 + $0x10] sm:$0xf]
        %v4241 = vld [vmem:[%s4235 + $0x14] sm:$0xf]
        %v4242 = vld [vmem:[%s4235 + $0x18] sm:$0xf]
        %v4243 = vld [vmem:[%s4235 + $0x1c] sm:$0xf]
        %v4244 = vld [vmem:[%s4235 + $0x20] sm:$0xf]
        %v4245 = vld [vmem:[%s4235 + $0x24] sm:$0xf]
        %v4246 = vld [vmem:[%s4235 + $0x28] sm:$0xf]
        %v4247 = vld [vmem:[%s4235 + $0x2c] sm:$0xf]
        %v4248 = vld [vmem:[%s4235 + $0x30] sm:$0xf]
        %v4249 = vld [vmem:[%s4235 + $0x34] sm:$0xf]
        %v4250 = vld [vmem:[%s4235 + $0x38] sm:$0xf]
        %v4251 = vld [vmem:[%s4235 + $0x3c] sm:$0xf]
        %v4252 = vld [vmem:[%s4235 + $0x40] sm:$0xf]
        %v4253 = vld [vmem:[%s4235 + $0x44] sm:$0xf]
        %v4254 = vld [vmem:[%s4235 + $0x48] sm:$0xf]
        %v4255 = vld [vmem:[%s4235 + $0x4c] sm:$0xf]
        %v4256 = vld [vmem:[%s4235 + $0x50] sm:$0xf]
        %v4257 = vld [vmem:[%s4235 + $0x54] sm:$0xf]
        %v4258 = vld [vmem:[%s4235 + $0x58] sm:$0xf]
        %v4259 = vld [vmem:[%s4235 + $0x5c] sm:$0xf]
        %v4260 = vld [vmem:[%s4235 + $0x60] sm:$0xf]
        %v4261 = vld [vmem:[%s4235 + $0x64] sm:$0xf]
        %v4262 = vld [vmem:[%s4235 + $0x68] sm:$0xf]
        %v4263 = vld [vmem:[%s4235 + $0x6c] sm:$0xf]
        %v4292 = vunpack.c.l.b16 %v4236
        %v4293 = vunpack.c.l.b16 %v4237
        %v4294 = vunpack.c.l.b16 %v4238
        %v4295 = vunpack.c.l.b16 %v4239
        %v4296 = vunpack.c.l.b16 %v4240
        %v4297 = vunpack.c.l.b16 %v4241
        %v4298 = vunpack.c.l.b16 %v4242
        %v4299 = vunpack.c.l.b16 %v4243
        %v4300 = vunpack.c.l.b16 %v4244
        %v4301 = vunpack.c.l.b16 %v4245
        %v4302 = vunpack.c.l.b16 %v4246
        %v4303 = vunpack.c.l.b16 %v4247
        %v4304 = vunpack.c.l.b16 %v4248
        %v4305 = vunpack.c.l.b16 %v4249
        %v4306 = vunpack.c.l.b16 %v4250
        %v4307 = vunpack.c.l.b16 %v4251
        %v4308 = vunpack.c.l.b16 %v4252
        %v4309 = vunpack.c.l.b16 %v4253
        %v4310 = vunpack.c.l.b16 %v4254
        %v4311 = vunpack.c.l.b16 %v4255
        %v4312 = vunpack.c.l.b16 %v4256
        %v4313 = vunpack.c.l.b16 %v4257
        %v4314 = vunpack.c.l.b16 %v4258
        %v4315 = vunpack.c.l.b16 %v4259
        %v4316 = vunpack.c.l.b16 %v4260
        %v4317 = vunpack.c.l.b16 %v4261
        %v4318 = vunpack.c.l.b16 %v4262
        %v4319 = vunpack.c.l.b16 %v4263
        %v4320 = vpack.c.b16 %v4293, %v4292
        %v4321 = vpack.c.b16 %v4295, %v4294
        %v4322 = vpack.c.b16 %v4297, %v4296
        %v4323 = vpack.c.b16 %v4299, %v4298
        %v4324 = vpack.c.b16 %v4301, %v4300
        %v4325 = vpack.c.b16 %v4303, %v4302
        %v4326 = vpack.c.b16 %v4305, %v4304
        %v4327 = vpack.c.b16 %v4307, %v4306
        %v4328 = vpack.c.b16 %v4309, %v4308
        %v4329 = vpack.c.b16 %v4311, %v4310
        %v4330 = vpack.c.b16 %v4313, %v4312
        %v4331 = vpack.c.b16 %v4315, %v4314
        %v4332 = vpack.c.b16 %v4317, %v4316
        %v4333 = vpack.c.b16 %v4319, %v4318
        %v4349 = vsel %vm2210, %v4232, 0
        %v4352 = vsel %vm2210, %v4234, 0
        %4354 = vmatprep.subr.bf16.mxu0 0
        %4355 = vmatpush1.bf16.msra.mxu0 %v4327
        %4356 = vmatprep.subr.bf16.mxu0 0
        %4357 = vmatpush1.bf16.msra.mxu0 %v4326
        %4358 = vmatprep.subr.bf16.mxu0 0
        %4359 = vmatpush1.bf16.msra.mxu0 %v4325
        %4360 = vmatprep.subr.bf16.mxu0 0
        %4361 = vmatpush1.bf16.msra.mxu0 %v4324
        %4362 = vmatprep.subr.bf16.mxu0 0
        %4363 = vmatpush1.bf16.msra.mxu0 %v4323
        %4364 = vmatprep.subr.bf16.mxu0 0
        %4365 = vmatpush1.bf16.msra.mxu0 %v4322
        %4366 = vmatprep.subr.bf16.mxu0 0
        %4367 = vmatpush1.bf16.msra.mxu0 %v4321
        %4368 = vmatprep.subr.bf16.mxu0 0
        %4369 = vmatpush1.bf16.msra.mxu0 %v4320
        %4370 = vmatprep.subr.bf16.mxu0 0
        %4371 = vmatpush2.bf16.msra.mxu0 0
        %4372 = vmatprep.subr.bf16.mxu0 0
        %4373 = vmatpush2.bf16.msra.mxu0 0
        %4374 = vmatprep.subr.bf16.mxu0 0
        %4375 = vmatpush2.bf16.msra.mxu0 %v4333
        %4376 = vmatprep.subr.bf16.mxu0 0
        %4377 = vmatpush2.bf16.msra.mxu0 %v4332
        %4378 = vmatprep.subr.bf16.mxu0 0
        %4379 = vmatpush2.bf16.msra.mxu0 %v4331
        %4380 = vmatprep.subr.bf16.mxu0 0
        %4381 = vmatpush2.bf16.msra.mxu0 %v4330
        %4382 = vmatprep.subr.bf16.mxu0 0
        %4383 = vmatpush2.bf16.msra.mxu0 %v4329
        %4384 = vmatprep.subr.bf16.mxu0 0
        %4385 = vmatpush2.bf16.msra.mxu0 %v4328
        %4386 = vmatprep.mubr.bf16.mxu0 %v4349
        %4387 = vmatmul.mubr.bf16.gmra.mxu0 %v4231
        %v4388 = vpop.f32.mrf.mxu0
        %v4389 = vadd.f32 0.0, %v4388
        %v4390 = vpop.f32.mrf.mxu0
        %v4391 = vpop.f32.mrf.mxu0
        %v4392 = vadd.f32 0.0, %v4391
        %v4393 = vpop.f32.mrf.mxu0
        %4394 = vmatprep.mubr.bf16.mxu0 %v4352
        %4395 = vmatmul.mubr.bf16.gmra.mxu0 %v4233
        %v4396 = vpop.f32.mrf.mxu0
        %v4397 = vadd.f32 0.0, %v4396
        %v4398 = vpop.f32.mrf.mxu0
        %v4399 = vpop.f32.mrf.mxu0
        %v4400 = vpop.f32.mrf.mxu0
        %4401 = vdwg.mxu0
        %v4402 = vadd.f32 %v4228, %v4389
        %v4403 = vadd.f32 %v4229, %v4392
        %v4404 = vadd.f32 %v4230, %v4397
        %v4406 = vlaneseq
        %v4407 = vshrl.u32 %v4406, 7
        %v4408 = vsub.s32 0, %v4407
        %v4409 = vrot.slane %v3552, %v4408
        %v4411 = vadd.f32 %v4402, %v4409
        %v4412 = vmax.f32 %v4411, 0.0
        %v4413 = vand.u32 2147483647, %v4411
        %v4414 = vsub.f32 0.0, %v4413
        %v4415 = vmul.f32 %v4414, 1.442695
        %v4416 = vpow.pop %v4415
        %v4417 = vadd.f32 %v4416, 1.0
        %v4418 = vlog2.pop %v4417
        %v4419 = vmul.f32 %v4418, 0.6931472
        %v4420 = vmul.f32 -0.5, %v4416
        %v4421 = vadd.f32 %v4420, 1.0
        %v4422 = vmul.f32 %v4421, %v4416
        %v4423 = vand.u32 2147483647, %v4416
        %vm4424 = vcmp.lt.f32.partialorder %v4423, 0.0004427343
        %v4425 = vsel %vm4424, %v4422, %v4419
        %v4426 = vadd.f32 %v4412, %v4425
        %v4427 = vadd.f32 %v4403, %v4409
        %v4428 = vmax.f32 %v4427, 0.0
        %v4429 = vand.u32 2147483647, %v4427
        %v4430 = vsub.f32 0.0, %v4429
        %v4431 = vmul.f32 %v4430, 1.442695
        %v4432 = vpow.pop %v4431
        %v4433 = vadd.f32 %v4432, 1.0
        %v4434 = vlog2.pop %v4433
        %v4435 = vmul.f32 %v4434, 0.6931472
        %v4436 = vmul.f32 -0.5, %v4432
        %v4437 = vadd.f32 %v4436, 1.0
        %v4438 = vmul.f32 %v4437, %v4432
        %v4439 = vand.u32 2147483647, %v4432
        %vm4440 = vcmp.lt.f32.partialorder %v4439, 0.0004427343
        %v4441 = vsel %vm4440, %v4438, %v4435
        %v4442 = vadd.f32 %v4428, %v4441
        %v4443 = vadd.f32 %v4404, %v4409
        %v4444 = vmax.f32 %v4443, 0.0
        %v4445 = vand.u32 2147483647, %v4443
        %v4446 = vsub.f32 0.0, %v4445
        %v4447 = vmul.f32 %v4446, 1.442695
        %v4448 = vpow.pop %v4447
        %v4449 = vadd.f32 %v4448, 1.0
        %v4450 = vlog2.pop %v4449
        %v4451 = vmul.f32 %v4450, 0.6931472
        %v4452 = vmul.f32 -0.5, %v4448
        %v4453 = vadd.f32 %v4452, 1.0
        %v4454 = vmul.f32 %v4453, %v4448
        %v4455 = vand.u32 2147483647, %v4448
        %vm4456 = vcmp.lt.f32.partialorder %v4455, 0.0004427343
        %v4457 = vsel %vm4456, %v4454, %v4451
        %v4458 = vadd.f32 %v4444, %v4457
        %v4459 = vadd.f32 %v4066, %v4409
        %v4460 = vmax.f32 %v4459, 0.0
        %v4461 = vand.u32 2147483647, %v4459
        %v4462 = vsub.f32 0.0, %v4461
        %v4463 = vmul.f32 %v4462, 1.442695
        %v4464 = vpow.pop %v4463
        %v4465 = vadd.f32 %v4464, 1.0
        %v4466 = vlog2.pop %v4465
        %v4467 = vmul.f32 %v4466, 0.6931472
        %v4468 = vmul.f32 -0.5, %v4464
        %v4469 = vadd.f32 %v4468, 1.0
        %v4470 = vmul.f32 %v4469, %v4464
        %v4471 = vand.u32 2147483647, %v4464
        %vm4472 = vcmp.lt.f32.partialorder %v4471, 0.0004427343
        %v4473 = vsel %vm4472, %v4470, %v4467
        %v4474 = vadd.f32 %v4460, %v4473
        %v4475 = vpack.c.bf16 %v4426, %v4426
        %v4476 = vpack.c.bf16 %v4442, %v4442
        %v4477 = vpack.c.bf16 %v4458, %v4458
        %v4478 = vpack.c.bf16 %v4474, %v4474
        %v4479 = vld [vmem:[%s8] sm:$0xff]
        %v4480 = vld [vmem:[%s8 + $0x8] sm:$0xff]
        %v4481 = vld [vmem:[%s8 + $0x10] sm:$0xff]
        %v4482 = vld [vmem:[%s8 + $0x18] sm:$0xf]
        %v4483 = vld [vmem:[%s8 + $0x1c] sm:$0xff]
        %v4484 = vld [vmem:[%s8 + $0x24] sm:$0xff]
        %v4485 = vld [vmem:[%s8 + $0x2c] sm:$0xff]
        %v4486 = vld [vmem:[%s8 + $0x34] sm:$0xf]
        %v4487 = vld [vmem:[%s8 + $0x38] sm:$0xff]
        %v4488 = vld [vmem:[%s8 + $0x40] sm:$0xff]
        %v4489 = vld [vmem:[%s8 + $0x48] sm:$0xff]
        %v4490 = vld [vmem:[%s8 + $0x50] sm:$0xf]
        %v4491 = vld [vmem:[%s8 + $0x54] sm:$0xff]
        %v4492 = vld [vmem:[%s8 + $0x5c] sm:$0xff]
        %v4493 = vld [vmem:[%s8 + $0x64] sm:$0xff]
        %v4494 = vld [vmem:[%s8 + $0x6c] sm:$0xf]
        %v4495 = vld [vmem:[%s8 + $0x70] sm:$0xff]
        %v4496 = vld [vmem:[%s8 + $0x78] sm:$0xff]
        %v4497 = vld [vmem:[%s8 + $0x80] sm:$0xff]
        %v4498 = vld [vmem:[%s8 + $0x88] sm:$0xf]
        %v4499 = vld [vmem:[%s8 + $0x8c] sm:$0xff]
        %v4500 = vld [vmem:[%s8 + $0x94] sm:$0xff]
        %v4501 = vld [vmem:[%s8 + $0x9c] sm:$0xff]
        %v4502 = vld [vmem:[%s8 + $0xa4] sm:$0xf]
        %v4503 = vld [vmem:[%s8 + $0xa8] sm:$0xff]
        %v4504 = vld [vmem:[%s8 + $0xb0] sm:$0xff]
        %v4505 = vld [vmem:[%s8 + $0xb8] sm:$0xff]
        %v4506 = vld [vmem:[%s8 + $0xc0] sm:$0xf]
        %v4507 = vld [vmem:[%s8 + $0xc4] sm:$0xff]
        %v4508 = vld [vmem:[%s8 + $0xcc] sm:$0xff]
        %v4509 = vld [vmem:[%s8 + $0xd4] sm:$0xff]
        %v4510 = vld [vmem:[%s8 + $0xdc] sm:$0xf]
        %v4511 = vld [vmem:[%s8 + $0xe0] sm:$0xff]
        %v4512 = vld [vmem:[%s8 + $0xe8] sm:$0xff]
        %v4513 = vld [vmem:[%s8 + $0xf0] sm:$0xff]
        %v4514 = vld [vmem:[%s8 + $0xf8] sm:$0xf]
        %v4515 = vld [vmem:[%s8 + $0xfc] sm:$0xff]
        %v4516 = vld [vmem:[%s8 + $0x104] sm:$0xff]
        %v4517 = vld [vmem:[%s8 + $0x10c] sm:$0xff]
        %v4518 = vld [vmem:[%s8 + $0x114] sm:$0xf]
        %v4519 = vld [vmem:[%s8 + $0x118] sm:$0xff]
        %v4520 = vld [vmem:[%s8 + $0x120] sm:$0xff]
        %v4521 = vld [vmem:[%s8 + $0x128] sm:$0xff]
        %v4522 = vld [vmem:[%s8 + $0x130] sm:$0xf]
        %v4523 = vld [vmem:[%s8 + $0x134] sm:$0xff]
        %v4524 = vld [vmem:[%s8 + $0x13c] sm:$0xff]
        %v4525 = vld [vmem:[%s8 + $0x144] sm:$0xff]
        %v4526 = vld [vmem:[%s8 + $0x14c] sm:$0xf]
        %v4527 = vld [vmem:[%s8 + $0x150] sm:$0xff]
        %v4528 = vld [vmem:[%s8 + $0x158] sm:$0xff]
        %v4529 = vld [vmem:[%s8 + $0x160] sm:$0xff]
        %v4530 = vld [vmem:[%s8 + $0x168] sm:$0xf]
        %v4531 = vld [vmem:[%s8 + $0x16c] sm:$0xff]
        %v4532 = vld [vmem:[%s8 + $0x174] sm:$0xff]
        %v4533 = vld [vmem:[%s8 + $0x17c] sm:$0xff]
        %v4534 = vld [vmem:[%s8 + $0x184] sm:$0xf]
        %v4535 = vld [vmem:[%s8 + $0x188] sm:$0xff]
        %v4536 = vld [vmem:[%s8 + $0x190] sm:$0xff]
        %v4537 = vld [vmem:[%s8 + $0x198] sm:$0xff]
        %v4538 = vld [vmem:[%s8 + $0x1a0] sm:$0xf]
        %v4539 = vld [vmem:[%s8 + $0x1a4] sm:$0xff]
        %v4540 = vld [vmem:[%s8 + $0x1ac] sm:$0xff]
        %v4541 = vld [vmem:[%s8 + $0x1b4] sm:$0xff]
        %v4542 = vld [vmem:[%s8 + $0x1bc] sm:$0xf]
        %v4543 = vld [vmem:[%s8 + $0x1c0] sm:$0xff]
        %v4544 = vld [vmem:[%s8 + $0x1c8] sm:$0xff]
        %v4545 = vld [vmem:[%s8 + $0x1d0] sm:$0xff]
        %v4546 = vld [vmem:[%s8 + $0x1d8] sm:$0xf]
        %v4547 = vld [vmem:[%s8 + $0x1dc] sm:$0xff]
        %v4548 = vld [vmem:[%s8 + $0x1e4] sm:$0xff]
        %v4549 = vld [vmem:[%s8 + $0x1ec] sm:$0xff]
        %v4550 = vld [vmem:[%s8 + $0x1f4] sm:$0xf]
        %v4551 = vld [vmem:[%s8 + $0x1f8] sm:$0xff]
        %v4552 = vld [vmem:[%s8 + $0x200] sm:$0xff]
        %v4553 = vld [vmem:[%s8 + $0x208] sm:$0xff]
        %v4554 = vld [vmem:[%s8 + $0x210] sm:$0xf]
        %v4555 = vld [vmem:[%s8 + $0x214] sm:$0xff]
        %v4556 = vld [vmem:[%s8 + $0x21c] sm:$0xff]
        %v4557 = vld [vmem:[%s8 + $0x224] sm:$0xff]
        %v4558 = vld [vmem:[%s8 + $0x22c] sm:$0xf]
        %v4559 = vld [vmem:[%s8 + $0x230] sm:$0xff]
        %v4560 = vld [vmem:[%s8 + $0x238] sm:$0xff]
        %v4561 = vld [vmem:[%s8 + $0x240] sm:$0xff]
        %v4562 = vld [vmem:[%s8 + $0x248] sm:$0xf]
        %v4563 = vld [vmem:[%s8 + $0x24c] sm:$0xff]
        %v4564 = vld [vmem:[%s8 + $0x254] sm:$0xff]
        %v4565 = vld [vmem:[%s8 + $0x25c] sm:$0xff]
        %v4566 = vld [vmem:[%s8 + $0x264] sm:$0xf]
        %v4567 = vld [vmem:[%s8 + $0x268] sm:$0xff]
        %v4568 = vld [vmem:[%s8 + $0x270] sm:$0xff]
        %v4569 = vld [vmem:[%s8 + $0x278] sm:$0xff]
        %v4570 = vld [vmem:[%s8 + $0x280] sm:$0xf]
        %v4571 = vld [vmem:[%s8 + $0x284] sm:$0xff]
        %v4572 = vld [vmem:[%s8 + $0x28c] sm:$0xff]
        %v4573 = vld [vmem:[%s8 + $0x294] sm:$0xff]
        %v4574 = vld [vmem:[%s8 + $0x29c] sm:$0xf]
        %v4575 = vld [vmem:[%s8 + $0x2a0] sm:$0xff]
        %v4576 = vld [vmem:[%s8 + $0x2a8] sm:$0xff]
        %v4577 = vld [vmem:[%s8 + $0x2b0] sm:$0xff]
        %v4578 = vld [vmem:[%s8 + $0x2b8] sm:$0xf]
        %v4579 = vld [vmem:[%s8 + $0x2bc] sm:$0xff]
        %v4580 = vld [vmem:[%s8 + $0x2c4] sm:$0xff]
        %v4581 = vld [vmem:[%s8 + $0x2cc] sm:$0xff]
        %v4582 = vld [vmem:[%s8 + $0x2d4] sm:$0xf]
        %v4583 = vld [vmem:[%s8 + $0x2d8] sm:$0xff]
        %v4584 = vld [vmem:[%s8 + $0x2e0] sm:$0xff]
        %v4585 = vld [vmem:[%s8 + $0x2e8] sm:$0xff]
        %v4586 = vld [vmem:[%s8 + $0x2f0] sm:$0xf]
        %v4587 = vld [vmem:[%s8 + $0x2f4] sm:$0xff]
        %v4588 = vld [vmem:[%s8 + $0x2fc] sm:$0xff]
        %v4589 = vld [vmem:[%s8 + $0x304] sm:$0xff]
        %v4590 = vld [vmem:[%s8 + $0x30c] sm:$0xf]
        %v4591 = vld [vmem:[%s8 + $0x310] sm:$0xff]
        %v4592 = vld [vmem:[%s8 + $0x318] sm:$0xff]
        %v4593 = vld [vmem:[%s8 + $0x320] sm:$0xff]
        %v4594 = vld [vmem:[%s8 + $0x328] sm:$0xf]
        %v4595 = vld [vmem:[%s8 + $0x32c] sm:$0xff]
        %v4596 = vld [vmem:[%s8 + $0x334] sm:$0xff]
        %v4597 = vld [vmem:[%s8 + $0x33c] sm:$0xff]
        %v4598 = vld [vmem:[%s8 + $0x344] sm:$0xf]
        %v4599 = vld [vmem:[%s8 + $0x348] sm:$0xff]
        %v4600 = vld [vmem:[%s8 + $0x350] sm:$0xff]
        %v4601 = vld [vmem:[%s8 + $0x358] sm:$0xff]
        %v4602 = vld [vmem:[%s8 + $0x360] sm:$0xf]
        %v4603 = vld [vmem:[%s8 + $0x364] sm:$0xff]
        %v4604 = vld [vmem:[%s8 + $0x36c] sm:$0xff]
        %v4605 = vld [vmem:[%s8 + $0x374] sm:$0xff]
        %v4606 = vld [vmem:[%s8 + $0x37c] sm:$0xf]
        %v4607 = vld [vmem:[%s8 + $0x380] sm:$0xff]
        %v4608 = vld [vmem:[%s8 + $0x388] sm:$0xff]
        %v4609 = vld [vmem:[%s8 + $0x390] sm:$0xff]
        %v4610 = vld [vmem:[%s8 + $0x398] sm:$0xf]
        %v4611 = vld [vmem:[%s8 + $0x39c] sm:$0xff]
        %v4612 = vld [vmem:[%s8 + $0x3a4] sm:$0xff]
        %v4613 = vld [vmem:[%s8 + $0x3ac] sm:$0xff]
        %v4614 = vld [vmem:[%s8 + $0x3b4] sm:$0xf]
        %v4615 = vld [vmem:[%s8 + $0x3b8] sm:$0xff]
        %v4616 = vld [vmem:[%s8 + $0x3c0] sm:$0xff]
        %v4617 = vld [vmem:[%s8 + $0x3c8] sm:$0xff]
        %v4618 = vld [vmem:[%s8 + $0x3d0] sm:$0xf]
        %v4619 = vld [vmem:[%s8 + $0x3d4] sm:$0xff]
        %v4620 = vld [vmem:[%s8 + $0x3dc] sm:$0xff]
        %v4621 = vld [vmem:[%s8 + $0x3e4] sm:$0xff]
        %v4622 = vld [vmem:[%s8 + $0x3ec] sm:$0xf]
        %v4623 = vld [vmem:[%s8 + $0x3f0] sm:$0xff]
        %v4624 = vld [vmem:[%s8 + $0x3f8] sm:$0xff]
        %v4625 = vld [vmem:[%s8 + $0x400] sm:$0xff]
        %v4626 = vld [vmem:[%s8 + $0x408] sm:$0xf]
        %v4627 = vld [vmem:[%s8 + $0x40c] sm:$0xff]
        %v4628 = vld [vmem:[%s8 + $0x414] sm:$0xff]
        %v4629 = vld [vmem:[%s8 + $0x41c] sm:$0xff]
        %v4630 = vld [vmem:[%s8 + $0x424] sm:$0xf]
        %v4631 = vld [vmem:[%s8 + $0x428] sm:$0xff]
        %v4632 = vld [vmem:[%s8 + $0x430] sm:$0xff]
        %v4633 = vld [vmem:[%s8 + $0x438] sm:$0xff]
        %v4634 = vld [vmem:[%s8 + $0x440] sm:$0xf]
        %v4635 = vld [vmem:[%s8 + $0x444] sm:$0xff]
        %v4636 = vld [vmem:[%s8 + $0x44c] sm:$0xff]
        %v4637 = vld [vmem:[%s8 + $0x454] sm:$0xff]
        %v4638 = vld [vmem:[%s8 + $0x45c] sm:$0xf]
        %v4639 = vld [vmem:[%s8 + $0x460] sm:$0xff]
        %v4640 = vld [vmem:[%s8 + $0x468] sm:$0xff]
        %v4641 = vld [vmem:[%s8 + $0x470] sm:$0xff]
        %v4642 = vld [vmem:[%s8 + $0x478] sm:$0xf]
        %v4643 = vld [vmem:[%s8 + $0x47c] sm:$0xff]
        %v4644 = vld [vmem:[%s8 + $0x484] sm:$0xff]
        %v4645 = vld [vmem:[%s8 + $0x48c] sm:$0xff]
        %v4646 = vld [vmem:[%s8 + $0x494] sm:$0xf]
        %v4647 = vld [vmem:[%s8 + $0x498] sm:$0xff]
        %v4648 = vld [vmem:[%s8 + $0x4a0] sm:$0xff]
        %v4649 = vld [vmem:[%s8 + $0x4a8] sm:$0xff]
        %v4650 = vld [vmem:[%s8 + $0x4b0] sm:$0xf]
        %v4651 = vld [vmem:[%s8 + $0x4b4] sm:$0xff]
        %v4652 = vld [vmem:[%s8 + $0x4bc] sm:$0xff]
        %v4653 = vld [vmem:[%s8 + $0x4c4] sm:$0xff]
        %v4654 = vld [vmem:[%s8 + $0x4cc] sm:$0xf]
        %v4655 = vld [vmem:[%s8 + $0x4d0] sm:$0xff]
        %v4656 = vld [vmem:[%s8 + $0x4d8] sm:$0xff]
        %v4657 = vld [vmem:[%s8 + $0x4e0] sm:$0xff]
        %v4658 = vld [vmem:[%s8 + $0x4e8] sm:$0xf]
        %v4659 = vld [vmem:[%s8 + $0x4ec] sm:$0xff]
        %v4660 = vld [vmem:[%s8 + $0x4f4] sm:$0xff]
        %v4661 = vld [vmem:[%s8 + $0x4fc] sm:$0xff]
        %v4662 = vld [vmem:[%s8 + $0x504] sm:$0xf]
        %v4663 = vld [vmem:[%s8 + $0x508] sm:$0xff]
        %v4664 = vld [vmem:[%s8 + $0x510] sm:$0xff]
        %v4665 = vld [vmem:[%s8 + $0x518] sm:$0xff]
        %v4666 = vld [vmem:[%s8 + $0x520] sm:$0xf]
        %v4667 = vld [vmem:[%s8 + $0x524] sm:$0xff]
        %v4668 = vld [vmem:[%s8 + $0x52c] sm:$0xff]
        %v4669 = vld [vmem:[%s8 + $0x534] sm:$0xff]
        %v4670 = vld [vmem:[%s8 + $0x53c] sm:$0xf]
        %v4671 = vld [vmem:[%s8 + $0x540] sm:$0xff]
        %v4672 = vld [vmem:[%s8 + $0x548] sm:$0xff]
        %v4673 = vld [vmem:[%s8 + $0x550] sm:$0xff]
        %v4674 = vld [vmem:[%s8 + $0x558] sm:$0xf]
        %v4675 = vld [vmem:[%s8 + $0x55c] sm:$0xff]
        %v4676 = vld [vmem:[%s8 + $0x564] sm:$0xff]
        %v4677 = vld [vmem:[%s8 + $0x56c] sm:$0xff]
        %v4678 = vld [vmem:[%s8 + $0x574] sm:$0xf]
        %v4679 = vld [vmem:[%s8 + $0x578] sm:$0xff]
        %v4680 = vld [vmem:[%s8 + $0x580] sm:$0xff]
        %v4681 = vld [vmem:[%s8 + $0x588] sm:$0xff]
        %v4682 = vld [vmem:[%s8 + $0x590] sm:$0xf]
        %v4683 = vld [vmem:[%s8 + $0x594] sm:$0xff]
        %v4684 = vld [vmem:[%s8 + $0x59c] sm:$0xff]
        %v4685 = vld [vmem:[%s8 + $0x5a4] sm:$0xff]
        %v4686 = vld [vmem:[%s8 + $0x5ac] sm:$0xf]
        %v4687 = vld [vmem:[%s8 + $0x5b0] sm:$0xff]
        %v4688 = vld [vmem:[%s8 + $0x5b8] sm:$0xff]
        %v4689 = vld [vmem:[%s8 + $0x5c0] sm:$0xff]
        %v4690 = vld [vmem:[%s8 + $0x5c8] sm:$0xf]
        %v4691 = vld [vmem:[%s8 + $0x5cc] sm:$0xff]
        %v4692 = vld [vmem:[%s8 + $0x5d4] sm:$0xff]
        %v4693 = vld [vmem:[%s8 + $0x5dc] sm:$0xff]
        %v4694 = vld [vmem:[%s8 + $0x5e4] sm:$0xf]
        %v4695 = vld [vmem:[%s8 + $0x5e8] sm:$0xff]
        %v4696 = vld [vmem:[%s8 + $0x5f0] sm:$0xff]
        %v4697 = vld [vmem:[%s8 + $0x5f8] sm:$0xff]
        %v4698 = vld [vmem:[%s8 + $0x600] sm:$0xf]
        %v4699 = vld [vmem:[%s8 + $0x604] sm:$0xff]
        %v4700 = vld [vmem:[%s8 + $0x60c] sm:$0xff]
        %v4701 = vld [vmem:[%s8 + $0x614] sm:$0xff]
        %v4702 = vld [vmem:[%s8 + $0x61c] sm:$0xf]
        %v4703 = vld [vmem:[%s8 + $0x620] sm:$0xff]
        %v4704 = vld [vmem:[%s8 + $0x628] sm:$0xff]
        %v4705 = vld [vmem:[%s8 + $0x630] sm:$0xff]
        %v4706 = vld [vmem:[%s8 + $0x638] sm:$0xf]
        %v4707 = vld [vmem:[%s8 + $0x63c] sm:$0xff]
        %v4708 = vld [vmem:[%s8 + $0x644] sm:$0xff]
        %v4709 = vld [vmem:[%s8 + $0x64c] sm:$0xff]
        %v4710 = vld [vmem:[%s8 + $0x654] sm:$0xf]
        %v4711 = vld [vmem:[%s8 + $0x658] sm:$0xff]
        %v4712 = vld [vmem:[%s8 + $0x660] sm:$0xff]
        %v4713 = vld [vmem:[%s8 + $0x668] sm:$0xff]
        %v4714 = vld [vmem:[%s8 + $0x670] sm:$0xf]
        %v4715 = vld [vmem:[%s8 + $0x674] sm:$0xff]
        %v4716 = vld [vmem:[%s8 + $0x67c] sm:$0xff]
        %v4717 = vld [vmem:[%s8 + $0x684] sm:$0xff]
        %v4718 = vld [vmem:[%s8 + $0x68c] sm:$0xf]
        %v4719 = vld [vmem:[%s8 + $0x690] sm:$0xff]
        %v4720 = vld [vmem:[%s8 + $0x698] sm:$0xff]
        %v4721 = vld [vmem:[%s8 + $0x6a0] sm:$0xff]
        %v4722 = vld [vmem:[%s8 + $0x6a8] sm:$0xf]
        %v4723 = vld [vmem:[%s8 + $0x6ac] sm:$0xff]
        %v4724 = vld [vmem:[%s8 + $0x6b4] sm:$0xff]
        %v4725 = vld [vmem:[%s8 + $0x6bc] sm:$0xff]
        %v4726 = vld [vmem:[%s8 + $0x6c4] sm:$0xf]
        %v4727 = vld [vmem:[%s8 + $0x6c8] sm:$0xff]
        %v4728 = vld [vmem:[%s8 + $0x6d0] sm:$0xff]
        %v4729 = vld [vmem:[%s8 + $0x6d8] sm:$0xff]
        %v4730 = vld [vmem:[%s8 + $0x6e0] sm:$0xf]
        %v4731 = vld [vmem:[%s8 + $0x6e4] sm:$0xff]
        %v4732 = vld [vmem:[%s8 + $0x6ec] sm:$0xff]
        %v4733 = vld [vmem:[%s8 + $0x6f4] sm:$0xff]
        %v4734 = vld [vmem:[%s8 + $0x6fc] sm:$0xf]
        %v4735 = vld [vmem:[%s9] sm:$0x7f]
        %v4737 = vlaneseq
        %v4738 = vshrl.u32 %v4737, 7
        %v4739 = vsub.s32 0, %v4738
        %v4740 = vrot.slane %v4735, %v4739
        %v4741 = vlaneseq
        %v4742 = vshrl.u32 %v4741, 7
        %v4743 = vsub.s32 1, %v4742
        %v4744 = vrot.slane %v4735, %v4743
        %v4745 = vlaneseq
        %v4746 = vshrl.u32 %v4745, 7
        %v4747 = vsub.s32 2, %v4746
        %v4748 = vrot.slane %v4735, %v4747
        %v4749 = vlaneseq
        %v4750 = vshrl.u32 %v4749, 7
        %v4751 = vsub.s32 3, %v4750
        %v4752 = vrot.slane %v4735, %v4751
        %v4753 = vlaneseq
        %v4754 = vshrl.u32 %v4753, 7
        %v4755 = vsub.s32 4, %v4754
        %v4756 = vrot.slane %v4735, %v4755
        %v4757 = vlaneseq
        %v4758 = vshrl.u32 %v4757, 7
        %v4759 = vsub.s32 5, %v4758
        %v4760 = vrot.slane %v4735, %v4759
        %v4761 = vlaneseq
        %v4762 = vshrl.u32 %v4761, 7
        %v4763 = vsub.s32 6, %v4762
        %v4764 = vrot.slane %v4735, %v4763
        %v5028 = vunpack.c.l.b16 %v4479
        %v5029 = vunpack.c.h.b16 %v4479
        %v5030 = vunpack.c.l.b16 %v4480
        %v5031 = vunpack.c.h.b16 %v4480
        %v5032 = vunpack.c.l.b16 %v4481
        %v5033 = vunpack.c.h.b16 %v4481
        %v5034 = vunpack.c.l.b16 %v4482
        %v5035 = vunpack.c.l.b16 %v4483
        %v5036 = vunpack.c.h.b16 %v4483
        %v5037 = vunpack.c.l.b16 %v4484
        %v5038 = vunpack.c.h.b16 %v4484
        %v5039 = vunpack.c.l.b16 %v4485
        %v5040 = vunpack.c.h.b16 %v4485
        %v5041 = vunpack.c.l.b16 %v4486
        %v5042 = vunpack.c.l.b16 %v4487
        %v5043 = vunpack.c.h.b16 %v4487
        %v5044 = vunpack.c.l.b16 %v4488
        %v5045 = vunpack.c.h.b16 %v4488
        %v5046 = vunpack.c.l.b16 %v4489
        %v5047 = vunpack.c.h.b16 %v4489
        %v5048 = vunpack.c.l.b16 %v4490
        %v5049 = vunpack.c.l.b16 %v4491
        %v5050 = vunpack.c.h.b16 %v4491
        %v5051 = vunpack.c.l.b16 %v4492
        %v5052 = vunpack.c.h.b16 %v4492
        %v5053 = vunpack.c.l.b16 %v4493
        %v5054 = vunpack.c.h.b16 %v4493
        %v5055 = vunpack.c.l.b16 %v4494
        %v5056 = vunpack.c.l.b16 %v4495
        %v5057 = vunpack.c.h.b16 %v4495
        %v5058 = vunpack.c.l.b16 %v4496
        %v5059 = vunpack.c.h.b16 %v4496
        %v5060 = vunpack.c.l.b16 %v4497
        %v5061 = vunpack.c.h.b16 %v4497
        %v5062 = vunpack.c.l.b16 %v4498
        %v5063 = vunpack.c.l.b16 %v4499
        %v5064 = vunpack.c.h.b16 %v4499
        %v5065 = vunpack.c.l.b16 %v4500
        %v5066 = vunpack.c.h.b16 %v4500
        %v5067 = vunpack.c.l.b16 %v4501
        %v5068 = vunpack.c.h.b16 %v4501
        %v5069 = vunpack.c.l.b16 %v4502
        %v5070 = vunpack.c.l.b16 %v4503
        %v5071 = vunpack.c.h.b16 %v4503
        %v5072 = vunpack.c.l.b16 %v4504
        %v5073 = vunpack.c.h.b16 %v4504
        %v5074 = vunpack.c.l.b16 %v4505
        %v5075 = vunpack.c.h.b16 %v4505
        %v5076 = vunpack.c.l.b16 %v4506
        %v5077 = vunpack.c.l.b16 %v4507
        %v5078 = vunpack.c.h.b16 %v4507
        %v5079 = vunpack.c.l.b16 %v4508
        %v5080 = vunpack.c.h.b16 %v4508
        %v5081 = vunpack.c.l.b16 %v4509
        %v5082 = vunpack.c.h.b16 %v4509
        %v5083 = vunpack.c.l.b16 %v4510
        %v5084 = vunpack.c.l.b16 %v4511
        %v5085 = vunpack.c.h.b16 %v4511
        %v5086 = vunpack.c.l.b16 %v4512
        %v5087 = vunpack.c.h.b16 %v4512
        %v5088 = vunpack.c.l.b16 %v4513
        %v5089 = vunpack.c.h.b16 %v4513
        %v5090 = vunpack.c.l.b16 %v4514
        %v5091 = vunpack.c.l.b16 %v4515
        %v5092 = vunpack.c.h.b16 %v4515
        %v5093 = vunpack.c.l.b16 %v4516
        %v5094 = vunpack.c.h.b16 %v4516
        %v5095 = vunpack.c.l.b16 %v4517
        %v5096 = vunpack.c.h.b16 %v4517
        %v5097 = vunpack.c.l.b16 %v4518
        %v5098 = vunpack.c.l.b16 %v4519
        %v5099 = vunpack.c.h.b16 %v4519
        %v5100 = vunpack.c.l.b16 %v4520
        %v5101 = vunpack.c.h.b16 %v4520
        %v5102 = vunpack.c.l.b16 %v4521
        %v5103 = vunpack.c.h.b16 %v4521
        %v5104 = vunpack.c.l.b16 %v4522
        %v5105 = vunpack.c.l.b16 %v4523
        %v5106 = vunpack.c.h.b16 %v4523
        %v5107 = vunpack.c.l.b16 %v4524
        %v5108 = vunpack.c.h.b16 %v4524
        %v5109 = vunpack.c.l.b16 %v4525
        %v5110 = vunpack.c.h.b16 %v4525
        %v5111 = vunpack.c.l.b16 %v4526
        %v5112 = vunpack.c.l.b16 %v4527
        %v5113 = vunpack.c.h.b16 %v4527
        %v5114 = vunpack.c.l.b16 %v4528
        %v5115 = vunpack.c.h.b16 %v4528
        %v5116 = vunpack.c.l.b16 %v4529
        %v5117 = vunpack.c.h.b16 %v4529
        %v5118 = vunpack.c.l.b16 %v4530
        %v5119 = vunpack.c.l.b16 %v4531
        %v5120 = vunpack.c.h.b16 %v4531
        %v5121 = vunpack.c.l.b16 %v4532
        %v5122 = vunpack.c.h.b16 %v4532
        %v5123 = vunpack.c.l.b16 %v4533
        %v5124 = vunpack.c.h.b16 %v4533
        %v5125 = vunpack.c.l.b16 %v4534
        %v5126 = vunpack.c.l.b16 %v4535
        %v5127 = vunpack.c.h.b16 %v4535
        %v5128 = vunpack.c.l.b16 %v4536
        %v5129 = vunpack.c.h.b16 %v4536
        %v5130 = vunpack.c.l.b16 %v4537
        %v5131 = vunpack.c.h.b16 %v4537
        %v5132 = vunpack.c.l.b16 %v4538
        %v5133 = vunpack.c.l.b16 %v4539
        %v5134 = vunpack.c.h.b16 %v4539
        %v5135 = vunpack.c.l.b16 %v4540
        %v5136 = vunpack.c.h.b16 %v4540
        %v5137 = vunpack.c.l.b16 %v4541
        %v5138 = vunpack.c.h.b16 %v4541
        %v5139 = vunpack.c.l.b16 %v4542
        %v5140 = vunpack.c.l.b16 %v4543
        %v5141 = vunpack.c.h.b16 %v4543
        %v5142 = vunpack.c.l.b16 %v4544
        %v5143 = vunpack.c.h.b16 %v4544
        %v5144 = vunpack.c.l.b16 %v4545
        %v5145 = vunpack.c.h.b16 %v4545
        %v5146 = vunpack.c.l.b16 %v4546
        %v5147 = vunpack.c.l.b16 %v4547
        %v5148 = vunpack.c.h.b16 %v4547
        %v5149 = vunpack.c.l.b16 %v4548
        %v5150 = vunpack.c.h.b16 %v4548
        %v5151 = vunpack.c.l.b16 %v4549
        %v5152 = vunpack.c.h.b16 %v4549
        %v5153 = vunpack.c.l.b16 %v4550
        %v5154 = vunpack.c.l.b16 %v4551
        %v5155 = vunpack.c.h.b16 %v4551
        %v5156 = vunpack.c.l.b16 %v4552
        %v5157 = vunpack.c.h.b16 %v4552
        %v5158 = vunpack.c.l.b16 %v4553
        %v5159 = vunpack.c.h.b16 %v4553
        %v5160 = vunpack.c.l.b16 %v4554
        %v5161 = vunpack.c.l.b16 %v4555
        %v5162 = vunpack.c.h.b16 %v4555
        %v5163 = vunpack.c.l.b16 %v4556
        %v5164 = vunpack.c.h.b16 %v4556
        %v5165 = vunpack.c.l.b16 %v4557
        %v5166 = vunpack.c.h.b16 %v4557
        %v5167 = vunpack.c.l.b16 %v4558
        %v5168 = vunpack.c.l.b16 %v4559
        %v5169 = vunpack.c.h.b16 %v4559
        %v5170 = vunpack.c.l.b16 %v4560
        %v5171 = vunpack.c.h.b16 %v4560
        %v5172 = vunpack.c.l.b16 %v4561
        %v5173 = vunpack.c.h.b16 %v4561
        %v5174 = vunpack.c.l.b16 %v4562
        %v5175 = vunpack.c.l.b16 %v4563
        %v5176 = vunpack.c.h.b16 %v4563
        %v5177 = vunpack.c.l.b16 %v4564
        %v5178 = vunpack.c.h.b16 %v4564
        %v5179 = vunpack.c.l.b16 %v4565
        %v5180 = vunpack.c.h.b16 %v4565
        %v5181 = vunpack.c.l.b16 %v4566
        %v5182 = vunpack.c.l.b16 %v4567
        %v5183 = vunpack.c.h.b16 %v4567
        %v5184 = vunpack.c.l.b16 %v4568
        %v5185 = vunpack.c.h.b16 %v4568
        %v5186 = vunpack.c.l.b16 %v4569
        %v5187 = vunpack.c.h.b16 %v4569
        %v5188 = vunpack.c.l.b16 %v4570
        %v5189 = vunpack.c.l.b16 %v4571
        %v5190 = vunpack.c.h.b16 %v4571
        %v5191 = vunpack.c.l.b16 %v4572
        %v5192 = vunpack.c.h.b16 %v4572
        %v5193 = vunpack.c.l.b16 %v4573
        %v5194 = vunpack.c.h.b16 %v4573
        %v5195 = vunpack.c.l.b16 %v4574
        %v5196 = vunpack.c.l.b16 %v4575
        %v5197 = vunpack.c.h.b16 %v4575
        %v5198 = vunpack.c.l.b16 %v4576
        %v5199 = vunpack.c.h.b16 %v4576
        %v5200 = vunpack.c.l.b16 %v4577
        %v5201 = vunpack.c.h.b16 %v4577
        %v5202 = vunpack.c.l.b16 %v4578
        %v5203 = vunpack.c.l.b16 %v4579
        %v5204 = vunpack.c.h.b16 %v4579
        %v5205 = vunpack.c.l.b16 %v4580
        %v5206 = vunpack.c.h.b16 %v4580
        %v5207 = vunpack.c.l.b16 %v4581
        %v5208 = vunpack.c.h.b16 %v4581
        %v5209 = vunpack.c.l.b16 %v4582
        %v5210 = vunpack.c.l.b16 %v4583
        %v5211 = vunpack.c.h.b16 %v4583
        %v5212 = vunpack.c.l.b16 %v4584
        %v5213 = vunpack.c.h.b16 %v4584
        %v5214 = vunpack.c.l.b16 %v4585
        %v5215 = vunpack.c.h.b16 %v4585
        %v5216 = vunpack.c.l.b16 %v4586
        %v5217 = vunpack.c.l.b16 %v4587
        %v5218 = vunpack.c.h.b16 %v4587
        %v5219 = vunpack.c.l.b16 %v4588
        %v5220 = vunpack.c.h.b16 %v4588
        %v5221 = vunpack.c.l.b16 %v4589
        %v5222 = vunpack.c.h.b16 %v4589
        %v5223 = vunpack.c.l.b16 %v4590
        %v5224 = vunpack.c.l.b16 %v4591
        %v5225 = vunpack.c.h.b16 %v4591
        %v5226 = vunpack.c.l.b16 %v4592
        %v5227 = vunpack.c.h.b16 %v4592
        %v5228 = vunpack.c.l.b16 %v4593
        %v5229 = vunpack.c.h.b16 %v4593
        %v5230 = vunpack.c.l.b16 %v4594
        %v5231 = vunpack.c.l.b16 %v4595
        %v5232 = vunpack.c.h.b16 %v4595
        %v5233 = vunpack.c.l.b16 %v4596
        %v5234 = vunpack.c.h.b16 %v4596
        %v5235 = vunpack.c.l.b16 %v4597
        %v5236 = vunpack.c.h.b16 %v4597
        %v5237 = vunpack.c.l.b16 %v4598
        %v5238 = vunpack.c.l.b16 %v4599
        %v5239 = vunpack.c.h.b16 %v4599
        %v5240 = vunpack.c.l.b16 %v4600
        %v5241 = vunpack.c.h.b16 %v4600
        %v5242 = vunpack.c.l.b16 %v4601
        %v5243 = vunpack.c.h.b16 %v4601
        %v5244 = vunpack.c.l.b16 %v4602
        %v5245 = vunpack.c.l.b16 %v4603
        %v5246 = vunpack.c.h.b16 %v4603
        %v5247 = vunpack.c.l.b16 %v4604
        %v5248 = vunpack.c.h.b16 %v4604
        %v5249 = vunpack.c.l.b16 %v4605
        %v5250 = vunpack.c.h.b16 %v4605
        %v5251 = vunpack.c.l.b16 %v4606
        %v5252 = vunpack.c.l.b16 %v4607
        %v5253 = vunpack.c.h.b16 %v4607
        %v5254 = vunpack.c.l.b16 %v4608
        %v5255 = vunpack.c.h.b16 %v4608
        %v5256 = vunpack.c.l.b16 %v4609
        %v5257 = vunpack.c.h.b16 %v4609
        %v5258 = vunpack.c.l.b16 %v4610
        %v5259 = vunpack.c.l.b16 %v4611
        %v5260 = vunpack.c.h.b16 %v4611
        %v5261 = vunpack.c.l.b16 %v4612
        %v5262 = vunpack.c.h.b16 %v4612
        %v5263 = vunpack.c.l.b16 %v4613
        %v5264 = vunpack.c.h.b16 %v4613
        %v5265 = vunpack.c.l.b16 %v4614
        %v5266 = vunpack.c.l.b16 %v4615
        %v5267 = vunpack.c.h.b16 %v4615
        %v5268 = vunpack.c.l.b16 %v4616
        %v5269 = vunpack.c.h.b16 %v4616
        %v5270 = vunpack.c.l.b16 %v4617
        %v5271 = vunpack.c.h.b16 %v4617
        %v5272 = vunpack.c.l.b16 %v4618
        %v5273 = vunpack.c.l.b16 %v4619
        %v5274 = vunpack.c.h.b16 %v4619
        %v5275 = vunpack.c.l.b16 %v4620
        %v5276 = vunpack.c.h.b16 %v4620
        %v5277 = vunpack.c.l.b16 %v4621
        %v5278 = vunpack.c.h.b16 %v4621
        %v5279 = vunpack.c.l.b16 %v4622
        %v5280 = vunpack.c.l.b16 %v4623
        %v5281 = vunpack.c.h.b16 %v4623
        %v5282 = vunpack.c.l.b16 %v4624
        %v5283 = vunpack.c.h.b16 %v4624
        %v5284 = vunpack.c.l.b16 %v4625
        %v5285 = vunpack.c.h.b16 %v4625
        %v5286 = vunpack.c.l.b16 %v4626
        %v5287 = vunpack.c.l.b16 %v4627
        %v5288 = vunpack.c.h.b16 %v4627
        %v5289 = vunpack.c.l.b16 %v4628
        %v5290 = vunpack.c.h.b16 %v4628
        %v5291 = vunpack.c.l.b16 %v4629
        %v5292 = vunpack.c.h.b16 %v4629
        %v5293 = vunpack.c.l.b16 %v4630
        %v5294 = vunpack.c.l.b16 %v4631
        %v5295 = vunpack.c.h.b16 %v4631
        %v5296 = vunpack.c.l.b16 %v4632
        %v5297 = vunpack.c.h.b16 %v4632
        %v5298 = vunpack.c.l.b16 %v4633
        %v5299 = vunpack.c.h.b16 %v4633
        %v5300 = vunpack.c.l.b16 %v4634
        %v5301 = vunpack.c.l.b16 %v4635
        %v5302 = vunpack.c.h.b16 %v4635
        %v5303 = vunpack.c.l.b16 %v4636
        %v5304 = vunpack.c.h.b16 %v4636
        %v5305 = vunpack.c.l.b16 %v4637
        %v5306 = vunpack.c.h.b16 %v4637
        %v5307 = vunpack.c.l.b16 %v4638
        %v5308 = vunpack.c.l.b16 %v4639
        %v5309 = vunpack.c.h.b16 %v4639
        %v5310 = vunpack.c.l.b16 %v4640
        %v5311 = vunpack.c.h.b16 %v4640
        %v5312 = vunpack.c.l.b16 %v4641
        %v5313 = vunpack.c.h.b16 %v4641
        %v5314 = vunpack.c.l.b16 %v4642
        %v5315 = vunpack.c.l.b16 %v4643
        %v5316 = vunpack.c.h.b16 %v4643
        %v5317 = vunpack.c.l.b16 %v4644
        %v5318 = vunpack.c.h.b16 %v4644
        %v5319 = vunpack.c.l.b16 %v4645
        %v5320 = vunpack.c.h.b16 %v4645
        %v5321 = vunpack.c.l.b16 %v4646
        %v5322 = vunpack.c.l.b16 %v4647
        %v5323 = vunpack.c.h.b16 %v4647
        %v5324 = vunpack.c.l.b16 %v4648
        %v5325 = vunpack.c.h.b16 %v4648
        %v5326 = vunpack.c.l.b16 %v4649
        %v5327 = vunpack.c.h.b16 %v4649
        %v5328 = vunpack.c.l.b16 %v4650
        %v5329 = vunpack.c.l.b16 %v4651
        %v5330 = vunpack.c.h.b16 %v4651
        %v5331 = vunpack.c.l.b16 %v4652
        %v5332 = vunpack.c.h.b16 %v4652
        %v5333 = vunpack.c.l.b16 %v4653
        %v5334 = vunpack.c.h.b16 %v4653
        %v5335 = vunpack.c.l.b16 %v4654
        %v5336 = vunpack.c.l.b16 %v4655
        %v5337 = vunpack.c.h.b16 %v4655
        %v5338 = vunpack.c.l.b16 %v4656
        %v5339 = vunpack.c.h.b16 %v4656
        %v5340 = vunpack.c.l.b16 %v4657
        %v5341 = vunpack.c.h.b16 %v4657
        %v5342 = vunpack.c.l.b16 %v4658
        %v5343 = vunpack.c.l.b16 %v4659
        %v5344 = vunpack.c.h.b16 %v4659
        %v5345 = vunpack.c.l.b16 %v4660
        %v5346 = vunpack.c.h.b16 %v4660
        %v5347 = vunpack.c.l.b16 %v4661
        %v5348 = vunpack.c.h.b16 %v4661
        %v5349 = vunpack.c.l.b16 %v4662
        %v5350 = vunpack.c.l.b16 %v4663
        %v5351 = vunpack.c.h.b16 %v4663
        %v5352 = vunpack.c.l.b16 %v4664
        %v5353 = vunpack.c.h.b16 %v4664
        %v5354 = vunpack.c.l.b16 %v4665
        %v5355 = vunpack.c.h.b16 %v4665
        %v5356 = vunpack.c.l.b16 %v4666
        %v5357 = vunpack.c.l.b16 %v4667
        %v5358 = vunpack.c.h.b16 %v4667
        %v5359 = vunpack.c.l.b16 %v4668
        %v5360 = vunpack.c.h.b16 %v4668
        %v5361 = vunpack.c.l.b16 %v4669
        %v5362 = vunpack.c.h.b16 %v4669
        %v5363 = vunpack.c.l.b16 %v4670
        %v5364 = vunpack.c.l.b16 %v4671
        %v5365 = vunpack.c.h.b16 %v4671
        %v5366 = vunpack.c.l.b16 %v4672
        %v5367 = vunpack.c.h.b16 %v4672
        %v5368 = vunpack.c.l.b16 %v4673
        %v5369 = vunpack.c.h.b16 %v4673
        %v5370 = vunpack.c.l.b16 %v4674
        %v5371 = vunpack.c.l.b16 %v4675
        %v5372 = vunpack.c.h.b16 %v4675
        %v5373 = vunpack.c.l.b16 %v4676
        %v5374 = vunpack.c.h.b16 %v4676
        %v5375 = vunpack.c.l.b16 %v4677
        %v5376 = vunpack.c.h.b16 %v4677
        %v5377 = vunpack.c.l.b16 %v4678
        %v5378 = vunpack.c.l.b16 %v4679
        %v5379 = vunpack.c.h.b16 %v4679
        %v5380 = vunpack.c.l.b16 %v4680
        %v5381 = vunpack.c.h.b16 %v4680
        %v5382 = vunpack.c.l.b16 %v4681
        %v5383 = vunpack.c.h.b16 %v4681
        %v5384 = vunpack.c.l.b16 %v4682
        %v5385 = vunpack.c.l.b16 %v4683
        %v5386 = vunpack.c.h.b16 %v4683
        %v5387 = vunpack.c.l.b16 %v4684
        %v5388 = vunpack.c.h.b16 %v4684
        %v5389 = vunpack.c.l.b16 %v4685
        %v5390 = vunpack.c.h.b16 %v4685
        %v5391 = vunpack.c.l.b16 %v4686
        %v5392 = vunpack.c.l.b16 %v4687
        %v5393 = vunpack.c.h.b16 %v4687
        %v5394 = vunpack.c.l.b16 %v4688
        %v5395 = vunpack.c.h.b16 %v4688
        %v5396 = vunpack.c.l.b16 %v4689
        %v5397 = vunpack.c.h.b16 %v4689
        %v5398 = vunpack.c.l.b16 %v4690
        %v5399 = vunpack.c.l.b16 %v4691
        %v5400 = vunpack.c.h.b16 %v4691
        %v5401 = vunpack.c.l.b16 %v4692
        %v5402 = vunpack.c.h.b16 %v4692
        %v5403 = vunpack.c.l.b16 %v4693
        %v5404 = vunpack.c.h.b16 %v4693
        %v5405 = vunpack.c.l.b16 %v4694
        %v5406 = vunpack.c.l.b16 %v4695
        %v5407 = vunpack.c.h.b16 %v4695
        %v5408 = vunpack.c.l.b16 %v4696
        %v5409 = vunpack.c.h.b16 %v4696
        %v5410 = vunpack.c.l.b16 %v4697
        %v5411 = vunpack.c.h.b16 %v4697
        %v5412 = vunpack.c.l.b16 %v4698
        %v5413 = vunpack.c.l.b16 %v4699
        %v5414 = vunpack.c.h.b16 %v4699
        %v5415 = vunpack.c.l.b16 %v4700
        %v5416 = vunpack.c.h.b16 %v4700
        %v5417 = vunpack.c.l.b16 %v4701
        %v5418 = vunpack.c.h.b16 %v4701
        %v5419 = vunpack.c.l.b16 %v4702
        %v5420 = vunpack.c.l.b16 %v4703
        %v5421 = vunpack.c.h.b16 %v4703
        %v5422 = vunpack.c.l.b16 %v4704
        %v5423 = vunpack.c.h.b16 %v4704
        %v5424 = vunpack.c.l.b16 %v4705
        %v5425 = vunpack.c.h.b16 %v4705
        %v5426 = vunpack.c.l.b16 %v4706
        %v5427 = vunpack.c.l.b16 %v4707
        %v5428 = vunpack.c.h.b16 %v4707
        %v5429 = vunpack.c.l.b16 %v4708
        %v5430 = vunpack.c.h.b16 %v4708
        %v5431 = vunpack.c.l.b16 %v4709
        %v5432 = vunpack.c.h.b16 %v4709
        %v5433 = vunpack.c.l.b16 %v4710
        %v5434 = vunpack.c.l.b16 %v4711
        %v5435 = vunpack.c.h.b16 %v4711
        %v5436 = vunpack.c.l.b16 %v4712
        %v5437 = vunpack.c.h.b16 %v4712
        %v5438 = vunpack.c.l.b16 %v4713
        %v5439 = vunpack.c.h.b16 %v4713
        %v5440 = vunpack.c.l.b16 %v4714
        %v5441 = vunpack.c.l.b16 %v4715
        %v5442 = vunpack.c.h.b16 %v4715
        %v5443 = vunpack.c.l.b16 %v4716
        %v5444 = vunpack.c.h.b16 %v4716
        %v5445 = vunpack.c.l.b16 %v4717
        %v5446 = vunpack.c.h.b16 %v4717
        %v5447 = vunpack.c.l.b16 %v4718
        %v5448 = vunpack.c.l.b16 %v4719
        %v5449 = vunpack.c.h.b16 %v4719
        %v5450 = vunpack.c.l.b16 %v4720
        %v5451 = vunpack.c.h.b16 %v4720
        %v5452 = vunpack.c.l.b16 %v4721
        %v5453 = vunpack.c.h.b16 %v4721
        %v5454 = vunpack.c.l.b16 %v4722
        %v5455 = vunpack.c.l.b16 %v4723
        %v5456 = vunpack.c.h.b16 %v4723
        %v5457 = vunpack.c.l.b16 %v4724
        %v5458 = vunpack.c.h.b16 %v4724
        %v5459 = vunpack.c.l.b16 %v4725
        %v5460 = vunpack.c.h.b16 %v4725
        %v5461 = vunpack.c.l.b16 %v4726
        %v5462 = vunpack.c.l.b16 %v4727
        %v5463 = vunpack.c.h.b16 %v4727
        %v5464 = vunpack.c.l.b16 %v4728
        %v5465 = vunpack.c.h.b16 %v4728
        %v5466 = vunpack.c.l.b16 %v4729
        %v5467 = vunpack.c.h.b16 %v4729
        %v5468 = vunpack.c.l.b16 %v4730
        %v5469 = vunpack.c.l.b16 %v4731
        %v5470 = vunpack.c.h.b16 %v4731
        %v5471 = vunpack.c.l.b16 %v4732
        %v5472 = vunpack.c.h.b16 %v4732
        %v5473 = vunpack.c.l.b16 %v4733
        %v5474 = vunpack.c.h.b16 %v4733
        %v5475 = vunpack.c.l.b16 %v4734
        %v5476 = vpack.c.b16 %v5035, %v5028
        %v5477 = vpack.c.b16 %v5036, %v5029
        %v5478 = vpack.c.b16 %v5037, %v5030
        %v5479 = vpack.c.b16 %v5038, %v5031
        %v5480 = vpack.c.b16 %v5039, %v5032
        %v5481 = vpack.c.b16 %v5040, %v5033
        %v5482 = vpack.c.b16 %v5041, %v5034
        %v5483 = vpack.c.b16 %v5049, %v5042
        %v5484 = vpack.c.b16 %v5050, %v5043
        %v5485 = vpack.c.b16 %v5051, %v5044
        %v5486 = vpack.c.b16 %v5052, %v5045
        %v5487 = vpack.c.b16 %v5053, %v5046
        %v5488 = vpack.c.b16 %v5054, %v5047
        %v5489 = vpack.c.b16 %v5055, %v5048
        %v5490 = vpack.c.b16 %v5063, %v5056
        %v5491 = vpack.c.b16 %v5064, %v5057
        %v5492 = vpack.c.b16 %v5065, %v5058
        %v5493 = vpack.c.b16 %v5066, %v5059
        %v5494 = vpack.c.b16 %v5067, %v5060
        %v5495 = vpack.c.b16 %v5068, %v5061
        %v5496 = vpack.c.b16 %v5069, %v5062
        %v5497 = vpack.c.b16 %v5077, %v5070
        %v5498 = vpack.c.b16 %v5078, %v5071
        %v5499 = vpack.c.b16 %v5079, %v5072
        %v5500 = vpack.c.b16 %v5080, %v5073
        %v5501 = vpack.c.b16 %v5081, %v5074
        %v5502 = vpack.c.b16 %v5082, %v5075
        %v5503 = vpack.c.b16 %v5083, %v5076
        %v5504 = vpack.c.b16 %v5091, %v5084
        %v5505 = vpack.c.b16 %v5092, %v5085
        %v5506 = vpack.c.b16 %v5093, %v5086
        %v5507 = vpack.c.b16 %v5094, %v5087
        %v5508 = vpack.c.b16 %v5095, %v5088
        %v5509 = vpack.c.b16 %v5096, %v5089
        %v5510 = vpack.c.b16 %v5097, %v5090
        %v5511 = vpack.c.b16 %v5105, %v5098
        %v5512 = vpack.c.b16 %v5106, %v5099
        %v5513 = vpack.c.b16 %v5107, %v5100
        %v5514 = vpack.c.b16 %v5108, %v5101
        %v5515 = vpack.c.b16 %v5109, %v5102
        %v5516 = vpack.c.b16 %v5110, %v5103
        %v5517 = vpack.c.b16 %v5111, %v5104
        %v5518 = vpack.c.b16 %v5119, %v5112
        %v5519 = vpack.c.b16 %v5120, %v5113
        %v5520 = vpack.c.b16 %v5121, %v5114
        %v5521 = vpack.c.b16 %v5122, %v5115
        %v5522 = vpack.c.b16 %v5123, %v5116
        %v5523 = vpack.c.b16 %v5124, %v5117
        %v5524 = vpack.c.b16 %v5125, %v5118
        %v5525 = vpack.c.b16 %v5133, %v5126
        %v5526 = vpack.c.b16 %v5134, %v5127
        %v5527 = vpack.c.b16 %v5135, %v5128
        %v5528 = vpack.c.b16 %v5136, %v5129
        %v5529 = vpack.c.b16 %v5137, %v5130
        %v5530 = vpack.c.b16 %v5138, %v5131
        %v5531 = vpack.c.b16 %v5139, %v5132
        %v5532 = vpack.c.b16 %v5147, %v5140
        %v5533 = vpack.c.b16 %v5148, %v5141
        %v5534 = vpack.c.b16 %v5149, %v5142
        %v5535 = vpack.c.b16 %v5150, %v5143
        %v5536 = vpack.c.b16 %v5151, %v5144
        %v5537 = vpack.c.b16 %v5152, %v5145
        %v5538 = vpack.c.b16 %v5153, %v5146
        %v5539 = vpack.c.b16 %v5161, %v5154
        %v5540 = vpack.c.b16 %v5162, %v5155
        %v5541 = vpack.c.b16 %v5163, %v5156
        %v5542 = vpack.c.b16 %v5164, %v5157
        %v5543 = vpack.c.b16 %v5165, %v5158
        %v5544 = vpack.c.b16 %v5166, %v5159
        %v5545 = vpack.c.b16 %v5167, %v5160
        %v5546 = vpack.c.b16 %v5175, %v5168
        %v5547 = vpack.c.b16 %v5176, %v5169
        %v5548 = vpack.c.b16 %v5177, %v5170
        %v5549 = vpack.c.b16 %v5178, %v5171
        %v5550 = vpack.c.b16 %v5179, %v5172
        %v5551 = vpack.c.b16 %v5180, %v5173
        %v5552 = vpack.c.b16 %v5181, %v5174
        %v5553 = vpack.c.b16 %v5189, %v5182
        %v5554 = vpack.c.b16 %v5190, %v5183
        %v5555 = vpack.c.b16 %v5191, %v5184
        %v5556 = vpack.c.b16 %v5192, %v5185
        %v5557 = vpack.c.b16 %v5193, %v5186
        %v5558 = vpack.c.b16 %v5194, %v5187
        %v5559 = vpack.c.b16 %v5195, %v5188
        %v5560 = vpack.c.b16 %v5203, %v5196
        %v5561 = vpack.c.b16 %v5204, %v5197
        %v5562 = vpack.c.b16 %v5205, %v5198
        %v5563 = vpack.c.b16 %v5206, %v5199
        %v5564 = vpack.c.b16 %v5207, %v5200
        %v5565 = vpack.c.b16 %v5208, %v5201
        %v5566 = vpack.c.b16 %v5209, %v5202
        %v5567 = vpack.c.b16 %v5217, %v5210
        %v5568 = vpack.c.b16 %v5218, %v5211
        %v5569 = vpack.c.b16 %v5219, %v5212
        %v5570 = vpack.c.b16 %v5220, %v5213
        %v5571 = vpack.c.b16 %v5221, %v5214
        %v5572 = vpack.c.b16 %v5222, %v5215
        %v5573 = vpack.c.b16 %v5223, %v5216
        %v5574 = vpack.c.b16 %v5231, %v5224
        %v5575 = vpack.c.b16 %v5232, %v5225
        %v5576 = vpack.c.b16 %v5233, %v5226
        %v5577 = vpack.c.b16 %v5234, %v5227
        %v5578 = vpack.c.b16 %v5235, %v5228
        %v5579 = vpack.c.b16 %v5236, %v5229
        %v5580 = vpack.c.b16 %v5237, %v5230
        %v5581 = vpack.c.b16 %v5245, %v5238
        %v5582 = vpack.c.b16 %v5246, %v5239
        %v5583 = vpack.c.b16 %v5247, %v5240
        %v5584 = vpack.c.b16 %v5248, %v5241
        %v5585 = vpack.c.b16 %v5249, %v5242
        %v5586 = vpack.c.b16 %v5250, %v5243
        %v5587 = vpack.c.b16 %v5251, %v5244
        %v5588 = vpack.c.b16 %v5259, %v5252
        %v5589 = vpack.c.b16 %v5260, %v5253
        %v5590 = vpack.c.b16 %v5261, %v5254
        %v5591 = vpack.c.b16 %v5262, %v5255
        %v5592 = vpack.c.b16 %v5263, %v5256
        %v5593 = vpack.c.b16 %v5264, %v5257
        %v5594 = vpack.c.b16 %v5265, %v5258
        %v5595 = vpack.c.b16 %v5273, %v5266
        %v5596 = vpack.c.b16 %v5274, %v5267
        %v5597 = vpack.c.b16 %v5275, %v5268
        %v5598 = vpack.c.b16 %v5276, %v5269
        %v5599 = vpack.c.b16 %v5277, %v5270
        %v5600 = vpack.c.b16 %v5278, %v5271
        %v5601 = vpack.c.b16 %v5279, %v5272
        %v5602 = vpack.c.b16 %v5287, %v5280
        %v5603 = vpack.c.b16 %v5288, %v5281
        %v5604 = vpack.c.b16 %v5289, %v5282
        %v5605 = vpack.c.b16 %v5290, %v5283
        %v5606 = vpack.c.b16 %v5291, %v5284
        %v5607 = vpack.c.b16 %v5292, %v5285
        %v5608 = vpack.c.b16 %v5293, %v5286
        %v5609 = vpack.c.b16 %v5301, %v5294
        %v5610 = vpack.c.b16 %v5302, %v5295
        %v5611 = vpack.c.b16 %v5303, %v5296
        %v5612 = vpack.c.b16 %v5304, %v5297
        %v5613 = vpack.c.b16 %v5305, %v5298
        %v5614 = vpack.c.b16 %v5306, %v5299
        %v5615 = vpack.c.b16 %v5307, %v5300
        %v5616 = vpack.c.b16 %v5315, %v5308
        %v5617 = vpack.c.b16 %v5316, %v5309
        %v5618 = vpack.c.b16 %v5317, %v5310
        %v5619 = vpack.c.b16 %v5318, %v5311
        %v5620 = vpack.c.b16 %v5319, %v5312
        %v5621 = vpack.c.b16 %v5320, %v5313
        %v5622 = vpack.c.b16 %v5321, %v5314
        %v5623 = vpack.c.b16 %v5329, %v5322
        %v5624 = vpack.c.b16 %v5330, %v5323
        %v5625 = vpack.c.b16 %v5331, %v5324
        %v5626 = vpack.c.b16 %v5332, %v5325
        %v5627 = vpack.c.b16 %v5333, %v5326
        %v5628 = vpack.c.b16 %v5334, %v5327
        %v5629 = vpack.c.b16 %v5335, %v5328
        %v5630 = vpack.c.b16 %v5343, %v5336
        %v5631 = vpack.c.b16 %v5344, %v5337
        %v5632 = vpack.c.b16 %v5345, %v5338
        %v5633 = vpack.c.b16 %v5346, %v5339
        %v5634 = vpack.c.b16 %v5347, %v5340
        %v5635 = vpack.c.b16 %v5348, %v5341
        %v5636 = vpack.c.b16 %v5349, %v5342
        %v5637 = vpack.c.b16 %v5357, %v5350
        %v5638 = vpack.c.b16 %v5358, %v5351
        %v5639 = vpack.c.b16 %v5359, %v5352
        %v5640 = vpack.c.b16 %v5360, %v5353
        %v5641 = vpack.c.b16 %v5361, %v5354
        %v5642 = vpack.c.b16 %v5362, %v5355
        %v5643 = vpack.c.b16 %v5363, %v5356
        %v5644 = vpack.c.b16 %v5371, %v5364
        %v5645 = vpack.c.b16 %v5372, %v5365
        %v5646 = vpack.c.b16 %v5373, %v5366
        %v5647 = vpack.c.b16 %v5374, %v5367
        %v5648 = vpack.c.b16 %v5375, %v5368
        %v5649 = vpack.c.b16 %v5376, %v5369
        %v5650 = vpack.c.b16 %v5377, %v5370
        %v5651 = vpack.c.b16 %v5385, %v5378
        %v5652 = vpack.c.b16 %v5386, %v5379
        %v5653 = vpack.c.b16 %v5387, %v5380
        %v5654 = vpack.c.b16 %v5388, %v5381
        %v5655 = vpack.c.b16 %v5389, %v5382
        %v5656 = vpack.c.b16 %v5390, %v5383
        %v5657 = vpack.c.b16 %v5391, %v5384
        %v5658 = vpack.c.b16 %v5399, %v5392
        %v5659 = vpack.c.b16 %v5400, %v5393
        %v5660 = vpack.c.b16 %v5401, %v5394
        %v5661 = vpack.c.b16 %v5402, %v5395
        %v5662 = vpack.c.b16 %v5403, %v5396
        %v5663 = vpack.c.b16 %v5404, %v5397
        %v5664 = vpack.c.b16 %v5405, %v5398
        %v5665 = vpack.c.b16 %v5413, %v5406
        %v5666 = vpack.c.b16 %v5414, %v5407
        %v5667 = vpack.c.b16 %v5415, %v5408
        %v5668 = vpack.c.b16 %v5416, %v5409
        %v5669 = vpack.c.b16 %v5417, %v5410
        %v5670 = vpack.c.b16 %v5418, %v5411
        %v5671 = vpack.c.b16 %v5419, %v5412
        %v5672 = vpack.c.b16 %v5427, %v5420
        %v5673 = vpack.c.b16 %v5428, %v5421
        %v5674 = vpack.c.b16 %v5429, %v5422
        %v5675 = vpack.c.b16 %v5430, %v5423
        %v5676 = vpack.c.b16 %v5431, %v5424
        %v5677 = vpack.c.b16 %v5432, %v5425
        %v5678 = vpack.c.b16 %v5433, %v5426
        %v5679 = vpack.c.b16 %v5441, %v5434
        %v5680 = vpack.c.b16 %v5442, %v5435
        %v5681 = vpack.c.b16 %v5443, %v5436
        %v5682 = vpack.c.b16 %v5444, %v5437
        %v5683 = vpack.c.b16 %v5445, %v5438
        %v5684 = vpack.c.b16 %v5446, %v5439
        %v5685 = vpack.c.b16 %v5447, %v5440
        %v5686 = vpack.c.b16 %v5455, %v5448
        %v5687 = vpack.c.b16 %v5456, %v5449
        %v5688 = vpack.c.b16 %v5457, %v5450
        %v5689 = vpack.c.b16 %v5458, %v5451
        %v5690 = vpack.c.b16 %v5459, %v5452
        %v5691 = vpack.c.b16 %v5460, %v5453
        %v5692 = vpack.c.b16 %v5461, %v5454
        %v5693 = vpack.c.b16 %v5469, %v5462
        %v5694 = vpack.c.b16 %v5470, %v5463
        %v5695 = vpack.c.b16 %v5471, %v5464
        %v5696 = vpack.c.b16 %v5472, %v5465
        %v5697 = vpack.c.b16 %v5473, %v5466
        %v5698 = vpack.c.b16 %v5474, %v5467
        %v5699 = vpack.c.b16 %v5475, %v5468
        %5924 = vmatprep.subr.bf16.mxu0 %v5526
        %5925 = vmatpush1.bf16.msra.mxu0 %v5525
        %5926 = vmatprep.subr.bf16.mxu0 %v5519
        %5927 = vmatpush1.bf16.msra.mxu0 %v5518
        %5928 = vmatprep.subr.bf16.mxu0 %v5512
        %5929 = vmatpush1.bf16.msra.mxu0 %v5511
        %5930 = vmatprep.subr.bf16.mxu0 %v5505
        %5931 = vmatpush1.bf16.msra.mxu0 %v5504
        %5932 = vmatprep.subr.bf16.mxu0 %v5498
        %5933 = vmatpush1.bf16.msra.mxu0 %v5497
        %5934 = vmatprep.subr.bf16.mxu0 %v5491
        %5935 = vmatpush1.bf16.msra.mxu0 %v5490
        %5936 = vmatprep.subr.bf16.mxu0 %v5484
        %5937 = vmatpush1.bf16.msra.mxu0 %v5483
        %5938 = vmatprep.subr.bf16.mxu0 %v5477
        %5939 = vmatpush1.bf16.msra.mxu0 %v5476
        %5940 = vmatprep.subr.bf16.mxu0 %v5582
        %5941 = vmatpush2.bf16.msra.mxu0 %v5581
        %5942 = vmatprep.subr.bf16.mxu0 %v5575
        %5943 = vmatpush2.bf16.msra.mxu0 %v5574
        %5944 = vmatprep.subr.bf16.mxu0 %v5568
        %5945 = vmatpush2.bf16.msra.mxu0 %v5567
        %5946 = vmatprep.subr.bf16.mxu0 %v5561
        %5947 = vmatpush2.bf16.msra.mxu0 %v5560
        %5948 = vmatprep.subr.bf16.mxu0 %v5554
        %5949 = vmatpush2.bf16.msra.mxu0 %v5553
        %5950 = vmatprep.subr.bf16.mxu0 %v5547
        %5951 = vmatpush2.bf16.msra.mxu0 %v5546
        %5952 = vmatprep.subr.bf16.mxu0 %v5540
        %5953 = vmatpush2.bf16.msra.mxu0 %v5539
        %5954 = vmatprep.subr.bf16.mxu0 %v5533
        %5955 = vmatpush2.bf16.msra.mxu0 %v5532
        %5956 = vmatprep.mubr.bf16.mxu0 %v4476
        %5957 = vmatmul.mubr.bf16.gmra.mxu0 %v4475
        %v5958 = vpop.f32.mrf.mxu0
        %v5959 = vadd.f32 %v4740, %v5958
        %v5960 = vpop.f32.mrf.mxu0
        %v5961 = vadd.f32 %v4744, %v5960
        %v5962 = vpop.f32.mrf.mxu0
        %v5963 = vpop.f32.mrf.mxu0
        %5964 = vdwg.mxu0
        %5965 = vmatprep.subr.bf16.mxu0 %v5638
        %5966 = vmatpush1.bf16.msra.mxu0 %v5637
        %5967 = vmatprep.subr.bf16.mxu0 %v5631
        %5968 = vmatpush1.bf16.msra.mxu0 %v5630
        %5969 = vmatprep.subr.bf16.mxu0 %v5624
        %5970 = vmatpush1.bf16.msra.mxu0 %v5623
        %5971 = vmatprep.subr.bf16.mxu0 %v5617
        %5972 = vmatpush1.bf16.msra.mxu0 %v5616
        %5973 = vmatprep.subr.bf16.mxu0 %v5610
        %5974 = vmatpush1.bf16.msra.mxu0 %v5609
        %5975 = vmatprep.subr.bf16.mxu0 %v5603
        %5976 = vmatpush1.bf16.msra.mxu0 %v5602
        %5977 = vmatprep.subr.bf16.mxu0 %v5596
        %5978 = vmatpush1.bf16.msra.mxu0 %v5595
        %5979 = vmatprep.subr.bf16.mxu0 %v5589
        %5980 = vmatpush1.bf16.msra.mxu0 %v5588
        %5981 = vmatprep.subr.bf16.mxu0 %v5694
        %5982 = vmatpush2.bf16.msra.mxu0 %v5693
        %5983 = vmatprep.subr.bf16.mxu0 %v5687
        %5984 = vmatpush2.bf16.msra.mxu0 %v5686
        %5985 = vmatprep.subr.bf16.mxu0 %v5680
        %5986 = vmatpush2.bf16.msra.mxu0 %v5679
        %5987 = vmatprep.subr.bf16.mxu0 %v5673
        %5988 = vmatpush2.bf16.msra.mxu0 %v5672
        %5989 = vmatprep.subr.bf16.mxu0 %v5666
        %5990 = vmatpush2.bf16.msra.mxu0 %v5665
        %5991 = vmatprep.subr.bf16.mxu0 %v5659
        %5992 = vmatpush2.bf16.msra.mxu0 %v5658
        %5993 = vmatprep.subr.bf16.mxu0 %v5652
        %5994 = vmatpush2.bf16.msra.mxu0 %v5651
        %5995 = vmatprep.subr.bf16.mxu0 %v5645
        %5996 = vmatpush2.bf16.msra.mxu0 %v5644
        %5997 = vmatprep.mubr.bf16.mxu0 %v4478
        %5998 = vmatmul.mubr.bf16.gmra.mxu0 %v4477
        %v5999 = vpop.f32.mrf.mxu0
        %v6000 = vadd.f32 %v5959, %v5999
        %v6001 = vpop.f32.mrf.mxu0
        %v6002 = vadd.f32 %v5961, %v6001
        %v6003 = vpop.f32.mrf.mxu0
        %v6004 = vpop.f32.mrf.mxu0
        %6005 = vdwg.mxu0
        %6006 = vmatprep.subr.bf16.mxu0 %v5528
        %6007 = vmatpush1.bf16.msra.mxu0 %v5527
        %6008 = vmatprep.subr.bf16.mxu0 %v5521
        %6009 = vmatpush1.bf16.msra.mxu0 %v5520
        %6010 = vmatprep.subr.bf16.mxu0 %v5514
        %6011 = vmatpush1.bf16.msra.mxu0 %v5513
        %6012 = vmatprep.subr.bf16.mxu0 %v5507
        %6013 = vmatpush1.bf16.msra.mxu0 %v5506
        %6014 = vmatprep.subr.bf16.mxu0 %v5500
        %6015 = vmatpush1.bf16.msra.mxu0 %v5499
        %6016 = vmatprep.subr.bf16.mxu0 %v5493
        %6017 = vmatpush1.bf16.msra.mxu0 %v5492
        %6018 = vmatprep.subr.bf16.mxu0 %v5486
        %6019 = vmatpush1.bf16.msra.mxu0 %v5485
        %6020 = vmatprep.subr.bf16.mxu0 %v5479
        %6021 = vmatpush1.bf16.msra.mxu0 %v5478
        %6022 = vmatprep.subr.bf16.mxu0 %v5584
        %6023 = vmatpush2.bf16.msra.mxu0 %v5583
        %6024 = vmatprep.subr.bf16.mxu0 %v5577
        %6025 = vmatpush2.bf16.msra.mxu0 %v5576
        %6026 = vmatprep.subr.bf16.mxu0 %v5570
        %6027 = vmatpush2.bf16.msra.mxu0 %v5569
        %6028 = vmatprep.subr.bf16.mxu0 %v5563
        %6029 = vmatpush2.bf16.msra.mxu0 %v5562
        %6030 = vmatprep.subr.bf16.mxu0 %v5556
        %6031 = vmatpush2.bf16.msra.mxu0 %v5555
        %6032 = vmatprep.subr.bf16.mxu0 %v5549
        %6033 = vmatpush2.bf16.msra.mxu0 %v5548
        %6034 = vmatprep.subr.bf16.mxu0 %v5542
        %6035 = vmatpush2.bf16.msra.mxu0 %v5541
        %6036 = vmatprep.subr.bf16.mxu0 %v5535
        %6037 = vmatpush2.bf16.msra.mxu0 %v5534
        %6038 = vmatprep.mubr.bf16.mxu0 %v4476
        %6039 = vmatmul.mubr.bf16.gmra.mxu0 %v4475
        %v6040 = vpop.f32.mrf.mxu0
        %v6041 = vadd.f32 %v4748, %v6040
        %v6042 = vpop.f32.mrf.mxu0
        %v6043 = vadd.f32 %v4752, %v6042
        %v6044 = vpop.f32.mrf.mxu0
        %v6045 = vpop.f32.mrf.mxu0
        %6046 = vdwg.mxu0
        %6047 = vmatprep.subr.bf16.mxu0 %v5640
        %6048 = vmatpush1.bf16.msra.mxu0 %v5639
        %6049 = vmatprep.subr.bf16.mxu0 %v5633
        %6050 = vmatpush1.bf16.msra.mxu0 %v5632
        %6051 = vmatprep.subr.bf16.mxu0 %v5626
        %6052 = vmatpush1.bf16.msra.mxu0 %v5625
        %6053 = vmatprep.subr.bf16.mxu0 %v5619
        %6054 = vmatpush1.bf16.msra.mxu0 %v5618
        %6055 = vmatprep.subr.bf16.mxu0 %v5612
        %6056 = vmatpush1.bf16.msra.mxu0 %v5611
        %6057 = vmatprep.subr.bf16.mxu0 %v5605
        %6058 = vmatpush1.bf16.msra.mxu0 %v5604
        %6059 = vmatprep.subr.bf16.mxu0 %v5598
        %6060 = vmatpush1.bf16.msra.mxu0 %v5597
        %6061 = vmatprep.subr.bf16.mxu0 %v5591
        %6062 = vmatpush1.bf16.msra.mxu0 %v5590
        %6063 = vmatprep.subr.bf16.mxu0 %v5696
        %6064 = vmatpush2.bf16.msra.mxu0 %v5695
        %6065 = vmatprep.subr.bf16.mxu0 %v5689
        %6066 = vmatpush2.bf16.msra.mxu0 %v5688
        %6067 = vmatprep.subr.bf16.mxu0 %v5682
        %6068 = vmatpush2.bf16.msra.mxu0 %v5681
        %6069 = vmatprep.subr.bf16.mxu0 %v5675
        %6070 = vmatpush2.bf16.msra.mxu0 %v5674
        %6071 = vmatprep.subr.bf16.mxu0 %v5668
        %6072 = vmatpush2.bf16.msra.mxu0 %v5667
        %6073 = vmatprep.subr.bf16.mxu0 %v5661
        %6074 = vmatpush2.bf16.msra.mxu0 %v5660
        %6075 = vmatprep.subr.bf16.mxu0 %v5654
        %6076 = vmatpush2.bf16.msra.mxu0 %v5653
        %6077 = vmatprep.subr.bf16.mxu0 %v5647
        %6078 = vmatpush2.bf16.msra.mxu0 %v5646
        %6079 = vmatprep.mubr.bf16.mxu0 %v4478
        %6080 = vmatmul.mubr.bf16.gmra.mxu0 %v4477
        %v6081 = vpop.f32.mrf.mxu0
        %v6082 = vadd.f32 %v6041, %v6081
        %v6083 = vpop.f32.mrf.mxu0
        %v6084 = vadd.f32 %v6043, %v6083
        %v6085 = vpop.f32.mrf.mxu0
        %v6086 = vpop.f32.mrf.mxu0
        %6087 = vdwg.mxu0
        %6088 = vmatprep.subr.bf16.mxu0 %v5530
        %6089 = vmatpush1.bf16.msra.mxu0 %v5529
        %6090 = vmatprep.subr.bf16.mxu0 %v5523
        %6091 = vmatpush1.bf16.msra.mxu0 %v5522
        %6092 = vmatprep.subr.bf16.mxu0 %v5516
        %6093 = vmatpush1.bf16.msra.mxu0 %v5515
        %6094 = vmatprep.subr.bf16.mxu0 %v5509
        %6095 = vmatpush1.bf16.msra.mxu0 %v5508
        %6096 = vmatprep.subr.bf16.mxu0 %v5502
        %6097 = vmatpush1.bf16.msra.mxu0 %v5501
        %6098 = vmatprep.subr.bf16.mxu0 %v5495
        %6099 = vmatpush1.bf16.msra.mxu0 %v5494
        %6100 = vmatprep.subr.bf16.mxu0 %v5488
        %6101 = vmatpush1.bf16.msra.mxu0 %v5487
        %6102 = vmatprep.subr.bf16.mxu0 %v5481
        %6103 = vmatpush1.bf16.msra.mxu0 %v5480
        %6104 = vmatprep.subr.bf16.mxu0 %v5586
        %6105 = vmatpush2.bf16.msra.mxu0 %v5585
        %6106 = vmatprep.subr.bf16.mxu0 %v5579
        %6107 = vmatpush2.bf16.msra.mxu0 %v5578
        %6108 = vmatprep.subr.bf16.mxu0 %v5572
        %6109 = vmatpush2.bf16.msra.mxu0 %v5571
        %6110 = vmatprep.subr.bf16.mxu0 %v5565
        %6111 = vmatpush2.bf16.msra.mxu0 %v5564
        %6112 = vmatprep.subr.bf16.mxu0 %v5558
        %6113 = vmatpush2.bf16.msra.mxu0 %v5557
        %6114 = vmatprep.subr.bf16.mxu0 %v5551
        %6115 = vmatpush2.bf16.msra.mxu0 %v5550
        %6116 = vmatprep.subr.bf16.mxu0 %v5544
        %6117 = vmatpush2.bf16.msra.mxu0 %v5543
        %6118 = vmatprep.subr.bf16.mxu0 %v5537
        %6119 = vmatpush2.bf16.msra.mxu0 %v5536
        %6120 = vmatprep.mubr.bf16.mxu0 %v4476
        %6121 = vmatmul.mubr.bf16.gmra.mxu0 %v4475
        %v6122 = vpop.f32.mrf.mxu0
        %v6123 = vadd.f32 %v4756, %v6122
        %v6124 = vpop.f32.mrf.mxu0
        %v6125 = vadd.f32 %v4760, %v6124
        %v6126 = vpop.f32.mrf.mxu0
        %v6127 = vpop.f32.mrf.mxu0
        %6128 = vdwg.mxu0
        %6129 = vmatprep.subr.bf16.mxu0 %v5642
        %6130 = vmatpush1.bf16.msra.mxu0 %v5641
        %6131 = vmatprep.subr.bf16.mxu0 %v5635
        %6132 = vmatpush1.bf16.msra.mxu0 %v5634
        %6133 = vmatprep.subr.bf16.mxu0 %v5628
        %6134 = vmatpush1.bf16.msra.mxu0 %v5627
        %6135 = vmatprep.subr.bf16.mxu0 %v5621
        %6136 = vmatpush1.bf16.msra.mxu0 %v5620
        %6137 = vmatprep.subr.bf16.mxu0 %v5614
        %6138 = vmatpush1.bf16.msra.mxu0 %v5613
        %6139 = vmatprep.subr.bf16.mxu0 %v5607
        %6140 = vmatpush1.bf16.msra.mxu0 %v5606
        %6141 = vmatprep.subr.bf16.mxu0 %v5600
        %6142 = vmatpush1.bf16.msra.mxu0 %v5599
        %6143 = vmatprep.subr.bf16.mxu0 %v5593
        %6144 = vmatpush1.bf16.msra.mxu0 %v5592
        %6145 = vmatprep.subr.bf16.mxu0 %v5698
        %6146 = vmatpush2.bf16.msra.mxu0 %v5697
        %6147 = vmatprep.subr.bf16.mxu0 %v5691
        %6148 = vmatpush2.bf16.msra.mxu0 %v5690
        %6149 = vmatprep.subr.bf16.mxu0 %v5684
        %6150 = vmatpush2.bf16.msra.mxu0 %v5683
        %6151 = vmatprep.subr.bf16.mxu0 %v5677
        %6152 = vmatpush2.bf16.msra.mxu0 %v5676
        %6153 = vmatprep.subr.bf16.mxu0 %v5670
        %6154 = vmatpush2.bf16.msra.mxu0 %v5669
        %6155 = vmatprep.subr.bf16.mxu0 %v5663
        %6156 = vmatpush2.bf16.msra.mxu0 %v5662
        %6157 = vmatprep.subr.bf16.mxu0 %v5656
        %6158 = vmatpush2.bf16.msra.mxu0 %v5655
        %6159 = vmatprep.subr.bf16.mxu0 %v5649
        %6160 = vmatpush2.bf16.msra.mxu0 %v5648
        %6161 = vmatprep.mubr.bf16.mxu0 %v4478
        %6162 = vmatmul.mubr.bf16.gmra.mxu0 %v4477
        %v6163 = vpop.f32.mrf.mxu0
        %v6164 = vadd.f32 %v6123, %v6163
        %v6165 = vpop.f32.mrf.mxu0
        %v6166 = vadd.f32 %v6125, %v6165
        %v6167 = vpop.f32.mrf.mxu0
        %v6168 = vpop.f32.mrf.mxu0
        %6169 = vdwg.mxu0
        %6170 = vmatprep.subr.bf16.mxu0 0
        %6171 = vmatpush1.bf16.msra.mxu0 %v5531
        %6172 = vmatprep.subr.bf16.mxu0 0
        %6173 = vmatpush1.bf16.msra.mxu0 %v5524
        %6174 = vmatprep.subr.bf16.mxu0 0
        %6175 = vmatpush1.bf16.msra.mxu0 %v5517
        %6176 = vmatprep.subr.bf16.mxu0 0
        %6177 = vmatpush1.bf16.msra.mxu0 %v5510
        %6178 = vmatprep.subr.bf16.mxu0 0
        %6179 = vmatpush1.bf16.msra.mxu0 %v5503
        %6180 = vmatprep.subr.bf16.mxu0 0
        %6181 = vmatpush1.bf16.msra.mxu0 %v5496
        %6182 = vmatprep.subr.bf16.mxu0 0
        %6183 = vmatpush1.bf16.msra.mxu0 %v5489
        %6184 = vmatprep.subr.bf16.mxu0 0
        %6185 = vmatpush1.bf16.msra.mxu0 %v5482
        %6186 = vmatprep.subr.bf16.mxu0 0
        %6187 = vmatpush2.bf16.msra.mxu0 %v5587
        %6188 = vmatprep.subr.bf16.mxu0 0
        %6189 = vmatpush2.bf16.msra.mxu0 %v5580
        %6190 = vmatprep.subr.bf16.mxu0 0
        %6191 = vmatpush2.bf16.msra.mxu0 %v5573
        %6192 = vmatprep.subr.bf16.mxu0 0
        %6193 = vmatpush2.bf16.msra.mxu0 %v5566
        %6194 = vmatprep.subr.bf16.mxu0 0
        %6195 = vmatpush2.bf16.msra.mxu0 %v5559
        %6196 = vmatprep.subr.bf16.mxu0 0
        %6197 = vmatpush2.bf16.msra.mxu0 %v5552
        %6198 = vmatprep.subr.bf16.mxu0 0
        %6199 = vmatpush2.bf16.msra.mxu0 %v5545
        %6200 = vmatprep.subr.bf16.mxu0 0
        %6201 = vmatpush2.bf16.msra.mxu0 %v5538
        %6202 = vmatprep.mubr.bf16.mxu0 %v4476
        %6203 = vmatmul.mubr.bf16.gmra.mxu0 %v4475
        %v6204 = vpop.f32.mrf.mxu0
        %v6205 = vadd.f32 %v4764, %v6204
        %v6206 = vpop.f32.mrf.mxu0
        %v6207 = vpop.f32.mrf.mxu0
        %v6208 = vpop.f32.mrf.mxu0
        %6209 = vdwg.mxu0
        %6210 = vmatprep.subr.bf16.mxu0 0
        %6211 = vmatpush1.bf16.msra.mxu0 %v5643
        %6212 = vmatprep.subr.bf16.mxu0 0
        %6213 = vmatpush1.bf16.msra.mxu0 %v5636
        %6214 = vmatprep.subr.bf16.mxu0 0
        %6215 = vmatpush1.bf16.msra.mxu0 %v5629
        %6216 = vmatprep.subr.bf16.mxu0 0
        %6217 = vmatpush1.bf16.msra.mxu0 %v5622
        %6218 = vmatprep.subr.bf16.mxu0 0
        %6219 = vmatpush1.bf16.msra.mxu0 %v5615
        %6220 = vmatprep.subr.bf16.mxu0 0
        %6221 = vmatpush1.bf16.msra.mxu0 %v5608
        %6222 = vmatprep.subr.bf16.mxu0 0
        %6223 = vmatpush1.bf16.msra.mxu0 %v5601
        %6224 = vmatprep.subr.bf16.mxu0 0
        %6225 = vmatpush1.bf16.msra.mxu0 %v5594
        %6226 = vmatprep.subr.bf16.mxu0 0
        %6227 = vmatpush2.bf16.msra.mxu0 %v5699
        %6228 = vmatprep.subr.bf16.mxu0 0
        %6229 = vmatpush2.bf16.msra.mxu0 %v5692
        %6230 = vmatprep.subr.bf16.mxu0 0
        %6231 = vmatpush2.bf16.msra.mxu0 %v5685
        %6232 = vmatprep.subr.bf16.mxu0 0
        %6233 = vmatpush2.bf16.msra.mxu0 %v5678
        %6234 = vmatprep.subr.bf16.mxu0 0
        %6235 = vmatpush2.bf16.msra.mxu0 %v5671
        %6236 = vmatprep.subr.bf16.mxu0 0
        %6237 = vmatpush2.bf16.msra.mxu0 %v5664
        %6238 = vmatprep.subr.bf16.mxu0 0
        %6239 = vmatpush2.bf16.msra.mxu0 %v5657
        %6240 = vmatprep.subr.bf16.mxu0 0
        %6241 = vmatpush2.bf16.msra.mxu0 %v5650
        %6242 = vmatprep.mubr.bf16.mxu0 %v4478
        %6243 = vmatmul.mubr.bf16.gmra.mxu0 %v4477
        %v6244 = vpop.f32.mrf.mxu0
        %v6245 = vadd.f32 %v6205, %v6244
        %v6246 = vpop.f32.mrf.mxu0
        %v6247 = vpop.f32.mrf.mxu0
        %v6248 = vpop.f32.mrf.mxu0
        %6249 = vdwg.mxu0
        %v6250 = vmax.f32 %v6000, 0.0
        %v6251 = vmax.f32 %v6002, 0.0
        %v6252 = vmax.f32 %v6082, 0.0
        %v6253 = vmax.f32 %v6084, 0.0
        %v6254 = vmax.f32 %v6164, 0.0
        %v6255 = vmax.f32 %v6166, 0.0
        %v6256 = vmax.f32 %v6245, 0.0
        %v6257 = vand.u32 2147483647, %v6000
        %v6258 = vand.u32 2147483647, %v6002
        %v6259 = vand.u32 2147483647, %v6082
        %v6260 = vand.u32 2147483647, %v6084
        %v6261 = vand.u32 2147483647, %v6164
        %v6262 = vand.u32 2147483647, %v6166
        %v6263 = vand.u32 2147483647, %v6245
        %v6264 = vsub.f32 0.0, %v6257
        %v6265 = vsub.f32 0.0, %v6258
        %v6266 = vsub.f32 0.0, %v6259
        %v6267 = vsub.f32 0.0, %v6260
        %v6268 = vsub.f32 0.0, %v6261
        %v6269 = vsub.f32 0.0, %v6262
        %v6270 = vsub.f32 0.0, %v6263
        %v6271 = vmul.f32 %v6264, 1.442695
        %v6272 = vpow.pop %v6271
        %v6273 = vmul.f32 %v6265, 1.442695
        %v6274 = vpow.pop %v6273
        %v6275 = vmul.f32 %v6266, 1.442695
        %v6276 = vpow.pop %v6275
        %v6277 = vmul.f32 %v6267, 1.442695
        %v6278 = vpow.pop %v6277
        %v6279 = vmul.f32 %v6268, 1.442695
        %v6280 = vpow.pop %v6279
        %v6281 = vmul.f32 %v6269, 1.442695
        %v6282 = vpow.pop %v6281
        %v6283 = vmul.f32 %v6270, 1.442695
        %v6284 = vpow.pop %v6283
        %v6285 = vadd.f32 %v6272, 1.0
        %v6286 = vlog2.pop %v6285
        %v6287 = vmul.f32 %v6286, 0.6931472
        %v6288 = vmul.f32 -0.5, %v6272
        %v6289 = vadd.f32 %v6288, 1.0
        %v6290 = vmul.f32 %v6289, %v6272
        %v6291 = vand.u32 2147483647, %v6272
        %vm6292 = vcmp.lt.f32.partialorder %v6291, 0.0004427343
        %v6293 = vsel %vm6292, %v6290, %v6287
        %v6294 = vadd.f32 %v6274, 1.0
        %v6295 = vlog2.pop %v6294
        %v6296 = vmul.f32 %v6295, 0.6931472
        %v6297 = vmul.f32 -0.5, %v6274
        %v6298 = vadd.f32 %v6297, 1.0
        %v6299 = vmul.f32 %v6298, %v6274
        %v6300 = vand.u32 2147483647, %v6274
        %vm6301 = vcmp.lt.f32.partialorder %v6300, 0.0004427343
        %v6302 = vsel %vm6301, %v6299, %v6296
        %v6303 = vadd.f32 %v6276, 1.0
        %v6304 = vlog2.pop %v6303
        %v6305 = vmul.f32 %v6304, 0.6931472
        %v6306 = vmul.f32 -0.5, %v6276
        %v6307 = vadd.f32 %v6306, 1.0
        %v6308 = vmul.f32 %v6307, %v6276
        %v6309 = vand.u32 2147483647, %v6276
        %vm6310 = vcmp.lt.f32.partialorder %v6309, 0.0004427343
        %v6311 = vsel %vm6310, %v6308, %v6305
        %v6312 = vadd.f32 %v6278, 1.0
        %v6313 = vlog2.pop %v6312
        %v6314 = vmul.f32 %v6313, 0.6931472
        %v6315 = vmul.f32 -0.5, %v6278
        %v6316 = vadd.f32 %v6315, 1.0
        %v6317 = vmul.f32 %v6316, %v6278
        %v6318 = vand.u32 2147483647, %v6278
        %vm6319 = vcmp.lt.f32.partialorder %v6318, 0.0004427343
        %v6320 = vsel %vm6319, %v6317, %v6314
        %v6321 = vadd.f32 %v6280, 1.0
        %v6322 = vlog2.pop %v6321
        %v6323 = vmul.f32 %v6322, 0.6931472
        %v6324 = vmul.f32 -0.5, %v6280
        %v6325 = vadd.f32 %v6324, 1.0
        %v6326 = vmul.f32 %v6325, %v6280
        %v6327 = vand.u32 2147483647, %v6280
        %vm6328 = vcmp.lt.f32.partialorder %v6327, 0.0004427343
        %v6329 = vsel %vm6328, %v6326, %v6323
        %v6330 = vadd.f32 %v6282, 1.0
        %v6331 = vlog2.pop %v6330
        %v6332 = vmul.f32 %v6331, 0.6931472
        %v6333 = vmul.f32 -0.5, %v6282
        %v6334 = vadd.f32 %v6333, 1.0
        %v6335 = vmul.f32 %v6334, %v6282
        %v6336 = vand.u32 2147483647, %v6282
        %vm6337 = vcmp.lt.f32.partialorder %v6336, 0.0004427343
        %v6338 = vsel %vm6337, %v6335, %v6332
        %v6339 = vadd.f32 %v6284, 1.0
        %v6340 = vlog2.pop %v6339
        %v6341 = vmul.f32 %v6340, 0.6931472
        %v6342 = vmul.f32 -0.5, %v6284
        %v6343 = vadd.f32 %v6342, 1.0
        %v6344 = vmul.f32 %v6343, %v6284
        %v6345 = vand.u32 2147483647, %v6284
        %vm6346 = vcmp.lt.f32.partialorder %v6345, 0.0004427343
        %v6347 = vsel %vm6346, %v6344, %v6341
        %v6348 = vadd.f32 %v6250, %v6293
        %v6349 = vadd.f32 %v6251, %v6302
        %v6350 = vadd.f32 %v6252, %v6311
        %v6351 = vadd.f32 %v6253, %v6320
        %v6352 = vadd.f32 %v6254, %v6329
        %v6353 = vadd.f32 %v6255, %v6338
        %v6354 = vadd.f32 %v6256, %v6347
        %6355 = vst [vmem:[%s595] sm:$0xff] %v6348
        %6356 = vst [vmem:[%s595 + $0x8] sm:$0xff] %v6349
        %6357 = vst [vmem:[%s595 + $0x10] sm:$0xff] %v6350
        %6358 = vst [vmem:[%s595 + $0x18] sm:$0xff] %v6351
        %6359 = vst [vmem:[%s595 + $0x20] sm:$0xff] %v6352
        %6360 = vst [vmem:[%s595 + $0x28] sm:$0xff] %v6353
        %vm6361 = vcmask 261120
        %6362 = vst.msk [vmem:[%s595 + $0x30] sm:$0xff] %vm6361, %v6354
        %v6363 = vpack.c.bf16 %v6348, %v6348
        %v6364 = vpack.c.bf16 %v6349, %v6349
        %v6365 = vpack.c.bf16 %v6350, %v6350
        %v6366 = vpack.c.bf16 %v6351, %v6351
        %v6367 = vpack.c.bf16 %v6352, %v6352
        %v6368 = vpack.c.bf16 %v6353, %v6353
        %v6369 = vpack.c.bf16 %v6354, %v6354
        %v6370 = vld [vmem:[%s10] sm:$0xf]
        %v6371 = vld [vmem:[%s10 + $0x4] sm:$0xf]
        %v6372 = vld [vmem:[%s10 + $0x8] sm:$0xf]
        %v6373 = vld [vmem:[%s10 + $0xc] sm:$0xf]
        %v6374 = vld [vmem:[%s10 + $0x10] sm:$0xf]
        %v6375 = vld [vmem:[%s10 + $0x14] sm:$0xf]
        %v6376 = vld [vmem:[%s10 + $0x18] sm:$0xf]
        %v6377 = vld [vmem:[%s10 + $0x1c] sm:$0xf]
        %v6378 = vld [vmem:[%s10 + $0x20] sm:$0xf]
        %v6379 = vld [vmem:[%s10 + $0x24] sm:$0xf]
        %v6380 = vld [vmem:[%s10 + $0x28] sm:$0xf]
        %v6381 = vld [vmem:[%s10 + $0x2c] sm:$0xf]
        %v6382 = vld [vmem:[%s10 + $0x30] sm:$0xf]
        %v6383 = vld [vmem:[%s10 + $0x34] sm:$0xf]
        %v6384 = vld [vmem:[%s10 + $0x38] sm:$0xf]
        %v6385 = vld [vmem:[%s10 + $0x3c] sm:$0xf]
        %v6386 = vld [vmem:[%s10 + $0x40] sm:$0xf]
        %v6387 = vld [vmem:[%s10 + $0x44] sm:$0xf]
        %v6388 = vld [vmem:[%s10 + $0x48] sm:$0xf]
        %v6389 = vld [vmem:[%s10 + $0x4c] sm:$0xf]
        %v6390 = vld [vmem:[%s10 + $0x50] sm:$0xf]
        %v6391 = vld [vmem:[%s10 + $0x54] sm:$0xf]
        %v6392 = vld [vmem:[%s10 + $0x58] sm:$0xf]
        %v6393 = vld [vmem:[%s10 + $0x5c] sm:$0xf]
        %v6394 = vld [vmem:[%s10 + $0x60] sm:$0xf]
        %v6395 = vld [vmem:[%s10 + $0x64] sm:$0xf]
        %v6396 = vld [vmem:[%s10 + $0x68] sm:$0xf]
        %v6397 = vld [vmem:[%s10 + $0x6c] sm:$0xf]
        %v6398 = vld [vmem:[%s10 + $0x70] sm:$0xf]
        %v6399 = vld [vmem:[%s10 + $0x74] sm:$0xf]
        %v6400 = vld [vmem:[%s10 + $0x78] sm:$0xf]
        %v6401 = vld [vmem:[%s10 + $0x7c] sm:$0xf]
        %v6402 = vld [vmem:[%s10 + $0x80] sm:$0xf]
        %v6403 = vld [vmem:[%s10 + $0x84] sm:$0xf]
        %v6404 = vld [vmem:[%s10 + $0x88] sm:$0xf]
        %v6405 = vld [vmem:[%s10 + $0x8c] sm:$0xf]
        %v6406 = vld [vmem:[%s10 + $0x90] sm:$0xf]
        %v6407 = vld [vmem:[%s10 + $0x94] sm:$0xf]
        %v6408 = vld [vmem:[%s10 + $0x98] sm:$0xf]
        %v6409 = vld [vmem:[%s10 + $0x9c] sm:$0xf]
        %v6410 = vld [vmem:[%s10 + $0xa0] sm:$0xf]
        %v6411 = vld [vmem:[%s10 + $0xa4] sm:$0xf]
        %v6412 = vld [vmem:[%s10 + $0xa8] sm:$0xf]
        %v6413 = vld [vmem:[%s10 + $0xac] sm:$0xf]
        %v6414 = vld [vmem:[%s10 + $0xb0] sm:$0xf]
        %v6415 = vld [vmem:[%s10 + $0xb4] sm:$0xf]
        %v6416 = vld [vmem:[%s10 + $0xb8] sm:$0xf]
        %v6417 = vld [vmem:[%s10 + $0xbc] sm:$0xf]
        %v6418 = vld [vmem:[%s10 + $0xc0] sm:$0xf]
        %v6419 = vld [vmem:[%s10 + $0xc4] sm:$0xf]
        %v6420 = vld [vmem:[%s10 + $0xc8] sm:$0xf]
        %v6421 = vld [vmem:[%s10 + $0xcc] sm:$0xf]
        %v6422 = vld [vmem:[%s10 + $0xd0] sm:$0xf]
        %v6423 = vld [vmem:[%s10 + $0xd4] sm:$0xf]
        %v6424 = vld [vmem:[%s10 + $0xd8] sm:$0xf]
        %v6425 = vld [vmem:[%s10 + $0xdc] sm:$0xf]
        %v6426 = vld [vmem:[%s10 + $0xe0] sm:$0xf]
        %v6427 = vld [vmem:[%s10 + $0xe4] sm:$0xf]
        %v6428 = vld [vmem:[%s10 + $0xe8] sm:$0xf]
        %v6429 = vld [vmem:[%s10 + $0xec] sm:$0xf]
        %v6430 = vld [vmem:[%s10 + $0xf0] sm:$0xf]
        %v6431 = vld [vmem:[%s10 + $0xf4] sm:$0xf]
        %v6432 = vld [vmem:[%s10 + $0xf8] sm:$0xf]
        %v6433 = vld [vmem:[%s10 + $0xfc] sm:$0xf]
        %v6434 = vld [vmem:[%s10 + $0x100] sm:$0xf]
        %v6435 = vld [vmem:[%s10 + $0x104] sm:$0xf]
        %v6436 = vld [vmem:[%s10 + $0x108] sm:$0xf]
        %v6437 = vld [vmem:[%s10 + $0x10c] sm:$0xf]
        %v6438 = vld [vmem:[%s10 + $0x110] sm:$0xf]
        %v6439 = vld [vmem:[%s10 + $0x114] sm:$0xf]
        %v6440 = vld [vmem:[%s10 + $0x118] sm:$0xf]
        %v6441 = vld [vmem:[%s10 + $0x11c] sm:$0xf]
        %v6442 = vld [vmem:[%s10 + $0x120] sm:$0xf]
        %v6443 = vld [vmem:[%s10 + $0x124] sm:$0xf]
        %v6444 = vld [vmem:[%s10 + $0x128] sm:$0xf]
        %v6445 = vld [vmem:[%s10 + $0x12c] sm:$0xf]
        %v6446 = vld [vmem:[%s10 + $0x130] sm:$0xf]
        %v6447 = vld [vmem:[%s10 + $0x134] sm:$0xf]
        %v6448 = vld [vmem:[%s10 + $0x138] sm:$0xf]
        %v6449 = vld [vmem:[%s10 + $0x13c] sm:$0xf]
        %v6450 = vld [vmem:[%s10 + $0x140] sm:$0xf]
        %v6451 = vld [vmem:[%s10 + $0x144] sm:$0xf]
        %v6452 = vld [vmem:[%s10 + $0x148] sm:$0xf]
        %v6453 = vld [vmem:[%s10 + $0x14c] sm:$0xf]
        %v6454 = vld [vmem:[%s10 + $0x150] sm:$0xf]
        %v6455 = vld [vmem:[%s10 + $0x154] sm:$0xf]
        %v6456 = vld [vmem:[%s10 + $0x158] sm:$0xf]
        %v6457 = vld [vmem:[%s10 + $0x15c] sm:$0xf]
        %v6458 = vld [vmem:[%s10 + $0x160] sm:$0xf]
        %v6459 = vld [vmem:[%s10 + $0x164] sm:$0xf]
        %v6460 = vld [vmem:[%s10 + $0x168] sm:$0xf]
        %v6461 = vld [vmem:[%s10 + $0x16c] sm:$0xf]
        %v6462 = vld [vmem:[%s10 + $0x170] sm:$0xf]
        %v6463 = vld [vmem:[%s10 + $0x174] sm:$0xf]
        %v6464 = vld [vmem:[%s10 + $0x178] sm:$0xf]
        %v6465 = vld [vmem:[%s10 + $0x17c] sm:$0xf]
        %v6466 = vld [vmem:[%s10 + $0x180] sm:$0xf]
        %v6467 = vld [vmem:[%s10 + $0x184] sm:$0xf]
        %v6468 = vld [vmem:[%s10 + $0x188] sm:$0xf]
        %v6469 = vld [vmem:[%s10 + $0x18c] sm:$0xf]
        %v6470 = vld [vmem:[%s11] sm:$0x1]
        %v6472 = vlaneseq
        %v6473 = vshrl.u32 %v6472, 7
        %v6474 = vsub.s32 0, %v6473
        %v6475 = vrot.slane %v6470, %v6474
        %v6577 = vunpack.c.l.b16 %v6370
        %v6578 = vunpack.c.l.b16 %v6371
        %v6579 = vunpack.c.l.b16 %v6372
        %v6580 = vunpack.c.l.b16 %v6373
        %v6581 = vunpack.c.l.b16 %v6374
        %v6582 = vunpack.c.l.b16 %v6375
        %v6583 = vunpack.c.l.b16 %v6376
        %v6584 = vunpack.c.l.b16 %v6377
        %v6585 = vunpack.c.l.b16 %v6378
        %v6586 = vunpack.c.l.b16 %v6379
        %v6587 = vunpack.c.l.b16 %v6380
        %v6588 = vunpack.c.l.b16 %v6381
        %v6589 = vunpack.c.l.b16 %v6382
        %v6590 = vunpack.c.l.b16 %v6383
        %v6591 = vunpack.c.l.b16 %v6384
        %v6592 = vunpack.c.l.b16 %v6385
        %v6593 = vunpack.c.l.b16 %v6386
        %v6594 = vunpack.c.l.b16 %v6387
        %v6595 = vunpack.c.l.b16 %v6388
        %v6596 = vunpack.c.l.b16 %v6389
        %v6597 = vunpack.c.l.b16 %v6390
        %v6598 = vunpack.c.l.b16 %v6391
        %v6599 = vunpack.c.l.b16 %v6392
        %v6600 = vunpack.c.l.b16 %v6393
        %v6601 = vunpack.c.l.b16 %v6394
        %v6602 = vunpack.c.l.b16 %v6395
        %v6603 = vunpack.c.l.b16 %v6396
        %v6604 = vunpack.c.l.b16 %v6397
        %v6605 = vunpack.c.l.b16 %v6398
        %v6606 = vunpack.c.l.b16 %v6399
        %v6607 = vunpack.c.l.b16 %v6400
        %v6608 = vunpack.c.l.b16 %v6401
        %v6609 = vunpack.c.l.b16 %v6402
        %v6610 = vunpack.c.l.b16 %v6403
        %v6611 = vunpack.c.l.b16 %v6404
        %v6612 = vunpack.c.l.b16 %v6405
        %v6613 = vunpack.c.l.b16 %v6406
        %v6614 = vunpack.c.l.b16 %v6407
        %v6615 = vunpack.c.l.b16 %v6408
        %v6616 = vunpack.c.l.b16 %v6409
        %v6617 = vunpack.c.l.b16 %v6410
        %v6618 = vunpack.c.l.b16 %v6411
        %v6619 = vunpack.c.l.b16 %v6412
        %v6620 = vunpack.c.l.b16 %v6413
        %v6621 = vunpack.c.l.b16 %v6414
        %v6622 = vunpack.c.l.b16 %v6415
        %v6623 = vunpack.c.l.b16 %v6416
        %v6624 = vunpack.c.l.b16 %v6417
        %v6625 = vunpack.c.l.b16 %v6418
        %v6626 = vunpack.c.l.b16 %v6419
        %v6627 = vunpack.c.l.b16 %v6420
        %v6628 = vunpack.c.l.b16 %v6421
        %v6629 = vunpack.c.l.b16 %v6422
        %v6630 = vunpack.c.l.b16 %v6423
        %v6631 = vunpack.c.l.b16 %v6424
        %v6632 = vunpack.c.l.b16 %v6425
        %v6633 = vunpack.c.l.b16 %v6426
        %v6634 = vunpack.c.l.b16 %v6427
        %v6635 = vunpack.c.l.b16 %v6428
        %v6636 = vunpack.c.l.b16 %v6429
        %v6637 = vunpack.c.l.b16 %v6430
        %v6638 = vunpack.c.l.b16 %v6431
        %v6639 = vunpack.c.l.b16 %v6432
        %v6640 = vunpack.c.l.b16 %v6433
        %v6641 = vunpack.c.l.b16 %v6434
        %v6642 = vunpack.c.l.b16 %v6435
        %v6643 = vunpack.c.l.b16 %v6436
        %v6644 = vunpack.c.l.b16 %v6437
        %v6645 = vunpack.c.l.b16 %v6438
        %v6646 = vunpack.c.l.b16 %v6439
        %v6647 = vunpack.c.l.b16 %v6440
        %v6648 = vunpack.c.l.b16 %v6441
        %v6649 = vunpack.c.l.b16 %v6442
        %v6650 = vunpack.c.l.b16 %v6443
        %v6651 = vunpack.c.l.b16 %v6444
        %v6652 = vunpack.c.l.b16 %v6445
        %v6653 = vunpack.c.l.b16 %v6446
        %v6654 = vunpack.c.l.b16 %v6447
        %v6655 = vunpack.c.l.b16 %v6448
        %v6656 = vunpack.c.l.b16 %v6449
        %v6657 = vunpack.c.l.b16 %v6450
        %v6658 = vunpack.c.l.b16 %v6451
        %v6659 = vunpack.c.l.b16 %v6452
        %v6660 = vunpack.c.l.b16 %v6453
        %v6661 = vunpack.c.l.b16 %v6454
        %v6662 = vunpack.c.l.b16 %v6455
        %v6663 = vunpack.c.l.b16 %v6456
        %v6664 = vunpack.c.l.b16 %v6457
        %v6665 = vunpack.c.l.b16 %v6458
        %v6666 = vunpack.c.l.b16 %v6459
        %v6667 = vunpack.c.l.b16 %v6460
        %v6668 = vunpack.c.l.b16 %v6461
        %v6669 = vunpack.c.l.b16 %v6462
        %v6670 = vunpack.c.l.b16 %v6463
        %v6671 = vunpack.c.l.b16 %v6464
        %v6672 = vunpack.c.l.b16 %v6465
        %v6673 = vunpack.c.l.b16 %v6466
        %v6674 = vunpack.c.l.b16 %v6467
        %v6675 = vunpack.c.l.b16 %v6468
        %v6676 = vunpack.c.l.b16 %v6469
        %v6677 = vpack.c.b16 %v6578, %v6577
        %v6678 = vpack.c.b16 %v6580, %v6579
        %v6679 = vpack.c.b16 %v6582, %v6581
        %v6680 = vpack.c.b16 %v6584, %v6583
        %v6681 = vpack.c.b16 %v6586, %v6585
        %v6682 = vpack.c.b16 %v6588, %v6587
        %v6683 = vpack.c.b16 %v6590, %v6589
        %v6684 = vpack.c.b16 %v6592, %v6591
        %v6685 = vpack.c.b16 %v6594, %v6593
        %v6686 = vpack.c.b16 %v6596, %v6595
        %v6687 = vpack.c.b16 %v6598, %v6597
        %v6688 = vpack.c.b16 %v6600, %v6599
        %v6689 = vpack.c.b16 %v6602, %v6601
        %v6690 = vpack.c.b16 %v6604, %v6603
        %v6691 = vpack.c.b16 %v6606, %v6605
        %v6692 = vpack.c.b16 %v6608, %v6607
        %v6693 = vpack.c.b16 %v6610, %v6609
        %v6694 = vpack.c.b16 %v6612, %v6611
        %v6695 = vpack.c.b16 %v6614, %v6613
        %v6696 = vpack.c.b16 %v6616, %v6615
        %v6697 = vpack.c.b16 %v6618, %v6617
        %v6698 = vpack.c.b16 %v6620, %v6619
        %v6699 = vpack.c.b16 %v6622, %v6621
        %v6700 = vpack.c.b16 %v6624, %v6623
        %v6701 = vpack.c.b16 %v6626, %v6625
        %v6702 = vpack.c.b16 %v6628, %v6627
        %v6703 = vpack.c.b16 %v6630, %v6629
        %v6704 = vpack.c.b16 %v6632, %v6631
        %v6705 = vpack.c.b16 %v6634, %v6633
        %v6706 = vpack.c.b16 %v6636, %v6635
        %v6707 = vpack.c.b16 %v6638, %v6637
        %v6708 = vpack.c.b16 %v6640, %v6639
        %v6709 = vpack.c.b16 %v6642, %v6641
        %v6710 = vpack.c.b16 %v6644, %v6643
        %v6711 = vpack.c.b16 %v6646, %v6645
        %v6712 = vpack.c.b16 %v6648, %v6647
        %v6713 = vpack.c.b16 %v6650, %v6649
        %v6714 = vpack.c.b16 %v6652, %v6651
        %v6715 = vpack.c.b16 %v6654, %v6653
        %v6716 = vpack.c.b16 %v6656, %v6655
        %v6717 = vpack.c.b16 %v6658, %v6657
        %v6718 = vpack.c.b16 %v6660, %v6659
        %v6719 = vpack.c.b16 %v6662, %v6661
        %v6720 = vpack.c.b16 %v6664, %v6663
        %v6721 = vpack.c.b16 %v6666, %v6665
        %v6722 = vpack.c.b16 %v6668, %v6667
        %v6723 = vpack.c.b16 %v6670, %v6669
        %v6724 = vpack.c.b16 %v6672, %v6671
        %v6725 = vpack.c.b16 %v6674, %v6673
        %v6726 = vpack.c.b16 %v6676, %v6675
        %v6778 = vsel %vm6361, %v6369, 0
        %6780 = vmatprep.subr.bf16.mxu0 0
        %6781 = vmatpush1.bf16.msra.mxu0 %v6684
        %6782 = vmatprep.subr.bf16.mxu0 0
        %6783 = vmatpush1.bf16.msra.mxu0 %v6683
        %6784 = vmatprep.subr.bf16.mxu0 0
        %6785 = vmatpush1.bf16.msra.mxu0 %v6682
        %6786 = vmatprep.subr.bf16.mxu0 0
        %6787 = vmatpush1.bf16.msra.mxu0 %v6681
        %6788 = vmatprep.subr.bf16.mxu0 0
        %6789 = vmatpush1.bf16.msra.mxu0 %v6680
        %6790 = vmatprep.subr.bf16.mxu0 0
        %6791 = vmatpush1.bf16.msra.mxu0 %v6679
        %6792 = vmatprep.subr.bf16.mxu0 0
        %6793 = vmatpush1.bf16.msra.mxu0 %v6678
        %6794 = vmatprep.subr.bf16.mxu0 0
        %6795 = vmatpush1.bf16.msra.mxu0 %v6677
        %6796 = vmatprep.subr.bf16.mxu0 0
        %6797 = vmatpush2.bf16.msra.mxu0 %v6692
        %6798 = vmatprep.subr.bf16.mxu0 0
        %6799 = vmatpush2.bf16.msra.mxu0 %v6691
        %6800 = vmatprep.subr.bf16.mxu0 0
        %6801 = vmatpush2.bf16.msra.mxu0 %v6690
        %6802 = vmatprep.subr.bf16.mxu0 0
        %6803 = vmatpush2.bf16.msra.mxu0 %v6689
        %6804 = vmatprep.subr.bf16.mxu0 0
        %6805 = vmatpush2.bf16.msra.mxu0 %v6688
        %6806 = vmatprep.subr.bf16.mxu0 0
        %6807 = vmatpush2.bf16.msra.mxu0 %v6687
        %6808 = vmatprep.subr.bf16.mxu0 0
        %6809 = vmatpush2.bf16.msra.mxu0 %v6686
        %6810 = vmatprep.subr.bf16.mxu0 0
        %6811 = vmatpush2.bf16.msra.mxu0 %v6685
        %6812 = vmatprep.mubr.bf16.mxu0 %v6364
        %6813 = vmatmul.mubr.bf16.gmra.mxu0 %v6363
        %v6814 = vpop.f32.mrf.mxu0
        %v6815 = vadd.f32 %v6475, %v6814
        %v6816 = vpop.f32.mrf.mxu0
        %v6817 = vpop.f32.mrf.mxu0
        %v6818 = vpop.f32.mrf.mxu0
        %6819 = vdwg.mxu0
        %6820 = vmatprep.subr.bf16.mxu0 0
        %6821 = vmatpush1.bf16.msra.mxu0 %v6700
        %6822 = vmatprep.subr.bf16.mxu0 0
        %6823 = vmatpush1.bf16.msra.mxu0 %v6699
        %6824 = vmatprep.subr.bf16.mxu0 0
        %6825 = vmatpush1.bf16.msra.mxu0 %v6698
        %6826 = vmatprep.subr.bf16.mxu0 0
        %6827 = vmatpush1.bf16.msra.mxu0 %v6697
        %6828 = vmatprep.subr.bf16.mxu0 0
        %6829 = vmatpush1.bf16.msra.mxu0 %v6696
        %6830 = vmatprep.subr.bf16.mxu0 0
        %6831 = vmatpush1.bf16.msra.mxu0 %v6695
        %6832 = vmatprep.subr.bf16.mxu0 0
        %6833 = vmatpush1.bf16.msra.mxu0 %v6694
        %6834 = vmatprep.subr.bf16.mxu0 0
        %6835 = vmatpush1.bf16.msra.mxu0 %v6693
        %6836 = vmatprep.subr.bf16.mxu0 0
        %6837 = vmatpush2.bf16.msra.mxu0 %v6708
        %6838 = vmatprep.subr.bf16.mxu0 0
        %6839 = vmatpush2.bf16.msra.mxu0 %v6707
        %6840 = vmatprep.subr.bf16.mxu0 0
        %6841 = vmatpush2.bf16.msra.mxu0 %v6706
        %6842 = vmatprep.subr.bf16.mxu0 0
        %6843 = vmatpush2.bf16.msra.mxu0 %v6705
        %6844 = vmatprep.subr.bf16.mxu0 0
        %6845 = vmatpush2.bf16.msra.mxu0 %v6704
        %6846 = vmatprep.subr.bf16.mxu0 0
        %6847 = vmatpush2.bf16.msra.mxu0 %v6703
        %6848 = vmatprep.subr.bf16.mxu0 0
        %6849 = vmatpush2.bf16.msra.mxu0 %v6702
        %6850 = vmatprep.subr.bf16.mxu0 0
        %6851 = vmatpush2.bf16.msra.mxu0 %v6701
        %6852 = vmatprep.mubr.bf16.mxu0 %v6366
        %6853 = vmatmul.mubr.bf16.gmra.mxu0 %v6365
        %v6854 = vpop.f32.mrf.mxu0
        %v6855 = vadd.f32 %v6815, %v6854
        %v6856 = vpop.f32.mrf.mxu0
        %v6857 = vpop.f32.mrf.mxu0
        %v6858 = vpop.f32.mrf.mxu0
        %6859 = vdwg.mxu0
        %6860 = vmatprep.subr.bf16.mxu0 0
        %6861 = vmatpush1.bf16.msra.mxu0 %v6716
        %6862 = vmatprep.subr.bf16.mxu0 0
        %6863 = vmatpush1.bf16.msra.mxu0 %v6715
        %6864 = vmatprep.subr.bf16.mxu0 0
        %6865 = vmatpush1.bf16.msra.mxu0 %v6714
        %6866 = vmatprep.subr.bf16.mxu0 0
        %6867 = vmatpush1.bf16.msra.mxu0 %v6713
        %6868 = vmatprep.subr.bf16.mxu0 0
        %6869 = vmatpush1.bf16.msra.mxu0 %v6712
        %6870 = vmatprep.subr.bf16.mxu0 0
        %6871 = vmatpush1.bf16.msra.mxu0 %v6711
        %6872 = vmatprep.subr.bf16.mxu0 0
        %6873 = vmatpush1.bf16.msra.mxu0 %v6710
        %6874 = vmatprep.subr.bf16.mxu0 0
        %6875 = vmatpush1.bf16.msra.mxu0 %v6709
        %6876 = vmatprep.subr.bf16.mxu0 0
        %6877 = vmatpush2.bf16.msra.mxu0 %v6724
        %6878 = vmatprep.subr.bf16.mxu0 0
        %6879 = vmatpush2.bf16.msra.mxu0 %v6723
        %6880 = vmatprep.subr.bf16.mxu0 0
        %6881 = vmatpush2.bf16.msra.mxu0 %v6722
        %6882 = vmatprep.subr.bf16.mxu0 0
        %6883 = vmatpush2.bf16.msra.mxu0 %v6721
        %6884 = vmatprep.subr.bf16.mxu0 0
        %6885 = vmatpush2.bf16.msra.mxu0 %v6720
        %6886 = vmatprep.subr.bf16.mxu0 0
        %6887 = vmatpush2.bf16.msra.mxu0 %v6719
        %6888 = vmatprep.subr.bf16.mxu0 0
        %6889 = vmatpush2.bf16.msra.mxu0 %v6718
        %6890 = vmatprep.subr.bf16.mxu0 0
        %6891 = vmatpush2.bf16.msra.mxu0 %v6717
        %6892 = vmatprep.mubr.bf16.mxu0 %v6368
        %6893 = vmatmul.mubr.bf16.gmra.mxu0 %v6367
        %v6894 = vpop.f32.mrf.mxu0
        %v6895 = vadd.f32 %v6855, %v6894
        %v6896 = vpop.f32.mrf.mxu0
        %v6897 = vpop.f32.mrf.mxu0
        %v6898 = vpop.f32.mrf.mxu0
        %6899 = vdwg.mxu0
        %6900 = vmatprep.subr.bf16.mxu0 0
        %6901 = vmatpush1.bf16.msra.mxu0 0
        %6902 = vmatprep.subr.bf16.mxu0 0
        %6903 = vmatpush1.bf16.msra.mxu0 0
        %6904 = vmatprep.subr.bf16.mxu0 0
        %6905 = vmatpush1.bf16.msra.mxu0 0
        %6906 = vmatprep.subr.bf16.mxu0 0
        %6907 = vmatpush1.bf16.msra.mxu0 0
        %6908 = vmatprep.subr.bf16.mxu0 0
        %6909 = vmatpush1.bf16.msra.mxu0 0
        %6910 = vmatprep.subr.bf16.mxu0 0
        %6911 = vmatpush1.bf16.msra.mxu0 0
        %6912 = vmatprep.subr.bf16.mxu0 0
        %6913 = vmatpush1.bf16.msra.mxu0 %v6726
        %6914 = vmatprep.subr.bf16.mxu0 0
        %6915 = vmatpush1.bf16.msra.mxu0 %v6725
        %6916 = vmatprep.subr.bf16.mxu0 0
        %6917 = vmatpush2.bf16.msra.mxu0 0
        %6918 = vmatprep.subr.bf16.mxu0 0
        %6919 = vmatpush2.bf16.msra.mxu0 0
        %6920 = vmatprep.subr.bf16.mxu0 0
        %6921 = vmatpush2.bf16.msra.mxu0 0
        %6922 = vmatprep.subr.bf16.mxu0 0
        %6923 = vmatpush2.bf16.msra.mxu0 0
        %6924 = vmatprep.subr.bf16.mxu0 0
        %6925 = vmatpush2.bf16.msra.mxu0 0
        %6926 = vmatprep.subr.bf16.mxu0 0
        %6927 = vmatpush2.bf16.msra.mxu0 0
        %6928 = vmatprep.subr.bf16.mxu0 0
        %6929 = vmatpush2.bf16.msra.mxu0 0
        %6930 = vmatprep.subr.bf16.mxu0 0
        %6931 = vmatpush2.bf16.msra.mxu0 0
        %6932 = vmatprep.mubr.bf16.mxu0 0
        %6933 = vmatmul.mubr.bf16.gmra.mxu0 %v6778
        %v6934 = vpop.f32.mrf.mxu0
        %v6935 = vadd.f32 %v6895, %v6934
        %v6936 = vpop.f32.mrf.mxu0
        %v6937 = vpop.f32.mrf.mxu0
        %v6938 = vpop.f32.mrf.mxu0
        %6939 = vdwg.mxu0
        %v6940 = vmul.f32 %v6935, 0.5
        %v6941 = vmul.f32 %v6940, 1.442695
        %v6942 = vpow.pop %v6941
        %v6943 = vld [vmem:[%s605] sm:$0xff]
        %6945 = vrot.lane.b32.xlu0 %v6943, 32
        %v6946 = vpop.permute.xlu0 %6945
        %v6948 = vmul.f32 %v6942, %v6946
        %6950 = vrot.lane.b32.xlu0 %v6948, 96
        %v6951 = vpop.permute.xlu0 %6950
        %v6953 = vadd.f32 %v6935, %v6951
        %6955 = vrot.lane.b32.xlu0 %v6935, 32
        %v6956 = vpop.permute.xlu0 %6955
        %v6958 = vsel %vm6361, %v6953, %v6956
        %v6959 = vsel %vm2210, %v6958, 0.0
        %6960 = vst [vmem:[%s609] sm:$0xff] %v6959
        %s6961 = sand.u32 %s298, 1
        %s6962 = scalar_lea.sflag [#allocation4], %s6961
        %s6963 = sand.u32 %s298, 1
        %s6964 = smul.addr %s6963, 56
        %s6965 = scalar_lea.vmem [#allocation3], %s6964
        %p6966 = scmp.lt.s32.totalorder %s28, 1
        %s6967 = scalar_select %p6966, %s28, 1
        %s6968 = smul.addr %s6967, 8
        %s6969 = scalar_lea.vmem %s13, %s6968
        // Predicated region
        $region107: #{aux_encoder_forward.1} parent=101 // pred_check
          %p6970 = pneg %p308
        $region108: #{aux_encoder_forward.1} parent=101 // pred_check_branch
          %6972 = sbr.rel (%p6970) target = $region110
        $region109: #{aux_encoder_forward.1} parent=101 // pred_region
          %s6974 = ssub.s32 896, 896
          %6975 = vsyncadd %s6962, %s6974
          %s6976 = smul.addr %s28, 7
          %s6977 = smul.addr %s6976, 128
          %s6978 = scalar_lea.hbm %s12, %s6977
          %s6980 = sshll.u32 %s6965, 4
          %s6981 = int_to_ptr.vmem [resolvable:$true] %s6980
          %6983 = dma.vmem_to_hbm [thread:$0]  %s6981, 896, %s6978, %s6962
        $region110: #{aux_encoder_forward.1} parent=101 // pred_fallthru
          _
        // Predicated region
        $region111: #{aux_encoder_forward.1} parent=101 // pred_check
          %p6984 = pneg %p334
        $region112: #{aux_encoder_forward.1} parent=101 // pred_check_branch
          %6986 = sbr.rel (%p6984) target = $region114
        $region113: #{aux_encoder_forward.1} parent=101 // pred_region
          _
        $region114: #{aux_encoder_forward.1} parent=101 // pred_fallthru
          _
      $region102: #{aux_encoder_forward.1} parent=5 // pred_fallthru
        _
      %p6987 = scmp.le.s32.totalorder 2, %s23
      // Predicated region
      $region115: #{aux_encoder_forward.1} parent=5 // pred_check
        %p6988 = pneg %p6987
      $region116: #{aux_encoder_forward.1} parent=5 // pred_check_branch
        %6990 = sbr.rel (%p6988) target = $region118
      $region117: #{aux_encoder_forward.1} parent=5 // pred_region
        %s6991 = ssub.s32 %s23, 2
        // Predicated region
        $region119: #{aux_encoder_forward.1} parent=117 // pred_check
          %p6992 = pneg %p314
        $region120: #{aux_encoder_forward.1} parent=117 // pred_check_branch
          %6994 = sbr.rel (%p6992) target = $region122
        $region121: #{aux_encoder_forward.1} parent=117 // pred_region
          %s6995 = sand.u32 %s299, 1
          %s6996 = scalar_lea.sflag [#allocation4], %s6995
          %s6997 = sand.u32 %s299, 1
          %s6998 = smul.addr %s6997, 56
          %s6999 = scalar_lea.vmem [#allocation3], %s6998
          %7000 = dma.done %s6996, 896
        $region122: #{aux_encoder_forward.1} parent=117 // pred_fallthru
          _
        // Predicated region
        $region123: #{aux_encoder_forward.1} parent=117 // pred_check
          %p7001 = pneg %p340
        $region124: #{aux_encoder_forward.1} parent=117 // pred_check_branch
          %7003 = sbr.rel (%p7001) target = $region126
        $region125: #{aux_encoder_forward.1} parent=117 // pred_region
          %p7004 = scmp.lt.s32.totalorder %s29, 1
          %s7005 = scalar_select %p7004, %s29, 1
          %s7006 = smul.addr %s7005, 8
          %s7007 = scalar_lea.vmem %s13, %s7006
        $region126: #{aux_encoder_forward.1} parent=117 // pred_fallthru
          _
      $region118: #{aux_encoder_forward.1} parent=5 // pred_fallthru
        _
    $region6: #{aux_encoder_forward.1} parent=1 // loop_footer
      %s27 = sadd.s32 1, %s23
    $region7: #{aux_encoder_forward.1} parent=1 // loop_footer_branch
      %22 = sbr.rel target = $region3
    $region8: #{aux_encoder_forward.1} parent=1 // loop_exit
      _
    %7008 = vsyncpa [#allocation4], 1
    %s7009 = scalar_lea.sflag [#allocation4], 1
    %7010 = vsyncpa %s7009, 1

</llo_original>
